<compile_context>
chip_gen: v6e
topology: v6e:2x2x1
jax: 0.10.0
libtpu: 0.0.40
codegen_flags: <defaults>
</compile_context>

<pallas_src>
import jax
import jax.numpy as jnp
from jax import lax
from jax.experimental import pallas as pl
from jax.experimental.pallas import tpu as pltpu


def _round_up(x, m):
    return (x + m - 1) // m * m


# -------------------- kernel 1: category MLP (gridded over rows) --------------------
def _category_mlp_kernel(x_ref, wl_ref, bl_ref, w0_ref, b0_ref,
                         w1_ref, b1_ref, w2_ref, b2_ref, o_ref):
    # self.layer (no ReLU), then 3 x (Linear + ReLU).
    # bf16 weights and bf16 inter-layer activations; accumulation stays f32.
    h = (jnp.dot(x_ref[...].astype(jnp.bfloat16), wl_ref[...],
                 preferred_element_type=jnp.float32) + bl_ref[...]
         ).astype(jnp.bfloat16)
    h = jnp.maximum(jnp.dot(h, w0_ref[...], preferred_element_type=jnp.float32)
                    + b0_ref[...], 0.0).astype(jnp.bfloat16)
    h = jnp.maximum(jnp.dot(h, w1_ref[...], preferred_element_type=jnp.float32)
                    + b1_ref[...], 0.0).astype(jnp.bfloat16)
    h = jnp.maximum(jnp.dot(h, w2_ref[...], preferred_element_type=jnp.float32)
                    + b2_ref[...], 0.0)
    o_ref[...] = h.astype(o_ref.dtype)


def category_mlp(x, wl, bl, w0, b0, w1, b1, w2, b2, *, tile_m=512):
    # VMEM @ tile_m=512: 2x-buffered (512,E)+(512,128) f32 IO (~0.7 MiB),
    # single-buffered bf16 weights (~1.4 MiB), (512,1024) f32 accum (~2 MiB)
    # -> comfortably under v7x's 32 MiB scoped / 64 MiB physical VMEM.
    m, e = x.shape
    out_f = w2.shape[1]
    tm = min(tile_m, _round_up(m, 8))          # rows per tile, multiple of 8
    m_pad = _round_up(m, tm)
    if m_pad != m:
        x = jnp.pad(x, ((0, m_pad - m), (0, 0)))

    def resident(arr):
        # constant index_map -> fetched once; single-buffered to halve weight VMEM.
        return pl.BlockSpec(arr.shape, lambda i: (0, 0),
                            pipeline_mode=pl.Buffered(buffer_count=1))

    out = pl.pallas_call(
        _category_mlp_kernel,
        out_shape=jax.ShapeDtypeStruct((m_pad, out_f), jnp.float32),
        grid=(m_pad // tm,),
        in_specs=[pl.BlockSpec((tm, e), lambda i: (i, 0)),
                  resident(wl), resident(bl), resident(w0), resident(b0),
                  resident(w1), resident(b1), resident(w2), resident(b2)],
        out_specs=pl.BlockSpec((tm, out_f), lambda i: (i, 0)),
        compiler_params=pltpu.CompilerParams(
            dimension_semantics=("parallel",),
            vmem_limit_bytes=32 * 1024 * 1024),
    )(x, wl, bl, w0, b0, w1, b1, w2, b2)
    return out[:m]


# -------------------- kernel 2: fused BiLSTM (2 layers) + LayerNorm --------------------
def bilstm_layer_norm(emb, lstm_params, ln_gamma, ln_beta, *, batch_tile=None):
    """emb: (B, T, E) f32 batch-first embedded context -> (B, T, 2H) f32."""
    B, T, E = emb.shape
    assert len(lstm_params) == 2, "fused kernel implements nn.LSTM's 2-layer default"
    (wih0f, whh0f, b0f), (wih0b, whh0b, b0b) = lstm_params[0]
    (wih1f, whh1f, b1f), (wih1b, whh1b, b1b) = lstm_params[1]
    H = whh0f.shape[0]                 # per-direction hidden size
    H2, G = 2 * H, 4 * H

    # Batch tiling: >=2 grid steps whenever B >= 2 so v7x's two TensorCores both
    # work; the per-tile recurrences are independent, so "parallel" is valid.
    tb = batch_tile if batch_tile is not None else min(8, max(1, B // 2))
    nb = -(-B // tb)
    B_pad = nb * tb
    if B_pad != B:
        emb = jnp.pad(emb, ((0, B_pad - B), (0, 0), (0, 0)))

    # Pack into a 2-D slab whose rows are time-major WITHIN each batch tile:
    #   row = b_tile*(T*tb) + t*tb + j      (pure reshape when tb == 1).
    x2d = jnp.transpose(emb.reshape(nb, tb, T, E), (0, 2, 1, 3)).reshape(nb * T * tb, E)

    # Fuse the two directions' input projections along lanes: [fwd 4H | bwd 4H]
    # (128-lane-wide output here). Weights in bf16 (MXU-native), biases f32.
    bf16 = jnp.bfloat16
    w0c = jnp.concatenate([wih0f, wih0b], axis=1).astype(bf16)     # (E, 8H)
    b0c = jnp.concatenate([b0f, b0b], axis=1)                      # (1, 8H)
    w1c = jnp.concatenate([wih1f, wih1b], axis=1).astype(bf16)     # (2H, 8H)
    b1c = jnp.concatenate([b1f, b1b], axis=1)                      # (1, 8H)
    whh0f_, whh0b_ = whh0f.astype(bf16), whh0b.astype(bf16)        # (H, 4H)
    whh1f_, whh1b_ = whh1f.astype(bf16), whh1b.astype(bf16)

    def kernel(x_ref, w0c_ref, whh0f_ref, whh0b_ref, b0c_ref,
               w1c_ref, whh1f_ref, whh1b_ref, b1c_ref, lng_ref, lnb_ref,
               o_ref, xpf, xpb, hf, hb):

        def align(i):
            return pl.multiple_of(i, tb) if tb % 8 == 0 else i

        def lstm_cell(g, c):
            # PyTorch gate order [i | f | g | o] fused along lanes.
            # TODO(synk): H-wide lane slices cost XLU selects per step; for large
            # H a sublane-major gate layout would make these free views.
            i_g = jax.nn.sigmoid(g[:, 0 * H:1 * H])
            f_g = jax.nn.sigmoid(g[:, 1 * H:2 * H])
            g_g = jnp.tanh(g[:, 2 * H:3 * H])
            o_g = jax.nn.sigmoid(g[:, 3 * H:4 * H])
            c = f_g * c + i_g * g_g
            return o_g * jnp.tanh(c), c

        def run_layer(whh_f, whh_b):
            # Both directions fused in ONE serial time loop: step s handles the
            # forward t=s and the backward t=T-1-s; both h@W_hh pushes are issued
            # per step (bf16 x bf16, f32 accumulation).
            def step(s, carry):
                h_f, c_f, h_b, c_b = carry
                rf = align(s * tb)
                rb = align((T - 1 - s) * tb)
                gf = xpf[pl.ds(rf, tb), :] + jnp.dot(
                    h_f.astype(jnp.bfloat16), whh_f,
                    preferred_element_type=jnp.float32)
                gb = xpb[pl.ds(rb, tb), :] + jnp.dot(
                    h_b.astype(jnp.bfloat16), whh_b,
                    preferred_element_type=jnp.float32)
                h_f, c_f = lstm_cell(gf, c_f)
                h_b, c_b = lstm_cell(gb, c_b)
                # lane-dense (column-0) per-direction stores, no lane offsets
                hf[pl.ds(rf, tb), :] = h_f
                hb[pl.ds(rb, tb), :] = h_b
                return h_f, c_f, h_b, c_b

            z = jnp.zeros((tb, H), jnp.float32)
            lax.fori_loop(0, T, step, (z, z, z, z), unroll=True)

        # ---- layer 0: hoisted fused-direction input projection (one matmul) ----
        proj = (jnp.dot(x_ref[...].astype(jnp.bfloat16), w0c_ref[...],
                        preferred_element_type=jnp.float32) + b0c_ref[...])
        xpf[...] = proj[:, :G]
        xpb[...] = proj[:, G:]
        run_layer(whh0f_ref[...], whh0b_ref[...])
        # TODO(synk): nn.LSTM inter-layer dropout is train-mode only; eval here.

        # ---- layer 1: input is [h_fwd | h_bwd]; split the fused W_ih by rows ----
        proj = (jnp.dot(hf[...].astype(jnp.bfloat16), w1c_ref[:H, :],
                        preferred_element_type=jnp.float32)
                + jnp.dot(hb[...].astype(jnp.bfloat16), w1c_ref[H:, :],
                          preferred_element_type=jnp.float32)
                + b1c_ref[...])
        xpf[...] = proj[:, :G]
        xpb[...] = proj[:, G:]
        run_layer(whh1f_ref[...], whh1b_ref[...])

        # ---- LayerNorm epilogue + batch-first writeback ----
        y = jnp.concatenate([hf[...], hb[...]], axis=-1)            # (T*tb, 2H)
        mean = jnp.mean(y, axis=-1, keepdims=True)
        yc = y - mean
        var = jnp.mean(yc * yc, axis=-1, keepdims=True)             # biased (PyTorch LN)
        y = yc * lax.rsqrt(var + 1e-5) * lng_ref[...] + lnb_ref[...]
        for t in range(T):                                          # (tb, T, 2H) batch-first
            o_ref[:, t, :] = y[t * tb:(t + 1) * tb, :].astype(o_ref.dtype)

    def resident(arr):
        return pl.BlockSpec(arr.shape, lambda b: (0, 0),
                            pipeline_mode=pl.Buffered(buffer_count=1))

    out = pl.pallas_call(
        kernel,
        out_shape=jax.ShapeDtypeStruct((B_pad, T, H2), jnp.float32),
        grid=(nb,),
        in_specs=[pl.BlockSpec((T * tb, E), lambda b: (b, 0)),
                  resident(w0c), resident(whh0f_), resident(whh0b_), resident(b0c),
                  resident(w1c), resident(whh1f_), resident(whh1b_), resident(b1c),
                  resident(ln_gamma), resident(ln_beta)],
        out_specs=pl.BlockSpec((tb, T, H2), lambda b: (b, 0, 0)),
        scratch_shapes=[pltpu.VMEM((T * tb, G), jnp.float32),   # fwd x-projection
                        pltpu.VMEM((T * tb, G), jnp.float32),   # bwd x-projection
                        pltpu.VMEM((T * tb, H), jnp.float32),   # fwd hidden slab
                        pltpu.VMEM((T * tb, H), jnp.float32)],  # bwd hidden slab
        compiler_params=pltpu.CompilerParams(
            dimension_semantics=("parallel",),
            vmem_limit_bytes=32 * 1024 * 1024),
    )(x2d, w0c, whh0f_, whh0b_, b0c, w1c, whh1f_, whh1b_, b1c, ln_gamma, ln_beta)
    return out[:B]


# -------------------- parameters (deterministic, synthetic) --------------------
def init_params(key, vocab, embed_dim, lstm_hidden_dim, lstm_num_layers,
                in_feature, out_feature):
    H = lstm_hidden_dim // 2
    keys = iter(jax.random.split(key, 64))

    def mat(shape, fan_in):
        return jax.random.normal(next(keys), shape, jnp.float32) / jnp.sqrt(float(fan_in))

    params = {}
    # two separate embedding tables; padding_idx=0 -> row 0 is zero.
    params["emb_cat"] = mat((vocab, embed_dim), embed_dim).at[0].set(0.0)
    params["emb_ctx"] = mat((vocab, embed_dim), embed_dim).at[0].set(0.0)

    # category MLP: weights stored (in, out), bf16 (MXU-native); biases f32.
    dims = [(embed_dim, in_feature), (in_feature, 512), (512, 1024), (1024, out_feature)]
    params["mlp"] = [(mat((din, dout), din).astype(jnp.bfloat16),
                      jnp.full((1, dout), 0.01, jnp.float32)) for din, dout in dims]

    # bidirectional LSTM; nn.LSTM always gets its default of 2 layers in the
    # original module wiring.  Per direction, gates fused along the output axis
    # in PyTorch order [i | f | g | o]:
    #   W_ih (in, 4H), W_hh (H, 4H), b = b_ih + b_hh (1, 4H); stored f32,
    #   cast/fused to bf16 in the wrapper.
    lstm = []
    for layer in range(2):
        in_dim = embed_dim if layer == 0 else lstm_hidden_dim
        dirs = []
        for _ in range(2):
            wih = mat((in_dim, 4 * H), in_dim)
            whh = mat((H, 4 * H), H)
            b = mat((1, 4 * H), H) * 0.1
            dirs.append((wih, whh, b))
        lstm.append(tuple(dirs))
    params["lstm"] = lstm

    params["ln_gamma"] = jnp.ones((1, lstm_hidden_dim), jnp.float32)
    params["ln_beta"] = jnp.zeros((1, lstm_hidden_dim), jnp.float32)
    return params


# -------------------- full forward --------------------
def entity_context_encoder_forward(params, context, category):
    # ---- category branch: Embedding -> Linear -> 3x(Linear+ReLU) ----
    B, Lc = category.shape
    x = jnp.take(params["emb_cat"], category, axis=0)            # (B, Lc, E)
    E = x.shape[-1]
    (wl, bl), (w0, b0), (w1, b1), (w2, b2) = params["mlp"]
    y = category_mlp(x.reshape(B * Lc, E), wl, bl, w0, b0, w1, b1, w2, b2)
    x_out = y.reshape(B, Lc, -1)                                 # (B, Lc, out_feature)

    # ---- context branch: Embedding -> fused BiLSTM(2 layers) + LayerNorm ----
    emb = jnp.take(params["emb_ctx"], context, axis=0)           # (B, T, E) batch-first
    ctx = bilstm_layer_norm(emb, params["lstm"],
                            params["ln_gamma"], params["ln_beta"])  # (B, T, 2H)
    return x_out, ctx


if __name__ == "__main__":
    # In the original module, entity_context_encoder passes lstm_num_layers into
    # BiLSTM's `num_layer` slot, so nn.LSTM always uses its default of 2 layers;
    # the fused kernel implements exactly those 2 layers.
    lstm_hidden_dim = 32
    vocabsize = 50
    embed_dim = 32
    batchsize = 2
    lstm_num_layers = 2
    in_feature = 64
    out_feature = 128
    seq_len = 8
    cat_len = 4

    key = jax.random.PRNGKey(0)
    kp, kc, kg = jax.random.split(key, 3)
    params = init_params(kp, vocabsize, embed_dim, lstm_hidden_dim,
                         lstm_num_layers, in_feature, out_feature)
    context = jax.random.randint(kc, (batchsize, seq_len), 0, vocabsize, jnp.int32)
    category = jax.random.randint(kg, (batchsize, cat_len), 0, vocabsize, jnp.int32)

    x_out, ctx_out = jax.jit(entity_context_encoder_forward)(params, context, category)
    jax.block_until_ready((x_out, ctx_out))
    assert x_out.shape == (batchsize, cat_len, out_feature)
    assert ctx_out.shape == (batchsize, seq_len, lstm_hidden_dim)
    assert bool(jnp.isfinite(x_out).all()) and bool(jnp.isfinite(ctx_out).all())
    print("KERNEL_OK")
</pallas_src>

<mosaic_0001>
module attributes {stable_mosaic.version = 11 : i64} {
  func.func @_category_mlp_kernel(%arg0: i32, %arg1: memref<8x32xf32, #tpu.memory_space<vmem>>, %arg2: memref<32x64xbf16, #tpu.memory_space<vmem>>, %arg3: memref<1x64xf32, #tpu.memory_space<vmem>>, %arg4: memref<64x512xbf16, #tpu.memory_space<vmem>>, %arg5: memref<1x512xf32, #tpu.memory_space<vmem>>, %arg6: memref<512x1024xbf16, #tpu.memory_space<vmem>>, %arg7: memref<1x1024xf32, #tpu.memory_space<vmem>>, %arg8: memref<1024x128xbf16, #tpu.memory_space<vmem>>, %arg9: memref<1x128xf32, #tpu.memory_space<vmem>>, %arg10: memref<8x128xf32, #tpu.memory_space<vmem>>) attributes {dimension_semantics = [#tpu.dimension_semantics<parallel>], iteration_bounds = array<i64: 1>, scalar_prefetch = 0 : i64, scratch_operands = 0 : i64, tpu.core_type = #tpu.core_type<tc>, window_params = [{transform_indices = @transform_0, window_bounds = array<i64: 8, 32>}, {pipeline_mode = #tpu.pipeline_mode<synchronous>, transform_indices = @transform_1, window_bounds = array<i64: 32, 64>}, {pipeline_mode = #tpu.pipeline_mode<synchronous>, transform_indices = @transform_2, window_bounds = array<i64: 1, 64>}, {pipeline_mode = #tpu.pipeline_mode<synchronous>, transform_indices = @transform_3, window_bounds = array<i64: 64, 512>}, {pipeline_mode = #tpu.pipeline_mode<synchronous>, transform_indices = @transform_4, window_bounds = array<i64: 1, 512>}, {pipeline_mode = #tpu.pipeline_mode<synchronous>, transform_indices = @transform_5, window_bounds = array<i64: 512, 1024>}, {pipeline_mode = #tpu.pipeline_mode<synchronous>, transform_indices = @transform_6, window_bounds = array<i64: 1, 1024>}, {pipeline_mode = #tpu.pipeline_mode<synchronous>, transform_indices = @transform_7, window_bounds = array<i64: 1024, 128>}, {pipeline_mode = #tpu.pipeline_mode<synchronous>, transform_indices = @transform_8, window_bounds = array<i64: 1, 128>}, {transform_indices = @transform_9, window_bounds = array<i64: 8, 128>}]} {
    %c0 = arith.constant 0 : index
    %c0_0 = arith.constant 0 : index
    %0 = vector.load %arg1[%c0, %c0_0] : memref<8x32xf32, #tpu.memory_space<vmem>>, vector<8x32xf32>
    %1 = arith.truncf %0 : vector<8x32xf32> to vector<8x32xbf16>
    %c0_1 = arith.constant 0 : index
    %c0_2 = arith.constant 0 : index
    %2 = vector.load %arg2[%c0_1, %c0_2] : memref<32x64xbf16, #tpu.memory_space<vmem>>, vector<32x64xbf16>
    %cst = arith.constant dense<0.000000e+00> : vector<8x64xf32>
    %3 = tpu.matmul %1, %2, %cst {dimension_numbers = #tpu.dot_dimension_numbers<[1], [0], [0], [1], [0, 0, 1, 1], [], []>} : vector<8x32xbf16>, vector<32x64xbf16>, vector<8x64xf32> -> vector<8x64xf32>
    %c0_3 = arith.constant 0 : index
    %c0_4 = arith.constant 0 : index
    %4 = vector.load %arg3[%c0_3, %c0_4] : memref<1x64xf32, #tpu.memory_space<vmem>>, vector<1x64xf32>
    %5 = vector.broadcast %4 : vector<1x64xf32> to vector<8x64xf32>
    %6 = arith.addf %3, %5 : vector<8x64xf32>
    %7 = arith.truncf %6 : vector<8x64xf32> to vector<8x64xbf16>
    %c0_5 = arith.constant 0 : index
    %c0_6 = arith.constant 0 : index
    %8 = vector.load %arg4[%c0_5, %c0_6] : memref<64x512xbf16, #tpu.memory_space<vmem>>, vector<64x512xbf16>
    %cst_7 = arith.constant dense<0.000000e+00> : vector<8x512xf32>
    %9 = tpu.matmul %7, %8, %cst_7 {dimension_numbers = #tpu.dot_dimension_numbers<[1], [0], [0], [1], [0, 0, 1, 1], [], []>} : vector<8x64xbf16>, vector<64x512xbf16>, vector<8x512xf32> -> vector<8x512xf32>
    %c0_8 = arith.constant 0 : index
    %c0_9 = arith.constant 0 : index
    %10 = vector.load %arg5[%c0_8, %c0_9] : memref<1x512xf32, #tpu.memory_space<vmem>>, vector<1x512xf32>
    %11 = vector.broadcast %10 : vector<1x512xf32> to vector<8x512xf32>
    %12 = arith.addf %9, %11 : vector<8x512xf32>
    %cst_10 = arith.constant 0.000000e+00 : f32
    %13 = vector.broadcast %cst_10 : f32 to vector<8x512xf32>
    %14 = arith.maximumf %12, %13 : vector<8x512xf32>
    %15 = arith.truncf %14 : vector<8x512xf32> to vector<8x512xbf16>
    %c0_11 = arith.constant 0 : index
    %c0_12 = arith.constant 0 : index
    %16 = vector.load %arg6[%c0_11, %c0_12] : memref<512x1024xbf16, #tpu.memory_space<vmem>>, vector<512x1024xbf16>
    %cst_13 = arith.constant dense<0.000000e+00> : vector<8x1024xf32>
    %17 = tpu.matmul %15, %16, %cst_13 {dimension_numbers = #tpu.dot_dimension_numbers<[1], [0], [0], [1], [0, 0, 1, 1], [], []>} : vector<8x512xbf16>, vector<512x1024xbf16>, vector<8x1024xf32> -> vector<8x1024xf32>
    %c0_14 = arith.constant 0 : index
    %c0_15 = arith.constant 0 : index
    %18 = vector.load %arg7[%c0_14, %c0_15] : memref<1x1024xf32, #tpu.memory_space<vmem>>, vector<1x1024xf32>
    %19 = vector.broadcast %18 : vector<1x1024xf32> to vector<8x1024xf32>
    %20 = arith.addf %17, %19 : vector<8x1024xf32>
    %cst_16 = arith.constant 0.000000e+00 : f32
    %21 = vector.broadcast %cst_16 : f32 to vector<8x1024xf32>
    %22 = arith.maximumf %20, %21 : vector<8x1024xf32>
    %23 = arith.truncf %22 : vector<8x1024xf32> to vector<8x1024xbf16>
    %c0_17 = arith.constant 0 : index
    %c0_18 = arith.constant 0 : index
    %24 = vector.load %arg8[%c0_17, %c0_18] : memref<1024x128xbf16, #tpu.memory_space<vmem>>, vector<1024x128xbf16>
    %cst_19 = arith.constant dense<0.000000e+00> : vector<8x128xf32>
    %25 = tpu.matmul %23, %24, %cst_19 {dimension_numbers = #tpu.dot_dimension_numbers<[1], [0], [0], [1], [0, 0, 1, 1], [], []>} : vector<8x1024xbf16>, vector<1024x128xbf16>, vector<8x128xf32> -> vector<8x128xf32>
    %c0_20 = arith.constant 0 : index
    %c0_21 = arith.constant 0 : index
    %26 = vector.load %arg9[%c0_20, %c0_21] : memref<1x128xf32, #tpu.memory_space<vmem>>, vector<1x128xf32>
    %27 = vector.broadcast %26 : vector<1x128xf32> to vector<8x128xf32>
    %28 = arith.addf %25, %27 : vector<8x128xf32>
    %cst_22 = arith.constant 0.000000e+00 : f32
    %29 = vector.broadcast %cst_22 : f32 to vector<8x128xf32>
    %30 = arith.maximumf %28, %29 : vector<8x128xf32>
    %c0_23 = arith.constant 0 : index
    %c0_24 = arith.constant 0 : index
    %31 = vector.load %arg10[%c0_23, %c0_24] : memref<8x128xf32, #tpu.memory_space<vmem>>, vector<8x128xf32>
    tpu.vector_store %arg10[%c0_23, %c0_24], %30 {strides = array<i32>} : memref<8x128xf32, #tpu.memory_space<vmem>>, vector<8x128xf32>,
    return
  }
  func.func @transform_0(%arg0: i32) -> (i32, i32) {
    %c0_i32 = arith.constant 0 : i32
    %c0_i32_0 = arith.constant 0 : i32
    return %arg0, %c0_i32 : i32, i32
  }
  func.func @transform_1(%arg0: i32) -> (i32, i32) {
    %c0_i32 = arith.constant 0 : i32
    %c0_i32_0 = arith.constant 0 : i32
    %c0_i32_1 = arith.constant 0 : i32
    return %c0_i32, %c0_i32_0 : i32, i32
  }
  func.func @transform_2(%arg0: i32) -> (i32, i32) {
    %c0_i32 = arith.constant 0 : i32
    %c0_i32_0 = arith.constant 0 : i32
    %c0_i32_1 = arith.constant 0 : i32
    return %c0_i32, %c0_i32_0 : i32, i32
  }
  func.func @transform_3(%arg0: i32) -> (i32, i32) {
    %c0_i32 = arith.constant 0 : i32
    %c0_i32_0 = arith.constant 0 : i32
    %c0_i32_1 = arith.constant 0 : i32
    return %c0_i32, %c0_i32_0 : i32, i32
  }
  func.func @transform_4(%arg0: i32) -> (i32, i32) {
    %c0_i32 = arith.constant 0 : i32
    %c0_i32_0 = arith.constant 0 : i32
    %c0_i32_1 = arith.constant 0 : i32
    return %c0_i32, %c0_i32_0 : i32, i32
  }
  func.func @transform_5(%arg0: i32) -> (i32, i32) {
    %c0_i32 = arith.constant 0 : i32
    %c0_i32_0 = arith.constant 0 : i32
    %c0_i32_1 = arith.constant 0 : i32
    return %c0_i32, %c0_i32_0 : i32, i32
  }
  func.func @transform_6(%arg0: i32) -> (i32, i32) {
    %c0_i32 = arith.constant 0 : i32
    %c0_i32_0 = arith.constant 0 : i32
    %c0_i32_1 = arith.constant 0 : i32
    return %c0_i32, %c0_i32_0 : i32, i32
  }
  func.func @transform_7(%arg0: i32) -> (i32, i32) {
    %c0_i32 = arith.constant 0 : i32
    %c0_i32_0 = arith.constant 0 : i32
    %c0_i32_1 = arith.constant 0 : i32
    return %c0_i32, %c0_i32_0 : i32, i32
  }
  func.func @transform_8(%arg0: i32) -> (i32, i32) {
    %c0_i32 = arith.constant 0 : i32
    %c0_i32_0 = arith.constant 0 : i32
    %c0_i32_1 = arith.constant 0 : i32
    return %c0_i32, %c0_i32_0 : i32, i32
  }
  func.func @transform_9(%arg0: i32) -> (i32, i32) {
    %c0_i32 = arith.constant 0 : i32
    %c0_i32_0 = arith.constant 0 : i32
    return %arg0, %c0_i32 : i32, i32
  }
}

module attributes {stable_mosaic.version = 11 : i64} {
  func.func @kernel(%arg0: i32, %arg1: memref<8x32xf32, #tpu.memory_space<vmem>>, %arg2: memref<32x128xbf16, #tpu.memory_space<vmem>>, %arg3: memref<16x64xbf16, #tpu.memory_space<vmem>>, %arg4: memref<16x64xbf16, #tpu.memory_space<vmem>>, %arg5: memref<1x128xf32, #tpu.memory_space<vmem>>, %arg6: memref<32x128xbf16, #tpu.memory_space<vmem>>, %arg7: memref<16x64xbf16, #tpu.memory_space<vmem>>, %arg8: memref<16x64xbf16, #tpu.memory_space<vmem>>, %arg9: memref<1x128xf32, #tpu.memory_space<vmem>>, %arg10: memref<1x32xf32, #tpu.memory_space<vmem>>, %arg11: memref<1x32xf32, #tpu.memory_space<vmem>>, %arg12: memref<1x8x32xf32, #tpu.memory_space<vmem>>, %arg13: memref<8x64xf32, #tpu.memory_space<vmem>>, %arg14: memref<8x64xf32, #tpu.memory_space<vmem>>, %arg15: memref<8x16xf32, #tpu.memory_space<vmem>>, %arg16: memref<8x16xf32, #tpu.memory_space<vmem>>) attributes {dimension_semantics = [#tpu.dimension_semantics<parallel>], iteration_bounds = array<i64: 2>, scalar_prefetch = 0 : i64, scratch_operands = 4 : i64, tpu.core_type = #tpu.core_type<tc>, window_params = [{transform_indices = @transform_0, window_bounds = array<i64: 8, 32>}, {pipeline_mode = #tpu.pipeline_mode<synchronous>, transform_indices = @transform_1, window_bounds = array<i64: 32, 128>}, {pipeline_mode = #tpu.pipeline_mode<synchronous>, transform_indices = @transform_2, window_bounds = array<i64: 16, 64>}, {pipeline_mode = #tpu.pipeline_mode<synchronous>, transform_indices = @transform_3, window_bounds = array<i64: 16, 64>}, {pipeline_mode = #tpu.pipeline_mode<synchronous>, transform_indices = @transform_4, window_bounds = array<i64: 1, 128>}, {pipeline_mode = #tpu.pipeline_mode<synchronous>, transform_indices = @transform_5, window_bounds = array<i64: 32, 128>}, {pipeline_mode = #tpu.pipeline_mode<synchronous>, transform_indices = @transform_6, window_bounds = array<i64: 16, 64>}, {pipeline_mode = #tpu.pipeline_mode<synchronous>, transform_indices = @transform_7, window_bounds = array<i64: 16, 64>}, {pipeline_mode = #tpu.pipeline_mode<synchronous>, transform_indices = @transform_8, window_bounds = array<i64: 1, 128>}, {pipeline_mode = #tpu.pipeline_mode<synchronous>, transform_indices = @transform_9, window_bounds = array<i64: 1, 32>}, {pipeline_mode = #tpu.pipeline_mode<synchronous>, transform_indices = @transform_10, window_bounds = array<i64: 1, 32>}, {transform_indices = @transform_11, window_bounds = array<i64: 1, 8, 32>}]} {
    %c0 = arith.constant 0 : index
    %c0_0 = arith.constant 0 : index
    %0 = vector.load %arg1[%c0, %c0_0] : memref<8x32xf32, #tpu.memory_space<vmem>>, vector<8x32xf32>
    %1 = arith.truncf %0 : vector<8x32xf32> to vector<8x32xbf16>
    %c0_1 = arith.constant 0 : index
    %c0_2 = arith.constant 0 : index
    %2 = vector.load %arg2[%c0_1, %c0_2] : memref<32x128xbf16, #tpu.memory_space<vmem>>, vector<32x128xbf16>
    %cst = arith.constant dense<0.000000e+00> : vector<8x128xf32>
    %3 = tpu.matmul %1, %2, %cst {dimension_numbers = #tpu.dot_dimension_numbers<[1], [0], [0], [1], [0, 0, 1, 1], [], []>} : vector<8x32xbf16>, vector<32x128xbf16>, vector<8x128xf32> -> vector<8x128xf32>
    %c0_3 = arith.constant 0 : index
    %c0_4 = arith.constant 0 : index
    %4 = vector.load %arg5[%c0_3, %c0_4] : memref<1x128xf32, #tpu.memory_space<vmem>>, vector<1x128xf32>
    %5 = vector.broadcast %4 : vector<1x128xf32> to vector<8x128xf32>
    %6 = arith.addf %3, %5 : vector<8x128xf32>
    %7 = vector.extract_strided_slice %6 {offsets = [0, 0], sizes = [8, 64], strides = [1, 1]} : vector<8x128xf32> to vector<8x64xf32>
    %c0_5 = arith.constant 0 : index
    %c0_6 = arith.constant 0 : index
    %8 = vector.load %arg13[%c0_5, %c0_6] : memref<8x64xf32, #tpu.memory_space<vmem>>, vector<8x64xf32>
    tpu.vector_store %arg13[%c0_5, %c0_6], %7 {strides = array<i32>} : memref<8x64xf32, #tpu.memory_space<vmem>>, vector<8x64xf32>,
    %9 = vector.extract_strided_slice %6 {offsets = [0, 64], sizes = [8, 64], strides = [1, 1]} : vector<8x128xf32> to vector<8x64xf32>
    %c0_7 = arith.constant 0 : index
    %c0_8 = arith.constant 0 : index
    %10 = vector.load %arg14[%c0_7, %c0_8] : memref<8x64xf32, #tpu.memory_space<vmem>>, vector<8x64xf32>
    tpu.vector_store %arg14[%c0_7, %c0_8], %9 {strides = array<i32>} : memref<8x64xf32, #tpu.memory_space<vmem>>, vector<8x64xf32>,
    %c0_9 = arith.constant 0 : index
    %c0_10 = arith.constant 0 : index
    %11 = vector.load %arg3[%c0_9, %c0_10] : memref<16x64xbf16, #tpu.memory_space<vmem>>, vector<16x64xbf16>
    %c0_11 = arith.constant 0 : index
    %c0_12 = arith.constant 0 : index
    %12 = vector.load %arg4[%c0_11, %c0_12] : memref<16x64xbf16, #tpu.memory_space<vmem>>, vector<16x64xbf16>
    %cst_13 = arith.constant 0.000000e+00 : f32
    %13 = vector.broadcast %cst_13 : f32 to vector<1x16xf32>
    %c0_i32 = arith.constant 0 : i32
    %c1_i32 = arith.constant 1 : i32
    %14 = arith.muli %c0_i32, %c1_i32 : i32
    %c7_i32 = arith.constant 7 : i32
    %15 = arith.subi %c7_i32, %c0_i32 : i32
    %c1_i32_14 = arith.constant 1 : i32
    %16 = arith.muli %15, %c1_i32_14 : i32
    %17 = arith.index_cast %14 : i32 to index
    %c0_15 = arith.constant 0 : index
    %18 = vector.load %arg13[%17, %c0_15] : memref<8x64xf32, #tpu.memory_space<vmem>>, vector<1x64xf32>
    %19 = arith.truncf %13 : vector<1x16xf32> to vector<1x16xbf16>
    %cst_16 = arith.constant dense<0.000000e+00> : vector<1x64xf32>
    %20 = tpu.matmul %19, %11, %cst_16 {dimension_numbers = #tpu.dot_dimension_numbers<[1], [0], [0], [1], [0, 0, 1, 1], [], []>} : vector<1x16xbf16>, vector<16x64xbf16>, vector<1x64xf32> -> vector<1x64xf32>
    %21 = arith.addf %18, %20 : vector<1x64xf32>
    %22 = arith.index_cast %16 : i32 to index
    %c0_17 = arith.constant 0 : index
    %23 = vector.load %arg14[%22, %c0_17] : memref<8x64xf32, #tpu.memory_space<vmem>>, vector<1x64xf32>
    %24 = arith.truncf %13 : vector<1x16xf32> to vector<1x16xbf16>
    %cst_18 = arith.constant dense<0.000000e+00> : vector<1x64xf32>
    %25 = tpu.matmul %24, %12, %cst_18 {dimension_numbers = #tpu.dot_dimension_numbers<[1], [0], [0], [1], [0, 0, 1, 1], [], []>} : vector<1x16xbf16>, vector<16x64xbf16>, vector<1x64xf32> -> vector<1x64xf32>
    %26 = arith.addf %23, %25 : vector<1x64xf32>
    %27 = vector.extract_strided_slice %21 {offsets = [0, 0], sizes = [1, 16], strides = [1, 1]} : vector<1x64xf32> to vector<1x16xf32>
    %28 = arith.negf %27 : vector<1x16xf32>
    %29 = math.exp %28 : vector<1x16xf32>
    %cst_19 = arith.constant 1.000000e+00 : f32
    %30 = vector.broadcast %cst_19 : f32 to vector<1x16xf32>
    %31 = arith.addf %30, %29 : vector<1x16xf32>
    %32 = arith.divf %30, %31 : vector<1x16xf32>
    %33 = vector.extract_strided_slice %21 {offsets = [0, 16], sizes = [1, 16], strides = [1, 1]} : vector<1x64xf32> to vector<1x16xf32>
    %34 = arith.negf %33 : vector<1x16xf32>
    %35 = math.exp %34 : vector<1x16xf32>
    %cst_20 = arith.constant 1.000000e+00 : f32
    %36 = vector.broadcast %cst_20 : f32 to vector<1x16xf32>
    %37 = arith.addf %36, %35 : vector<1x16xf32>
    %38 = arith.divf %36, %37 : vector<1x16xf32>
    %39 = vector.extract_strided_slice %21 {offsets = [0, 32], sizes = [1, 16], strides = [1, 1]} : vector<1x64xf32> to vector<1x16xf32>
    %40 = math.tanh %39 : vector<1x16xf32>
    %41 = vector.extract_strided_slice %21 {offsets = [0, 48], sizes = [1, 16], strides = [1, 1]} : vector<1x64xf32> to vector<1x16xf32>
    %42 = arith.negf %41 : vector<1x16xf32>
    %43 = math.exp %42 : vector<1x16xf32>
    %cst_21 = arith.constant 1.000000e+00 : f32
    %44 = vector.broadcast %cst_21 : f32 to vector<1x16xf32>
    %45 = arith.addf %44, %43 : vector<1x16xf32>
    %46 = arith.divf %44, %45 : vector<1x16xf32>
    %47 = arith.mulf %38, %13 : vector<1x16xf32>
    %48 = arith.mulf %32, %40 : vector<1x16xf32>
    %49 = arith.addf %47, %48 : vector<1x16xf32>
    %50 = math.tanh %49 : vector<1x16xf32>
    %51 = arith.mulf %46, %50 : vector<1x16xf32>
    %52 = vector.extract_strided_slice %26 {offsets = [0, 0], sizes = [1, 16], strides = [1, 1]} : vector<1x64xf32> to vector<1x16xf32>
    %53 = arith.negf %52 : vector<1x16xf32>
    %54 = math.exp %53 : vector<1x16xf32>
    %cst_22 = arith.constant 1.000000e+00 : f32
    %55 = vector.broadcast %cst_22 : f32 to vector<1x16xf32>
    %56 = arith.addf %55, %54 : vector<1x16xf32>
    %57 = arith.divf %55, %56 : vector<1x16xf32>
    %58 = vector.extract_strided_slice %26 {offsets = [0, 16], sizes = [1, 16], strides = [1, 1]} : vector<1x64xf32> to vector<1x16xf32>
    %59 = arith.negf %58 : vector<1x16xf32>
    %60 = math.exp %59 : vector<1x16xf32>
    %cst_23 = arith.constant 1.000000e+00 : f32
    %61 = vector.broadcast %cst_23 : f32 to vector<1x16xf32>
    %62 = arith.addf %61, %60 : vector<1x16xf32>
    %63 = arith.divf %61, %62 : vector<1x16xf32>
    %64 = vector.extract_strided_slice %26 {offsets = [0, 32], sizes = [1, 16], strides = [1, 1]} : vector<1x64xf32> to vector<1x16xf32>
    %65 = math.tanh %64 : vector<1x16xf32>
    %66 = vector.extract_strided_slice %26 {offsets = [0, 48], sizes = [1, 16], strides = [1, 1]} : vector<1x64xf32> to vector<1x16xf32>
    %67 = arith.negf %66 : vector<1x16xf32>
    %68 = math.exp %67 : vector<1x16xf32>
    %cst_24 = arith.constant 1.000000e+00 : f32
    %69 = vector.broadcast %cst_24 : f32 to vector<1x16xf32>
    %70 = arith.addf %69, %68 : vector<1x16xf32>
    %71 = arith.divf %69, %70 : vector<1x16xf32>
    %72 = arith.mulf %63, %13 : vector<1x16xf32>
    %73 = arith.mulf %57, %65 : vector<1x16xf32>
    %74 = arith.addf %72, %73 : vector<1x16xf32>
    %75 = math.tanh %74 : vector<1x16xf32>
    %76 = arith.mulf %71, %75 : vector<1x16xf32>
    %77 = arith.index_cast %14 : i32 to index
    %c0_25 = arith.constant 0 : index
    %78 = vector.load %arg15[%77, %c0_25] : memref<8x16xf32, #tpu.memory_space<vmem>>, vector<1x16xf32>
    tpu.vector_store %arg15[%77, %c0_25], %51 {strides = array<i32>} : memref<8x16xf32, #tpu.memory_space<vmem>>, vector<1x16xf32>,
    %79 = arith.index_cast %16 : i32 to index
    %c0_26 = arith.constant 0 : index
    %80 = vector.load %arg16[%79, %c0_26] : memref<8x16xf32, #tpu.memory_space<vmem>>, vector<1x16xf32>
    tpu.vector_store %arg16[%79, %c0_26], %76 {strides = array<i32>} : memref<8x16xf32, #tpu.memory_space<vmem>>, vector<1x16xf32>,
    %c1_i32_27 = arith.constant 1 : i32
    %c1_i32_28 = arith.constant 1 : i32
    %81 = arith.muli %c1_i32_27, %c1_i32_28 : i32
    %c7_i32_29 = arith.constant 7 : i32
    %82 = arith.subi %c7_i32_29, %c1_i32_27 : i32
    %c1_i32_30 = arith.constant 1 : i32
    %83 = arith.muli %82, %c1_i32_30 : i32
    %84 = arith.index_cast %81 : i32 to index
    %c0_31 = arith.constant 0 : index
    %85 = vector.load %arg13[%84, %c0_31] : memref<8x64xf32, #tpu.memory_space<vmem>>, vector<1x64xf32>
    %86 = arith.truncf %51 : vector<1x16xf32> to vector<1x16xbf16>
    %cst_32 = arith.constant dense<0.000000e+00> : vector<1x64xf32>
    %87 = tpu.matmul %86, %11, %cst_32 {dimension_numbers = #tpu.dot_dimension_numbers<[1], [0], [0], [1], [0, 0, 1, 1], [], []>} : vector<1x16xbf16>, vector<16x64xbf16>, vector<1x64xf32> -> vector<1x64xf32>
    %88 = arith.addf %85, %87 : vector<1x64xf32>
    %89 = arith.index_cast %83 : i32 to index
    %c0_33 = arith.constant 0 : index
    %90 = vector.load %arg14[%89, %c0_33] : memref<8x64xf32, #tpu.memory_space<vmem>>, vector<1x64xf32>
    %91 = arith.truncf %76 : vector<1x16xf32> to vector<1x16xbf16>
    %cst_34 = arith.constant dense<0.000000e+00> : vector<1x64xf32>
    %92 = tpu.matmul %91, %12, %cst_34 {dimension_numbers = #tpu.dot_dimension_numbers<[1], [0], [0], [1], [0, 0, 1, 1], [], []>} : vector<1x16xbf16>, vector<16x64xbf16>, vector<1x64xf32> -> vector<1x64xf32>
    %93 = arith.addf %90, %92 : vector<1x64xf32>
    %94 = vector.extract_strided_slice %88 {offsets = [0, 0], sizes = [1, 16], strides = [1, 1]} : vector<1x64xf32> to vector<1x16xf32>
    %95 = arith.negf %94 : vector<1x16xf32>
    %96 = math.exp %95 : vector<1x16xf32>
    %cst_35 = arith.constant 1.000000e+00 : f32
    %97 = vector.broadcast %cst_35 : f32 to vector<1x16xf32>
    %98 = arith.addf %97, %96 : vector<1x16xf32>
    %99 = arith.divf %97, %98 : vector<1x16xf32>
    %100 = vector.extract_strided_slice %88 {offsets = [0, 16], sizes = [1, 16], strides = [1, 1]} : vector<1x64xf32> to vector<1x16xf32>
    %101 = arith.negf %100 : vector<1x16xf32>
    %102 = math.exp %101 : vector<1x16xf32>
    %cst_36 = arith.constant 1.000000e+00 : f32
    %103 = vector.broadcast %cst_36 : f32 to vector<1x16xf32>
    %104 = arith.addf %103, %102 : vector<1x16xf32>
    %105 = arith.divf %103, %104 : vector<1x16xf32>
    %106 = vector.extract_strided_slice %88 {offsets = [0, 32], sizes = [1, 16], strides = [1, 1]} : vector<1x64xf32> to vector<1x16xf32>
    %107 = math.tanh %106 : vector<1x16xf32>
    %108 = vector.extract_strided_slice %88 {offsets = [0, 48], sizes = [1, 16], strides = [1, 1]} : vector<1x64xf32> to vector<1x16xf32>
    %109 = arith.negf %108 : vector<1x16xf32>
    %110 = math.exp %109 : vector<1x16xf32>
    %cst_37 = arith.constant 1.000000e+00 : f32
    %111 = vector.broadcast %cst_37 : f32 to vector<1x16xf32>
    %112 = arith.addf %111, %110 : vector<1x16xf32>
    %113 = arith.divf %111, %112 : vector<1x16xf32>
    %114 = arith.mulf %105, %49 : vector<1x16xf32>
    %115 = arith.mulf %99, %107 : vector<1x16xf32>
    %116 = arith.addf %114, %115 : vector<1x16xf32>
    %117 = math.tanh %116 : vector<1x16xf32>
    %118 = arith.mulf %113, %117 : vector<1x16xf32>
    %119 = vector.extract_strided_slice %93 {offsets = [0, 0], sizes = [1, 16], strides = [1, 1]} : vector<1x64xf32> to vector<1x16xf32>
    %120 = arith.negf %119 : vector<1x16xf32>
    %121 = math.exp %120 : vector<1x16xf32>
    %cst_38 = arith.constant 1.000000e+00 : f32
    %122 = vector.broadcast %cst_38 : f32 to vector<1x16xf32>
    %123 = arith.addf %122, %121 : vector<1x16xf32>
    %124 = arith.divf %122, %123 : vector<1x16xf32>
    %125 = vector.extract_strided_slice %93 {offsets = [0, 16], sizes = [1, 16], strides = [1, 1]} : vector<1x64xf32> to vector<1x16xf32>
    %126 = arith.negf %125 : vector<1x16xf32>
    %127 = math.exp %126 : vector<1x16xf32>
    %cst_39 = arith.constant 1.000000e+00 : f32
    %128 = vector.broadcast %cst_39 : f32 to vector<1x16xf32>
    %129 = arith.addf %128, %127 : vector<1x16xf32>
    %130 = arith.divf %128, %129 : vector<1x16xf32>
    %131 = vector.extract_strided_slice %93 {offsets = [0, 32], sizes = [1, 16], strides = [1, 1]} : vector<1x64xf32> to vector<1x16xf32>
    %132 = math.tanh %131 : vector<1x16xf32>
    %133 = vector.extract_strided_slice %93 {offsets = [0, 48], sizes = [1, 16], strides = [1, 1]} : vector<1x64xf32> to vector<1x16xf32>
    %134 = arith.negf %133 : vector<1x16xf32>
    %135 = math.exp %134 : vector<1x16xf32>
    %cst_40 = arith.constant 1.000000e+00 : f32
    %136 = vector.broadcast %cst_40 : f32 to vector<1x16xf32>
    %137 = arith.addf %136, %135 : vector<1x16xf32>
    %138 = arith.divf %136, %137 : vector<1x16xf32>
    %139 = arith.mulf %130, %74 : vector<1x16xf32>
    %140 = arith.mulf %124, %132 : vector<1x16xf32>
    %141 = arith.addf %139, %140 : vector<1x16xf32>
    %142 = math.tanh %141 : vector<1x16xf32>
    %143 = arith.mulf %138, %142 : vector<1x16xf32>
    %144 = arith.index_cast %81 : i32 to index
    %c0_41 = arith.constant 0 : index
    %145 = vector.load %arg15[%144, %c0_41] : memref<8x16xf32, #tpu.memory_space<vmem>>, vector<1x16xf32>
    tpu.vector_store %arg15[%144, %c0_41], %118 {strides = array<i32>} : memref<8x16xf32, #tpu.memory_space<vmem>>, vector<1x16xf32>,
    %146 = arith.index_cast %83 : i32 to index
    %c0_42 = arith.constant 0 : index
    %147 = vector.load %arg16[%146, %c0_42] : memref<8x16xf32, #tpu.memory_space<vmem>>, vector<1x16xf32>
    tpu.vector_store %arg16[%146, %c0_42], %143 {strides = array<i32>} : memref<8x16xf32, #tpu.memory_space<vmem>>, vector<1x16xf32>,
    %c2_i32 = arith.constant 2 : i32
    %c1_i32_43 = arith.constant 1 : i32
    %148 = arith.muli %c2_i32, %c1_i32_43 : i32
    %c7_i32_44 = arith.constant 7 : i32
    %149 = arith.subi %c7_i32_44, %c2_i32 : i32
    %c1_i32_45 = arith.constant 1 : i32
    %150 = arith.muli %149, %c1_i32_45 : i32
    %151 = arith.index_cast %148 : i32 to index
    %c0_46 = arith.constant 0 : index
    %152 = vector.load %arg13[%151, %c0_46] : memref<8x64xf32, #tpu.memory_space<vmem>>, vector<1x64xf32>
    %153 = arith.truncf %118 : vector<1x16xf32> to vector<1x16xbf16>
    %cst_47 = arith.constant dense<0.000000e+00> : vector<1x64xf32>
    %154 = tpu.matmul %153, %11, %cst_47 {dimension_numbers = #tpu.dot_dimension_numbers<[1], [0], [0], [1], [0, 0, 1, 1], [], []>} : vector<1x16xbf16>, vector<16x64xbf16>, vector<1x64xf32> -> vector<1x64xf32>
    %155 = arith.addf %152, %154 : vector<1x64xf32>
    %156 = arith.index_cast %150 : i32 to index
    %c0_48 = arith.constant 0 : index
    %157 = vector.load %arg14[%156, %c0_48] : memref<8x64xf32, #tpu.memory_space<vmem>>, vector<1x64xf32>
    %158 = arith.truncf %143 : vector<1x16xf32> to vector<1x16xbf16>
    %cst_49 = arith.constant dense<0.000000e+00> : vector<1x64xf32>
    %159 = tpu.matmul %158, %12, %cst_49 {dimension_numbers = #tpu.dot_dimension_numbers<[1], [0], [0], [1], [0, 0, 1, 1], [], []>} : vector<1x16xbf16>, vector<16x64xbf16>, vector<1x64xf32> -> vector<1x64xf32>
    %160 = arith.addf %157, %159 : vector<1x64xf32>
    %161 = vector.extract_strided_slice %155 {offsets = [0, 0], sizes = [1, 16], strides = [1, 1]} : vector<1x64xf32> to vector<1x16xf32>
    %162 = arith.negf %161 : vector<1x16xf32>
    %163 = math.exp %162 : vector<1x16xf32>
    %cst_50 = arith.constant 1.000000e+00 : f32
    %164 = vector.broadcast %cst_50 : f32 to vector<1x16xf32>
    %165 = arith.addf %164, %163 : vector<1x16xf32>
    %166 = arith.divf %164, %165 : vector<1x16xf32>
    %167 = vector.extract_strided_slice %155 {offsets = [0, 16], sizes = [1, 16], strides = [1, 1]} : vector<1x64xf32> to vector<1x16xf32>
    %168 = arith.negf %167 : vector<1x16xf32>
    %169 = math.exp %168 : vector<1x16xf32>
    %cst_51 = arith.constant 1.000000e+00 : f32
    %170 = vector.broadcast %cst_51 : f32 to vector<1x16xf32>
    %171 = arith.addf %170, %169 : vector<1x16xf32>
    %172 = arith.divf %170, %171 : vector<1x16xf32>
    %173 = vector.extract_strided_slice %155 {offsets = [0, 32], sizes = [1, 16], strides = [1, 1]} : vector<1x64xf32> to vector<1x16xf32>
    %174 = math.tanh %173 : vector<1x16xf32>
    %175 = vector.extract_strided_slice %155 {offsets = [0, 48], sizes = [1, 16], strides = [1, 1]} : vector<1x64xf32> to vector<1x16xf32>
    %176 = arith.negf %175 : vector<1x16xf32>
    %177 = math.exp %176 : vector<1x16xf32>
    %cst_52 = arith.constant 1.000000e+00 : f32
    %178 = vector.broadcast %cst_52 : f32 to vector<1x16xf32>
    %179 = arith.addf %178, %177 : vector<1x16xf32>
    %180 = arith.divf %178, %179 : vector<1x16xf32>
    %181 = arith.mulf %172, %116 : vector<1x16xf32>
    %182 = arith.mulf %166, %174 : vector<1x16xf32>
    %183 = arith.addf %181, %182 : vector<1x16xf32>
    %184 = math.tanh %183 : vector<1x16xf32>
    %185 = arith.mulf %180, %184 : vector<1x16xf32>
    %186 = vector.extract_strided_slice %160 {offsets = [0, 0], sizes = [1, 16], strides = [1, 1]} : vector<1x64xf32> to vector<1x16xf32>
    %187 = arith.negf %186 : vector<1x16xf32>
    %188 = math.exp %187 : vector<1x16xf32>
    %cst_53 = arith.constant 1.000000e+00 : f32
    %189 = vector.broadcast %cst_53 : f32 to vector<1x16xf32>
    %190 = arith.addf %189, %188 : vector<1x16xf32>
    %191 = arith.divf %189, %190 : vector<1x16xf32>
    %192 = vector.extract_strided_slice %160 {offsets = [0, 16], sizes = [1, 16], strides = [1, 1]} : vector<1x64xf32> to vector<1x16xf32>
    %193 = arith.negf %192 : vector<1x16xf32>
    %194 = math.exp %193 : vector<1x16xf32>
    %cst_54 = arith.constant 1.000000e+00 : f32
    %195 = vector.broadcast %cst_54 : f32 to vector<1x16xf32>
    %196 = arith.addf %195, %194 : vector<1x16xf32>
    %197 = arith.divf %195, %196 : vector<1x16xf32>
    %198 = vector.extract_strided_slice %160 {offsets = [0, 32], sizes = [1, 16], strides = [1, 1]} : vector<1x64xf32> to vector<1x16xf32>
    %199 = math.tanh %198 : vector<1x16xf32>
    %200 = vector.extract_strided_slice %160 {offsets = [0, 48], sizes = [1, 16], strides = [1, 1]} : vector<1x64xf32> to vector<1x16xf32>
    %201 = arith.negf %200 : vector<1x16xf32>
    %202 = math.exp %201 : vector<1x16xf32>
    %cst_55 = arith.constant 1.000000e+00 : f32
    %203 = vector.broadcast %cst_55 : f32 to vector<1x16xf32>
    %204 = arith.addf %203, %202 : vector<1x16xf32>
    %205 = arith.divf %203, %204 : vector<1x16xf32>
    %206 = arith.mulf %197, %141 : vector<1x16xf32>
    %207 = arith.mulf %191, %199 : vector<1x16xf32>
    %208 = arith.addf %206, %207 : vector<1x16xf32>
    %209 = math.tanh %208 : vector<1x16xf32>
    %210 = arith.mulf %205, %209 : vector<1x16xf32>
    %211 = arith.index_cast %148 : i32 to index
    %c0_56 = arith.constant 0 : index
    %212 = vector.load %arg15[%211, %c0_56] : memref<8x16xf32, #tpu.memory_space<vmem>>, vector<1x16xf32>
    tpu.vector_store %arg15[%211, %c0_56], %185 {strides = array<i32>} : memref<8x16xf32, #tpu.memory_space<vmem>>, vector<1x16xf32>,
    %213 = arith.index_cast %150 : i32 to index
    %c0_57 = arith.constant 0 : index
    %214 = vector.load %arg16[%213, %c0_57] : memref<8x16xf32, #tpu.memory_space<vmem>>, vector<1x16xf32>
    tpu.vector_store %arg16[%213, %c0_57], %210 {strides = array<i32>} : memref<8x16xf32, #tpu.memory_space<vmem>>, vector<1x16xf32>,
    %c3_i32 = arith.constant 3 : i32
    %c1_i32_58 = arith.constant 1 : i32
    %215 = arith.muli %c3_i32, %c1_i32_58 : i32
    %c7_i32_59 = arith.constant 7 : i32
    %216 = arith.subi %c7_i32_59, %c3_i32 : i32
    %c1_i32_60 = arith.constant 1 : i32
    %217 = arith.muli %216, %c1_i32_60 : i32
    %218 = arith.index_cast %215 : i32 to index
    %c0_61 = arith.constant 0 : index
    %219 = vector.load %arg13[%218, %c0_61] : memref<8x64xf32, #tpu.memory_space<vmem>>, vector<1x64xf32>
    %220 = arith.truncf %185 : vector<1x16xf32> to vector<1x16xbf16>
    %cst_62 = arith.constant dense<0.000000e+00> : vector<1x64xf32>
    %221 = tpu.matmul %220, %11, %cst_62 {dimension_numbers = #tpu.dot_dimension_numbers<[1], [0], [0], [1], [0, 0, 1, 1], [], []>} : vector<1x16xbf16>, vector<16x64xbf16>, vector<1x64xf32> -> vector<1x64xf32>
    %222 = arith.addf %219, %221 : vector<1x64xf32>
    %223 = arith.index_cast %217 : i32 to index
    %c0_63 = arith.constant 0 : index
    %224 = vector.load %arg14[%223, %c0_63] : memref<8x64xf32, #tpu.memory_space<vmem>>, vector<1x64xf32>
    %225 = arith.truncf %210 : vector<1x16xf32> to vector<1x16xbf16>
    %cst_64 = arith.constant dense<0.000000e+00> : vector<1x64xf32>
    %226 = tpu.matmul %225, %12, %cst_64 {dimension_numbers = #tpu.dot_dimension_numbers<[1], [0], [0], [1], [0, 0, 1, 1], [], []>} : vector<1x16xbf16>, vector<16x64xbf16>, vector<1x64xf32> -> vector<1x64xf32>
    %227 = arith.addf %224, %226 : vector<1x64xf32>
    %228 = vector.extract_strided_slice %222 {offsets = [0, 0], sizes = [1, 16], strides = [1, 1]} : vector<1x64xf32> to vector<1x16xf32>
    %229 = arith.negf %228 : vector<1x16xf32>
    %230 = math.exp %229 : vector<1x16xf32>
    %cst_65 = arith.constant 1.000000e+00 : f32
    %231 = vector.broadcast %cst_65 : f32 to vector<1x16xf32>
    %232 = arith.addf %231, %230 : vector<1x16xf32>
    %233 = arith.divf %231, %232 : vector<1x16xf32>
    %234 = vector.extract_strided_slice %222 {offsets = [0, 16], sizes = [1, 16], strides = [1, 1]} : vector<1x64xf32> to vector<1x16xf32>
    %235 = arith.negf %234 : vector<1x16xf32>
    %236 = math.exp %235 : vector<1x16xf32>
    %cst_66 = arith.constant 1.000000e+00 : f32
    %237 = vector.broadcast %cst_66 : f32 to vector<1x16xf32>
    %238 = arith.addf %237, %236 : vector<1x16xf32>
    %239 = arith.divf %237, %238 : vector<1x16xf32>
    %240 = vector.extract_strided_slice %222 {offsets = [0, 32], sizes = [1, 16], strides = [1, 1]} : vector<1x64xf32> to vector<1x16xf32>
    %241 = math.tanh %240 : vector<1x16xf32>
    %242 = vector.extract_strided_slice %222 {offsets = [0, 48], sizes = [1, 16], strides = [1, 1]} : vector<1x64xf32> to vector<1x16xf32>
    %243 = arith.negf %242 : vector<1x16xf32>
    %244 = math.exp %243 : vector<1x16xf32>
    %cst_67 = arith.constant 1.000000e+00 : f32
    %245 = vector.broadcast %cst_67 : f32 to vector<1x16xf32>
    %246 = arith.addf %245, %244 : vector<1x16xf32>
    %247 = arith.divf %245, %246 : vector<1x16xf32>
    %248 = arith.mulf %239, %183 : vector<1x16xf32>
    %249 = arith.mulf %233, %241 : vector<1x16xf32>
    %250 = arith.addf %248, %249 : vector<1x16xf32>
    %251 = math.tanh %250 : vector<1x16xf32>
    %252 = arith.mulf %247, %251 : vector<1x16xf32>
    %253 = vector.extract_strided_slice %227 {offsets = [0, 0], sizes = [1, 16], strides = [1, 1]} : vector<1x64xf32> to vector<1x16xf32>
    %254 = arith.negf %253 : vector<1x16xf32>
    %255 = math.exp %254 : vector<1x16xf32>
    %cst_68 = arith.constant 1.000000e+00 : f32
    %256 = vector.broadcast %cst_68 : f32 to vector<1x16xf32>
    %257 = arith.addf %256, %255 : vector<1x16xf32>
    %258 = arith.divf %256, %257 : vector<1x16xf32>
    %259 = vector.extract_strided_slice %227 {offsets = [0, 16], sizes = [1, 16], strides = [1, 1]} : vector<1x64xf32> to vector<1x16xf32>
    %260 = arith.negf %259 : vector<1x16xf32>
    %261 = math.exp %260 : vector<1x16xf32>
    %cst_69 = arith.constant 1.000000e+00 : f32
    %262 = vector.broadcast %cst_69 : f32 to vector<1x16xf32>
    %263 = arith.addf %262, %261 : vector<1x16xf32>
    %264 = arith.divf %262, %263 : vector<1x16xf32>
    %265 = vector.extract_strided_slice %227 {offsets = [0, 32], sizes = [1, 16], strides = [1, 1]} : vector<1x64xf32> to vector<1x16xf32>
    %266 = math.tanh %265 : vector<1x16xf32>
    %267 = vector.extract_strided_slice %227 {offsets = [0, 48], sizes = [1, 16], strides = [1, 1]} : vector<1x64xf32> to vector<1x16xf32>
    %268 = arith.negf %267 : vector<1x16xf32>
    %269 = math.exp %268 : vector<1x16xf32>
    %cst_70 = arith.constant 1.000000e+00 : f32
    %270 = vector.broadcast %cst_70 : f32 to vector<1x16xf32>
    %271 = arith.addf %270, %269 : vector<1x16xf32>
    %272 = arith.divf %270, %271 : vector<1x16xf32>
    %273 = arith.mulf %264, %208 : vector<1x16xf32>
    %274 = arith.mulf %258, %266 : vector<1x16xf32>
    %275 = arith.addf %273, %274 : vector<1x16xf32>
    %276 = math.tanh %275 : vector<1x16xf32>
    %277 = arith.mulf %272, %276 : vector<1x16xf32>
    %278 = arith.index_cast %215 : i32 to index
    %c0_71 = arith.constant 0 : index
    %279 = vector.load %arg15[%278, %c0_71] : memref<8x16xf32, #tpu.memory_space<vmem>>, vector<1x16xf32>
    tpu.vector_store %arg15[%278, %c0_71], %252 {strides = array<i32>} : memref<8x16xf32, #tpu.memory_space<vmem>>, vector<1x16xf32>,
    %280 = arith.index_cast %217 : i32 to index
    %c0_72 = arith.constant 0 : index
    %281 = vector.load %arg16[%280, %c0_72] : memref<8x16xf32, #tpu.memory_space<vmem>>, vector<1x16xf32>
    tpu.vector_store %arg16[%280, %c0_72], %277 {strides = array<i32>} : memref<8x16xf32, #tpu.memory_space<vmem>>, vector<1x16xf32>,
    %c4_i32 = arith.constant 4 : i32
    %c1_i32_73 = arith.constant 1 : i32
    %282 = arith.muli %c4_i32, %c1_i32_73 : i32
    %c7_i32_74 = arith.constant 7 : i32
    %283 = arith.subi %c7_i32_74, %c4_i32 : i32
    %c1_i32_75 = arith.constant 1 : i32
    %284 = arith.muli %283, %c1_i32_75 : i32
    %285 = arith.index_cast %282 : i32 to index
    %c0_76 = arith.constant 0 : index
    %286 = vector.load %arg13[%285, %c0_76] : memref<8x64xf32, #tpu.memory_space<vmem>>, vector<1x64xf32>
    %287 = arith.truncf %252 : vector<1x16xf32> to vector<1x16xbf16>
    %cst_77 = arith.constant dense<0.000000e+00> : vector<1x64xf32>
    %288 = tpu.matmul %287, %11, %cst_77 {dimension_numbers = #tpu.dot_dimension_numbers<[1], [0], [0], [1], [0, 0, 1, 1], [], []>} : vector<1x16xbf16>, vector<16x64xbf16>, vector<1x64xf32> -> vector<1x64xf32>
    %289 = arith.addf %286, %288 : vector<1x64xf32>
    %290 = arith.index_cast %284 : i32 to index
    %c0_78 = arith.constant 0 : index
    %291 = vector.load %arg14[%290, %c0_78] : memref<8x64xf32, #tpu.memory_space<vmem>>, vector<1x64xf32>
    %292 = arith.truncf %277 : vector<1x16xf32> to vector<1x16xbf16>
    %cst_79 = arith.constant dense<0.000000e+00> : vector<1x64xf32>
    %293 = tpu.matmul %292, %12, %cst_79 {dimension_numbers = #tpu.dot_dimension_numbers<[1], [0], [0], [1], [0, 0, 1, 1], [], []>} : vector<1x16xbf16>, vector<16x64xbf16>, vector<1x64xf32> -> vector<1x64xf32>
    %294 = arith.addf %291, %293 : vector<1x64xf32>
    %295 = vector.extract_strided_slice %289 {offsets = [0, 0], sizes = [1, 16], strides = [1, 1]} : vector<1x64xf32> to vector<1x16xf32>
    %296 = arith.negf %295 : vector<1x16xf32>
    %297 = math.exp %296 : vector<1x16xf32>
    %cst_80 = arith.constant 1.000000e+00 : f32
    %298 = vector.broadcast %cst_80 : f32 to vector<1x16xf32>
    %299 = arith.addf %298, %297 : vector<1x16xf32>
    %300 = arith.divf %298, %299 : vector<1x16xf32>
    %301 = vector.extract_strided_slice %289 {offsets = [0, 16], sizes = [1, 16], strides = [1, 1]} : vector<1x64xf32> to vector<1x16xf32>
    %302 = arith.negf %301 : vector<1x16xf32>
    %303 = math.exp %302 : vector<1x16xf32>
    %cst_81 = arith.constant 1.000000e+00 : f32
    %304 = vector.broadcast %cst_81 : f32 to vector<1x16xf32>
    %305 = arith.addf %304, %303 : vector<1x16xf32>
    %306 = arith.divf %304, %305 : vector<1x16xf32>
    %307 = vector.extract_strided_slice %289 {offsets = [0, 32], sizes = [1, 16], strides = [1, 1]} : vector<1x64xf32> to vector<1x16xf32>
    %308 = math.tanh %307 : vector<1x16xf32>
    %309 = vector.extract_strided_slice %289 {offsets = [0, 48], sizes = [1, 16], strides = [1, 1]} : vector<1x64xf32> to vector<1x16xf32>
    %310 = arith.negf %309 : vector<1x16xf32>
    %311 = math.exp %310 : vector<1x16xf32>
    %cst_82 = arith.constant 1.000000e+00 : f32
    %312 = vector.broadcast %cst_82 : f32 to vector<1x16xf32>
    %313 = arith.addf %312, %311 : vector<1x16xf32>
    %314 = arith.divf %312, %313 : vector<1x16xf32>
    %315 = arith.mulf %306, %250 : vector<1x16xf32>
    %316 = arith.mulf %300, %308 : vector<1x16xf32>
    %317 = arith.addf %315, %316 : vector<1x16xf32>
    %318 = math.tanh %317 : vector<1x16xf32>
    %319 = arith.mulf %314, %318 : vector<1x16xf32>
    %320 = vector.extract_strided_slice %294 {offsets = [0, 0], sizes = [1, 16], strides = [1, 1]} : vector<1x64xf32> to vector<1x16xf32>
    %321 = arith.negf %320 : vector<1x16xf32>
    %322 = math.exp %321 : vector<1x16xf32>
    %cst_83 = arith.constant 1.000000e+00 : f32
    %323 = vector.broadcast %cst_83 : f32 to vector<1x16xf32>
    %324 = arith.addf %323, %322 : vector<1x16xf32>
    %325 = arith.divf %323, %324 : vector<1x16xf32>
    %326 = vector.extract_strided_slice %294 {offsets = [0, 16], sizes = [1, 16], strides = [1, 1]} : vector<1x64xf32> to vector<1x16xf32>
    %327 = arith.negf %326 : vector<1x16xf32>
    %328 = math.exp %327 : vector<1x16xf32>
    %cst_84 = arith.constant 1.000000e+00 : f32
    %329 = vector.broadcast %cst_84 : f32 to vector<1x16xf32>
    %330 = arith.addf %329, %328 : vector<1x16xf32>
    %331 = arith.divf %329, %330 : vector<1x16xf32>
    %332 = vector.extract_strided_slice %294 {offsets = [0, 32], sizes = [1, 16], strides = [1, 1]} : vector<1x64xf32> to vector<1x16xf32>
    %333 = math.tanh %332 : vector<1x16xf32>
    %334 = vector.extract_strided_slice %294 {offsets = [0, 48], sizes = [1, 16], strides = [1, 1]} : vector<1x64xf32> to vector<1x16xf32>
    %335 = arith.negf %334 : vector<1x16xf32>
    %336 = math.exp %335 : vector<1x16xf32>
    %cst_85 = arith.constant 1.000000e+00 : f32
    %337 = vector.broadcast %cst_85 : f32 to vector<1x16xf32>
    %338 = arith.addf %337, %336 : vector<1x16xf32>
    %339 = arith.divf %337, %338 : vector<1x16xf32>
    %340 = arith.mulf %331, %275 : vector<1x16xf32>
    %341 = arith.mulf %325, %333 : vector<1x16xf32>
    %342 = arith.addf %340, %341 : vector<1x16xf32>
    %343 = math.tanh %342 : vector<1x16xf32>
    %344 = arith.mulf %339, %343 : vector<1x16xf32>
    %345 = arith.index_cast %282 : i32 to index
    %c0_86 = arith.constant 0 : index
    %346 = vector.load %arg15[%345, %c0_86] : memref<8x16xf32, #tpu.memory_space<vmem>>, vector<1x16xf32>
    tpu.vector_store %arg15[%345, %c0_86], %319 {strides = array<i32>} : memref<8x16xf32, #tpu.memory_space<vmem>>, vector<1x16xf32>,
    %347 = arith.index_cast %284 : i32 to index
    %c0_87 = arith.constant 0 : index
    %348 = vector.load %arg16[%347, %c0_87] : memref<8x16xf32, #tpu.memory_space<vmem>>, vector<1x16xf32>
    tpu.vector_store %arg16[%347, %c0_87], %344 {strides = array<i32>} : memref<8x16xf32, #tpu.memory_space<vmem>>, vector<1x16xf32>,
    %c5_i32 = arith.constant 5 : i32
    %c1_i32_88 = arith.constant 1 : i32
    %349 = arith.muli %c5_i32, %c1_i32_88 : i32
    %c7_i32_89 = arith.constant 7 : i32
    %350 = arith.subi %c7_i32_89, %c5_i32 : i32
    %c1_i32_90 = arith.constant 1 : i32
    %351 = arith.muli %350, %c1_i32_90 : i32
    %352 = arith.index_cast %349 : i32 to index
    %c0_91 = arith.constant 0 : index
    %353 = vector.load %arg13[%352, %c0_91] : memref<8x64xf32, #tpu.memory_space<vmem>>, vector<1x64xf32>
    %354 = arith.truncf %319 : vector<1x16xf32> to vector<1x16xbf16>
    %cst_92 = arith.constant dense<0.000000e+00> : vector<1x64xf32>
    %355 = tpu.matmul %354, %11, %cst_92 {dimension_numbers = #tpu.dot_dimension_numbers<[1], [0], [0], [1], [0, 0, 1, 1], [], []>} : vector<1x16xbf16>, vector<16x64xbf16>, vector<1x64xf32> -> vector<1x64xf32>
    %356 = arith.addf %353, %355 : vector<1x64xf32>
    %357 = arith.index_cast %351 : i32 to index
    %c0_93 = arith.constant 0 : index
    %358 = vector.load %arg14[%357, %c0_93] : memref<8x64xf32, #tpu.memory_space<vmem>>, vector<1x64xf32>
    %359 = arith.truncf %344 : vector<1x16xf32> to vector<1x16xbf16>
    %cst_94 = arith.constant dense<0.000000e+00> : vector<1x64xf32>
    %360 = tpu.matmul %359, %12, %cst_94 {dimension_numbers = #tpu.dot_dimension_numbers<[1], [0], [0], [1], [0, 0, 1, 1], [], []>} : vector<1x16xbf16>, vector<16x64xbf16>, vector<1x64xf32> -> vector<1x64xf32>
    %361 = arith.addf %358, %360 : vector<1x64xf32>
    %362 = vector.extract_strided_slice %356 {offsets = [0, 0], sizes = [1, 16], strides = [1, 1]} : vector<1x64xf32> to vector<1x16xf32>
    %363 = arith.negf %362 : vector<1x16xf32>
    %364 = math.exp %363 : vector<1x16xf32>
    %cst_95 = arith.constant 1.000000e+00 : f32
    %365 = vector.broadcast %cst_95 : f32 to vector<1x16xf32>
    %366 = arith.addf %365, %364 : vector<1x16xf32>
    %367 = arith.divf %365, %366 : vector<1x16xf32>
    %368 = vector.extract_strided_slice %356 {offsets = [0, 16], sizes = [1, 16], strides = [1, 1]} : vector<1x64xf32> to vector<1x16xf32>
    %369 = arith.negf %368 : vector<1x16xf32>
    %370 = math.exp %369 : vector<1x16xf32>
    %cst_96 = arith.constant 1.000000e+00 : f32
    %371 = vector.broadcast %cst_96 : f32 to vector<1x16xf32>
    %372 = arith.addf %371, %370 : vector<1x16xf32>
    %373 = arith.divf %371, %372 : vector<1x16xf32>
    %374 = vector.extract_strided_slice %356 {offsets = [0, 32], sizes = [1, 16], strides = [1, 1]} : vector<1x64xf32> to vector<1x16xf32>
    %375 = math.tanh %374 : vector<1x16xf32>
    %376 = vector.extract_strided_slice %356 {offsets = [0, 48], sizes = [1, 16], strides = [1, 1]} : vector<1x64xf32> to vector<1x16xf32>
    %377 = arith.negf %376 : vector<1x16xf32>
    %378 = math.exp %377 : vector<1x16xf32>
    %cst_97 = arith.constant 1.000000e+00 : f32
    %379 = vector.broadcast %cst_97 : f32 to vector<1x16xf32>
    %380 = arith.addf %379, %378 : vector<1x16xf32>
    %381 = arith.divf %379, %380 : vector<1x16xf32>
    %382 = arith.mulf %373, %317 : vector<1x16xf32>
    %383 = arith.mulf %367, %375 : vector<1x16xf32>
    %384 = arith.addf %382, %383 : vector<1x16xf32>
    %385 = math.tanh %384 : vector<1x16xf32>
    %386 = arith.mulf %381, %385 : vector<1x16xf32>
    %387 = vector.extract_strided_slice %361 {offsets = [0, 0], sizes = [1, 16], strides = [1, 1]} : vector<1x64xf32> to vector<1x16xf32>
    %388 = arith.negf %387 : vector<1x16xf32>
    %389 = math.exp %388 : vector<1x16xf32>
    %cst_98 = arith.constant 1.000000e+00 : f32
    %390 = vector.broadcast %cst_98 : f32 to vector<1x16xf32>
    %391 = arith.addf %390, %389 : vector<1x16xf32>
    %392 = arith.divf %390, %391 : vector<1x16xf32>
    %393 = vector.extract_strided_slice %361 {offsets = [0, 16], sizes = [1, 16], strides = [1, 1]} : vector<1x64xf32> to vector<1x16xf32>
    %394 = arith.negf %393 : vector<1x16xf32>
    %395 = math.exp %394 : vector<1x16xf32>
    %cst_99 = arith.constant 1.000000e+00 : f32
    %396 = vector.broadcast %cst_99 : f32 to vector<1x16xf32>
    %397 = arith.addf %396, %395 : vector<1x16xf32>
    %398 = arith.divf %396, %397 : vector<1x16xf32>
    %399 = vector.extract_strided_slice %361 {offsets = [0, 32], sizes = [1, 16], strides = [1, 1]} : vector<1x64xf32> to vector<1x16xf32>
    %400 = math.tanh %399 : vector<1x16xf32>
    %401 = vector.extract_strided_slice %361 {offsets = [0, 48], sizes = [1, 16], strides = [1, 1]} : vector<1x64xf32> to vector<1x16xf32>
    %402 = arith.negf %401 : vector<1x16xf32>
    %403 = math.exp %402 : vector<1x16xf32>
    %cst_100 = arith.constant 1.000000e+00 : f32
    %404 = vector.broadcast %cst_100 : f32 to vector<1x16xf32>
    %405 = arith.addf %404, %403 : vector<1x16xf32>
    %406 = arith.divf %404, %405 : vector<1x16xf32>
    %407 = arith.mulf %398, %342 : vector<1x16xf32>
    %408 = arith.mulf %392, %400 : vector<1x16xf32>
    %409 = arith.addf %407, %408 : vector<1x16xf32>
    %410 = math.tanh %409 : vector<1x16xf32>
    %411 = arith.mulf %406, %410 : vector<1x16xf32>
    %412 = arith.index_cast %349 : i32 to index
    %c0_101 = arith.constant 0 : index
    %413 = vector.load %arg15[%412, %c0_101] : memref<8x16xf32, #tpu.memory_space<vmem>>, vector<1x16xf32>
    tpu.vector_store %arg15[%412, %c0_101], %386 {strides = array<i32>} : memref<8x16xf32, #tpu.memory_space<vmem>>, vector<1x16xf32>,
    %414 = arith.index_cast %351 : i32 to index
    %c0_102 = arith.constant 0 : index
    %415 = vector.load %arg16[%414, %c0_102] : memref<8x16xf32, #tpu.memory_space<vmem>>, vector<1x16xf32>
    tpu.vector_store %arg16[%414, %c0_102], %411 {strides = array<i32>} : memref<8x16xf32, #tpu.memory_space<vmem>>, vector<1x16xf32>,
    %c6_i32 = arith.constant 6 : i32
    %c1_i32_103 = arith.constant 1 : i32
    %416 = arith.muli %c6_i32, %c1_i32_103 : i32
    %c7_i32_104 = arith.constant 7 : i32
    %417 = arith.subi %c7_i32_104, %c6_i32 : i32
    %c1_i32_105 = arith.constant 1 : i32
    %418 = arith.muli %417, %c1_i32_105 : i32
    %419 = arith.index_cast %416 : i32 to index
    %c0_106 = arith.constant 0 : index
    %420 = vector.load %arg13[%419, %c0_106] : memref<8x64xf32, #tpu.memory_space<vmem>>, vector<1x64xf32>
    %421 = arith.truncf %386 : vector<1x16xf32> to vector<1x16xbf16>
    %cst_107 = arith.constant dense<0.000000e+00> : vector<1x64xf32>
    %422 = tpu.matmul %421, %11, %cst_107 {dimension_numbers = #tpu.dot_dimension_numbers<[1], [0], [0], [1], [0, 0, 1, 1], [], []>} : vector<1x16xbf16>, vector<16x64xbf16>, vector<1x64xf32> -> vector<1x64xf32>
    %423 = arith.addf %420, %422 : vector<1x64xf32>
    %424 = arith.index_cast %418 : i32 to index
    %c0_108 = arith.constant 0 : index
    %425 = vector.load %arg14[%424, %c0_108] : memref<8x64xf32, #tpu.memory_space<vmem>>, vector<1x64xf32>
    %426 = arith.truncf %411 : vector<1x16xf32> to vector<1x16xbf16>
    %cst_109 = arith.constant dense<0.000000e+00> : vector<1x64xf32>
    %427 = tpu.matmul %426, %12, %cst_109 {dimension_numbers = #tpu.dot_dimension_numbers<[1], [0], [0], [1], [0, 0, 1, 1], [], []>} : vector<1x16xbf16>, vector<16x64xbf16>, vector<1x64xf32> -> vector<1x64xf32>
    %428 = arith.addf %425, %427 : vector<1x64xf32>
    %429 = vector.extract_strided_slice %423 {offsets = [0, 0], sizes = [1, 16], strides = [1, 1]} : vector<1x64xf32> to vector<1x16xf32>
    %430 = arith.negf %429 : vector<1x16xf32>
    %431 = math.exp %430 : vector<1x16xf32>
    %cst_110 = arith.constant 1.000000e+00 : f32
    %432 = vector.broadcast %cst_110 : f32 to vector<1x16xf32>
    %433 = arith.addf %432, %431 : vector<1x16xf32>
    %434 = arith.divf %432, %433 : vector<1x16xf32>
    %435 = vector.extract_strided_slice %423 {offsets = [0, 16], sizes = [1, 16], strides = [1, 1]} : vector<1x64xf32> to vector<1x16xf32>
    %436 = arith.negf %435 : vector<1x16xf32>
    %437 = math.exp %436 : vector<1x16xf32>
    %cst_111 = arith.constant 1.000000e+00 : f32
    %438 = vector.broadcast %cst_111 : f32 to vector<1x16xf32>
    %439 = arith.addf %438, %437 : vector<1x16xf32>
    %440 = arith.divf %438, %439 : vector<1x16xf32>
    %441 = vector.extract_strided_slice %423 {offsets = [0, 32], sizes = [1, 16], strides = [1, 1]} : vector<1x64xf32> to vector<1x16xf32>
    %442 = math.tanh %441 : vector<1x16xf32>
    %443 = vector.extract_strided_slice %423 {offsets = [0, 48], sizes = [1, 16], strides = [1, 1]} : vector<1x64xf32> to vector<1x16xf32>
    %444 = arith.negf %443 : vector<1x16xf32>
    %445 = math.exp %444 : vector<1x16xf32>
    %cst_112 = arith.constant 1.000000e+00 : f32
    %446 = vector.broadcast %cst_112 : f32 to vector<1x16xf32>
    %447 = arith.addf %446, %445 : vector<1x16xf32>
    %448 = arith.divf %446, %447 : vector<1x16xf32>
    %449 = arith.mulf %440, %384 : vector<1x16xf32>
    %450 = arith.mulf %434, %442 : vector<1x16xf32>
    %451 = arith.addf %449, %450 : vector<1x16xf32>
    %452 = math.tanh %451 : vector<1x16xf32>
    %453 = arith.mulf %448, %452 : vector<1x16xf32>
    %454 = vector.extract_strided_slice %428 {offsets = [0, 0], sizes = [1, 16], strides = [1, 1]} : vector<1x64xf32> to vector<1x16xf32>
    %455 = arith.negf %454 : vector<1x16xf32>
    %456 = math.exp %455 : vector<1x16xf32>
    %cst_113 = arith.constant 1.000000e+00 : f32
    %457 = vector.broadcast %cst_113 : f32 to vector<1x16xf32>
    %458 = arith.addf %457, %456 : vector<1x16xf32>
    %459 = arith.divf %457, %458 : vector<1x16xf32>
    %460 = vector.extract_strided_slice %428 {offsets = [0, 16], sizes = [1, 16], strides = [1, 1]} : vector<1x64xf32> to vector<1x16xf32>
    %461 = arith.negf %460 : vector<1x16xf32>
    %462 = math.exp %461 : vector<1x16xf32>
    %cst_114 = arith.constant 1.000000e+00 : f32
    %463 = vector.broadcast %cst_114 : f32 to vector<1x16xf32>
    %464 = arith.addf %463, %462 : vector<1x16xf32>
    %465 = arith.divf %463, %464 : vector<1x16xf32>
    %466 = vector.extract_strided_slice %428 {offsets = [0, 32], sizes = [1, 16], strides = [1, 1]} : vector<1x64xf32> to vector<1x16xf32>
    %467 = math.tanh %466 : vector<1x16xf32>
    %468 = vector.extract_strided_slice %428 {offsets = [0, 48], sizes = [1, 16], strides = [1, 1]} : vector<1x64xf32> to vector<1x16xf32>
    %469 = arith.negf %468 : vector<1x16xf32>
    %470 = math.exp %469 : vector<1x16xf32>
    %cst_115 = arith.constant 1.000000e+00 : f32
    %471 = vector.broadcast %cst_115 : f32 to vector<1x16xf32>
    %472 = arith.addf %471, %470 : vector<1x16xf32>
    %473 = arith.divf %471, %472 : vector<1x16xf32>
    %474 = arith.mulf %465, %409 : vector<1x16xf32>
    %475 = arith.mulf %459, %467 : vector<1x16xf32>
    %476 = arith.addf %474, %475 : vector<1x16xf32>
    %477 = math.tanh %476 : vector<1x16xf32>
    %478 = arith.mulf %473, %477 : vector<1x16xf32>
    %479 = arith.index_cast %416 : i32 to index
    %c0_116 = arith.constant 0 : index
    %480 = vector.load %arg15[%479, %c0_116] : memref<8x16xf32, #tpu.memory_space<vmem>>, vector<1x16xf32>
    tpu.vector_store %arg15[%479, %c0_116], %453 {strides = array<i32>} : memref<8x16xf32, #tpu.memory_space<vmem>>, vector<1x16xf32>,
    %481 = arith.index_cast %418 : i32 to index
    %c0_117 = arith.constant 0 : index
    %482 = vector.load %arg16[%481, %c0_117] : memref<8x16xf32, #tpu.memory_space<vmem>>, vector<1x16xf32>
    tpu.vector_store %arg16[%481, %c0_117], %478 {strides = array<i32>} : memref<8x16xf32, #tpu.memory_space<vmem>>, vector<1x16xf32>,
    %c7_i32_118 = arith.constant 7 : i32
    %c1_i32_119 = arith.constant 1 : i32
    %483 = arith.muli %c7_i32_118, %c1_i32_119 : i32
    %c7_i32_120 = arith.constant 7 : i32
    %484 = arith.subi %c7_i32_120, %c7_i32_118 : i32
    %c1_i32_121 = arith.constant 1 : i32
    %485 = arith.muli %484, %c1_i32_121 : i32
    %486 = arith.index_cast %483 : i32 to index
    %c0_122 = arith.constant 0 : index
    %487 = vector.load %arg13[%486, %c0_122] : memref<8x64xf32, #tpu.memory_space<vmem>>, vector<1x64xf32>
    %488 = arith.truncf %453 : vector<1x16xf32> to vector<1x16xbf16>
    %cst_123 = arith.constant dense<0.000000e+00> : vector<1x64xf32>
    %489 = tpu.matmul %488, %11, %cst_123 {dimension_numbers = #tpu.dot_dimension_numbers<[1], [0], [0], [1], [0, 0, 1, 1], [], []>} : vector<1x16xbf16>, vector<16x64xbf16>, vector<1x64xf32> -> vector<1x64xf32>
    %490 = arith.addf %487, %489 : vector<1x64xf32>
    %491 = arith.index_cast %485 : i32 to index
    %c0_124 = arith.constant 0 : index
    %492 = vector.load %arg14[%491, %c0_124] : memref<8x64xf32, #tpu.memory_space<vmem>>, vector<1x64xf32>
    %493 = arith.truncf %478 : vector<1x16xf32> to vector<1x16xbf16>
    %cst_125 = arith.constant dense<0.000000e+00> : vector<1x64xf32>
    %494 = tpu.matmul %493, %12, %cst_125 {dimension_numbers = #tpu.dot_dimension_numbers<[1], [0], [0], [1], [0, 0, 1, 1], [], []>} : vector<1x16xbf16>, vector<16x64xbf16>, vector<1x64xf32> -> vector<1x64xf32>
    %495 = arith.addf %492, %494 : vector<1x64xf32>
    %496 = vector.extract_strided_slice %490 {offsets = [0, 0], sizes = [1, 16], strides = [1, 1]} : vector<1x64xf32> to vector<1x16xf32>
    %497 = arith.negf %496 : vector<1x16xf32>
    %498 = math.exp %497 : vector<1x16xf32>
    %cst_126 = arith.constant 1.000000e+00 : f32
    %499 = vector.broadcast %cst_126 : f32 to vector<1x16xf32>
    %500 = arith.addf %499, %498 : vector<1x16xf32>
    %501 = arith.divf %499, %500 : vector<1x16xf32>
    %502 = vector.extract_strided_slice %490 {offsets = [0, 16], sizes = [1, 16], strides = [1, 1]} : vector<1x64xf32> to vector<1x16xf32>
    %503 = arith.negf %502 : vector<1x16xf32>
    %504 = math.exp %503 : vector<1x16xf32>
    %cst_127 = arith.constant 1.000000e+00 : f32
    %505 = vector.broadcast %cst_127 : f32 to vector<1x16xf32>
    %506 = arith.addf %505, %504 : vector<1x16xf32>
    %507 = arith.divf %505, %506 : vector<1x16xf32>
    %508 = vector.extract_strided_slice %490 {offsets = [0, 32], sizes = [1, 16], strides = [1, 1]} : vector<1x64xf32> to vector<1x16xf32>
    %509 = math.tanh %508 : vector<1x16xf32>
    %510 = vector.extract_strided_slice %490 {offsets = [0, 48], sizes = [1, 16], strides = [1, 1]} : vector<1x64xf32> to vector<1x16xf32>
    %511 = arith.negf %510 : vector<1x16xf32>
    %512 = math.exp %511 : vector<1x16xf32>
    %cst_128 = arith.constant 1.000000e+00 : f32
    %513 = vector.broadcast %cst_128 : f32 to vector<1x16xf32>
    %514 = arith.addf %513, %512 : vector<1x16xf32>
    %515 = arith.divf %513, %514 : vector<1x16xf32>
    %516 = arith.mulf %507, %451 : vector<1x16xf32>
    %517 = arith.mulf %501, %509 : vector<1x16xf32>
    %518 = arith.addf %516, %517 : vector<1x16xf32>
    %519 = math.tanh %518 : vector<1x16xf32>
    %520 = arith.mulf %515, %519 : vector<1x16xf32>
    %521 = vector.extract_strided_slice %495 {offsets = [0, 0], sizes = [1, 16], strides = [1, 1]} : vector<1x64xf32> to vector<1x16xf32>
    %522 = arith.negf %521 : vector<1x16xf32>
    %523 = math.exp %522 : vector<1x16xf32>
    %cst_129 = arith.constant 1.000000e+00 : f32
    %524 = vector.broadcast %cst_129 : f32 to vector<1x16xf32>
    %525 = arith.addf %524, %523 : vector<1x16xf32>
    %526 = arith.divf %524, %525 : vector<1x16xf32>
    %527 = vector.extract_strided_slice %495 {offsets = [0, 16], sizes = [1, 16], strides = [1, 1]} : vector<1x64xf32> to vector<1x16xf32>
    %528 = arith.negf %527 : vector<1x16xf32>
    %529 = math.exp %528 : vector<1x16xf32>
    %cst_130 = arith.constant 1.000000e+00 : f32
    %530 = vector.broadcast %cst_130 : f32 to vector<1x16xf32>
    %531 = arith.addf %530, %529 : vector<1x16xf32>
    %532 = arith.divf %530, %531 : vector<1x16xf32>
    %533 = vector.extract_strided_slice %495 {offsets = [0, 32], sizes = [1, 16], strides = [1, 1]} : vector<1x64xf32> to vector<1x16xf32>
    %534 = math.tanh %533 : vector<1x16xf32>
    %535 = vector.extract_strided_slice %495 {offsets = [0, 48], sizes = [1, 16], strides = [1, 1]} : vector<1x64xf32> to vector<1x16xf32>
    %536 = arith.negf %535 : vector<1x16xf32>
    %537 = math.exp %536 : vector<1x16xf32>
    %cst_131 = arith.constant 1.000000e+00 : f32
    %538 = vector.broadcast %cst_131 : f32 to vector<1x16xf32>
    %539 = arith.addf %538, %537 : vector<1x16xf32>
    %540 = arith.divf %538, %539 : vector<1x16xf32>
    %541 = arith.mulf %532, %476 : vector<1x16xf32>
    %542 = arith.mulf %526, %534 : vector<1x16xf32>
    %543 = arith.addf %541, %542 : vector<1x16xf32>
    %544 = math.tanh %543 : vector<1x16xf32>
    %545 = arith.mulf %540, %544 : vector<1x16xf32>
    %546 = arith.index_cast %483 : i32 to index
    %c0_132 = arith.constant 0 : index
    %547 = vector.load %arg15[%546, %c0_132] : memref<8x16xf32, #tpu.memory_space<vmem>>, vector<1x16xf32>
    tpu.vector_store %arg15[%546, %c0_132], %520 {strides = array<i32>} : memref<8x16xf32, #tpu.memory_space<vmem>>, vector<1x16xf32>,
    %548 = arith.index_cast %485 : i32 to index
    %c0_133 = arith.constant 0 : index
    %549 = vector.load %arg16[%548, %c0_133] : memref<8x16xf32, #tpu.memory_space<vmem>>, vector<1x16xf32>
    tpu.vector_store %arg16[%548, %c0_133], %545 {strides = array<i32>} : memref<8x16xf32, #tpu.memory_space<vmem>>, vector<1x16xf32>,
    %c8_i32 = arith.constant 8 : i32
    %c0_134 = arith.constant 0 : index
    %c0_135 = arith.constant 0 : index
    %550 = vector.load %arg15[%c0_134, %c0_135] : memref<8x16xf32, #tpu.memory_space<vmem>>, vector<8x16xf32>
    %551 = arith.truncf %550 : vector<8x16xf32> to vector<8x16xbf16>
    %c0_136 = arith.constant 0 : index
    %c0_137 = arith.constant 0 : index
    %552 = vector.load %arg6[%c0_136, %c0_137] : memref<32x128xbf16, #tpu.memory_space<vmem>>, vector<16x128xbf16>
    %cst_138 = arith.constant dense<0.000000e+00> : vector<8x128xf32>
    %553 = tpu.matmul %551, %552, %cst_138 {dimension_numbers = #tpu.dot_dimension_numbers<[1], [0], [0], [1], [0, 0, 1, 1], [], []>} : vector<8x16xbf16>, vector<16x128xbf16>, vector<8x128xf32> -> vector<8x128xf32>
    %c0_139 = arith.constant 0 : index
    %c0_140 = arith.constant 0 : index
    %554 = vector.load %arg16[%c0_139, %c0_140] : memref<8x16xf32, #tpu.memory_space<vmem>>, vector<8x16xf32>
    %555 = arith.truncf %554 : vector<8x16xf32> to vector<8x16xbf16>
    %c16 = arith.constant 16 : index
    %c0_141 = arith.constant 0 : index
    %556 = vector.load %arg6[%c16, %c0_141] : memref<32x128xbf16, #tpu.memory_space<vmem>>, vector<16x128xbf16>
    %cst_142 = arith.constant dense<0.000000e+00> : vector<8x128xf32>
    %557 = tpu.matmul %555, %556, %cst_142 {dimension_numbers = #tpu.dot_dimension_numbers<[1], [0], [0], [1], [0, 0, 1, 1], [], []>} : vector<8x16xbf16>, vector<16x128xbf16>, vector<8x128xf32> -> vector<8x128xf32>
    %558 = arith.addf %553, %557 : vector<8x128xf32>
    %c0_143 = arith.constant 0 : index
    %c0_144 = arith.constant 0 : index
    %559 = vector.load %arg9[%c0_143, %c0_144] : memref<1x128xf32, #tpu.memory_space<vmem>>, vector<1x128xf32>
    %560 = vector.broadcast %559 : vector<1x128xf32> to vector<8x128xf32>
    %561 = arith.addf %558, %560 : vector<8x128xf32>
    %562 = vector.extract_strided_slice %561 {offsets = [0, 0], sizes = [8, 64], strides = [1, 1]} : vector<8x128xf32> to vector<8x64xf32>
    %c0_145 = arith.constant 0 : index
    %c0_146 = arith.constant 0 : index
    %563 = vector.load %arg13[%c0_145, %c0_146] : memref<8x64xf32, #tpu.memory_space<vmem>>, vector<8x64xf32>
    tpu.vector_store %arg13[%c0_145, %c0_146], %562 {strides = array<i32>} : memref<8x64xf32, #tpu.memory_space<vmem>>, vector<8x64xf32>,
    %564 = vector.extract_strided_slice %561 {offsets = [0, 64], sizes = [8, 64], strides = [1, 1]} : vector<8x128xf32> to vector<8x64xf32>
    %c0_147 = arith.constant 0 : index
    %c0_148 = arith.constant 0 : index
    %565 = vector.load %arg14[%c0_147, %c0_148] : memref<8x64xf32, #tpu.memory_space<vmem>>, vector<8x64xf32>
    tpu.vector_store %arg14[%c0_147, %c0_148], %564 {strides = array<i32>} : memref<8x64xf32, #tpu.memory_space<vmem>>, vector<8x64xf32>,
    %c0_149 = arith.constant 0 : index
    %c0_150 = arith.constant 0 : index
    %566 = vector.load %arg7[%c0_149, %c0_150] : memref<16x64xbf16, #tpu.memory_space<vmem>>, vector<16x64xbf16>
    %c0_151 = arith.constant 0 : index
    %c0_152 = arith.constant 0 : index
    %567 = vector.load %arg8[%c0_151, %c0_152] : memref<16x64xbf16, #tpu.memory_space<vmem>>, vector<16x64xbf16>
    %cst_153 = arith.constant 0.000000e+00 : f32
    %568 = vector.broadcast %cst_153 : f32 to vector<1x16xf32>
    %c0_i32_154 = arith.constant 0 : i32
    %c1_i32_155 = arith.constant 1 : i32
    %569 = arith.muli %c0_i32_154, %c1_i32_155 : i32
    %c7_i32_156 = arith.constant 7 : i32
    %570 = arith.subi %c7_i32_156, %c0_i32_154 : i32
    %c1_i32_157 = arith.constant 1 : i32
    %571 = arith.muli %570, %c1_i32_157 : i32
    %572 = arith.index_cast %569 : i32 to index
    %c0_158 = arith.constant 0 : index
    %573 = vector.load %arg13[%572, %c0_158] : memref<8x64xf32, #tpu.memory_space<vmem>>, vector<1x64xf32>
    %574 = arith.truncf %568 : vector<1x16xf32> to vector<1x16xbf16>
    %cst_159 = arith.constant dense<0.000000e+00> : vector<1x64xf32>
    %575 = tpu.matmul %574, %566, %cst_159 {dimension_numbers = #tpu.dot_dimension_numbers<[1], [0], [0], [1], [0, 0, 1, 1], [], []>} : vector<1x16xbf16>, vector<16x64xbf16>, vector<1x64xf32> -> vector<1x64xf32>
    %576 = arith.addf %573, %575 : vector<1x64xf32>
    %577 = arith.index_cast %571 : i32 to index
    %c0_160 = arith.constant 0 : index
    %578 = vector.load %arg14[%577, %c0_160] : memref<8x64xf32, #tpu.memory_space<vmem>>, vector<1x64xf32>
    %579 = arith.truncf %568 : vector<1x16xf32> to vector<1x16xbf16>
    %cst_161 = arith.constant dense<0.000000e+00> : vector<1x64xf32>
    %580 = tpu.matmul %579, %567, %cst_161 {dimension_numbers = #tpu.dot_dimension_numbers<[1], [0], [0], [1], [0, 0, 1, 1], [], []>} : vector<1x16xbf16>, vector<16x64xbf16>, vector<1x64xf32> -> vector<1x64xf32>
    %581 = arith.addf %578, %580 : vector<1x64xf32>
    %582 = vector.extract_strided_slice %576 {offsets = [0, 0], sizes = [1, 16], strides = [1, 1]} : vector<1x64xf32> to vector<1x16xf32>
    %583 = arith.negf %582 : vector<1x16xf32>
    %584 = math.exp %583 : vector<1x16xf32>
    %cst_162 = arith.constant 1.000000e+00 : f32
    %585 = vector.broadcast %cst_162 : f32 to vector<1x16xf32>
    %586 = arith.addf %585, %584 : vector<1x16xf32>
    %587 = arith.divf %585, %586 : vector<1x16xf32>
    %588 = vector.extract_strided_slice %576 {offsets = [0, 16], sizes = [1, 16], strides = [1, 1]} : vector<1x64xf32> to vector<1x16xf32>
    %589 = arith.negf %588 : vector<1x16xf32>
    %590 = math.exp %589 : vector<1x16xf32>
    %cst_163 = arith.constant 1.000000e+00 : f32
    %591 = vector.broadcast %cst_163 : f32 to vector<1x16xf32>
    %592 = arith.addf %591, %590 : vector<1x16xf32>
    %593 = arith.divf %591, %592 : vector<1x16xf32>
    %594 = vector.extract_strided_slice %576 {offsets = [0, 32], sizes = [1, 16], strides = [1, 1]} : vector<1x64xf32> to vector<1x16xf32>
    %595 = math.tanh %594 : vector<1x16xf32>
    %596 = vector.extract_strided_slice %576 {offsets = [0, 48], sizes = [1, 16], strides = [1, 1]} : vector<1x64xf32> to vector<1x16xf32>
    %597 = arith.negf %596 : vector<1x16xf32>
    %598 = math.exp %597 : vector<1x16xf32>
    %cst_164 = arith.constant 1.000000e+00 : f32
    %599 = vector.broadcast %cst_164 : f32 to vector<1x16xf32>
    %600 = arith.addf %599, %598 : vector<1x16xf32>
    %601 = arith.divf %599, %600 : vector<1x16xf32>
    %602 = arith.mulf %593, %568 : vector<1x16xf32>
    %603 = arith.mulf %587, %595 : vector<1x16xf32>
    %604 = arith.addf %602, %603 : vector<1x16xf32>
    %605 = math.tanh %604 : vector<1x16xf32>
    %606 = arith.mulf %601, %605 : vector<1x16xf32>
    %607 = vector.extract_strided_slice %581 {offsets = [0, 0], sizes = [1, 16], strides = [1, 1]} : vector<1x64xf32> to vector<1x16xf32>
    %608 = arith.negf %607 : vector<1x16xf32>
    %609 = math.exp %608 : vector<1x16xf32>
    %cst_165 = arith.constant 1.000000e+00 : f32
    %610 = vector.broadcast %cst_165 : f32 to vector<1x16xf32>
    %611 = arith.addf %610, %609 : vector<1x16xf32>
    %612 = arith.divf %610, %611 : vector<1x16xf32>
    %613 = vector.extract_strided_slice %581 {offsets = [0, 16], sizes = [1, 16], strides = [1, 1]} : vector<1x64xf32> to vector<1x16xf32>
    %614 = arith.negf %613 : vector<1x16xf32>
    %615 = math.exp %614 : vector<1x16xf32>
    %cst_166 = arith.constant 1.000000e+00 : f32
    %616 = vector.broadcast %cst_166 : f32 to vector<1x16xf32>
    %617 = arith.addf %616, %615 : vector<1x16xf32>
    %618 = arith.divf %616, %617 : vector<1x16xf32>
    %619 = vector.extract_strided_slice %581 {offsets = [0, 32], sizes = [1, 16], strides = [1, 1]} : vector<1x64xf32> to vector<1x16xf32>
    %620 = math.tanh %619 : vector<1x16xf32>
    %621 = vector.extract_strided_slice %581 {offsets = [0, 48], sizes = [1, 16], strides = [1, 1]} : vector<1x64xf32> to vector<1x16xf32>
    %622 = arith.negf %621 : vector<1x16xf32>
    %623 = math.exp %622 : vector<1x16xf32>
    %cst_167 = arith.constant 1.000000e+00 : f32
    %624 = vector.broadcast %cst_167 : f32 to vector<1x16xf32>
    %625 = arith.addf %624, %623 : vector<1x16xf32>
    %626 = arith.divf %624, %625 : vector<1x16xf32>
    %627 = arith.mulf %618, %568 : vector<1x16xf32>
    %628 = arith.mulf %612, %620 : vector<1x16xf32>
    %629 = arith.addf %627, %628 : vector<1x16xf32>
    %630 = math.tanh %629 : vector<1x16xf32>
    %631 = arith.mulf %626, %630 : vector<1x16xf32>
    %632 = arith.index_cast %569 : i32 to index
    %c0_168 = arith.constant 0 : index
    %633 = vector.load %arg15[%632, %c0_168] : memref<8x16xf32, #tpu.memory_space<vmem>>, vector<1x16xf32>
    tpu.vector_store %arg15[%632, %c0_168], %606 {strides = array<i32>} : memref<8x16xf32, #tpu.memory_space<vmem>>, vector<1x16xf32>,
    %634 = arith.index_cast %571 : i32 to index
    %c0_169 = arith.constant 0 : index
    %635 = vector.load %arg16[%634, %c0_169] : memref<8x16xf32, #tpu.memory_space<vmem>>, vector<1x16xf32>
    tpu.vector_store %arg16[%634, %c0_169], %631 {strides = array<i32>} : memref<8x16xf32, #tpu.memory_space<vmem>>, vector<1x16xf32>,
    %c1_i32_170 = arith.constant 1 : i32
    %c1_i32_171 = arith.constant 1 : i32
    %636 = arith.muli %c1_i32_170, %c1_i32_171 : i32
    %c7_i32_172 = arith.constant 7 : i32
    %637 = arith.subi %c7_i32_172, %c1_i32_170 : i32
    %c1_i32_173 = arith.constant 1 : i32
    %638 = arith.muli %637, %c1_i32_173 : i32
    %639 = arith.index_cast %636 : i32 to index
    %c0_174 = arith.constant 0 : index
    %640 = vector.load %arg13[%639, %c0_174] : memref<8x64xf32, #tpu.memory_space<vmem>>, vector<1x64xf32>
    %641 = arith.truncf %606 : vector<1x16xf32> to vector<1x16xbf16>
    %cst_175 = arith.constant dense<0.000000e+00> : vector<1x64xf32>
    %642 = tpu.matmul %641, %566, %cst_175 {dimension_numbers = #tpu.dot_dimension_numbers<[1], [0], [0], [1], [0, 0, 1, 1], [], []>} : vector<1x16xbf16>, vector<16x64xbf16>, vector<1x64xf32> -> vector<1x64xf32>
    %643 = arith.addf %640, %642 : vector<1x64xf32>
    %644 = arith.index_cast %638 : i32 to index
    %c0_176 = arith.constant 0 : index
    %645 = vector.load %arg14[%644, %c0_176] : memref<8x64xf32, #tpu.memory_space<vmem>>, vector<1x64xf32>
    %646 = arith.truncf %631 : vector<1x16xf32> to vector<1x16xbf16>
    %cst_177 = arith.constant dense<0.000000e+00> : vector<1x64xf32>
    %647 = tpu.matmul %646, %567, %cst_177 {dimension_numbers = #tpu.dot_dimension_numbers<[1], [0], [0], [1], [0, 0, 1, 1], [], []>} : vector<1x16xbf16>, vector<16x64xbf16>, vector<1x64xf32> -> vector<1x64xf32>
    %648 = arith.addf %645, %647 : vector<1x64xf32>
    %649 = vector.extract_strided_slice %643 {offsets = [0, 0], sizes = [1, 16], strides = [1, 1]} : vector<1x64xf32> to vector<1x16xf32>
    %650 = arith.negf %649 : vector<1x16xf32>
    %651 = math.exp %650 : vector<1x16xf32>
    %cst_178 = arith.constant 1.000000e+00 : f32
    %652 = vector.broadcast %cst_178 : f32 to vector<1x16xf32>
    %653 = arith.addf %652, %651 : vector<1x16xf32>
    %654 = arith.divf %652, %653 : vector<1x16xf32>
    %655 = vector.extract_strided_slice %643 {offsets = [0, 16], sizes = [1, 16], strides = [1, 1]} : vector<1x64xf32> to vector<1x16xf32>
    %656 = arith.negf %655 : vector<1x16xf32>
    %657 = math.exp %656 : vector<1x16xf32>
    %cst_179 = arith.constant 1.000000e+00 : f32
    %658 = vector.broadcast %cst_179 : f32 to vector<1x16xf32>
    %659 = arith.addf %658, %657 : vector<1x16xf32>
    %660 = arith.divf %658, %659 : vector<1x16xf32>
    %661 = vector.extract_strided_slice %643 {offsets = [0, 32], sizes = [1, 16], strides = [1, 1]} : vector<1x64xf32> to vector<1x16xf32>
    %662 = math.tanh %661 : vector<1x16xf32>
    %663 = vector.extract_strided_slice %643 {offsets = [0, 48], sizes = [1, 16], strides = [1, 1]} : vector<1x64xf32> to vector<1x16xf32>
    %664 = arith.negf %663 : vector<1x16xf32>
    %665 = math.exp %664 : vector<1x16xf32>
    %cst_180 = arith.constant 1.000000e+00 : f32
    %666 = vector.broadcast %cst_180 : f32 to vector<1x16xf32>
    %667 = arith.addf %666, %665 : vector<1x16xf32>
    %668 = arith.divf %666, %667 : vector<1x16xf32>
    %669 = arith.mulf %660, %604 : vector<1x16xf32>
    %670 = arith.mulf %654, %662 : vector<1x16xf32>
    %671 = arith.addf %669, %670 : vector<1x16xf32>
    %672 = math.tanh %671 : vector<1x16xf32>
    %673 = arith.mulf %668, %672 : vector<1x16xf32>
    %674 = vector.extract_strided_slice %648 {offsets = [0, 0], sizes = [1, 16], strides = [1, 1]} : vector<1x64xf32> to vector<1x16xf32>
    %675 = arith.negf %674 : vector<1x16xf32>
    %676 = math.exp %675 : vector<1x16xf32>
    %cst_181 = arith.constant 1.000000e+00 : f32
    %677 = vector.broadcast %cst_181 : f32 to vector<1x16xf32>
    %678 = arith.addf %677, %676 : vector<1x16xf32>
    %679 = arith.divf %677, %678 : vector<1x16xf32>
    %680 = vector.extract_strided_slice %648 {offsets = [0, 16], sizes = [1, 16], strides = [1, 1]} : vector<1x64xf32> to vector<1x16xf32>
    %681 = arith.negf %680 : vector<1x16xf32>
    %682 = math.exp %681 : vector<1x16xf32>
    %cst_182 = arith.constant 1.000000e+00 : f32
    %683 = vector.broadcast %cst_182 : f32 to vector<1x16xf32>
    %684 = arith.addf %683, %682 : vector<1x16xf32>
    %685 = arith.divf %683, %684 : vector<1x16xf32>
    %686 = vector.extract_strided_slice %648 {offsets = [0, 32], sizes = [1, 16], strides = [1, 1]} : vector<1x64xf32> to vector<1x16xf32>
    %687 = math.tanh %686 : vector<1x16xf32>
    %688 = vector.extract_strided_slice %648 {offsets = [0, 48], sizes = [1, 16], strides = [1, 1]} : vector<1x64xf32> to vector<1x16xf32>
    %689 = arith.negf %688 : vector<1x16xf32>
    %690 = math.exp %689 : vector<1x16xf32>
    %cst_183 = arith.constant 1.000000e+00 : f32
    %691 = vector.broadcast %cst_183 : f32 to vector<1x16xf32>
    %692 = arith.addf %691, %690 : vector<1x16xf32>
    %693 = arith.divf %691, %692 : vector<1x16xf32>
    %694 = arith.mulf %685, %629 : vector<1x16xf32>
    %695 = arith.mulf %679, %687 : vector<1x16xf32>
    %696 = arith.addf %694, %695 : vector<1x16xf32>
    %697 = math.tanh %696 : vector<1x16xf32>
    %698 = arith.mulf %693, %697 : vector<1x16xf32>
    %699 = arith.index_cast %636 : i32 to index
    %c0_184 = arith.constant 0 : index
    %700 = vector.load %arg15[%699, %c0_184] : memref<8x16xf32, #tpu.memory_space<vmem>>, vector<1x16xf32>
    tpu.vector_store %arg15[%699, %c0_184], %673 {strides = array<i32>} : memref<8x16xf32, #tpu.memory_space<vmem>>, vector<1x16xf32>,
    %701 = arith.index_cast %638 : i32 to index
    %c0_185 = arith.constant 0 : index
    %702 = vector.load %arg16[%701, %c0_185] : memref<8x16xf32, #tpu.memory_space<vmem>>, vector<1x16xf32>
    tpu.vector_store %arg16[%701, %c0_185], %698 {strides = array<i32>} : memref<8x16xf32, #tpu.memory_space<vmem>>, vector<1x16xf32>,
    %c2_i32_186 = arith.constant 2 : i32
    %c1_i32_187 = arith.constant 1 : i32
    %703 = arith.muli %c2_i32_186, %c1_i32_187 : i32
    %c7_i32_188 = arith.constant 7 : i32
    %704 = arith.subi %c7_i32_188, %c2_i32_186 : i32
    %c1_i32_189 = arith.constant 1 : i32
    %705 = arith.muli %704, %c1_i32_189 : i32
    %706 = arith.index_cast %703 : i32 to index
    %c0_190 = arith.constant 0 : index
    %707 = vector.load %arg13[%706, %c0_190] : memref<8x64xf32, #tpu.memory_space<vmem>>, vector<1x64xf32>
    %708 = arith.truncf %673 : vector<1x16xf32> to vector<1x16xbf16>
    %cst_191 = arith.constant dense<0.000000e+00> : vector<1x64xf32>
    %709 = tpu.matmul %708, %566, %cst_191 {dimension_numbers = #tpu.dot_dimension_numbers<[1], [0], [0], [1], [0, 0, 1, 1], [], []>} : vector<1x16xbf16>, vector<16x64xbf16>, vector<1x64xf32> -> vector<1x64xf32>
    %710 = arith.addf %707, %709 : vector<1x64xf32>
    %711 = arith.index_cast %705 : i32 to index
    %c0_192 = arith.constant 0 : index
    %712 = vector.load %arg14[%711, %c0_192] : memref<8x64xf32, #tpu.memory_space<vmem>>, vector<1x64xf32>
    %713 = arith.truncf %698 : vector<1x16xf32> to vector<1x16xbf16>
    %cst_193 = arith.constant dense<0.000000e+00> : vector<1x64xf32>
    %714 = tpu.matmul %713, %567, %cst_193 {dimension_numbers = #tpu.dot_dimension_numbers<[1], [0], [0], [1], [0, 0, 1, 1], [], []>} : vector<1x16xbf16>, vector<16x64xbf16>, vector<1x64xf32> -> vector<1x64xf32>
    %715 = arith.addf %712, %714 : vector<1x64xf32>
    %716 = vector.extract_strided_slice %710 {offsets = [0, 0], sizes = [1, 16], strides = [1, 1]} : vector<1x64xf32> to vector<1x16xf32>
    %717 = arith.negf %716 : vector<1x16xf32>
    %718 = math.exp %717 : vector<1x16xf32>
    %cst_194 = arith.constant 1.000000e+00 : f32
    %719 = vector.broadcast %cst_194 : f32 to vector<1x16xf32>
    %720 = arith.addf %719, %718 : vector<1x16xf32>
    %721 = arith.divf %719, %720 : vector<1x16xf32>
    %722 = vector.extract_strided_slice %710 {offsets = [0, 16], sizes = [1, 16], strides = [1, 1]} : vector<1x64xf32> to vector<1x16xf32>
    %723 = arith.negf %722 : vector<1x16xf32>
    %724 = math.exp %723 : vector<1x16xf32>
    %cst_195 = arith.constant 1.000000e+00 : f32
    %725 = vector.broadcast %cst_195 : f32 to vector<1x16xf32>
    %726 = arith.addf %725, %724 : vector<1x16xf32>
    %727 = arith.divf %725, %726 : vector<1x16xf32>
    %728 = vector.extract_strided_slice %710 {offsets = [0, 32], sizes = [1, 16], strides = [1, 1]} : vector<1x64xf32> to vector<1x16xf32>
    %729 = math.tanh %728 : vector<1x16xf32>
    %730 = vector.extract_strided_slice %710 {offsets = [0, 48], sizes = [1, 16], strides = [1, 1]} : vector<1x64xf32> to vector<1x16xf32>
    %731 = arith.negf %730 : vector<1x16xf32>
    %732 = math.exp %731 : vector<1x16xf32>
    %cst_196 = arith.constant 1.000000e+00 : f32
    %733 = vector.broadcast %cst_196 : f32 to vector<1x16xf32>
    %734 = arith.addf %733, %732 : vector<1x16xf32>
    %735 = arith.divf %733, %734 : vector<1x16xf32>
    %736 = arith.mulf %727, %671 : vector<1x16xf32>
    %737 = arith.mulf %721, %729 : vector<1x16xf32>
    %738 = arith.addf %736, %737 : vector<1x16xf32>
    %739 = math.tanh %738 : vector<1x16xf32>
    %740 = arith.mulf %735, %739 : vector<1x16xf32>
    %741 = vector.extract_strided_slice %715 {offsets = [0, 0], sizes = [1, 16], strides = [1, 1]} : vector<1x64xf32> to vector<1x16xf32>
    %742 = arith.negf %741 : vector<1x16xf32>
    %743 = math.exp %742 : vector<1x16xf32>
    %cst_197 = arith.constant 1.000000e+00 : f32
    %744 = vector.broadcast %cst_197 : f32 to vector<1x16xf32>
    %745 = arith.addf %744, %743 : vector<1x16xf32>
    %746 = arith.divf %744, %745 : vector<1x16xf32>
    %747 = vector.extract_strided_slice %715 {offsets = [0, 16], sizes = [1, 16], strides = [1, 1]} : vector<1x64xf32> to vector<1x16xf32>
    %748 = arith.negf %747 : vector<1x16xf32>
    %749 = math.exp %748 : vector<1x16xf32>
    %cst_198 = arith.constant 1.000000e+00 : f32
    %750 = vector.broadcast %cst_198 : f32 to vector<1x16xf32>
    %751 = arith.addf %750, %749 : vector<1x16xf32>
    %752 = arith.divf %750, %751 : vector<1x16xf32>
    %753 = vector.extract_strided_slice %715 {offsets = [0, 32], sizes = [1, 16], strides = [1, 1]} : vector<1x64xf32> to vector<1x16xf32>
    %754 = math.tanh %753 : vector<1x16xf32>
    %755 = vector.extract_strided_slice %715 {offsets = [0, 48], sizes = [1, 16], strides = [1, 1]} : vector<1x64xf32> to vector<1x16xf32>
    %756 = arith.negf %755 : vector<1x16xf32>
    %757 = math.exp %756 : vector<1x16xf32>
    %cst_199 = arith.constant 1.000000e+00 : f32
    %758 = vector.broadcast %cst_199 : f32 to vector<1x16xf32>
    %759 = arith.addf %758, %757 : vector<1x16xf32>
    %760 = arith.divf %758, %759 : vector<1x16xf32>
    %761 = arith.mulf %752, %696 : vector<1x16xf32>
    %762 = arith.mulf %746, %754 : vector<1x16xf32>
    %763 = arith.addf %761, %762 : vector<1x16xf32>
    %764 = math.tanh %763 : vector<1x16xf32>
    %765 = arith.mulf %760, %764 : vector<1x16xf32>
    %766 = arith.index_cast %703 : i32 to index
    %c0_200 = arith.constant 0 : index
    %767 = vector.load %arg15[%766, %c0_200] : memref<8x16xf32, #tpu.memory_space<vmem>>, vector<1x16xf32>
    tpu.vector_store %arg15[%766, %c0_200], %740 {strides = array<i32>} : memref<8x16xf32, #tpu.memory_space<vmem>>, vector<1x16xf32>,
    %768 = arith.index_cast %705 : i32 to index
    %c0_201 = arith.constant 0 : index
    %769 = vector.load %arg16[%768, %c0_201] : memref<8x16xf32, #tpu.memory_space<vmem>>, vector<1x16xf32>
    tpu.vector_store %arg16[%768, %c0_201], %765 {strides = array<i32>} : memref<8x16xf32, #tpu.memory_space<vmem>>, vector<1x16xf32>,
    %c3_i32_202 = arith.constant 3 : i32
    %c1_i32_203 = arith.constant 1 : i32
    %770 = arith.muli %c3_i32_202, %c1_i32_203 : i32
    %c7_i32_204 = arith.constant 7 : i32
    %771 = arith.subi %c7_i32_204, %c3_i32_202 : i32
    %c1_i32_205 = arith.constant 1 : i32
    %772 = arith.muli %771, %c1_i32_205 : i32
    %773 = arith.index_cast %770 : i32 to index
    %c0_206 = arith.constant 0 : index
    %774 = vector.load %arg13[%773, %c0_206] : memref<8x64xf32, #tpu.memory_space<vmem>>, vector<1x64xf32>
    %775 = arith.truncf %740 : vector<1x16xf32> to vector<1x16xbf16>
    %cst_207 = arith.constant dense<0.000000e+00> : vector<1x64xf32>
    %776 = tpu.matmul %775, %566, %cst_207 {dimension_numbers = #tpu.dot_dimension_numbers<[1], [0], [0], [1], [0, 0, 1, 1], [], []>} : vector<1x16xbf16>, vector<16x64xbf16>, vector<1x64xf32> -> vector<1x64xf32>
    %777 = arith.addf %774, %776 : vector<1x64xf32>
    %778 = arith.index_cast %772 : i32 to index
    %c0_208 = arith.constant 0 : index
    %779 = vector.load %arg14[%778, %c0_208] : memref<8x64xf32, #tpu.memory_space<vmem>>, vector<1x64xf32>
    %780 = arith.truncf %765 : vector<1x16xf32> to vector<1x16xbf16>
    %cst_209 = arith.constant dense<0.000000e+00> : vector<1x64xf32>
    %781 = tpu.matmul %780, %567, %cst_209 {dimension_numbers = #tpu.dot_dimension_numbers<[1], [0], [0], [1], [0, 0, 1, 1], [], []>} : vector<1x16xbf16>, vector<16x64xbf16>, vector<1x64xf32> -> vector<1x64xf32>
    %782 = arith.addf %779, %781 : vector<1x64xf32>
    %783 = vector.extract_strided_slice %777 {offsets = [0, 0], sizes = [1, 16], strides = [1, 1]} : vector<1x64xf32> to vector<1x16xf32>
    %784 = arith.negf %783 : vector<1x16xf32>
    %785 = math.exp %784 : vector<1x16xf32>
    %cst_210 = arith.constant 1.000000e+00 : f32
    %786 = vector.broadcast %cst_210 : f32 to vector<1x16xf32>
    %787 = arith.addf %786, %785 : vector<1x16xf32>
    %788 = arith.divf %786, %787 : vector<1x16xf32>
    %789 = vector.extract_strided_slice %777 {offsets = [0, 16], sizes = [1, 16], strides = [1, 1]} : vector<1x64xf32> to vector<1x16xf32>
    %790 = arith.negf %789 : vector<1x16xf32>
    %791 = math.exp %790 : vector<1x16xf32>
    %cst_211 = arith.constant 1.000000e+00 : f32
    %792 = vector.broadcast %cst_211 : f32 to vector<1x16xf32>
    %793 = arith.addf %792, %791 : vector<1x16xf32>
    %794 = arith.divf %792, %793 : vector<1x16xf32>
    %795 = vector.extract_strided_slice %777 {offsets = [0, 32], sizes = [1, 16], strides = [1, 1]} : vector<1x64xf32> to vector<1x16xf32>
    %796 = math.tanh %795 : vector<1x16xf32>
    %797 = vector.extract_strided_slice %777 {offsets = [0, 48], sizes = [1, 16], strides = [1, 1]} : vector<1x64xf32> to vector<1x16xf32>
    %798 = arith.negf %797 : vector<1x16xf32>
    %799 = math.exp %798 : vector<1x16xf32>
    %cst_212 = arith.constant 1.000000e+00 : f32
    %800 = vector.broadcast %cst_212 : f32 to vector<1x16xf32>
    %801 = arith.addf %800, %799 : vector<1x16xf32>
    %802 = arith.divf %800, %801 : vector<1x16xf32>
    %803 = arith.mulf %794, %738 : vector<1x16xf32>
    %804 = arith.mulf %788, %796 : vector<1x16xf32>
    %805 = arith.addf %803, %804 : vector<1x16xf32>
    %806 = math.tanh %805 : vector<1x16xf32>
    %807 = arith.mulf %802, %806 : vector<1x16xf32>
    %808 = vector.extract_strided_slice %782 {offsets = [0, 0], sizes = [1, 16], strides = [1, 1]} : vector<1x64xf32> to vector<1x16xf32>
    %809 = arith.negf %808 : vector<1x16xf32>
    %810 = math.exp %809 : vector<1x16xf32>
    %cst_213 = arith.constant 1.000000e+00 : f32
    %811 = vector.broadcast %cst_213 : f32 to vector<1x16xf32>
    %812 = arith.addf %811, %810 : vector<1x16xf32>
    %813 = arith.divf %811, %812 : vector<1x16xf32>
    %814 = vector.extract_strided_slice %782 {offsets = [0, 16], sizes = [1, 16], strides = [1, 1]} : vector<1x64xf32> to vector<1x16xf32>
    %815 = arith.negf %814 : vector<1x16xf32>
    %816 = math.exp %815 : vector<1x16xf32>
    %cst_214 = arith.constant 1.000000e+00 : f32
    %817 = vector.broadcast %cst_214 : f32 to vector<1x16xf32>
    %818 = arith.addf %817, %816 : vector<1x16xf32>
    %819 = arith.divf %817, %818 : vector<1x16xf32>
    %820 = vector.extract_strided_slice %782 {offsets = [0, 32], sizes = [1, 16], strides = [1, 1]} : vector<1x64xf32> to vector<1x16xf32>
    %821 = math.tanh %820 : vector<1x16xf32>
    %822 = vector.extract_strided_slice %782 {offsets = [0, 48], sizes = [1, 16], strides = [1, 1]} : vector<1x64xf32> to vector<1x16xf32>
    %823 = arith.negf %822 : vector<1x16xf32>
    %824 = math.exp %823 : vector<1x16xf32>
    %cst_215 = arith.constant 1.000000e+00 : f32
    %825 = vector.broadcast %cst_215 : f32 to vector<1x16xf32>
    %826 = arith.addf %825, %824 : vector<1x16xf32>
    %827 = arith.divf %825, %826 : vector<1x16xf32>
    %828 = arith.mulf %819, %763 : vector<1x16xf32>
    %829 = arith.mulf %813, %821 : vector<1x16xf32>
    %830 = arith.addf %828, %829 : vector<1x16xf32>
    %831 = math.tanh %830 : vector<1x16xf32>
    %832 = arith.mulf %827, %831 : vector<1x16xf32>
    %833 = arith.index_cast %770 : i32 to index
    %c0_216 = arith.constant 0 : index
    %834 = vector.load %arg15[%833, %c0_216] : memref<8x16xf32, #tpu.memory_space<vmem>>, vector<1x16xf32>
    tpu.vector_store %arg15[%833, %c0_216], %807 {strides = array<i32>} : memref<8x16xf32, #tpu.memory_space<vmem>>, vector<1x16xf32>,
    %835 = arith.index_cast %772 : i32 to index
    %c0_217 = arith.constant 0 : index
    %836 = vector.load %arg16[%835, %c0_217] : memref<8x16xf32, #tpu.memory_space<vmem>>, vector<1x16xf32>
    tpu.vector_store %arg16[%835, %c0_217], %832 {strides = array<i32>} : memref<8x16xf32, #tpu.memory_space<vmem>>, vector<1x16xf32>,
    %c4_i32_218 = arith.constant 4 : i32
    %c1_i32_219 = arith.constant 1 : i32
    %837 = arith.muli %c4_i32_218, %c1_i32_219 : i32
    %c7_i32_220 = arith.constant 7 : i32
    %838 = arith.subi %c7_i32_220, %c4_i32_218 : i32
    %c1_i32_221 = arith.constant 1 : i32
    %839 = arith.muli %838, %c1_i32_221 : i32
    %840 = arith.index_cast %837 : i32 to index
    %c0_222 = arith.constant 0 : index
    %841 = vector.load %arg13[%840, %c0_222] : memref<8x64xf32, #tpu.memory_space<vmem>>, vector<1x64xf32>
    %842 = arith.truncf %807 : vector<1x16xf32> to vector<1x16xbf16>
    %cst_223 = arith.constant dense<0.000000e+00> : vector<1x64xf32>
    %843 = tpu.matmul %842, %566, %cst_223 {dimension_numbers = #tpu.dot_dimension_numbers<[1], [0], [0], [1], [0, 0, 1, 1], [], []>} : vector<1x16xbf16>, vector<16x64xbf16>, vector<1x64xf32> -> vector<1x64xf32>
    %844 = arith.addf %841, %843 : vector<1x64xf32>
    %845 = arith.index_cast %839 : i32 to index
    %c0_224 = arith.constant 0 : index
    %846 = vector.load %arg14[%845, %c0_224] : memref<8x64xf32, #tpu.memory_space<vmem>>, vector<1x64xf32>
    %847 = arith.truncf %832 : vector<1x16xf32> to vector<1x16xbf16>
    %cst_225 = arith.constant dense<0.000000e+00> : vector<1x64xf32>
    %848 = tpu.matmul %847, %567, %cst_225 {dimension_numbers = #tpu.dot_dimension_numbers<[1], [0], [0], [1], [0, 0, 1, 1], [], []>} : vector<1x16xbf16>, vector<16x64xbf16>, vector<1x64xf32> -> vector<1x64xf32>
    %849 = arith.addf %846, %848 : vector<1x64xf32>
    %850 = vector.extract_strided_slice %844 {offsets = [0, 0], sizes = [1, 16], strides = [1, 1]} : vector<1x64xf32> to vector<1x16xf32>
    %851 = arith.negf %850 : vector<1x16xf32>
    %852 = math.exp %851 : vector<1x16xf32>
    %cst_226 = arith.constant 1.000000e+00 : f32
    %853 = vector.broadcast %cst_226 : f32 to vector<1x16xf32>
    %854 = arith.addf %853, %852 : vector<1x16xf32>
    %855 = arith.divf %853, %854 : vector<1x16xf32>
    %856 = vector.extract_strided_slice %844 {offsets = [0, 16], sizes = [1, 16], strides = [1, 1]} : vector<1x64xf32> to vector<1x16xf32>
    %857 = arith.negf %856 : vector<1x16xf32>
    %858 = math.exp %857 : vector<1x16xf32>
    %cst_227 = arith.constant 1.000000e+00 : f32
    %859 = vector.broadcast %cst_227 : f32 to vector<1x16xf32>
    %860 = arith.addf %859, %858 : vector<1x16xf32>
    %861 = arith.divf %859, %860 : vector<1x16xf32>
    %862 = vector.extract_strided_slice %844 {offsets = [0, 32], sizes = [1, 16], strides = [1, 1]} : vector<1x64xf32> to vector<1x16xf32>
    %863 = math.tanh %862 : vector<1x16xf32>
    %864 = vector.extract_strided_slice %844 {offsets = [0, 48], sizes = [1, 16], strides = [1, 1]} : vector<1x64xf32> to vector<1x16xf32>
    %865 = arith.negf %864 : vector<1x16xf32>
    %866 = math.exp %865 : vector<1x16xf32>
    %cst_228 = arith.constant 1.000000e+00 : f32
    %867 = vector.broadcast %cst_228 : f32 to vector<1x16xf32>
    %868 = arith.addf %867, %866 : vector<1x16xf32>
    %869 = arith.divf %867, %868 : vector<1x16xf32>
    %870 = arith.mulf %861, %805 : vector<1x16xf32>
    %871 = arith.mulf %855, %863 : vector<1x16xf32>
    %872 = arith.addf %870, %871 : vector<1x16xf32>
    %873 = math.tanh %872 : vector<1x16xf32>
    %874 = arith.mulf %869, %873 : vector<1x16xf32>
    %875 = vector.extract_strided_slice %849 {offsets = [0, 0], sizes = [1, 16], strides = [1, 1]} : vector<1x64xf32> to vector<1x16xf32>
    %876 = arith.negf %875 : vector<1x16xf32>
    %877 = math.exp %876 : vector<1x16xf32>
    %cst_229 = arith.constant 1.000000e+00 : f32
    %878 = vector.broadcast %cst_229 : f32 to vector<1x16xf32>
    %879 = arith.addf %878, %877 : vector<1x16xf32>
    %880 = arith.divf %878, %879 : vector<1x16xf32>
    %881 = vector.extract_strided_slice %849 {offsets = [0, 16], sizes = [1, 16], strides = [1, 1]} : vector<1x64xf32> to vector<1x16xf32>
    %882 = arith.negf %881 : vector<1x16xf32>
    %883 = math.exp %882 : vector<1x16xf32>
    %cst_230 = arith.constant 1.000000e+00 : f32
    %884 = vector.broadcast %cst_230 : f32 to vector<1x16xf32>
    %885 = arith.addf %884, %883 : vector<1x16xf32>
    %886 = arith.divf %884, %885 : vector<1x16xf32>
    %887 = vector.extract_strided_slice %849 {offsets = [0, 32], sizes = [1, 16], strides = [1, 1]} : vector<1x64xf32> to vector<1x16xf32>
    %888 = math.tanh %887 : vector<1x16xf32>
    %889 = vector.extract_strided_slice %849 {offsets = [0, 48], sizes = [1, 16], strides = [1, 1]} : vector<1x64xf32> to vector<1x16xf32>
    %890 = arith.negf %889 : vector<1x16xf32>
    %891 = math.exp %890 : vector<1x16xf32>
    %cst_231 = arith.constant 1.000000e+00 : f32
    %892 = vector.broadcast %cst_231 : f32 to vector<1x16xf32>
    %893 = arith.addf %892, %891 : vector<1x16xf32>
    %894 = arith.divf %892, %893 : vector<1x16xf32>
    %895 = arith.mulf %886, %830 : vector<1x16xf32>
    %896 = arith.mulf %880, %888 : vector<1x16xf32>
    %897 = arith.addf %895, %896 : vector<1x16xf32>
    %898 = math.tanh %897 : vector<1x16xf32>
    %899 = arith.mulf %894, %898 : vector<1x16xf32>
    %900 = arith.index_cast %837 : i32 to index
    %c0_232 = arith.constant 0 : index
    %901 = vector.load %arg15[%900, %c0_232] : memref<8x16xf32, #tpu.memory_space<vmem>>, vector<1x16xf32>
    tpu.vector_store %arg15[%900, %c0_232], %874 {strides = array<i32>} : memref<8x16xf32, #tpu.memory_space<vmem>>, vector<1x16xf32>,
    %902 = arith.index_cast %839 : i32 to index
    %c0_233 = arith.constant 0 : index
    %903 = vector.load %arg16[%902, %c0_233] : memref<8x16xf32, #tpu.memory_space<vmem>>, vector<1x16xf32>
    tpu.vector_store %arg16[%902, %c0_233], %899 {strides = array<i32>} : memref<8x16xf32, #tpu.memory_space<vmem>>, vector<1x16xf32>,
    %c5_i32_234 = arith.constant 5 : i32
    %c1_i32_235 = arith.constant 1 : i32
    %904 = arith.muli %c5_i32_234, %c1_i32_235 : i32
    %c7_i32_236 = arith.constant 7 : i32
    %905 = arith.subi %c7_i32_236, %c5_i32_234 : i32
    %c1_i32_237 = arith.constant 1 : i32
    %906 = arith.muli %905, %c1_i32_237 : i32
    %907 = arith.index_cast %904 : i32 to index
    %c0_238 = arith.constant 0 : index
    %908 = vector.load %arg13[%907, %c0_238] : memref<8x64xf32, #tpu.memory_space<vmem>>, vector<1x64xf32>
    %909 = arith.truncf %874 : vector<1x16xf32> to vector<1x16xbf16>
    %cst_239 = arith.constant dense<0.000000e+00> : vector<1x64xf32>
    %910 = tpu.matmul %909, %566, %cst_239 {dimension_numbers = #tpu.dot_dimension_numbers<[1], [0], [0], [1], [0, 0, 1, 1], [], []>} : vector<1x16xbf16>, vector<16x64xbf16>, vector<1x64xf32> -> vector<1x64xf32>
    %911 = arith.addf %908, %910 : vector<1x64xf32>
    %912 = arith.index_cast %906 : i32 to index
    %c0_240 = arith.constant 0 : index
    %913 = vector.load %arg14[%912, %c0_240] : memref<8x64xf32, #tpu.memory_space<vmem>>, vector<1x64xf32>
    %914 = arith.truncf %899 : vector<1x16xf32> to vector<1x16xbf16>
    %cst_241 = arith.constant dense<0.000000e+00> : vector<1x64xf32>
    %915 = tpu.matmul %914, %567, %cst_241 {dimension_numbers = #tpu.dot_dimension_numbers<[1], [0], [0], [1], [0, 0, 1, 1], [], []>} : vector<1x16xbf16>, vector<16x64xbf16>, vector<1x64xf32> -> vector<1x64xf32>
    %916 = arith.addf %913, %915 : vector<1x64xf32>
    %917 = vector.extract_strided_slice %911 {offsets = [0, 0], sizes = [1, 16], strides = [1, 1]} : vector<1x64xf32> to vector<1x16xf32>
    %918 = arith.negf %917 : vector<1x16xf32>
    %919 = math.exp %918 : vector<1x16xf32>
    %cst_242 = arith.constant 1.000000e+00 : f32
    %920 = vector.broadcast %cst_242 : f32 to vector<1x16xf32>
    %921 = arith.addf %920, %919 : vector<1x16xf32>
    %922 = arith.divf %920, %921 : vector<1x16xf32>
    %923 = vector.extract_strided_slice %911 {offsets = [0, 16], sizes = [1, 16], strides = [1, 1]} : vector<1x64xf32> to vector<1x16xf32>
    %924 = arith.negf %923 : vector<1x16xf32>
    %925 = math.exp %924 : vector<1x16xf32>
    %cst_243 = arith.constant 1.000000e+00 : f32
    %926 = vector.broadcast %cst_243 : f32 to vector<1x16xf32>
    %927 = arith.addf %926, %925 : vector<1x16xf32>
    %928 = arith.divf %926, %927 : vector<1x16xf32>
    %929 = vector.extract_strided_slice %911 {offsets = [0, 32], sizes = [1, 16], strides = [1, 1]} : vector<1x64xf32> to vector<1x16xf32>
    %930 = math.tanh %929 : vector<1x16xf32>
    %931 = vector.extract_strided_slice %911 {offsets = [0, 48], sizes = [1, 16], strides = [1, 1]} : vector<1x64xf32> to vector<1x16xf32>
    %932 = arith.negf %931 : vector<1x16xf32>
    %933 = math.exp %932 : vector<1x16xf32>
    %cst_244 = arith.constant 1.000000e+00 : f32
    %934 = vector.broadcast %cst_244 : f32 to vector<1x16xf32>
    %935 = arith.addf %934, %933 : vector<1x16xf32>
    %936 = arith.divf %934, %935 : vector<1x16xf32>
    %937 = arith.mulf %928, %872 : vector<1x16xf32>
    %938 = arith.mulf %922, %930 : vector<1x16xf32>
    %939 = arith.addf %937, %938 : vector<1x16xf32>
    %940 = math.tanh %939 : vector<1x16xf32>
    %941 = arith.mulf %936, %940 : vector<1x16xf32>
    %942 = vector.extract_strided_slice %916 {offsets = [0, 0], sizes = [1, 16], strides = [1, 1]} : vector<1x64xf32> to vector<1x16xf32>
    %943 = arith.negf %942 : vector<1x16xf32>
    %944 = math.exp %943 : vector<1x16xf32>
    %cst_245 = arith.constant 1.000000e+00 : f32
    %945 = vector.broadcast %cst_245 : f32 to vector<1x16xf32>
    %946 = arith.addf %945, %944 : vector<1x16xf32>
    %947 = arith.divf %945, %946 : vector<1x16xf32>
    %948 = vector.extract_strided_slice %916 {offsets = [0, 16], sizes = [1, 16], strides = [1, 1]} : vector<1x64xf32> to vector<1x16xf32>
    %949 = arith.negf %948 : vector<1x16xf32>
    %950 = math.exp %949 : vector<1x16xf32>
    %cst_246 = arith.constant 1.000000e+00 : f32
    %951 = vector.broadcast %cst_246 : f32 to vector<1x16xf32>
    %952 = arith.addf %951, %950 : vector<1x16xf32>
    %953 = arith.divf %951, %952 : vector<1x16xf32>
    %954 = vector.extract_strided_slice %916 {offsets = [0, 32], sizes = [1, 16], strides = [1, 1]} : vector<1x64xf32> to vector<1x16xf32>
    %955 = math.tanh %954 : vector<1x16xf32>
    %956 = vector.extract_strided_slice %916 {offsets = [0, 48], sizes = [1, 16], strides = [1, 1]} : vector<1x64xf32> to vector<1x16xf32>
    %957 = arith.negf %956 : vector<1x16xf32>
    %958 = math.exp %957 : vector<1x16xf32>
    %cst_247 = arith.constant 1.000000e+00 : f32
    %959 = vector.broadcast %cst_247 : f32 to vector<1x16xf32>
    %960 = arith.addf %959, %958 : vector<1x16xf32>
    %961 = arith.divf %959, %960 : vector<1x16xf32>
    %962 = arith.mulf %953, %897 : vector<1x16xf32>
    %963 = arith.mulf %947, %955 : vector<1x16xf32>
    %964 = arith.addf %962, %963 : vector<1x16xf32>
    %965 = math.tanh %964 : vector<1x16xf32>
    %966 = arith.mulf %961, %965 : vector<1x16xf32>
    %967 = arith.index_cast %904 : i32 to index
    %c0_248 = arith.constant 0 : index
    %968 = vector.load %arg15[%967, %c0_248] : memref<8x16xf32, #tpu.memory_space<vmem>>, vector<1x16xf32>
    tpu.vector_store %arg15[%967, %c0_248], %941 {strides = array<i32>} : memref<8x16xf32, #tpu.memory_space<vmem>>, vector<1x16xf32>,
    %969 = arith.index_cast %906 : i32 to index
    %c0_249 = arith.constant 0 : index
    %970 = vector.load %arg16[%969, %c0_249] : memref<8x16xf32, #tpu.memory_space<vmem>>, vector<1x16xf32>
    tpu.vector_store %arg16[%969, %c0_249], %966 {strides = array<i32>} : memref<8x16xf32, #tpu.memory_space<vmem>>, vector<1x16xf32>,
    %c6_i32_250 = arith.constant 6 : i32
    %c1_i32_251 = arith.constant 1 : i32
    %971 = arith.muli %c6_i32_250, %c1_i32_251 : i32
    %c7_i32_252 = arith.constant 7 : i32
    %972 = arith.subi %c7_i32_252, %c6_i32_250 : i32
    %c1_i32_253 = arith.constant 1 : i32
    %973 = arith.muli %972, %c1_i32_253 : i32
    %974 = arith.index_cast %971 : i32 to index
    %c0_254 = arith.constant 0 : index
    %975 = vector.load %arg13[%974, %c0_254] : memref<8x64xf32, #tpu.memory_space<vmem>>, vector<1x64xf32>
    %976 = arith.truncf %941 : vector<1x16xf32> to vector<1x16xbf16>
    %cst_255 = arith.constant dense<0.000000e+00> : vector<1x64xf32>
    %977 = tpu.matmul %976, %566, %cst_255 {dimension_numbers = #tpu.dot_dimension_numbers<[1], [0], [0], [1], [0, 0, 1, 1], [], []>} : vector<1x16xbf16>, vector<16x64xbf16>, vector<1x64xf32> -> vector<1x64xf32>
    %978 = arith.addf %975, %977 : vector<1x64xf32>
    %979 = arith.index_cast %973 : i32 to index
    %c0_256 = arith.constant 0 : index
    %980 = vector.load %arg14[%979, %c0_256] : memref<8x64xf32, #tpu.memory_space<vmem>>, vector<1x64xf32>
    %981 = arith.truncf %966 : vector<1x16xf32> to vector<1x16xbf16>
    %cst_257 = arith.constant dense<0.000000e+00> : vector<1x64xf32>
    %982 = tpu.matmul %981, %567, %cst_257 {dimension_numbers = #tpu.dot_dimension_numbers<[1], [0], [0], [1], [0, 0, 1, 1], [], []>} : vector<1x16xbf16>, vector<16x64xbf16>, vector<1x64xf32> -> vector<1x64xf32>
    %983 = arith.addf %980, %982 : vector<1x64xf32>
    %984 = vector.extract_strided_slice %978 {offsets = [0, 0], sizes = [1, 16], strides = [1, 1]} : vector<1x64xf32> to vector<1x16xf32>
    %985 = arith.negf %984 : vector<1x16xf32>
    %986 = math.exp %985 : vector<1x16xf32>
    %cst_258 = arith.constant 1.000000e+00 : f32
    %987 = vector.broadcast %cst_258 : f32 to vector<1x16xf32>
    %988 = arith.addf %987, %986 : vector<1x16xf32>
    %989 = arith.divf %987, %988 : vector<1x16xf32>
    %990 = vector.extract_strided_slice %978 {offsets = [0, 16], sizes = [1, 16], strides = [1, 1]} : vector<1x64xf32> to vector<1x16xf32>
    %991 = arith.negf %990 : vector<1x16xf32>
    %992 = math.exp %991 : vector<1x16xf32>
    %cst_259 = arith.constant 1.000000e+00 : f32
    %993 = vector.broadcast %cst_259 : f32 to vector<1x16xf32>
    %994 = arith.addf %993, %992 : vector<1x16xf32>
    %995 = arith.divf %993, %994 : vector<1x16xf32>
    %996 = vector.extract_strided_slice %978 {offsets = [0, 32], sizes = [1, 16], strides = [1, 1]} : vector<1x64xf32> to vector<1x16xf32>
    %997 = math.tanh %996 : vector<1x16xf32>
    %998 = vector.extract_strided_slice %978 {offsets = [0, 48], sizes = [1, 16], strides = [1, 1]} : vector<1x64xf32> to vector<1x16xf32>
    %999 = arith.negf %998 : vector<1x16xf32>
    %1000 = math.exp %999 : vector<1x16xf32>
    %cst_260 = arith.constant 1.000000e+00 : f32
    %1001 = vector.broadcast %cst_260 : f32 to vector<1x16xf32>
    %1002 = arith.addf %1001, %1000 : vector<1x16xf32>
    %1003 = arith.divf %1001, %1002 : vector<1x16xf32>
    %1004 = arith.mulf %995, %939 : vector<1x16xf32>
    %1005 = arith.mulf %989, %997 : vector<1x16xf32>
    %1006 = arith.addf %1004, %1005 : vector<1x16xf32>
    %1007 = math.tanh %1006 : vector<1x16xf32>
    %1008 = arith.mulf %1003, %1007 : vector<1x16xf32>
    %1009 = vector.extract_strided_slice %983 {offsets = [0, 0], sizes = [1, 16], strides = [1, 1]} : vector<1x64xf32> to vector<1x16xf32>
    %1010 = arith.negf %1009 : vector<1x16xf32>
    %1011 = math.exp %1010 : vector<1x16xf32>
    %cst_261 = arith.constant 1.000000e+00 : f32
    %1012 = vector.broadcast %cst_261 : f32 to vector<1x16xf32>
    %1013 = arith.addf %1012, %1011 : vector<1x16xf32>
    %1014 = arith.divf %1012, %1013 : vector<1x16xf32>
    %1015 = vector.extract_strided_slice %983 {offsets = [0, 16], sizes = [1, 16], strides = [1, 1]} : vector<1x64xf32> to vector<1x16xf32>
    %1016 = arith.negf %1015 : vector<1x16xf32>
    %1017 = math.exp %1016 : vector<1x16xf32>
    %cst_262 = arith.constant 1.000000e+00 : f32
    %1018 = vector.broadcast %cst_262 : f32 to vector<1x16xf32>
    %1019 = arith.addf %1018, %1017 : vector<1x16xf32>
    %1020 = arith.divf %1018, %1019 : vector<1x16xf32>
    %1021 = vector.extract_strided_slice %983 {offsets = [0, 32], sizes = [1, 16], strides = [1, 1]} : vector<1x64xf32> to vector<1x16xf32>
    %1022 = math.tanh %1021 : vector<1x16xf32>
    %1023 = vector.extract_strided_slice %983 {offsets = [0, 48], sizes = [1, 16], strides = [1, 1]} : vector<1x64xf32> to vector<1x16xf32>
    %1024 = arith.negf %1023 : vector<1x16xf32>
    %1025 = math.exp %1024 : vector<1x16xf32>
    %cst_263 = arith.constant 1.000000e+00 : f32
    %1026 = vector.broadcast %cst_263 : f32 to vector<1x16xf32>
    %1027 = arith.addf %1026, %1025 : vector<1x16xf32>
    %1028 = arith.divf %1026, %1027 : vector<1x16xf32>
    %1029 = arith.mulf %1020, %964 : vector<1x16xf32>
    %1030 = arith.mulf %1014, %1022 : vector<1x16xf32>
    %1031 = arith.addf %1029, %1030 : vector<1x16xf32>
    %1032 = math.tanh %1031 : vector<1x16xf32>
    %1033 = arith.mulf %1028, %1032 : vector<1x16xf32>
    %1034 = arith.index_cast %971 : i32 to index
    %c0_264 = arith.constant 0 : index
    %1035 = vector.load %arg15[%1034, %c0_264] : memref<8x16xf32, #tpu.memory_space<vmem>>, vector<1x16xf32>
    tpu.vector_store %arg15[%1034, %c0_264], %1008 {strides = array<i32>} : memref<8x16xf32, #tpu.memory_space<vmem>>, vector<1x16xf32>,
    %1036 = arith.index_cast %973 : i32 to index
    %c0_265 = arith.constant 0 : index
    %1037 = vector.load %arg16[%1036, %c0_265] : memref<8x16xf32, #tpu.memory_space<vmem>>, vector<1x16xf32>
    tpu.vector_store %arg16[%1036, %c0_265], %1033 {strides = array<i32>} : memref<8x16xf32, #tpu.memory_space<vmem>>, vector<1x16xf32>,
    %c7_i32_266 = arith.constant 7 : i32
    %c1_i32_267 = arith.constant 1 : i32
    %1038 = arith.muli %c7_i32_266, %c1_i32_267 : i32
    %c7_i32_268 = arith.constant 7 : i32
    %1039 = arith.subi %c7_i32_268, %c7_i32_266 : i32
    %c1_i32_269 = arith.constant 1 : i32
    %1040 = arith.muli %1039, %c1_i32_269 : i32
    %1041 = arith.index_cast %1038 : i32 to index
    %c0_270 = arith.constant 0 : index
    %1042 = vector.load %arg13[%1041, %c0_270] : memref<8x64xf32, #tpu.memory_space<vmem>>, vector<1x64xf32>
    %1043 = arith.truncf %1008 : vector<1x16xf32> to vector<1x16xbf16>
    %cst_271 = arith.constant dense<0.000000e+00> : vector<1x64xf32>
    %1044 = tpu.matmul %1043, %566, %cst_271 {dimension_numbers = #tpu.dot_dimension_numbers<[1], [0], [0], [1], [0, 0, 1, 1], [], []>} : vector<1x16xbf16>, vector<16x64xbf16>, vector<1x64xf32> -> vector<1x64xf32>
    %1045 = arith.addf %1042, %1044 : vector<1x64xf32>
    %1046 = arith.index_cast %1040 : i32 to index
    %c0_272 = arith.constant 0 : index
    %1047 = vector.load %arg14[%1046, %c0_272] : memref<8x64xf32, #tpu.memory_space<vmem>>, vector<1x64xf32>
    %1048 = arith.truncf %1033 : vector<1x16xf32> to vector<1x16xbf16>
    %cst_273 = arith.constant dense<0.000000e+00> : vector<1x64xf32>
    %1049 = tpu.matmul %1048, %567, %cst_273 {dimension_numbers = #tpu.dot_dimension_numbers<[1], [0], [0], [1], [0, 0, 1, 1], [], []>} : vector<1x16xbf16>, vector<16x64xbf16>, vector<1x64xf32> -> vector<1x64xf32>
    %1050 = arith.addf %1047, %1049 : vector<1x64xf32>
    %1051 = vector.extract_strided_slice %1045 {offsets = [0, 0], sizes = [1, 16], strides = [1, 1]} : vector<1x64xf32> to vector<1x16xf32>
    %1052 = arith.negf %1051 : vector<1x16xf32>
    %1053 = math.exp %1052 : vector<1x16xf32>
    %cst_274 = arith.constant 1.000000e+00 : f32
    %1054 = vector.broadcast %cst_274 : f32 to vector<1x16xf32>
    %1055 = arith.addf %1054, %1053 : vector<1x16xf32>
    %1056 = arith.divf %1054, %1055 : vector<1x16xf32>
    %1057 = vector.extract_strided_slice %1045 {offsets = [0, 16], sizes = [1, 16], strides = [1, 1]} : vector<1x64xf32> to vector<1x16xf32>
    %1058 = arith.negf %1057 : vector<1x16xf32>
    %1059 = math.exp %1058 : vector<1x16xf32>
    %cst_275 = arith.constant 1.000000e+00 : f32
    %1060 = vector.broadcast %cst_275 : f32 to vector<1x16xf32>
    %1061 = arith.addf %1060, %1059 : vector<1x16xf32>
    %1062 = arith.divf %1060, %1061 : vector<1x16xf32>
    %1063 = vector.extract_strided_slice %1045 {offsets = [0, 32], sizes = [1, 16], strides = [1, 1]} : vector<1x64xf32> to vector<1x16xf32>
    %1064 = math.tanh %1063 : vector<1x16xf32>
    %1065 = vector.extract_strided_slice %1045 {offsets = [0, 48], sizes = [1, 16], strides = [1, 1]} : vector<1x64xf32> to vector<1x16xf32>
    %1066 = arith.negf %1065 : vector<1x16xf32>
    %1067 = math.exp %1066 : vector<1x16xf32>
    %cst_276 = arith.constant 1.000000e+00 : f32
    %1068 = vector.broadcast %cst_276 : f32 to vector<1x16xf32>
    %1069 = arith.addf %1068, %1067 : vector<1x16xf32>
    %1070 = arith.divf %1068, %1069 : vector<1x16xf32>
    %1071 = arith.mulf %1062, %1006 : vector<1x16xf32>
    %1072 = arith.mulf %1056, %1064 : vector<1x16xf32>
    %1073 = arith.addf %1071, %1072 : vector<1x16xf32>
    %1074 = math.tanh %1073 : vector<1x16xf32>
    %1075 = arith.mulf %1070, %1074 : vector<1x16xf32>
    %1076 = vector.extract_strided_slice %1050 {offsets = [0, 0], sizes = [1, 16], strides = [1, 1]} : vector<1x64xf32> to vector<1x16xf32>
    %1077 = arith.negf %1076 : vector<1x16xf32>
    %1078 = math.exp %1077 : vector<1x16xf32>
    %cst_277 = arith.constant 1.000000e+00 : f32
    %1079 = vector.broadcast %cst_277 : f32 to vector<1x16xf32>
    %1080 = arith.addf %1079, %1078 : vector<1x16xf32>
    %1081 = arith.divf %1079, %1080 : vector<1x16xf32>
    %1082 = vector.extract_strided_slice %1050 {offsets = [0, 16], sizes = [1, 16], strides = [1, 1]} : vector<1x64xf32> to vector<1x16xf32>
    %1083 = arith.negf %1082 : vector<1x16xf32>
    %1084 = math.exp %1083 : vector<1x16xf32>
    %cst_278 = arith.constant 1.000000e+00 : f32
    %1085 = vector.broadcast %cst_278 : f32 to vector<1x16xf32>
    %1086 = arith.addf %1085, %1084 : vector<1x16xf32>
    %1087 = arith.divf %1085, %1086 : vector<1x16xf32>
    %1088 = vector.extract_strided_slice %1050 {offsets = [0, 32], sizes = [1, 16], strides = [1, 1]} : vector<1x64xf32> to vector<1x16xf32>
    %1089 = math.tanh %1088 : vector<1x16xf32>
    %1090 = vector.extract_strided_slice %1050 {offsets = [0, 48], sizes = [1, 16], strides = [1, 1]} : vector<1x64xf32> to vector<1x16xf32>
    %1091 = arith.negf %1090 : vector<1x16xf32>
    %1092 = math.exp %1091 : vector<1x16xf32>
    %cst_279 = arith.constant 1.000000e+00 : f32
    %1093 = vector.broadcast %cst_279 : f32 to vector<1x16xf32>
    %1094 = arith.addf %1093, %1092 : vector<1x16xf32>
    %1095 = arith.divf %1093, %1094 : vector<1x16xf32>
    %1096 = arith.mulf %1087, %1031 : vector<1x16xf32>
    %1097 = arith.mulf %1081, %1089 : vector<1x16xf32>
    %1098 = arith.addf %1096, %1097 : vector<1x16xf32>
    %1099 = math.tanh %1098 : vector<1x16xf32>
    %1100 = arith.mulf %1095, %1099 : vector<1x16xf32>
    %1101 = arith.index_cast %1038 : i32 to index
    %c0_280 = arith.constant 0 : index
    %1102 = vector.load %arg15[%1101, %c0_280] : memref<8x16xf32, #tpu.memory_space<vmem>>, vector<1x16xf32>
    tpu.vector_store %arg15[%1101, %c0_280], %1075 {strides = array<i32>} : memref<8x16xf32, #tpu.memory_space<vmem>>, vector<1x16xf32>,
    %1103 = arith.index_cast %1040 : i32 to index
    %c0_281 = arith.constant 0 : index
    %1104 = vector.load %arg16[%1103, %c0_281] : memref<8x16xf32, #tpu.memory_space<vmem>>, vector<1x16xf32>
    tpu.vector_store %arg16[%1103, %c0_281], %1100 {strides = array<i32>} : memref<8x16xf32, #tpu.memory_space<vmem>>, vector<1x16xf32>,
    %c8_i32_282 = arith.constant 8 : i32
    %c0_283 = arith.constant 0 : index
    %c0_284 = arith.constant 0 : index
    %1105 = vector.load %arg15[%c0_283, %c0_284] : memref<8x16xf32, #tpu.memory_space<vmem>>, vector<8x16xf32>
    %c0_285 = arith.constant 0 : index
    %c0_286 = arith.constant 0 : index
    %1106 = vector.load %arg16[%c0_285, %c0_286] : memref<8x16xf32, #tpu.memory_space<vmem>>, vector<8x16xf32>
    %1107 = tpu.concatenate %1105, %1106 in 1 : vector<8x16xf32>, vector<8x16xf32> -> vector<8x32xf32>
    %cst_287 = arith.constant dense<0.000000e+00> : vector<8xf32>
    %1108 = vector.multi_reduction <add>, %1107, %cst_287 [1] : vector<8x32xf32> to vector<8xf32>
    %1109 = vector.shape_cast %1108 : vector<8xf32> to vector<8x1xf32>
    %cst_288 = arith.constant 3.200000e+01 : f32
    %1110 = vector.broadcast %cst_288 : f32 to vector<8x1xf32>
    %1111 = arith.divf %1109, %1110 : vector<8x1xf32>
    %1112 = vector.broadcast %1111 : vector<8x1xf32> to vector<8x32xf32>
    %1113 = arith.subf %1107, %1112 : vector<8x32xf32>
    %1114 = arith.mulf %1113, %1113 : vector<8x32xf32>
    %cst_289 = arith.constant dense<0.000000e+00> : vector<8xf32>
    %1115 = vector.multi_reduction <add>, %1114, %cst_289 [1] : vector<8x32xf32> to vector<8xf32>
    %1116 = vector.shape_cast %1115 : vector<8xf32> to vector<8x1xf32>
    %cst_290 = arith.constant 3.200000e+01 : f32
    %1117 = vector.broadcast %cst_290 : f32 to vector<8x1xf32>
    %1118 = arith.divf %1116, %1117 : vector<8x1xf32>
    %cst_291 = arith.constant 9.99999974E-6 : f32
    %1119 = vector.broadcast %cst_291 : f32 to vector<8x1xf32>
    %1120 = arith.addf %1118, %1119 : vector<8x1xf32>
    %1121 = math.rsqrt %1120 : vector<8x1xf32>
    %1122 = vector.broadcast %1121 : vector<8x1xf32> to vector<8x32xf32>
    %1123 = arith.mulf %1113, %1122 : vector<8x32xf32>
    %c0_292 = arith.constant 0 : index
    %c0_293 = arith.constant 0 : index
    %1124 = vector.load %arg10[%c0_292, %c0_293] : memref<1x32xf32, #tpu.memory_space<vmem>>, vector<1x32xf32>
    %1125 = vector.broadcast %1124 : vector<1x32xf32> to vector<8x32xf32>
    %1126 = arith.mulf %1123, %1125 : vector<8x32xf32>
    %c0_294 = arith.constant 0 : index
    %c0_295 = arith.constant 0 : index
    %1127 = vector.load %arg11[%c0_294, %c0_295] : memref<1x32xf32, #tpu.memory_space<vmem>>, vector<1x32xf32>
    %1128 = vector.broadcast %1127 : vector<1x32xf32> to vector<8x32xf32>
    %1129 = arith.addf %1126, %1128 : vector<8x32xf32>
    %1130 = vector.extract_strided_slice %1129 {offsets = [0, 0], sizes = [1, 32], strides = [1, 1]} : vector<8x32xf32> to vector<1x32xf32>
    %c0_296 = arith.constant 0 : index
    %c0_297 = arith.constant 0 : index
    %c0_298 = arith.constant 0 : index
    %1131 = vector.load %arg12[%c0_296, %c0_297, %c0_298] : memref<1x8x32xf32, #tpu.memory_space<vmem>>, vector<1x1x32xf32>
    %1132 = vector.shape_cast %1131 : vector<1x1x32xf32> to vector<1x32xf32>
    %1133 = vector.shape_cast %1130 : vector<1x32xf32> to vector<1x1x32xf32>
    tpu.vector_store %arg12[%c0_296, %c0_297, %c0_298], %1133 {strides = array<i32>} : memref<1x8x32xf32, #tpu.memory_space<vmem>>, vector<1x1x32xf32>,
    %1134 = vector.extract_strided_slice %1129 {offsets = [1, 0], sizes = [1, 32], strides = [1, 1]} : vector<8x32xf32> to vector<1x32xf32>
    %c0_299 = arith.constant 0 : index
    %c1 = arith.constant 1 : index
    %c0_300 = arith.constant 0 : index
    %1135 = vector.load %arg12[%c0_299, %c1, %c0_300] : memref<1x8x32xf32, #tpu.memory_space<vmem>>, vector<1x1x32xf32>
    %1136 = vector.shape_cast %1135 : vector<1x1x32xf32> to vector<1x32xf32>
    %1137 = vector.shape_cast %1134 : vector<1x32xf32> to vector<1x1x32xf32>
    tpu.vector_store %arg12[%c0_299, %c1, %c0_300], %1137 {strides = array<i32>} : memref<1x8x32xf32, #tpu.memory_space<vmem>>, vector<1x1x32xf32>,
    %1138 = vector.extract_strided_slice %1129 {offsets = [2, 0], sizes = [1, 32], strides = [1, 1]} : vector<8x32xf32> to vector<1x32xf32>
    %c0_301 = arith.constant 0 : index
    %c2 = arith.constant 2 : index
    %c0_302 = arith.constant 0 : index
    %1139 = vector.load %arg12[%c0_301, %c2, %c0_302] : memref<1x8x32xf32, #tpu.memory_space<vmem>>, vector<1x1x32xf32>
    %1140 = vector.shape_cast %1139 : vector<1x1x32xf32> to vector<1x32xf32>
    %1141 = vector.shape_cast %1138 : vector<1x32xf32> to vector<1x1x32xf32>
    tpu.vector_store %arg12[%c0_301, %c2, %c0_302], %1141 {strides = array<i32>} : memref<1x8x32xf32, #tpu.memory_space<vmem>>, vector<1x1x32xf32>,
    %1142 = vector.extract_strided_slice %1129 {offsets = [3, 0], sizes = [1, 32], strides = [1, 1]} : vector<8x32xf32> to vector<1x32xf32>
    %c0_303 = arith.constant 0 : index
    %c3 = arith.constant 3 : index
    %c0_304 = arith.constant 0 : index
    %1143 = vector.load %arg12[%c0_303, %c3, %c0_304] : memref<1x8x32xf32, #tpu.memory_space<vmem>>, vector<1x1x32xf32>
    %1144 = vector.shape_cast %1143 : vector<1x1x32xf32> to vector<1x32xf32>
    %1145 = vector.shape_cast %1142 : vector<1x32xf32> to vector<1x1x32xf32>
    tpu.vector_store %arg12[%c0_303, %c3, %c0_304], %1145 {strides = array<i32>} : memref<1x8x32xf32, #tpu.memory_space<vmem>>, vector<1x1x32xf32>,
    %1146 = vector.extract_strided_slice %1129 {offsets = [4, 0], sizes = [1, 32], strides = [1, 1]} : vector<8x32xf32> to vector<1x32xf32>
    %c0_305 = arith.constant 0 : index
    %c4 = arith.constant 4 : index
    %c0_306 = arith.constant 0 : index
    %1147 = vector.load %arg12[%c0_305, %c4, %c0_306] : memref<1x8x32xf32, #tpu.memory_space<vmem>>, vector<1x1x32xf32>
    %1148 = vector.shape_cast %1147 : vector<1x1x32xf32> to vector<1x32xf32>
    %1149 = vector.shape_cast %1146 : vector<1x32xf32> to vector<1x1x32xf32>
    tpu.vector_store %arg12[%c0_305, %c4, %c0_306], %1149 {strides = array<i32>} : memref<1x8x32xf32, #tpu.memory_space<vmem>>, vector<1x1x32xf32>,
    %1150 = vector.extract_strided_slice %1129 {offsets = [5, 0], sizes = [1, 32], strides = [1, 1]} : vector<8x32xf32> to vector<1x32xf32>
    %c0_307 = arith.constant 0 : index
    %c5 = arith.constant 5 : index
    %c0_308 = arith.constant 0 : index
    %1151 = vector.load %arg12[%c0_307, %c5, %c0_308] : memref<1x8x32xf32, #tpu.memory_space<vmem>>, vector<1x1x32xf32>
    %1152 = vector.shape_cast %1151 : vector<1x1x32xf32> to vector<1x32xf32>
    %1153 = vector.shape_cast %1150 : vector<1x32xf32> to vector<1x1x32xf32>
    tpu.vector_store %arg12[%c0_307, %c5, %c0_308], %1153 {strides = array<i32>} : memref<1x8x32xf32, #tpu.memory_space<vmem>>, vector<1x1x32xf32>,
    %1154 = vector.extract_strided_slice %1129 {offsets = [6, 0], sizes = [1, 32], strides = [1, 1]} : vector<8x32xf32> to vector<1x32xf32>
    %c0_309 = arith.constant 0 : index
    %c6 = arith.constant 6 : index
    %c0_310 = arith.constant 0 : index
    %1155 = vector.load %arg12[%c0_309, %c6, %c0_310] : memref<1x8x32xf32, #tpu.memory_space<vmem>>, vector<1x1x32xf32>
    %1156 = vector.shape_cast %1155 : vector<1x1x32xf32> to vector<1x32xf32>
    %1157 = vector.shape_cast %1154 : vector<1x32xf32> to vector<1x1x32xf32>
    tpu.vector_store %arg12[%c0_309, %c6, %c0_310], %1157 {strides = array<i32>} : memref<1x8x32xf32, #tpu.memory_space<vmem>>, vector<1x1x32xf32>,
    %1158 = vector.extract_strided_slice %1129 {offsets = [7, 0], sizes = [1, 32], strides = [1, 1]} : vector<8x32xf32> to vector<1x32xf32>
    %c0_311 = arith.constant 0 : index
    %c7 = arith.constant 7 : index
    %c0_312 = arith.constant 0 : index
    %1159 = vector.load %arg12[%c0_311, %c7, %c0_312] : memref<1x8x32xf32, #tpu.memory_space<vmem>>, vector<1x1x32xf32>
    %1160 = vector.shape_cast %1159 : vector<1x1x32xf32> to vector<1x32xf32>
    %1161 = vector.shape_cast %1158 : vector<1x32xf32> to vector<1x1x32xf32>
    tpu.vector_store %arg12[%c0_311, %c7, %c0_312], %1161 {strides = array<i32>} : memref<1x8x32xf32, #tpu.memory_space<vmem>>, vector<1x1x32xf32>,
    return
  }
  func.func @transform_0(%arg0: i32) -> (i32, i32) {
    %c0_i32 = arith.constant 0 : i32
    %c0_i32_0 = arith.constant 0 : i32
    return %arg0, %c0_i32 : i32, i32
  }
  func.func @transform_1(%arg0: i32) -> (i32, i32) {
    %c0_i32 = arith.constant 0 : i32
    %c0_i32_0 = arith.constant 0 : i32
    %c0_i32_1 = arith.constant 0 : i32
    return %c0_i32, %c0_i32_0 : i32, i32
  }
  func.func @transform_2(%arg0: i32) -> (i32, i32) {
    %c0_i32 = arith.constant 0 : i32
    %c0_i32_0 = arith.constant 0 : i32
    %c0_i32_1 = arith.constant 0 : i32
    return %c0_i32, %c0_i32_0 : i32, i32
  }
  func.func @transform_3(%arg0: i32) -> (i32, i32) {
    %c0_i32 = arith.constant 0 : i32
    %c0_i32_0 = arith.constant 0 : i32
    %c0_i32_1 = arith.constant 0 : i32
    return %c0_i32, %c0_i32_0 : i32, i32
  }
  func.func @transform_4(%arg0: i32) -> (i32, i32) {
    %c0_i32 = arith.constant 0 : i32
    %c0_i32_0 = arith.constant 0 : i32
    %c0_i32_1 = arith.constant 0 : i32
    return %c0_i32, %c0_i32_0 : i32, i32
  }
  func.func @transform_5(%arg0: i32) -> (i32, i32) {
    %c0_i32 = arith.constant 0 : i32
    %c0_i32_0 = arith.constant 0 : i32
    %c0_i32_1 = arith.constant 0 : i32
    return %c0_i32, %c0_i32_0 : i32, i32
  }
  func.func @transform_6(%arg0: i32) -> (i32, i32) {
    %c0_i32 = arith.constant 0 : i32
    %c0_i32_0 = arith.constant 0 : i32
    %c0_i32_1 = arith.constant 0 : i32
    return %c0_i32, %c0_i32_0 : i32, i32
  }
  func.func @transform_7(%arg0: i32) -> (i32, i32) {
    %c0_i32 = arith.constant 0 : i32
    %c0_i32_0 = arith.constant 0 : i32
    %c0_i32_1 = arith.constant 0 : i32
    return %c0_i32, %c0_i32_0 : i32, i32
  }
  func.func @transform_8(%arg0: i32) -> (i32, i32) {
    %c0_i32 = arith.constant 0 : i32
    %c0_i32_0 = arith.constant 0 : i32
    %c0_i32_1 = arith.constant 0 : i32
    return %c0_i32, %c0_i32_0 : i32, i32
  }
  func.func @transform_9(%arg0: i32) -> (i32, i32) {
    %c0_i32 = arith.constant 0 : i32
    %c0_i32_0 = arith.constant 0 : i32
    %c0_i32_1 = arith.constant 0 : i32
    return %c0_i32, %c0_i32_0 : i32, i32
  }
  func.func @transform_10(%arg0: i32) -> (i32, i32) {
    %c0_i32 = arith.constant 0 : i32
    %c0_i32_0 = arith.constant 0 : i32
    %c0_i32_1 = arith.constant 0 : i32
    return %c0_i32, %c0_i32_0 : i32, i32
  }
  func.func @transform_11(%arg0: i32) -> (i32, i32, i32) {
    %c0_i32 = arith.constant 0 : i32
    %c0_i32_0 = arith.constant 0 : i32
    %c0_i32_1 = arith.constant 0 : i32
    return %arg0, %c0_i32, %c0_i32_0 : i32, i32, i32
  }
}

</mosaic_0001>

<llo_original>
// kernel: entity_context_encoder_forward.3
$region0: #{entity_context_encoder_forward.3}
  #allocation0 [shape = 'u32[]', space=smem, size = 0x4, offset = 0x4, fixed_abs, tag = 'smem constant byte address 0x4 - core index']
  #allocation1 [shape = 'u32[144,128]{1,0:T(1,128)}', space=vmem, size = 0x12000, scoped, tag = 'internal scratch']
  #allocation2 [shape = 'f32[8,64]{1,0:T(8,128)}', space=vmem, size = 0x1000, scoped, tag = 'scratch operand']
  #allocation3 [shape = 'f32[8,64]{1,0:T(8,128)}', space=vmem, size = 0x1000, scoped, tag = 'scratch operand']
  #allocation4 [shape = 'f32[8,16]{1,0:T(8,128)}', space=vmem, size = 0x1000, scoped, tag = 'scratch operand']
  #allocation5 [shape = 'f32[8,16]{1,0:T(8,128)}', space=vmem, size = 0x1000, scoped, tag = 'scratch operand']
  %s0 = inlined_call_operand.vmem [shape: f32[16,32], index: 0, kind: input, shape index: {}]
  %s1 = inlined_call_operand.vmem [shape: bf16[32,128], index: 1, kind: input, shape index: {}]
  %s2 = inlined_call_operand.vmem [shape: bf16[16,64], index: 2, kind: input, shape index: {}]
  %s3 = inlined_call_operand.vmem [shape: bf16[16,64], index: 3, kind: input, shape index: {}]
  %s4 = inlined_call_operand.vmem [shape: f32[1,128], index: 4, kind: input, shape index: {}]
  %s5 = inlined_call_operand.vmem [shape: bf16[32,128], index: 5, kind: input, shape index: {}]
  %s6 = inlined_call_operand.vmem [shape: bf16[16,64], index: 6, kind: input, shape index: {}]
  %s7 = inlined_call_operand.vmem [shape: bf16[16,64], index: 7, kind: input, shape index: {}]
  %s8 = inlined_call_operand.vmem [shape: f32[1,128], index: 8, kind: input, shape index: {}]
  %s9 = inlined_call_operand.vmem [shape: f32[1,32], index: 9, kind: input, shape index: {}]
  %s10 = inlined_call_operand.vmem [shape: f32[1,32], index: 10, kind: input, shape index: {}]
  %s11 = inlined_call_operand.hbm [shape: f32[2,8,32], index: 11, kind: output, shape index: {}]
  %s12 = sld [smem:[#allocation0]]
  $region77: #{entity_context_encoder_forward.3} parent=0
    _
  %s14 = ssub.s32 1, %s12
  %s15 = scalar_select 0, %s14, %s12
  $region1: #{entity_context_encoder_forward.3} parent=0
    #allocation6 [shape = 'u8[8192]{0}', space=vmem, size = 0x2000, scoped, tag = 'output window, operand 0']
    #allocation7 [shape = 's32[2]{0}', space=sflag, size = 0x8, scoped, tag = 'scoped memory for entity_context_encoder_forward.3']
    %16 = vsyncpa [#allocation7], 0
    %s17 = scalar_lea.sflag [#allocation7], 1
    %18 = vsyncpa %s17, 0
    loop: start=0, step=1, limit=4
    $region2: #{entity_context_encoder_forward.3} parent=1 // loop_pre_header
      _
    $region3: #{entity_context_encoder_forward.3} parent=1 // loop_header
      %s20 = sphi 0, %s24
      %p21 = scmp.ge.s32.totalorder %s20, 4
      %s30 = sphi 0, %s32
      %s33 = sphi 0, %s30
      %s34 = sphi 0, %s33
      %s50 = sphi 0, %s34
      %s54 = sphi 0, %s54
      %s56 = sphi 0, %s54
      %s57 = sphi 0, %s56
      %s71 = sphi 0, %s57
      %s75 = sphi 0, %s75
      %s77 = sphi 0, %s75
      %s78 = sphi 0, %s77
      %s92 = sphi 0, %s78
      %s96 = sphi 0, %s96
      %s98 = sphi 0, %s96
      %s99 = sphi 0, %s98
      %s113 = sphi 0, %s99
      %s117 = sphi 0, %s117
      %s119 = sphi 0, %s117
      %s120 = sphi 0, %s119
      %s134 = sphi 0, %s120
      %s138 = sphi 0, %s138
      %s140 = sphi 0, %s138
      %s141 = sphi 0, %s140
      %s155 = sphi 0, %s141
      %s159 = sphi 0, %s159
      %s161 = sphi 0, %s159
      %s162 = sphi 0, %s161
      %s176 = sphi 0, %s162
      %s180 = sphi 0, %s180
      %s182 = sphi 0, %s180
      %s183 = sphi 0, %s182
      %s197 = sphi 0, %s183
      %s201 = sphi 0, %s201
      %s203 = sphi 0, %s201
      %s204 = sphi 0, %s203
      %s218 = sphi 0, %s204
      %s222 = sphi 0, %s222
      %s224 = sphi 0, %s222
      %s225 = sphi 0, %s224
      %s239 = sphi 0, %s225
      %s243 = sphi 0, %s243
      %s245 = sphi 0, %s243
      %s246 = sphi 0, %s245
      %s260 = sphi 0, %s246
      %s266 = sphi 0, %s268
      %s269 = sphi 0, %s266
      %s270 = sphi 0, %s269
      %s286 = sphi 0, %s270
    $region4: #{entity_context_encoder_forward.3} parent=1 // loop_header_branch
      %23 = sbr.rel (%p21) target = $region8
    $region5: #{entity_context_encoder_forward.3} parent=1 // loop_body
      %s25 = ssub.s32 %s20, 1
      %s26 = ssub.s32 %s20, 2
      %s27 = sadd.s32 %s20, 1
      %s28 = ssub.s32 %s20, %s27
      %p29 = scmp.eq.s32.totalorder %s28, 0
      %s31 = sadd.s32 %s30, 1
      %s32 = scalar_select %p29, %s30, %s31
      %p35 = pneg %p29
      %p36 = scmp.eq.s32.totalorder %s20, 1
      %p37 = por %p35, %p36
      %p38 = scmp.ne.s32.totalorder %s30, %s33
      %p39 = scmp.eq.s32.totalorder %s20, 0
      %p40 = por %p38, %p39
      %p41 = scmp.ne.s32.totalorder %s30, %s33
      %p42 = scmp.eq.s32.totalorder %s25, 1
      %p43 = por %p41, %p42
      %p44 = scmp.ne.s32.totalorder %s33, %s34
      %p45 = scmp.eq.s32.totalorder %s25, 0
      %p46 = por %p44, %p45
      %p47 = scmp.ne.s32.totalorder %s33, %s34
      %p48 = scmp.eq.s32.totalorder %s26, 1
      %p49 = por %p47, %p48
      %p51 = scmp.ne.s32.totalorder %s34, %s50
      %p52 = scmp.eq.s32.totalorder %s26, 0
      %p53 = por %p51, %p52
      %s55 = sadd.s32 %s54, 1
      %p58 = scmp.eq.s32.totalorder %s20, 1
      %p59 = scmp.ne.s32.totalorder %s54, %s56
      %p60 = scmp.eq.s32.totalorder %s20, 0
      %p61 = por %p59, %p60
      %p62 = scmp.ne.s32.totalorder %s54, %s56
      %p63 = scmp.eq.s32.totalorder %s25, 1
      %p64 = por %p62, %p63
      %p65 = scmp.ne.s32.totalorder %s56, %s57
      %p66 = scmp.eq.s32.totalorder %s25, 0
      %p67 = por %p65, %p66
      %p68 = scmp.ne.s32.totalorder %s56, %s57
      %p69 = scmp.eq.s32.totalorder %s26, 1
      %p70 = por %p68, %p69
      %p72 = scmp.ne.s32.totalorder %s57, %s71
      %p73 = scmp.eq.s32.totalorder %s26, 0
      %p74 = por %p72, %p73
      %s76 = sadd.s32 %s75, 1
      %p79 = scmp.eq.s32.totalorder %s20, 1
      %p80 = scmp.ne.s32.totalorder %s75, %s77
      %p81 = scmp.eq.s32.totalorder %s20, 0
      %p82 = por %p80, %p81
      %p83 = scmp.ne.s32.totalorder %s75, %s77
      %p84 = scmp.eq.s32.totalorder %s25, 1
      %p85 = por %p83, %p84
      %p86 = scmp.ne.s32.totalorder %s77, %s78
      %p87 = scmp.eq.s32.totalorder %s25, 0
      %p88 = por %p86, %p87
      %p89 = scmp.ne.s32.totalorder %s77, %s78
      %p90 = scmp.eq.s32.totalorder %s26, 1
      %p91 = por %p89, %p90
      %p93 = scmp.ne.s32.totalorder %s78, %s92
      %p94 = scmp.eq.s32.totalorder %s26, 0
      %p95 = por %p93, %p94
      %s97 = sadd.s32 %s96, 1
      %p100 = scmp.eq.s32.totalorder %s20, 1
      %p101 = scmp.ne.s32.totalorder %s96, %s98
      %p102 = scmp.eq.s32.totalorder %s20, 0
      %p103 = por %p101, %p102
      %p104 = scmp.ne.s32.totalorder %s96, %s98
      %p105 = scmp.eq.s32.totalorder %s25, 1
      %p106 = por %p104, %p105
      %p107 = scmp.ne.s32.totalorder %s98, %s99
      %p108 = scmp.eq.s32.totalorder %s25, 0
      %p109 = por %p107, %p108
      %p110 = scmp.ne.s32.totalorder %s98, %s99
      %p111 = scmp.eq.s32.totalorder %s26, 1
      %p112 = por %p110, %p111
      %p114 = scmp.ne.s32.totalorder %s99, %s113
      %p115 = scmp.eq.s32.totalorder %s26, 0
      %p116 = por %p114, %p115
      %s118 = sadd.s32 %s117, 1
      %p121 = scmp.eq.s32.totalorder %s20, 1
      %p122 = scmp.ne.s32.totalorder %s117, %s119
      %p123 = scmp.eq.s32.totalorder %s20, 0
      %p124 = por %p122, %p123
      %p125 = scmp.ne.s32.totalorder %s117, %s119
      %p126 = scmp.eq.s32.totalorder %s25, 1
      %p127 = por %p125, %p126
      %p128 = scmp.ne.s32.totalorder %s119, %s120
      %p129 = scmp.eq.s32.totalorder %s25, 0
      %p130 = por %p128, %p129
      %p131 = scmp.ne.s32.totalorder %s119, %s120
      %p132 = scmp.eq.s32.totalorder %s26, 1
      %p133 = por %p131, %p132
      %p135 = scmp.ne.s32.totalorder %s120, %s134
      %p136 = scmp.eq.s32.totalorder %s26, 0
      %p137 = por %p135, %p136
      %s139 = sadd.s32 %s138, 1
      %p142 = scmp.eq.s32.totalorder %s20, 1
      %p143 = scmp.ne.s32.totalorder %s138, %s140
      %p144 = scmp.eq.s32.totalorder %s20, 0
      %p145 = por %p143, %p144
      %p146 = scmp.ne.s32.totalorder %s138, %s140
      %p147 = scmp.eq.s32.totalorder %s25, 1
      %p148 = por %p146, %p147
      %p149 = scmp.ne.s32.totalorder %s140, %s141
      %p150 = scmp.eq.s32.totalorder %s25, 0
      %p151 = por %p149, %p150
      %p152 = scmp.ne.s32.totalorder %s140, %s141
      %p153 = scmp.eq.s32.totalorder %s26, 1
      %p154 = por %p152, %p153
      %p156 = scmp.ne.s32.totalorder %s141, %s155
      %p157 = scmp.eq.s32.totalorder %s26, 0
      %p158 = por %p156, %p157
      %s160 = sadd.s32 %s159, 1
      %p163 = scmp.eq.s32.totalorder %s20, 1
      %p164 = scmp.ne.s32.totalorder %s159, %s161
      %p165 = scmp.eq.s32.totalorder %s20, 0
      %p166 = por %p164, %p165
      %p167 = scmp.ne.s32.totalorder %s159, %s161
      %p168 = scmp.eq.s32.totalorder %s25, 1
      %p169 = por %p167, %p168
      %p170 = scmp.ne.s32.totalorder %s161, %s162
      %p171 = scmp.eq.s32.totalorder %s25, 0
      %p172 = por %p170, %p171
      %p173 = scmp.ne.s32.totalorder %s161, %s162
      %p174 = scmp.eq.s32.totalorder %s26, 1
      %p175 = por %p173, %p174
      %p177 = scmp.ne.s32.totalorder %s162, %s176
      %p178 = scmp.eq.s32.totalorder %s26, 0
      %p179 = por %p177, %p178
      %s181 = sadd.s32 %s180, 1
      %p184 = scmp.eq.s32.totalorder %s20, 1
      %p185 = scmp.ne.s32.totalorder %s180, %s182
      %p186 = scmp.eq.s32.totalorder %s20, 0
      %p187 = por %p185, %p186
      %p188 = scmp.ne.s32.totalorder %s180, %s182
      %p189 = scmp.eq.s32.totalorder %s25, 1
      %p190 = por %p188, %p189
      %p191 = scmp.ne.s32.totalorder %s182, %s183
      %p192 = scmp.eq.s32.totalorder %s25, 0
      %p193 = por %p191, %p192
      %p194 = scmp.ne.s32.totalorder %s182, %s183
      %p195 = scmp.eq.s32.totalorder %s26, 1
      %p196 = por %p194, %p195
      %p198 = scmp.ne.s32.totalorder %s183, %s197
      %p199 = scmp.eq.s32.totalorder %s26, 0
      %p200 = por %p198, %p199
      %s202 = sadd.s32 %s201, 1
      %p205 = scmp.eq.s32.totalorder %s20, 1
      %p206 = scmp.ne.s32.totalorder %s201, %s203
      %p207 = scmp.eq.s32.totalorder %s20, 0
      %p208 = por %p206, %p207
      %p209 = scmp.ne.s32.totalorder %s201, %s203
      %p210 = scmp.eq.s32.totalorder %s25, 1
      %p211 = por %p209, %p210
      %p212 = scmp.ne.s32.totalorder %s203, %s204
      %p213 = scmp.eq.s32.totalorder %s25, 0
      %p214 = por %p212, %p213
      %p215 = scmp.ne.s32.totalorder %s203, %s204
      %p216 = scmp.eq.s32.totalorder %s26, 1
      %p217 = por %p215, %p216
      %p219 = scmp.ne.s32.totalorder %s204, %s218
      %p220 = scmp.eq.s32.totalorder %s26, 0
      %p221 = por %p219, %p220
      %s223 = sadd.s32 %s222, 1
      %p226 = scmp.eq.s32.totalorder %s20, 1
      %p227 = scmp.ne.s32.totalorder %s222, %s224
      %p228 = scmp.eq.s32.totalorder %s20, 0
      %p229 = por %p227, %p228
      %p230 = scmp.ne.s32.totalorder %s222, %s224
      %p231 = scmp.eq.s32.totalorder %s25, 1
      %p232 = por %p230, %p231
      %p233 = scmp.ne.s32.totalorder %s224, %s225
      %p234 = scmp.eq.s32.totalorder %s25, 0
      %p235 = por %p233, %p234
      %p236 = scmp.ne.s32.totalorder %s224, %s225
      %p237 = scmp.eq.s32.totalorder %s26, 1
      %p238 = por %p236, %p237
      %p240 = scmp.ne.s32.totalorder %s225, %s239
      %p241 = scmp.eq.s32.totalorder %s26, 0
      %p242 = por %p240, %p241
      %s244 = sadd.s32 %s243, 1
      %p247 = scmp.eq.s32.totalorder %s20, 1
      %p248 = scmp.ne.s32.totalorder %s243, %s245
      %p249 = scmp.eq.s32.totalorder %s20, 0
      %p250 = por %p248, %p249
      %p251 = scmp.ne.s32.totalorder %s243, %s245
      %p252 = scmp.eq.s32.totalorder %s25, 1
      %p253 = por %p251, %p252
      %p254 = scmp.ne.s32.totalorder %s245, %s246
      %p255 = scmp.eq.s32.totalorder %s25, 0
      %p256 = por %p254, %p255
      %p257 = scmp.ne.s32.totalorder %s245, %s246
      %p258 = scmp.eq.s32.totalorder %s26, 1
      %p259 = por %p257, %p258
      %p261 = scmp.ne.s32.totalorder %s246, %s260
      %p262 = scmp.eq.s32.totalorder %s26, 0
      %p263 = por %p261, %p262
      %s264 = ssub.s32 %s20, %s27
      %p265 = scmp.eq.s32.totalorder %s264, 0
      %s267 = sadd.s32 %s266, 1
      %s268 = scalar_select %p265, %s266, %s267
      %p271 = pneg %p265
      %p272 = scmp.eq.s32.totalorder %s20, 1
      %p273 = por %p271, %p272
      %p274 = scmp.ne.s32.totalorder %s266, %s269
      %p275 = scmp.eq.s32.totalorder %s20, 0
      %p276 = por %p274, %p275
      %p277 = scmp.ne.s32.totalorder %s266, %s269
      %p278 = scmp.eq.s32.totalorder %s25, 1
      %p279 = por %p277, %p278
      %p280 = scmp.ne.s32.totalorder %s269, %s270
      %p281 = scmp.eq.s32.totalorder %s25, 0
      %p282 = por %p280, %p281
      %p283 = scmp.ne.s32.totalorder %s269, %s270
      %p284 = scmp.eq.s32.totalorder %s26, 1
      %p285 = por %p283, %p284
      %p287 = scmp.ne.s32.totalorder %s270, %s286
      %p288 = scmp.eq.s32.totalorder %s26, 0
      %p289 = por %p287, %p288
      %p290 = scmp.le.s32.totalorder 1, %s20
      %p291 = scmp.lt.s32.totalorder %s20, 3
      %p292 = pnand %p290, %p291
      %p293 = pneg %p292
      // Predicated region
      $region9: #{entity_context_encoder_forward.3} parent=5 // pred_check
        _
      $region10: #{entity_context_encoder_forward.3} parent=5 // pred_check_branch
        %295 = sbr.rel (%p292) target = $region12
      $region11: #{entity_context_encoder_forward.3} parent=5 // pred_region
        %s296 = ssub.s32 %s20, 1
        // Predicated region
        $region13: #{entity_context_encoder_forward.3} parent=11 // pred_check
          %p297 = pneg %p67
        $region14: #{entity_context_encoder_forward.3} parent=11 // pred_check_branch
          %299 = sbr.rel (%p297) target = $region16
        $region15: #{entity_context_encoder_forward.3} parent=11 // pred_region
          _
        $region16: #{entity_context_encoder_forward.3} parent=11 // pred_fallthru
          _
        // Predicated region
        $region17: #{entity_context_encoder_forward.3} parent=11 // pred_check
          %p300 = pneg %p88
        $region18: #{entity_context_encoder_forward.3} parent=11 // pred_check_branch
          %302 = sbr.rel (%p300) target = $region20
        $region19: #{entity_context_encoder_forward.3} parent=11 // pred_region
          _
        $region20: #{entity_context_encoder_forward.3} parent=11 // pred_fallthru
          _
        // Predicated region
        $region21: #{entity_context_encoder_forward.3} parent=11 // pred_check
          %p303 = pneg %p109
        $region22: #{entity_context_encoder_forward.3} parent=11 // pred_check_branch
          %305 = sbr.rel (%p303) target = $region24
        $region23: #{entity_context_encoder_forward.3} parent=11 // pred_region
          _
        $region24: #{entity_context_encoder_forward.3} parent=11 // pred_fallthru
          _
        // Predicated region
        $region25: #{entity_context_encoder_forward.3} parent=11 // pred_check
          %p306 = pneg %p130
        $region26: #{entity_context_encoder_forward.3} parent=11 // pred_check_branch
          %308 = sbr.rel (%p306) target = $region28
        $region27: #{entity_context_encoder_forward.3} parent=11 // pred_region
          _
        $region28: #{entity_context_encoder_forward.3} parent=11 // pred_fallthru
          _
        // Predicated region
        $region29: #{entity_context_encoder_forward.3} parent=11 // pred_check
          %p309 = pneg %p151
        $region30: #{entity_context_encoder_forward.3} parent=11 // pred_check_branch
          %311 = sbr.rel (%p309) target = $region32
        $region31: #{entity_context_encoder_forward.3} parent=11 // pred_region
          _
        $region32: #{entity_context_encoder_forward.3} parent=11 // pred_fallthru
          _
        // Predicated region
        $region33: #{entity_context_encoder_forward.3} parent=11 // pred_check
          %p312 = pneg %p172
        $region34: #{entity_context_encoder_forward.3} parent=11 // pred_check_branch
          %314 = sbr.rel (%p312) target = $region36
        $region35: #{entity_context_encoder_forward.3} parent=11 // pred_region
          _
        $region36: #{entity_context_encoder_forward.3} parent=11 // pred_fallthru
          _
        // Predicated region
        $region37: #{entity_context_encoder_forward.3} parent=11 // pred_check
          %p315 = pneg %p193
        $region38: #{entity_context_encoder_forward.3} parent=11 // pred_check_branch
          %317 = sbr.rel (%p315) target = $region40
        $region39: #{entity_context_encoder_forward.3} parent=11 // pred_region
          _
        $region40: #{entity_context_encoder_forward.3} parent=11 // pred_fallthru
          _
        // Predicated region
        $region41: #{entity_context_encoder_forward.3} parent=11 // pred_check
          %p318 = pneg %p214
        $region42: #{entity_context_encoder_forward.3} parent=11 // pred_check_branch
          %320 = sbr.rel (%p318) target = $region44
        $region43: #{entity_context_encoder_forward.3} parent=11 // pred_region
          _
        $region44: #{entity_context_encoder_forward.3} parent=11 // pred_fallthru
          _
        // Predicated region
        $region45: #{entity_context_encoder_forward.3} parent=11 // pred_check
          %p321 = pneg %p235
        $region46: #{entity_context_encoder_forward.3} parent=11 // pred_check_branch
          %323 = sbr.rel (%p321) target = $region48
        $region47: #{entity_context_encoder_forward.3} parent=11 // pred_region
          _
        $region48: #{entity_context_encoder_forward.3} parent=11 // pred_fallthru
          _
        // Predicated region
        $region49: #{entity_context_encoder_forward.3} parent=11 // pred_check
          %p324 = pneg %p256
        $region50: #{entity_context_encoder_forward.3} parent=11 // pred_check_branch
          %326 = sbr.rel (%p324) target = $region52
        $region51: #{entity_context_encoder_forward.3} parent=11 // pred_region
          _
        $region52: #{entity_context_encoder_forward.3} parent=11 // pred_fallthru
          _
      $region12: #{entity_context_encoder_forward.3} parent=5 // pred_fallthru
        _
      %p327 = scmp.lt.s32.totalorder %s20, 2
      // Predicated region
      $region53: #{entity_context_encoder_forward.3} parent=5 // pred_check
        %p328 = pneg %p327
      $region54: #{entity_context_encoder_forward.3} parent=5 // pred_check_branch
        %330 = sbr.rel (%p328) target = $region56
      $region55: #{entity_context_encoder_forward.3} parent=5 // pred_region
        // Predicated region
        $region57: #{entity_context_encoder_forward.3} parent=55 // pred_check
          %p331 = pneg %p40
        $region58: #{entity_context_encoder_forward.3} parent=55 // pred_check_branch
          %333 = sbr.rel (%p331) target = $region60
        $region59: #{entity_context_encoder_forward.3} parent=55 // pred_region
          %p334 = scmp.lt.s32.totalorder %s20, 1
          %s335 = scalar_select %p334, %s20, 1
          %s336 = smul.addr %s335, 8
          %s337 = scalar_lea.vmem %s0, %s336
        $region60: #{entity_context_encoder_forward.3} parent=55 // pred_fallthru
          _
      $region56: #{entity_context_encoder_forward.3} parent=5 // pred_fallthru
        _
      %p338 = scmp.le.s32.totalorder 1, %s20
      %p339 = scmp.lt.s32.totalorder %s20, 3
      %p340 = pnand %p338, %p339
      %p341 = pneg %p340
      // Predicated region
      $region61: #{entity_context_encoder_forward.3} parent=5 // pred_check
        _
      $region62: #{entity_context_encoder_forward.3} parent=5 // pred_check_branch
        %343 = sbr.rel (%p340) target = $region64
      $region63: #{entity_context_encoder_forward.3} parent=5 // pred_region
        %s344 = ssub.s32 %s20, 1
        %p345 = scmp.lt.s32.totalorder %s25, 1
        %s346 = scalar_select %p345, %s25, 1
        %s347 = smul.addr %s346, 8
        %s348 = scalar_lea.vmem %s0, %s347
        %p349 = pneg %p46
        %p350 = pneg %p43
        %p351 = pneg %p67
        %p352 = pneg %p64
        %p353 = pneg %p88
        %p354 = pneg %p85
        %p355 = pneg %p109
        %p356 = pneg %p106
        %p357 = pneg %p130
        %p358 = pneg %p127
        %p359 = pneg %p151
        %p360 = pneg %p148
        %p361 = pneg %p172
        %p362 = pneg %p169
        %p363 = pneg %p193
        %p364 = pneg %p190
        %p365 = pneg %p214
        %p366 = pneg %p211
        %p367 = pneg %p235
        %p368 = pneg %p232
        %p369 = pneg %p256
        %p370 = pneg %p253
        %p371 = pneg %p282
        %p372 = pneg %p279
        %s373 = sand.u32 %s269, 1
        %s374 = scalar_lea.sflag [#allocation7], %s373
        %s375 = sand.u32 %s269, 1
        %s376 = smul.addr %s375, 8
        %s377 = scalar_lea.vmem [#allocation6], %s376
        %p378 = scmp.lt.s32.totalorder %s25, 1
        %s379 = scalar_select %p378, %s25, 1
        %s380 = smul.addr %s379, 8
        %s381 = scalar_lea.vmem %s0, %s380
        %v383 = vld [vmem:[%s381] sm:$0xff]
        %v384 = vpack.c.bf16 %v383, %v383
        %v385 = vld [vmem:[%s1] sm:$0xf]
        %v386 = vld [vmem:[%s1 + $0x4] sm:$0xf]
        %v387 = vld [vmem:[%s1 + $0x8] sm:$0xf]
        %v388 = vld [vmem:[%s1 + $0xc] sm:$0xf]
        %v389 = vld [vmem:[%s4] sm:$0x1]
        %v391 = vlaneseq
        %v392 = vshrl.u32 %v391, 7
        %v393 = vsub.s32 0, %v392
        %v394 = vrot.slane %v389, %v393
        %v400 = vunpack.c.l.b16 %v385
        %v401 = vunpack.c.l.b16 %v386
        %v402 = vunpack.c.l.b16 %v387
        %v403 = vunpack.c.l.b16 %v388
        %v404 = vpack.c.b16 %v401, %v400
        %v405 = vpack.c.b16 %v403, %v402
        %vm408 = vcmask 261120
        %v410 = vsel %vm408, %v384, 0
        %412 = vmatprep.subr.bf16.mxu0 0
        %413 = vmatpush1.bf16.msra.mxu0 0
        %414 = vmatprep.subr.bf16.mxu0 0
        %415 = vmatpush1.bf16.msra.mxu0 0
        %416 = vmatprep.subr.bf16.mxu0 0
        %417 = vmatpush1.bf16.msra.mxu0 0
        %418 = vmatprep.subr.bf16.mxu0 0
        %419 = vmatpush1.bf16.msra.mxu0 0
        %420 = vmatprep.subr.bf16.mxu0 0
        %421 = vmatpush1.bf16.msra.mxu0 0
        %422 = vmatprep.subr.bf16.mxu0 0
        %423 = vmatpush1.bf16.msra.mxu0 0
        %424 = vmatprep.subr.bf16.mxu0 0
        %425 = vmatpush1.bf16.msra.mxu0 %v405
        %426 = vmatprep.subr.bf16.mxu0 0
        %427 = vmatpush1.bf16.msra.mxu0 %v404
        %428 = vmatprep.subr.bf16.mxu0 0
        %429 = vmatpush2.bf16.msra.mxu0 0
        %430 = vmatprep.subr.bf16.mxu0 0
        %431 = vmatpush2.bf16.msra.mxu0 0
        %432 = vmatprep.subr.bf16.mxu0 0
        %433 = vmatpush2.bf16.msra.mxu0 0
        %434 = vmatprep.subr.bf16.mxu0 0
        %435 = vmatpush2.bf16.msra.mxu0 0
        %436 = vmatprep.subr.bf16.mxu0 0
        %437 = vmatpush2.bf16.msra.mxu0 0
        %438 = vmatprep.subr.bf16.mxu0 0
        %439 = vmatpush2.bf16.msra.mxu0 0
        %440 = vmatprep.subr.bf16.mxu0 0
        %441 = vmatpush2.bf16.msra.mxu0 0
        %442 = vmatprep.subr.bf16.mxu0 0
        %443 = vmatpush2.bf16.msra.mxu0 0
        %444 = vmatprep.mubr.bf16.mxu0 0
        %445 = vmatmul.mubr.bf16.gmra.mxu0 %v410
        %v446 = vpop.f32.mrf.mxu0
        %v447 = vadd.f32 %v394, %v446
        %v448 = vpop.f32.mrf.mxu0
        %v449 = vpop.f32.mrf.mxu0
        %v450 = vpop.f32.mrf.mxu0
        %451 = vdwg.mxu0
        %vm452 = vcmask 523264
        %453 = vst.msk [vmem:[#allocation2] sm:$0xff] %vm452, %v447
        %455 = vrot.lane.b32.xlu0 %v447, 64
        %v456 = vpop.permute.xlu0 %455
        %458 = vst.msk [vmem:[#allocation3] sm:$0xff] %vm452, %v456
        %v459 = vld [vmem:[%s2] sm:$0xf]
        %v460 = vld [vmem:[%s2 + $0x4] sm:$0xf]
        %v461 = vld [vmem:[%s3] sm:$0xf]
        %v462 = vld [vmem:[%s3 + $0x4] sm:$0xf]
        %v463 = vld [vmem:[#allocation2] sm:$0x1]
        %v466 = vunpack.c.l.b16 %v459
        %v467 = vunpack.c.l.b16 %v460
        %v468 = vpack.c.b16 %v467, %v466
        %vm470 = vcmask 130048
        %v472 = vsel %vm470, 0, 0
        %474 = vmatprep.subr.bf16.mxu0 0
        %475 = vmatpush1.bf16.msra.mxu0 0
        %476 = vmatprep.subr.bf16.mxu0 0
        %477 = vmatpush1.bf16.msra.mxu0 0
        %478 = vmatprep.subr.bf16.mxu0 0
        %479 = vmatpush1.bf16.msra.mxu0 0
        %480 = vmatprep.subr.bf16.mxu0 0
        %481 = vmatpush1.bf16.msra.mxu0 0
        %482 = vmatprep.subr.bf16.mxu0 0
        %483 = vmatpush1.bf16.msra.mxu0 0
        %484 = vmatprep.subr.bf16.mxu0 0
        %485 = vmatpush1.bf16.msra.mxu0 0
        %486 = vmatprep.subr.bf16.mxu0 0
        %487 = vmatpush1.bf16.msra.mxu0 0
        %488 = vmatprep.subr.bf16.mxu0 0
        %489 = vmatpush1.bf16.msra.mxu0 %v468
        %490 = vmatprep.subr.bf16.mxu0 0
        %491 = vmatpush2.bf16.msra.mxu0 0
        %492 = vmatprep.subr.bf16.mxu0 0
        %493 = vmatpush2.bf16.msra.mxu0 0
        %494 = vmatprep.subr.bf16.mxu0 0
        %495 = vmatpush2.bf16.msra.mxu0 0
        %496 = vmatprep.subr.bf16.mxu0 0
        %497 = vmatpush2.bf16.msra.mxu0 0
        %498 = vmatprep.subr.bf16.mxu0 0
        %499 = vmatpush2.bf16.msra.mxu0 0
        %500 = vmatprep.subr.bf16.mxu0 0
        %501 = vmatpush2.bf16.msra.mxu0 0
        %502 = vmatprep.subr.bf16.mxu0 0
        %503 = vmatpush2.bf16.msra.mxu0 0
        %504 = vmatprep.subr.bf16.mxu0 0
        %505 = vmatpush2.bf16.msra.mxu0 0
        %506 = vmatprep.mubr.bf16.mxu0 0
        %507 = vmatmul.mubr.bf16.gmra.mxu0 %v472
        %v508 = vpop.f32.mrf.mxu0
        %v509 = vadd.f32 0.0, %v508
        %v510 = vpop.f32.mrf.mxu0
        %v511 = vpop.f32.mrf.mxu0
        %v512 = vpop.f32.mrf.mxu0
        %513 = vdwg.mxu0
        %v514 = vadd.f32 %v463, %v509
        %v515 = vld [vmem:[#allocation3 + $0x7] sm:$0x1]
        %v518 = vunpack.c.l.b16 %v461
        %v519 = vunpack.c.l.b16 %v462
        %v520 = vpack.c.b16 %v519, %v518
        %522 = vmatprep.subr.bf16.mxu0 0
        %523 = vmatpush1.bf16.msra.mxu0 0
        %524 = vmatprep.subr.bf16.mxu0 0
        %525 = vmatpush1.bf16.msra.mxu0 0
        %526 = vmatprep.subr.bf16.mxu0 0
        %527 = vmatpush1.bf16.msra.mxu0 0
        %528 = vmatprep.subr.bf16.mxu0 0
        %529 = vmatpush1.bf16.msra.mxu0 0
        %530 = vmatprep.subr.bf16.mxu0 0
        %531 = vmatpush1.bf16.msra.mxu0 0
        %532 = vmatprep.subr.bf16.mxu0 0
        %533 = vmatpush1.bf16.msra.mxu0 0
        %534 = vmatprep.subr.bf16.mxu0 0
        %535 = vmatpush1.bf16.msra.mxu0 0
        %536 = vmatprep.subr.bf16.mxu0 0
        %537 = vmatpush1.bf16.msra.mxu0 %v520
        %538 = vmatprep.subr.bf16.mxu0 0
        %539 = vmatpush2.bf16.msra.mxu0 0
        %540 = vmatprep.subr.bf16.mxu0 0
        %541 = vmatpush2.bf16.msra.mxu0 0
        %542 = vmatprep.subr.bf16.mxu0 0
        %543 = vmatpush2.bf16.msra.mxu0 0
        %544 = vmatprep.subr.bf16.mxu0 0
        %545 = vmatpush2.bf16.msra.mxu0 0
        %546 = vmatprep.subr.bf16.mxu0 0
        %547 = vmatpush2.bf16.msra.mxu0 0
        %548 = vmatprep.subr.bf16.mxu0 0
        %549 = vmatpush2.bf16.msra.mxu0 0
        %550 = vmatprep.subr.bf16.mxu0 0
        %551 = vmatpush2.bf16.msra.mxu0 0
        %552 = vmatprep.subr.bf16.mxu0 0
        %553 = vmatpush2.bf16.msra.mxu0 0
        %554 = vmatprep.mubr.bf16.mxu0 0
        %555 = vmatmul.mubr.bf16.gmra.mxu0 %v472
        %v556 = vpop.f32.mrf.mxu0
        %v557 = vadd.f32 0.0, %v556
        %v558 = vpop.f32.mrf.mxu0
        %v559 = vpop.f32.mrf.mxu0
        %v560 = vpop.f32.mrf.mxu0
        %561 = vdwg.mxu0
        %v562 = vadd.f32 %v515, %v557
        %v563 = vxor.u32 %v514, 2147483648
        %v564 = vmul.f32 %v563, 1.442695
        %v565 = vpow.pop %v564
        %v566 = vadd.f32 %v565, 1.0
        %v567 = vrcp.pop %v566
        %v568 = vmul.f32 1.0, %v567
        %v569 = vtanh.pop %v514
        %v570 = vmul.f32 %v568, 0.0
        %572 = vrot.lane.b32.xlu0 %v569, 96
        %v573 = vpop.permute.xlu0 %572
        %v575 = vmul.f32 %v568, %v573
        %577 = vrot.lane.b32.xlu0 %v575, 16
        %v578 = vpop.permute.xlu0 %577
        %v580 = vadd.f32 %v570, %v578
        %v581 = vtanh.pop %v580
        %583 = vrot.lane.b32.xlu0 %v581, 32
        %v584 = vpop.permute.xlu0 %583
        %v586 = vmul.f32 %v568, %v584
        %v587 = vxor.u32 %v562, 2147483648
        %v588 = vmul.f32 %v587, 1.442695
        %v589 = vpow.pop %v588
        %v590 = vadd.f32 %v589, 1.0
        %v591 = vrcp.pop %v590
        %v592 = vmul.f32 1.0, %v591
        %v593 = vtanh.pop %v562
        %v594 = vmul.f32 %v592, 0.0
        %596 = vrot.lane.b32.xlu0 %v593, 96
        %v597 = vpop.permute.xlu0 %596
        %v599 = vmul.f32 %v592, %v597
        %601 = vrot.lane.b32.xlu0 %v599, 16
        %v602 = vpop.permute.xlu0 %601
        %v604 = vadd.f32 %v594, %v602
        %v605 = vtanh.pop %v604
        %607 = vrot.lane.b32.xlu0 %v605, 32
        %v608 = vpop.permute.xlu0 %607
        %v610 = vmul.f32 %v592, %v608
        %612 = vrot.lane.b32.xlu0 %v586, 80
        %v613 = vpop.permute.xlu0 %612
        %vm615 = vcmask 122880
        %616 = vst.msk [vmem:[#allocation4] sm:$0x1] %vm615, %v613
        %618 = vrot.lane.b32.xlu0 %v610, 80
        %v619 = vpop.permute.xlu0 %618
        %621 = vst.msk [vmem:[#allocation5 + $0x7] sm:$0x1] %vm615, %v619
        %v622 = vld [vmem:[#allocation2 + $0x1] sm:$0x1]
        %v623 = vpack.c.bf16 %v586, %v586
        %625 = vrot.lane.b32.xlu0 %v623, 80
        %v626 = vpop.permute.xlu0 %625
        %v628 = vsel %vm470, %v626, 0
        %630 = vmatprep.subr.bf16.mxu0 0
        %631 = vmatpush1.bf16.msra.mxu0 0
        %632 = vmatprep.subr.bf16.mxu0 0
        %633 = vmatpush1.bf16.msra.mxu0 0
        %634 = vmatprep.subr.bf16.mxu0 0
        %635 = vmatpush1.bf16.msra.mxu0 0
        %636 = vmatprep.subr.bf16.mxu0 0
        %637 = vmatpush1.bf16.msra.mxu0 0
        %638 = vmatprep.subr.bf16.mxu0 0
        %639 = vmatpush1.bf16.msra.mxu0 0
        %640 = vmatprep.subr.bf16.mxu0 0
        %641 = vmatpush1.bf16.msra.mxu0 0
        %642 = vmatprep.subr.bf16.mxu0 0
        %643 = vmatpush1.bf16.msra.mxu0 0
        %644 = vmatprep.subr.bf16.mxu0 0
        %645 = vmatpush1.bf16.msra.mxu0 %v468
        %646 = vmatprep.subr.bf16.mxu0 0
        %647 = vmatpush2.bf16.msra.mxu0 0
        %648 = vmatprep.subr.bf16.mxu0 0
        %649 = vmatpush2.bf16.msra.mxu0 0
        %650 = vmatprep.subr.bf16.mxu0 0
        %651 = vmatpush2.bf16.msra.mxu0 0
        %652 = vmatprep.subr.bf16.mxu0 0
        %653 = vmatpush2.bf16.msra.mxu0 0
        %654 = vmatprep.subr.bf16.mxu0 0
        %655 = vmatpush2.bf16.msra.mxu0 0
        %656 = vmatprep.subr.bf16.mxu0 0
        %657 = vmatpush2.bf16.msra.mxu0 0
        %658 = vmatprep.subr.bf16.mxu0 0
        %659 = vmatpush2.bf16.msra.mxu0 0
        %660 = vmatprep.subr.bf16.mxu0 0
        %661 = vmatpush2.bf16.msra.mxu0 0
        %662 = vmatprep.mubr.bf16.mxu0 0
        %663 = vmatmul.mubr.bf16.gmra.mxu0 %v628
        %v664 = vpop.f32.mrf.mxu0
        %v665 = vadd.f32 0.0, %v664
        %v666 = vpop.f32.mrf.mxu0
        %v667 = vpop.f32.mrf.mxu0
        %v668 = vpop.f32.mrf.mxu0
        %669 = vdwg.mxu0
        %v670 = vadd.f32 %v622, %v665
        %v671 = vld [vmem:[#allocation3 + $0x6] sm:$0x1]
        %v672 = vpack.c.bf16 %v610, %v610
        %674 = vrot.lane.b32.xlu0 %v672, 80
        %v675 = vpop.permute.xlu0 %674
        %v677 = vsel %vm470, %v675, 0
        %679 = vmatprep.subr.bf16.mxu0 0
        %680 = vmatpush1.bf16.msra.mxu0 0
        %681 = vmatprep.subr.bf16.mxu0 0
        %682 = vmatpush1.bf16.msra.mxu0 0
        %683 = vmatprep.subr.bf16.mxu0 0
        %684 = vmatpush1.bf16.msra.mxu0 0
        %685 = vmatprep.subr.bf16.mxu0 0
        %686 = vmatpush1.bf16.msra.mxu0 0
        %687 = vmatprep.subr.bf16.mxu0 0
        %688 = vmatpush1.bf16.msra.mxu0 0
        %689 = vmatprep.subr.bf16.mxu0 0
        %690 = vmatpush1.bf16.msra.mxu0 0
        %691 = vmatprep.subr.bf16.mxu0 0
        %692 = vmatpush1.bf16.msra.mxu0 0
        %693 = vmatprep.subr.bf16.mxu0 0
        %694 = vmatpush1.bf16.msra.mxu0 %v520
        %695 = vmatprep.subr.bf16.mxu0 0
        %696 = vmatpush2.bf16.msra.mxu0 0
        %697 = vmatprep.subr.bf16.mxu0 0
        %698 = vmatpush2.bf16.msra.mxu0 0
        %699 = vmatprep.subr.bf16.mxu0 0
        %700 = vmatpush2.bf16.msra.mxu0 0
        %701 = vmatprep.subr.bf16.mxu0 0
        %702 = vmatpush2.bf16.msra.mxu0 0
        %703 = vmatprep.subr.bf16.mxu0 0
        %704 = vmatpush2.bf16.msra.mxu0 0
        %705 = vmatprep.subr.bf16.mxu0 0
        %706 = vmatpush2.bf16.msra.mxu0 0
        %707 = vmatprep.subr.bf16.mxu0 0
        %708 = vmatpush2.bf16.msra.mxu0 0
        %709 = vmatprep.subr.bf16.mxu0 0
        %710 = vmatpush2.bf16.msra.mxu0 0
        %711 = vmatprep.mubr.bf16.mxu0 0
        %712 = vmatmul.mubr.bf16.gmra.mxu0 %v677
        %v713 = vpop.f32.mrf.mxu0
        %v714 = vadd.f32 0.0, %v713
        %v715 = vpop.f32.mrf.mxu0
        %v716 = vpop.f32.mrf.mxu0
        %v717 = vpop.f32.mrf.mxu0
        %718 = vdwg.mxu0
        %v719 = vadd.f32 %v671, %v714
        %v720 = vxor.u32 %v670, 2147483648
        %v721 = vmul.f32 %v720, 1.442695
        %v722 = vpow.pop %v721
        %v723 = vadd.f32 %v722, 1.0
        %v724 = vrcp.pop %v723
        %v725 = vmul.f32 1.0, %v724
        %v726 = vtanh.pop %v670
        %v727 = vmul.f32 %v725, %v580
        %729 = vrot.lane.b32.xlu0 %v726, 96
        %v730 = vpop.permute.xlu0 %729
        %v732 = vmul.f32 %v725, %v730
        %734 = vrot.lane.b32.xlu0 %v732, 16
        %v735 = vpop.permute.xlu0 %734
        %v737 = vadd.f32 %v727, %v735
        %v738 = vtanh.pop %v737
        %740 = vrot.lane.b32.xlu0 %v738, 32
        %v741 = vpop.permute.xlu0 %740
        %v743 = vmul.f32 %v725, %v741
        %v744 = vxor.u32 %v719, 2147483648
        %v745 = vmul.f32 %v744, 1.442695
        %v746 = vpow.pop %v745
        %v747 = vadd.f32 %v746, 1.0
        %v748 = vrcp.pop %v747
        %v749 = vmul.f32 1.0, %v748
        %v750 = vtanh.pop %v719
        %v751 = vmul.f32 %v749, %v604
        %753 = vrot.lane.b32.xlu0 %v750, 96
        %v754 = vpop.permute.xlu0 %753
        %v756 = vmul.f32 %v749, %v754
        %758 = vrot.lane.b32.xlu0 %v756, 16
        %v759 = vpop.permute.xlu0 %758
        %v761 = vadd.f32 %v751, %v759
        %v762 = vtanh.pop %v761
        %764 = vrot.lane.b32.xlu0 %v762, 32
        %v765 = vpop.permute.xlu0 %764
        %v767 = vmul.f32 %v749, %v765
        %769 = vrot.lane.b32.xlu0 %v743, 80
        %v770 = vpop.permute.xlu0 %769
        %772 = vst.msk [vmem:[#allocation4 + $0x1] sm:$0x1] %vm615, %v770
        %774 = vrot.lane.b32.xlu0 %v767, 80
        %v775 = vpop.permute.xlu0 %774
        %777 = vst.msk [vmem:[#allocation5 + $0x6] sm:$0x1] %vm615, %v775
        %v778 = vld [vmem:[#allocation2 + $0x2] sm:$0x1]
        %v779 = vpack.c.bf16 %v743, %v743
        %781 = vrot.lane.b32.xlu0 %v779, 80
        %v782 = vpop.permute.xlu0 %781
        %v784 = vsel %vm470, %v782, 0
        %786 = vmatprep.subr.bf16.mxu0 0
        %787 = vmatpush1.bf16.msra.mxu0 0
        %788 = vmatprep.subr.bf16.mxu0 0
        %789 = vmatpush1.bf16.msra.mxu0 0
        %790 = vmatprep.subr.bf16.mxu0 0
        %791 = vmatpush1.bf16.msra.mxu0 0
        %792 = vmatprep.subr.bf16.mxu0 0
        %793 = vmatpush1.bf16.msra.mxu0 0
        %794 = vmatprep.subr.bf16.mxu0 0
        %795 = vmatpush1.bf16.msra.mxu0 0
        %796 = vmatprep.subr.bf16.mxu0 0
        %797 = vmatpush1.bf16.msra.mxu0 0
        %798 = vmatprep.subr.bf16.mxu0 0
        %799 = vmatpush1.bf16.msra.mxu0 0
        %800 = vmatprep.subr.bf16.mxu0 0
        %801 = vmatpush1.bf16.msra.mxu0 %v468
        %802 = vmatprep.subr.bf16.mxu0 0
        %803 = vmatpush2.bf16.msra.mxu0 0
        %804 = vmatprep.subr.bf16.mxu0 0
        %805 = vmatpush2.bf16.msra.mxu0 0
        %806 = vmatprep.subr.bf16.mxu0 0
        %807 = vmatpush2.bf16.msra.mxu0 0
        %808 = vmatprep.subr.bf16.mxu0 0
        %809 = vmatpush2.bf16.msra.mxu0 0
        %810 = vmatprep.subr.bf16.mxu0 0
        %811 = vmatpush2.bf16.msra.mxu0 0
        %812 = vmatprep.subr.bf16.mxu0 0
        %813 = vmatpush2.bf16.msra.mxu0 0
        %814 = vmatprep.subr.bf16.mxu0 0
        %815 = vmatpush2.bf16.msra.mxu0 0
        %816 = vmatprep.subr.bf16.mxu0 0
        %817 = vmatpush2.bf16.msra.mxu0 0
        %818 = vmatprep.mubr.bf16.mxu0 0
        %819 = vmatmul.mubr.bf16.gmra.mxu0 %v784
        %v820 = vpop.f32.mrf.mxu0
        %v821 = vadd.f32 0.0, %v820
        %v822 = vpop.f32.mrf.mxu0
        %v823 = vpop.f32.mrf.mxu0
        %v824 = vpop.f32.mrf.mxu0
        %825 = vdwg.mxu0
        %v826 = vadd.f32 %v778, %v821
        %v827 = vld [vmem:[#allocation3 + $0x5] sm:$0x1]
        %v828 = vpack.c.bf16 %v767, %v767
        %830 = vrot.lane.b32.xlu0 %v828, 80
        %v831 = vpop.permute.xlu0 %830
        %v833 = vsel %vm470, %v831, 0
        %835 = vmatprep.subr.bf16.mxu0 0
        %836 = vmatpush1.bf16.msra.mxu0 0
        %837 = vmatprep.subr.bf16.mxu0 0
        %838 = vmatpush1.bf16.msra.mxu0 0
        %839 = vmatprep.subr.bf16.mxu0 0
        %840 = vmatpush1.bf16.msra.mxu0 0
        %841 = vmatprep.subr.bf16.mxu0 0
        %842 = vmatpush1.bf16.msra.mxu0 0
        %843 = vmatprep.subr.bf16.mxu0 0
        %844 = vmatpush1.bf16.msra.mxu0 0
        %845 = vmatprep.subr.bf16.mxu0 0
        %846 = vmatpush1.bf16.msra.mxu0 0
        %847 = vmatprep.subr.bf16.mxu0 0
        %848 = vmatpush1.bf16.msra.mxu0 0
        %849 = vmatprep.subr.bf16.mxu0 0
        %850 = vmatpush1.bf16.msra.mxu0 %v520
        %851 = vmatprep.subr.bf16.mxu0 0
        %852 = vmatpush2.bf16.msra.mxu0 0
        %853 = vmatprep.subr.bf16.mxu0 0
        %854 = vmatpush2.bf16.msra.mxu0 0
        %855 = vmatprep.subr.bf16.mxu0 0
        %856 = vmatpush2.bf16.msra.mxu0 0
        %857 = vmatprep.subr.bf16.mxu0 0
        %858 = vmatpush2.bf16.msra.mxu0 0
        %859 = vmatprep.subr.bf16.mxu0 0
        %860 = vmatpush2.bf16.msra.mxu0 0
        %861 = vmatprep.subr.bf16.mxu0 0
        %862 = vmatpush2.bf16.msra.mxu0 0
        %863 = vmatprep.subr.bf16.mxu0 0
        %864 = vmatpush2.bf16.msra.mxu0 0
        %865 = vmatprep.subr.bf16.mxu0 0
        %866 = vmatpush2.bf16.msra.mxu0 0
        %867 = vmatprep.mubr.bf16.mxu0 0
        %868 = vmatmul.mubr.bf16.gmra.mxu0 %v833
        %v869 = vpop.f32.mrf.mxu0
        %v870 = vadd.f32 0.0, %v869
        %v871 = vpop.f32.mrf.mxu0
        %v872 = vpop.f32.mrf.mxu0
        %v873 = vpop.f32.mrf.mxu0
        %874 = vdwg.mxu0
        %v875 = vadd.f32 %v827, %v870
        %v876 = vxor.u32 %v826, 2147483648
        %v877 = vmul.f32 %v876, 1.442695
        %v878 = vpow.pop %v877
        %v879 = vadd.f32 %v878, 1.0
        %v880 = vrcp.pop %v879
        %v881 = vmul.f32 1.0, %v880
        %v882 = vtanh.pop %v826
        %v883 = vmul.f32 %v881, %v737
        %885 = vrot.lane.b32.xlu0 %v882, 96
        %v886 = vpop.permute.xlu0 %885
        %v888 = vmul.f32 %v881, %v886
        %890 = vrot.lane.b32.xlu0 %v888, 16
        %v891 = vpop.permute.xlu0 %890
        %v893 = vadd.f32 %v883, %v891
        %v894 = vtanh.pop %v893
        %896 = vrot.lane.b32.xlu0 %v894, 32
        %v897 = vpop.permute.xlu0 %896
        %v899 = vmul.f32 %v881, %v897
        %v900 = vxor.u32 %v875, 2147483648
        %v901 = vmul.f32 %v900, 1.442695
        %v902 = vpow.pop %v901
        %v903 = vadd.f32 %v902, 1.0
        %v904 = vrcp.pop %v903
        %v905 = vmul.f32 1.0, %v904
        %v906 = vtanh.pop %v875
        %v907 = vmul.f32 %v905, %v761
        %909 = vrot.lane.b32.xlu0 %v906, 96
        %v910 = vpop.permute.xlu0 %909
        %v912 = vmul.f32 %v905, %v910
        %914 = vrot.lane.b32.xlu0 %v912, 16
        %v915 = vpop.permute.xlu0 %914
        %v917 = vadd.f32 %v907, %v915
        %v918 = vtanh.pop %v917
        %920 = vrot.lane.b32.xlu0 %v918, 32
        %v921 = vpop.permute.xlu0 %920
        %v923 = vmul.f32 %v905, %v921
        %925 = vrot.lane.b32.xlu0 %v899, 80
        %v926 = vpop.permute.xlu0 %925
        %928 = vst.msk [vmem:[#allocation4 + $0x2] sm:$0x1] %vm615, %v926
        %930 = vrot.lane.b32.xlu0 %v923, 80
        %v931 = vpop.permute.xlu0 %930
        %933 = vst.msk [vmem:[#allocation5 + $0x5] sm:$0x1] %vm615, %v931
        %v934 = vld [vmem:[#allocation2 + $0x3] sm:$0x1]
        %v935 = vpack.c.bf16 %v899, %v899
        %937 = vrot.lane.b32.xlu0 %v935, 80
        %v938 = vpop.permute.xlu0 %937
        %v940 = vsel %vm470, %v938, 0
        %942 = vmatprep.subr.bf16.mxu0 0
        %943 = vmatpush1.bf16.msra.mxu0 0
        %944 = vmatprep.subr.bf16.mxu0 0
        %945 = vmatpush1.bf16.msra.mxu0 0
        %946 = vmatprep.subr.bf16.mxu0 0
        %947 = vmatpush1.bf16.msra.mxu0 0
        %948 = vmatprep.subr.bf16.mxu0 0
        %949 = vmatpush1.bf16.msra.mxu0 0
        %950 = vmatprep.subr.bf16.mxu0 0
        %951 = vmatpush1.bf16.msra.mxu0 0
        %952 = vmatprep.subr.bf16.mxu0 0
        %953 = vmatpush1.bf16.msra.mxu0 0
        %954 = vmatprep.subr.bf16.mxu0 0
        %955 = vmatpush1.bf16.msra.mxu0 0
        %956 = vmatprep.subr.bf16.mxu0 0
        %957 = vmatpush1.bf16.msra.mxu0 %v468
        %958 = vmatprep.subr.bf16.mxu0 0
        %959 = vmatpush2.bf16.msra.mxu0 0
        %960 = vmatprep.subr.bf16.mxu0 0
        %961 = vmatpush2.bf16.msra.mxu0 0
        %962 = vmatprep.subr.bf16.mxu0 0
        %963 = vmatpush2.bf16.msra.mxu0 0
        %964 = vmatprep.subr.bf16.mxu0 0
        %965 = vmatpush2.bf16.msra.mxu0 0
        %966 = vmatprep.subr.bf16.mxu0 0
        %967 = vmatpush2.bf16.msra.mxu0 0
        %968 = vmatprep.subr.bf16.mxu0 0
        %969 = vmatpush2.bf16.msra.mxu0 0
        %970 = vmatprep.subr.bf16.mxu0 0
        %971 = vmatpush2.bf16.msra.mxu0 0
        %972 = vmatprep.subr.bf16.mxu0 0
        %973 = vmatpush2.bf16.msra.mxu0 0
        %974 = vmatprep.mubr.bf16.mxu0 0
        %975 = vmatmul.mubr.bf16.gmra.mxu0 %v940
        %v976 = vpop.f32.mrf.mxu0
        %v977 = vadd.f32 0.0, %v976
        %v978 = vpop.f32.mrf.mxu0
        %v979 = vpop.f32.mrf.mxu0
        %v980 = vpop.f32.mrf.mxu0
        %981 = vdwg.mxu0
        %v982 = vadd.f32 %v934, %v977
        %v983 = vld [vmem:[#allocation3 + $0x4] sm:$0x1]
        %v984 = vpack.c.bf16 %v923, %v923
        %986 = vrot.lane.b32.xlu0 %v984, 80
        %v987 = vpop.permute.xlu0 %986
        %v989 = vsel %vm470, %v987, 0
        %991 = vmatprep.subr.bf16.mxu0 0
        %992 = vmatpush1.bf16.msra.mxu0 0
        %993 = vmatprep.subr.bf16.mxu0 0
        %994 = vmatpush1.bf16.msra.mxu0 0
        %995 = vmatprep.subr.bf16.mxu0 0
        %996 = vmatpush1.bf16.msra.mxu0 0
        %997 = vmatprep.subr.bf16.mxu0 0
        %998 = vmatpush1.bf16.msra.mxu0 0
        %999 = vmatprep.subr.bf16.mxu0 0
        %1000 = vmatpush1.bf16.msra.mxu0 0
        %1001 = vmatprep.subr.bf16.mxu0 0
        %1002 = vmatpush1.bf16.msra.mxu0 0
        %1003 = vmatprep.subr.bf16.mxu0 0
        %1004 = vmatpush1.bf16.msra.mxu0 0
        %1005 = vmatprep.subr.bf16.mxu0 0
        %1006 = vmatpush1.bf16.msra.mxu0 %v520
        %1007 = vmatprep.subr.bf16.mxu0 0
        %1008 = vmatpush2.bf16.msra.mxu0 0
        %1009 = vmatprep.subr.bf16.mxu0 0
        %1010 = vmatpush2.bf16.msra.mxu0 0
        %1011 = vmatprep.subr.bf16.mxu0 0
        %1012 = vmatpush2.bf16.msra.mxu0 0
        %1013 = vmatprep.subr.bf16.mxu0 0
        %1014 = vmatpush2.bf16.msra.mxu0 0
        %1015 = vmatprep.subr.bf16.mxu0 0
        %1016 = vmatpush2.bf16.msra.mxu0 0
        %1017 = vmatprep.subr.bf16.mxu0 0
        %1018 = vmatpush2.bf16.msra.mxu0 0
        %1019 = vmatprep.subr.bf16.mxu0 0
        %1020 = vmatpush2.bf16.msra.mxu0 0
        %1021 = vmatprep.subr.bf16.mxu0 0
        %1022 = vmatpush2.bf16.msra.mxu0 0
        %1023 = vmatprep.mubr.bf16.mxu0 0
        %1024 = vmatmul.mubr.bf16.gmra.mxu0 %v989
        %v1025 = vpop.f32.mrf.mxu0
        %v1026 = vadd.f32 0.0, %v1025
        %v1027 = vpop.f32.mrf.mxu0
        %v1028 = vpop.f32.mrf.mxu0
        %v1029 = vpop.f32.mrf.mxu0
        %1030 = vdwg.mxu0
        %v1031 = vadd.f32 %v983, %v1026
        %v1032 = vxor.u32 %v982, 2147483648
        %v1033 = vmul.f32 %v1032, 1.442695
        %v1034 = vpow.pop %v1033
        %v1035 = vadd.f32 %v1034, 1.0
        %v1036 = vrcp.pop %v1035
        %v1037 = vmul.f32 1.0, %v1036
        %v1038 = vtanh.pop %v982
        %v1039 = vmul.f32 %v1037, %v893
        %1041 = vrot.lane.b32.xlu0 %v1038, 96
        %v1042 = vpop.permute.xlu0 %1041
        %v1044 = vmul.f32 %v1037, %v1042
        %1046 = vrot.lane.b32.xlu0 %v1044, 16
        %v1047 = vpop.permute.xlu0 %1046
        %v1049 = vadd.f32 %v1039, %v1047
        %v1050 = vtanh.pop %v1049
        %1052 = vrot.lane.b32.xlu0 %v1050, 32
        %v1053 = vpop.permute.xlu0 %1052
        %v1055 = vmul.f32 %v1037, %v1053
        %v1056 = vxor.u32 %v1031, 2147483648
        %v1057 = vmul.f32 %v1056, 1.442695
        %v1058 = vpow.pop %v1057
        %v1059 = vadd.f32 %v1058, 1.0
        %v1060 = vrcp.pop %v1059
        %v1061 = vmul.f32 1.0, %v1060
        %v1062 = vtanh.pop %v1031
        %v1063 = vmul.f32 %v1061, %v917
        %1065 = vrot.lane.b32.xlu0 %v1062, 96
        %v1066 = vpop.permute.xlu0 %1065
        %v1068 = vmul.f32 %v1061, %v1066
        %1070 = vrot.lane.b32.xlu0 %v1068, 16
        %v1071 = vpop.permute.xlu0 %1070
        %v1073 = vadd.f32 %v1063, %v1071
        %v1074 = vtanh.pop %v1073
        %1076 = vrot.lane.b32.xlu0 %v1074, 32
        %v1077 = vpop.permute.xlu0 %1076
        %v1079 = vmul.f32 %v1061, %v1077
        %1081 = vrot.lane.b32.xlu0 %v1055, 80
        %v1082 = vpop.permute.xlu0 %1081
        %1084 = vst.msk [vmem:[#allocation4 + $0x3] sm:$0x1] %vm615, %v1082
        %1086 = vrot.lane.b32.xlu0 %v1079, 80
        %v1087 = vpop.permute.xlu0 %1086
        %1089 = vst.msk [vmem:[#allocation5 + $0x4] sm:$0x1] %vm615, %v1087
        %v1090 = vld [vmem:[#allocation2 + $0x4] sm:$0x1]
        %v1091 = vpack.c.bf16 %v1055, %v1055
        %1093 = vrot.lane.b32.xlu0 %v1091, 80
        %v1094 = vpop.permute.xlu0 %1093
        %v1096 = vsel %vm470, %v1094, 0
        %1098 = vmatprep.subr.bf16.mxu0 0
        %1099 = vmatpush1.bf16.msra.mxu0 0
        %1100 = vmatprep.subr.bf16.mxu0 0
        %1101 = vmatpush1.bf16.msra.mxu0 0
        %1102 = vmatprep.subr.bf16.mxu0 0
        %1103 = vmatpush1.bf16.msra.mxu0 0
        %1104 = vmatprep.subr.bf16.mxu0 0
        %1105 = vmatpush1.bf16.msra.mxu0 0
        %1106 = vmatprep.subr.bf16.mxu0 0
        %1107 = vmatpush1.bf16.msra.mxu0 0
        %1108 = vmatprep.subr.bf16.mxu0 0
        %1109 = vmatpush1.bf16.msra.mxu0 0
        %1110 = vmatprep.subr.bf16.mxu0 0
        %1111 = vmatpush1.bf16.msra.mxu0 0
        %1112 = vmatprep.subr.bf16.mxu0 0
        %1113 = vmatpush1.bf16.msra.mxu0 %v468
        %1114 = vmatprep.subr.bf16.mxu0 0
        %1115 = vmatpush2.bf16.msra.mxu0 0
        %1116 = vmatprep.subr.bf16.mxu0 0
        %1117 = vmatpush2.bf16.msra.mxu0 0
        %1118 = vmatprep.subr.bf16.mxu0 0
        %1119 = vmatpush2.bf16.msra.mxu0 0
        %1120 = vmatprep.subr.bf16.mxu0 0
        %1121 = vmatpush2.bf16.msra.mxu0 0
        %1122 = vmatprep.subr.bf16.mxu0 0
        %1123 = vmatpush2.bf16.msra.mxu0 0
        %1124 = vmatprep.subr.bf16.mxu0 0
        %1125 = vmatpush2.bf16.msra.mxu0 0
        %1126 = vmatprep.subr.bf16.mxu0 0
        %1127 = vmatpush2.bf16.msra.mxu0 0
        %1128 = vmatprep.subr.bf16.mxu0 0
        %1129 = vmatpush2.bf16.msra.mxu0 0
        %1130 = vmatprep.mubr.bf16.mxu0 0
        %1131 = vmatmul.mubr.bf16.gmra.mxu0 %v1096
        %v1132 = vpop.f32.mrf.mxu0
        %v1133 = vadd.f32 0.0, %v1132
        %v1134 = vpop.f32.mrf.mxu0
        %v1135 = vpop.f32.mrf.mxu0
        %v1136 = vpop.f32.mrf.mxu0
        %1137 = vdwg.mxu0
        %v1138 = vadd.f32 %v1090, %v1133
        %v1139 = vld [vmem:[#allocation3 + $0x3] sm:$0x1]
        %v1140 = vpack.c.bf16 %v1079, %v1079
        %1142 = vrot.lane.b32.xlu0 %v1140, 80
        %v1143 = vpop.permute.xlu0 %1142
        %v1145 = vsel %vm470, %v1143, 0
        %1147 = vmatprep.subr.bf16.mxu0 0
        %1148 = vmatpush1.bf16.msra.mxu0 0
        %1149 = vmatprep.subr.bf16.mxu0 0
        %1150 = vmatpush1.bf16.msra.mxu0 0
        %1151 = vmatprep.subr.bf16.mxu0 0
        %1152 = vmatpush1.bf16.msra.mxu0 0
        %1153 = vmatprep.subr.bf16.mxu0 0
        %1154 = vmatpush1.bf16.msra.mxu0 0
        %1155 = vmatprep.subr.bf16.mxu0 0
        %1156 = vmatpush1.bf16.msra.mxu0 0
        %1157 = vmatprep.subr.bf16.mxu0 0
        %1158 = vmatpush1.bf16.msra.mxu0 0
        %1159 = vmatprep.subr.bf16.mxu0 0
        %1160 = vmatpush1.bf16.msra.mxu0 0
        %1161 = vmatprep.subr.bf16.mxu0 0
        %1162 = vmatpush1.bf16.msra.mxu0 %v520
        %1163 = vmatprep.subr.bf16.mxu0 0
        %1164 = vmatpush2.bf16.msra.mxu0 0
        %1165 = vmatprep.subr.bf16.mxu0 0
        %1166 = vmatpush2.bf16.msra.mxu0 0
        %1167 = vmatprep.subr.bf16.mxu0 0
        %1168 = vmatpush2.bf16.msra.mxu0 0
        %1169 = vmatprep.subr.bf16.mxu0 0
        %1170 = vmatpush2.bf16.msra.mxu0 0
        %1171 = vmatprep.subr.bf16.mxu0 0
        %1172 = vmatpush2.bf16.msra.mxu0 0
        %1173 = vmatprep.subr.bf16.mxu0 0
        %1174 = vmatpush2.bf16.msra.mxu0 0
        %1175 = vmatprep.subr.bf16.mxu0 0
        %1176 = vmatpush2.bf16.msra.mxu0 0
        %1177 = vmatprep.subr.bf16.mxu0 0
        %1178 = vmatpush2.bf16.msra.mxu0 0
        %1179 = vmatprep.mubr.bf16.mxu0 0
        %1180 = vmatmul.mubr.bf16.gmra.mxu0 %v1145
        %v1181 = vpop.f32.mrf.mxu0
        %v1182 = vadd.f32 0.0, %v1181
        %v1183 = vpop.f32.mrf.mxu0
        %v1184 = vpop.f32.mrf.mxu0
        %v1185 = vpop.f32.mrf.mxu0
        %1186 = vdwg.mxu0
        %v1187 = vadd.f32 %v1139, %v1182
        %v1188 = vxor.u32 %v1138, 2147483648
        %v1189 = vmul.f32 %v1188, 1.442695
        %v1190 = vpow.pop %v1189
        %v1191 = vadd.f32 %v1190, 1.0
        %v1192 = vrcp.pop %v1191
        %v1193 = vmul.f32 1.0, %v1192
        %v1194 = vtanh.pop %v1138
        %v1195 = vmul.f32 %v1193, %v1049
        %1197 = vrot.lane.b32.xlu0 %v1194, 96
        %v1198 = vpop.permute.xlu0 %1197
        %v1200 = vmul.f32 %v1193, %v1198
        %1202 = vrot.lane.b32.xlu0 %v1200, 16
        %v1203 = vpop.permute.xlu0 %1202
        %v1205 = vadd.f32 %v1195, %v1203
        %v1206 = vtanh.pop %v1205
        %1208 = vrot.lane.b32.xlu0 %v1206, 32
        %v1209 = vpop.permute.xlu0 %1208
        %v1211 = vmul.f32 %v1193, %v1209
        %v1212 = vxor.u32 %v1187, 2147483648
        %v1213 = vmul.f32 %v1212, 1.442695
        %v1214 = vpow.pop %v1213
        %v1215 = vadd.f32 %v1214, 1.0
        %v1216 = vrcp.pop %v1215
        %v1217 = vmul.f32 1.0, %v1216
        %v1218 = vtanh.pop %v1187
        %v1219 = vmul.f32 %v1217, %v1073
        %1221 = vrot.lane.b32.xlu0 %v1218, 96
        %v1222 = vpop.permute.xlu0 %1221
        %v1224 = vmul.f32 %v1217, %v1222
        %1226 = vrot.lane.b32.xlu0 %v1224, 16
        %v1227 = vpop.permute.xlu0 %1226
        %v1229 = vadd.f32 %v1219, %v1227
        %v1230 = vtanh.pop %v1229
        %1232 = vrot.lane.b32.xlu0 %v1230, 32
        %v1233 = vpop.permute.xlu0 %1232
        %v1235 = vmul.f32 %v1217, %v1233
        %1237 = vrot.lane.b32.xlu0 %v1211, 80
        %v1238 = vpop.permute.xlu0 %1237
        %1240 = vst.msk [vmem:[#allocation4 + $0x4] sm:$0x1] %vm615, %v1238
        %1242 = vrot.lane.b32.xlu0 %v1235, 80
        %v1243 = vpop.permute.xlu0 %1242
        %1245 = vst.msk [vmem:[#allocation5 + $0x3] sm:$0x1] %vm615, %v1243
        %v1246 = vld [vmem:[#allocation2 + $0x5] sm:$0x1]
        %v1247 = vpack.c.bf16 %v1211, %v1211
        %1249 = vrot.lane.b32.xlu0 %v1247, 80
        %v1250 = vpop.permute.xlu0 %1249
        %v1252 = vsel %vm470, %v1250, 0
        %1254 = vmatprep.subr.bf16.mxu0 0
        %1255 = vmatpush1.bf16.msra.mxu0 0
        %1256 = vmatprep.subr.bf16.mxu0 0
        %1257 = vmatpush1.bf16.msra.mxu0 0
        %1258 = vmatprep.subr.bf16.mxu0 0
        %1259 = vmatpush1.bf16.msra.mxu0 0
        %1260 = vmatprep.subr.bf16.mxu0 0
        %1261 = vmatpush1.bf16.msra.mxu0 0
        %1262 = vmatprep.subr.bf16.mxu0 0
        %1263 = vmatpush1.bf16.msra.mxu0 0
        %1264 = vmatprep.subr.bf16.mxu0 0
        %1265 = vmatpush1.bf16.msra.mxu0 0
        %1266 = vmatprep.subr.bf16.mxu0 0
        %1267 = vmatpush1.bf16.msra.mxu0 0
        %1268 = vmatprep.subr.bf16.mxu0 0
        %1269 = vmatpush1.bf16.msra.mxu0 %v468
        %1270 = vmatprep.subr.bf16.mxu0 0
        %1271 = vmatpush2.bf16.msra.mxu0 0
        %1272 = vmatprep.subr.bf16.mxu0 0
        %1273 = vmatpush2.bf16.msra.mxu0 0
        %1274 = vmatprep.subr.bf16.mxu0 0
        %1275 = vmatpush2.bf16.msra.mxu0 0
        %1276 = vmatprep.subr.bf16.mxu0 0
        %1277 = vmatpush2.bf16.msra.mxu0 0
        %1278 = vmatprep.subr.bf16.mxu0 0
        %1279 = vmatpush2.bf16.msra.mxu0 0
        %1280 = vmatprep.subr.bf16.mxu0 0
        %1281 = vmatpush2.bf16.msra.mxu0 0
        %1282 = vmatprep.subr.bf16.mxu0 0
        %1283 = vmatpush2.bf16.msra.mxu0 0
        %1284 = vmatprep.subr.bf16.mxu0 0
        %1285 = vmatpush2.bf16.msra.mxu0 0
        %1286 = vmatprep.mubr.bf16.mxu0 0
        %1287 = vmatmul.mubr.bf16.gmra.mxu0 %v1252
        %v1288 = vpop.f32.mrf.mxu0
        %v1289 = vadd.f32 0.0, %v1288
        %v1290 = vpop.f32.mrf.mxu0
        %v1291 = vpop.f32.mrf.mxu0
        %v1292 = vpop.f32.mrf.mxu0
        %1293 = vdwg.mxu0
        %v1294 = vadd.f32 %v1246, %v1289
        %v1295 = vld [vmem:[#allocation3 + $0x2] sm:$0x1]
        %v1296 = vpack.c.bf16 %v1235, %v1235
        %1298 = vrot.lane.b32.xlu0 %v1296, 80
        %v1299 = vpop.permute.xlu0 %1298
        %v1301 = vsel %vm470, %v1299, 0
        %1303 = vmatprep.subr.bf16.mxu0 0
        %1304 = vmatpush1.bf16.msra.mxu0 0
        %1305 = vmatprep.subr.bf16.mxu0 0
        %1306 = vmatpush1.bf16.msra.mxu0 0
        %1307 = vmatprep.subr.bf16.mxu0 0
        %1308 = vmatpush1.bf16.msra.mxu0 0
        %1309 = vmatprep.subr.bf16.mxu0 0
        %1310 = vmatpush1.bf16.msra.mxu0 0
        %1311 = vmatprep.subr.bf16.mxu0 0
        %1312 = vmatpush1.bf16.msra.mxu0 0
        %1313 = vmatprep.subr.bf16.mxu0 0
        %1314 = vmatpush1.bf16.msra.mxu0 0
        %1315 = vmatprep.subr.bf16.mxu0 0
        %1316 = vmatpush1.bf16.msra.mxu0 0
        %1317 = vmatprep.subr.bf16.mxu0 0
        %1318 = vmatpush1.bf16.msra.mxu0 %v520
        %1319 = vmatprep.subr.bf16.mxu0 0
        %1320 = vmatpush2.bf16.msra.mxu0 0
        %1321 = vmatprep.subr.bf16.mxu0 0
        %1322 = vmatpush2.bf16.msra.mxu0 0
        %1323 = vmatprep.subr.bf16.mxu0 0
        %1324 = vmatpush2.bf16.msra.mxu0 0
        %1325 = vmatprep.subr.bf16.mxu0 0
        %1326 = vmatpush2.bf16.msra.mxu0 0
        %1327 = vmatprep.subr.bf16.mxu0 0
        %1328 = vmatpush2.bf16.msra.mxu0 0
        %1329 = vmatprep.subr.bf16.mxu0 0
        %1330 = vmatpush2.bf16.msra.mxu0 0
        %1331 = vmatprep.subr.bf16.mxu0 0
        %1332 = vmatpush2.bf16.msra.mxu0 0
        %1333 = vmatprep.subr.bf16.mxu0 0
        %1334 = vmatpush2.bf16.msra.mxu0 0
        %1335 = vmatprep.mubr.bf16.mxu0 0
        %1336 = vmatmul.mubr.bf16.gmra.mxu0 %v1301
        %v1337 = vpop.f32.mrf.mxu0
        %v1338 = vadd.f32 0.0, %v1337
        %v1339 = vpop.f32.mrf.mxu0
        %v1340 = vpop.f32.mrf.mxu0
        %v1341 = vpop.f32.mrf.mxu0
        %1342 = vdwg.mxu0
        %v1343 = vadd.f32 %v1295, %v1338
        %v1344 = vxor.u32 %v1294, 2147483648
        %v1345 = vmul.f32 %v1344, 1.442695
        %v1346 = vpow.pop %v1345
        %v1347 = vadd.f32 %v1346, 1.0
        %v1348 = vrcp.pop %v1347
        %v1349 = vmul.f32 1.0, %v1348
        %v1350 = vtanh.pop %v1294
        %v1351 = vmul.f32 %v1349, %v1205
        %1353 = vrot.lane.b32.xlu0 %v1350, 96
        %v1354 = vpop.permute.xlu0 %1353
        %v1356 = vmul.f32 %v1349, %v1354
        %1358 = vrot.lane.b32.xlu0 %v1356, 16
        %v1359 = vpop.permute.xlu0 %1358
        %v1361 = vadd.f32 %v1351, %v1359
        %v1362 = vtanh.pop %v1361
        %1364 = vrot.lane.b32.xlu0 %v1362, 32
        %v1365 = vpop.permute.xlu0 %1364
        %v1367 = vmul.f32 %v1349, %v1365
        %v1368 = vxor.u32 %v1343, 2147483648
        %v1369 = vmul.f32 %v1368, 1.442695
        %v1370 = vpow.pop %v1369
        %v1371 = vadd.f32 %v1370, 1.0
        %v1372 = vrcp.pop %v1371
        %v1373 = vmul.f32 1.0, %v1372
        %v1374 = vtanh.pop %v1343
        %v1375 = vmul.f32 %v1373, %v1229
        %1377 = vrot.lane.b32.xlu0 %v1374, 96
        %v1378 = vpop.permute.xlu0 %1377
        %v1380 = vmul.f32 %v1373, %v1378
        %1382 = vrot.lane.b32.xlu0 %v1380, 16
        %v1383 = vpop.permute.xlu0 %1382
        %v1385 = vadd.f32 %v1375, %v1383
        %v1386 = vtanh.pop %v1385
        %1388 = vrot.lane.b32.xlu0 %v1386, 32
        %v1389 = vpop.permute.xlu0 %1388
        %v1391 = vmul.f32 %v1373, %v1389
        %1393 = vrot.lane.b32.xlu0 %v1367, 80
        %v1394 = vpop.permute.xlu0 %1393
        %1396 = vst.msk [vmem:[#allocation4 + $0x5] sm:$0x1] %vm615, %v1394
        %1398 = vrot.lane.b32.xlu0 %v1391, 80
        %v1399 = vpop.permute.xlu0 %1398
        %1401 = vst.msk [vmem:[#allocation5 + $0x2] sm:$0x1] %vm615, %v1399
        %v1402 = vld [vmem:[#allocation2 + $0x6] sm:$0x1]
        %v1403 = vpack.c.bf16 %v1367, %v1367
        %1405 = vrot.lane.b32.xlu0 %v1403, 80
        %v1406 = vpop.permute.xlu0 %1405
        %v1408 = vsel %vm470, %v1406, 0
        %1410 = vmatprep.subr.bf16.mxu0 0
        %1411 = vmatpush1.bf16.msra.mxu0 0
        %1412 = vmatprep.subr.bf16.mxu0 0
        %1413 = vmatpush1.bf16.msra.mxu0 0
        %1414 = vmatprep.subr.bf16.mxu0 0
        %1415 = vmatpush1.bf16.msra.mxu0 0
        %1416 = vmatprep.subr.bf16.mxu0 0
        %1417 = vmatpush1.bf16.msra.mxu0 0
        %1418 = vmatprep.subr.bf16.mxu0 0
        %1419 = vmatpush1.bf16.msra.mxu0 0
        %1420 = vmatprep.subr.bf16.mxu0 0
        %1421 = vmatpush1.bf16.msra.mxu0 0
        %1422 = vmatprep.subr.bf16.mxu0 0
        %1423 = vmatpush1.bf16.msra.mxu0 0
        %1424 = vmatprep.subr.bf16.mxu0 0
        %1425 = vmatpush1.bf16.msra.mxu0 %v468
        %1426 = vmatprep.subr.bf16.mxu0 0
        %1427 = vmatpush2.bf16.msra.mxu0 0
        %1428 = vmatprep.subr.bf16.mxu0 0
        %1429 = vmatpush2.bf16.msra.mxu0 0
        %1430 = vmatprep.subr.bf16.mxu0 0
        %1431 = vmatpush2.bf16.msra.mxu0 0
        %1432 = vmatprep.subr.bf16.mxu0 0
        %1433 = vmatpush2.bf16.msra.mxu0 0
        %1434 = vmatprep.subr.bf16.mxu0 0
        %1435 = vmatpush2.bf16.msra.mxu0 0
        %1436 = vmatprep.subr.bf16.mxu0 0
        %1437 = vmatpush2.bf16.msra.mxu0 0
        %1438 = vmatprep.subr.bf16.mxu0 0
        %1439 = vmatpush2.bf16.msra.mxu0 0
        %1440 = vmatprep.subr.bf16.mxu0 0
        %1441 = vmatpush2.bf16.msra.mxu0 0
        %1442 = vmatprep.mubr.bf16.mxu0 0
        %1443 = vmatmul.mubr.bf16.gmra.mxu0 %v1408
        %v1444 = vpop.f32.mrf.mxu0
        %v1445 = vadd.f32 0.0, %v1444
        %v1446 = vpop.f32.mrf.mxu0
        %v1447 = vpop.f32.mrf.mxu0
        %v1448 = vpop.f32.mrf.mxu0
        %1449 = vdwg.mxu0
        %v1450 = vadd.f32 %v1402, %v1445
        %v1451 = vld [vmem:[#allocation3 + $0x1] sm:$0x1]
        %v1452 = vpack.c.bf16 %v1391, %v1391
        %1454 = vrot.lane.b32.xlu0 %v1452, 80
        %v1455 = vpop.permute.xlu0 %1454
        %v1457 = vsel %vm470, %v1455, 0
        %1459 = vmatprep.subr.bf16.mxu0 0
        %1460 = vmatpush1.bf16.msra.mxu0 0
        %1461 = vmatprep.subr.bf16.mxu0 0
        %1462 = vmatpush1.bf16.msra.mxu0 0
        %1463 = vmatprep.subr.bf16.mxu0 0
        %1464 = vmatpush1.bf16.msra.mxu0 0
        %1465 = vmatprep.subr.bf16.mxu0 0
        %1466 = vmatpush1.bf16.msra.mxu0 0
        %1467 = vmatprep.subr.bf16.mxu0 0
        %1468 = vmatpush1.bf16.msra.mxu0 0
        %1469 = vmatprep.subr.bf16.mxu0 0
        %1470 = vmatpush1.bf16.msra.mxu0 0
        %1471 = vmatprep.subr.bf16.mxu0 0
        %1472 = vmatpush1.bf16.msra.mxu0 0
        %1473 = vmatprep.subr.bf16.mxu0 0
        %1474 = vmatpush1.bf16.msra.mxu0 %v520
        %1475 = vmatprep.subr.bf16.mxu0 0
        %1476 = vmatpush2.bf16.msra.mxu0 0
        %1477 = vmatprep.subr.bf16.mxu0 0
        %1478 = vmatpush2.bf16.msra.mxu0 0
        %1479 = vmatprep.subr.bf16.mxu0 0
        %1480 = vmatpush2.bf16.msra.mxu0 0
        %1481 = vmatprep.subr.bf16.mxu0 0
        %1482 = vmatpush2.bf16.msra.mxu0 0
        %1483 = vmatprep.subr.bf16.mxu0 0
        %1484 = vmatpush2.bf16.msra.mxu0 0
        %1485 = vmatprep.subr.bf16.mxu0 0
        %1486 = vmatpush2.bf16.msra.mxu0 0
        %1487 = vmatprep.subr.bf16.mxu0 0
        %1488 = vmatpush2.bf16.msra.mxu0 0
        %1489 = vmatprep.subr.bf16.mxu0 0
        %1490 = vmatpush2.bf16.msra.mxu0 0
        %1491 = vmatprep.mubr.bf16.mxu0 0
        %1492 = vmatmul.mubr.bf16.gmra.mxu0 %v1457
        %v1493 = vpop.f32.mrf.mxu0
        %v1494 = vadd.f32 0.0, %v1493
        %v1495 = vpop.f32.mrf.mxu0
        %v1496 = vpop.f32.mrf.mxu0
        %v1497 = vpop.f32.mrf.mxu0
        %1498 = vdwg.mxu0
        %v1499 = vadd.f32 %v1451, %v1494
        %v1500 = vxor.u32 %v1450, 2147483648
        %v1501 = vmul.f32 %v1500, 1.442695
        %v1502 = vpow.pop %v1501
        %v1503 = vadd.f32 %v1502, 1.0
        %v1504 = vrcp.pop %v1503
        %v1505 = vmul.f32 1.0, %v1504
        %v1506 = vtanh.pop %v1450
        %v1507 = vmul.f32 %v1505, %v1361
        %1509 = vrot.lane.b32.xlu0 %v1506, 96
        %v1510 = vpop.permute.xlu0 %1509
        %v1512 = vmul.f32 %v1505, %v1510
        %1514 = vrot.lane.b32.xlu0 %v1512, 16
        %v1515 = vpop.permute.xlu0 %1514
        %v1517 = vadd.f32 %v1507, %v1515
        %v1518 = vtanh.pop %v1517
        %1520 = vrot.lane.b32.xlu0 %v1518, 32
        %v1521 = vpop.permute.xlu0 %1520
        %v1523 = vmul.f32 %v1505, %v1521
        %v1524 = vxor.u32 %v1499, 2147483648
        %v1525 = vmul.f32 %v1524, 1.442695
        %v1526 = vpow.pop %v1525
        %v1527 = vadd.f32 %v1526, 1.0
        %v1528 = vrcp.pop %v1527
        %v1529 = vmul.f32 1.0, %v1528
        %v1530 = vtanh.pop %v1499
        %v1531 = vmul.f32 %v1529, %v1385
        %1533 = vrot.lane.b32.xlu0 %v1530, 96
        %v1534 = vpop.permute.xlu0 %1533
        %v1536 = vmul.f32 %v1529, %v1534
        %1538 = vrot.lane.b32.xlu0 %v1536, 16
        %v1539 = vpop.permute.xlu0 %1538
        %v1541 = vadd.f32 %v1531, %v1539
        %v1542 = vtanh.pop %v1541
        %1544 = vrot.lane.b32.xlu0 %v1542, 32
        %v1545 = vpop.permute.xlu0 %1544
        %v1547 = vmul.f32 %v1529, %v1545
        %1549 = vrot.lane.b32.xlu0 %v1523, 80
        %v1550 = vpop.permute.xlu0 %1549
        %1552 = vst.msk [vmem:[#allocation4 + $0x6] sm:$0x1] %vm615, %v1550
        %1554 = vrot.lane.b32.xlu0 %v1547, 80
        %v1555 = vpop.permute.xlu0 %1554
        %1557 = vst.msk [vmem:[#allocation5 + $0x1] sm:$0x1] %vm615, %v1555
        %v1558 = vld [vmem:[#allocation2 + $0x7] sm:$0x1]
        %v1559 = vpack.c.bf16 %v1523, %v1523
        %1561 = vrot.lane.b32.xlu0 %v1559, 80
        %v1562 = vpop.permute.xlu0 %1561
        %v1564 = vsel %vm470, %v1562, 0
        %1566 = vmatprep.subr.bf16.mxu0 0
        %1567 = vmatpush1.bf16.msra.mxu0 0
        %1568 = vmatprep.subr.bf16.mxu0 0
        %1569 = vmatpush1.bf16.msra.mxu0 0
        %1570 = vmatprep.subr.bf16.mxu0 0
        %1571 = vmatpush1.bf16.msra.mxu0 0
        %1572 = vmatprep.subr.bf16.mxu0 0
        %1573 = vmatpush1.bf16.msra.mxu0 0
        %1574 = vmatprep.subr.bf16.mxu0 0
        %1575 = vmatpush1.bf16.msra.mxu0 0
        %1576 = vmatprep.subr.bf16.mxu0 0
        %1577 = vmatpush1.bf16.msra.mxu0 0
        %1578 = vmatprep.subr.bf16.mxu0 0
        %1579 = vmatpush1.bf16.msra.mxu0 0
        %1580 = vmatprep.subr.bf16.mxu0 0
        %1581 = vmatpush1.bf16.msra.mxu0 %v468
        %1582 = vmatprep.subr.bf16.mxu0 0
        %1583 = vmatpush2.bf16.msra.mxu0 0
        %1584 = vmatprep.subr.bf16.mxu0 0
        %1585 = vmatpush2.bf16.msra.mxu0 0
        %1586 = vmatprep.subr.bf16.mxu0 0
        %1587 = vmatpush2.bf16.msra.mxu0 0
        %1588 = vmatprep.subr.bf16.mxu0 0
        %1589 = vmatpush2.bf16.msra.mxu0 0
        %1590 = vmatprep.subr.bf16.mxu0 0
        %1591 = vmatpush2.bf16.msra.mxu0 0
        %1592 = vmatprep.subr.bf16.mxu0 0
        %1593 = vmatpush2.bf16.msra.mxu0 0
        %1594 = vmatprep.subr.bf16.mxu0 0
        %1595 = vmatpush2.bf16.msra.mxu0 0
        %1596 = vmatprep.subr.bf16.mxu0 0
        %1597 = vmatpush2.bf16.msra.mxu0 0
        %1598 = vmatprep.mubr.bf16.mxu0 0
        %1599 = vmatmul.mubr.bf16.gmra.mxu0 %v1564
        %v1600 = vpop.f32.mrf.mxu0
        %v1601 = vadd.f32 0.0, %v1600
        %v1602 = vpop.f32.mrf.mxu0
        %v1603 = vpop.f32.mrf.mxu0
        %v1604 = vpop.f32.mrf.mxu0
        %1605 = vdwg.mxu0
        %v1606 = vadd.f32 %v1558, %v1601
        %v1607 = vld [vmem:[#allocation3] sm:$0x1]
        %v1608 = vpack.c.bf16 %v1547, %v1547
        %1610 = vrot.lane.b32.xlu0 %v1608, 80
        %v1611 = vpop.permute.xlu0 %1610
        %v1613 = vsel %vm470, %v1611, 0
        %1615 = vmatprep.subr.bf16.mxu0 0
        %1616 = vmatpush1.bf16.msra.mxu0 0
        %1617 = vmatprep.subr.bf16.mxu0 0
        %1618 = vmatpush1.bf16.msra.mxu0 0
        %1619 = vmatprep.subr.bf16.mxu0 0
        %1620 = vmatpush1.bf16.msra.mxu0 0
        %1621 = vmatprep.subr.bf16.mxu0 0
        %1622 = vmatpush1.bf16.msra.mxu0 0
        %1623 = vmatprep.subr.bf16.mxu0 0
        %1624 = vmatpush1.bf16.msra.mxu0 0
        %1625 = vmatprep.subr.bf16.mxu0 0
        %1626 = vmatpush1.bf16.msra.mxu0 0
        %1627 = vmatprep.subr.bf16.mxu0 0
        %1628 = vmatpush1.bf16.msra.mxu0 0
        %1629 = vmatprep.subr.bf16.mxu0 0
        %1630 = vmatpush1.bf16.msra.mxu0 %v520
        %1631 = vmatprep.subr.bf16.mxu0 0
        %1632 = vmatpush2.bf16.msra.mxu0 0
        %1633 = vmatprep.subr.bf16.mxu0 0
        %1634 = vmatpush2.bf16.msra.mxu0 0
        %1635 = vmatprep.subr.bf16.mxu0 0
        %1636 = vmatpush2.bf16.msra.mxu0 0
        %1637 = vmatprep.subr.bf16.mxu0 0
        %1638 = vmatpush2.bf16.msra.mxu0 0
        %1639 = vmatprep.subr.bf16.mxu0 0
        %1640 = vmatpush2.bf16.msra.mxu0 0
        %1641 = vmatprep.subr.bf16.mxu0 0
        %1642 = vmatpush2.bf16.msra.mxu0 0
        %1643 = vmatprep.subr.bf16.mxu0 0
        %1644 = vmatpush2.bf16.msra.mxu0 0
        %1645 = vmatprep.subr.bf16.mxu0 0
        %1646 = vmatpush2.bf16.msra.mxu0 0
        %1647 = vmatprep.mubr.bf16.mxu0 0
        %1648 = vmatmul.mubr.bf16.gmra.mxu0 %v1613
        %v1649 = vpop.f32.mrf.mxu0
        %v1650 = vadd.f32 0.0, %v1649
        %v1651 = vpop.f32.mrf.mxu0
        %v1652 = vpop.f32.mrf.mxu0
        %v1653 = vpop.f32.mrf.mxu0
        %1654 = vdwg.mxu0
        %v1655 = vadd.f32 %v1607, %v1650
        %v1656 = vxor.u32 %v1606, 2147483648
        %v1657 = vmul.f32 %v1656, 1.442695
        %v1658 = vpow.pop %v1657
        %v1659 = vadd.f32 %v1658, 1.0
        %v1660 = vrcp.pop %v1659
        %v1661 = vmul.f32 1.0, %v1660
        %v1662 = vtanh.pop %v1606
        %v1663 = vmul.f32 %v1661, %v1517
        %1665 = vrot.lane.b32.xlu0 %v1662, 96
        %v1666 = vpop.permute.xlu0 %1665
        %v1668 = vmul.f32 %v1661, %v1666
        %1670 = vrot.lane.b32.xlu0 %v1668, 16
        %v1671 = vpop.permute.xlu0 %1670
        %v1673 = vadd.f32 %v1663, %v1671
        %v1674 = vtanh.pop %v1673
        %1676 = vrot.lane.b32.xlu0 %v1674, 32
        %v1677 = vpop.permute.xlu0 %1676
        %v1679 = vmul.f32 %v1661, %v1677
        %v1680 = vxor.u32 %v1655, 2147483648
        %v1681 = vmul.f32 %v1680, 1.442695
        %v1682 = vpow.pop %v1681
        %v1683 = vadd.f32 %v1682, 1.0
        %v1684 = vrcp.pop %v1683
        %v1685 = vmul.f32 1.0, %v1684
        %v1686 = vtanh.pop %v1655
        %v1687 = vmul.f32 %v1685, %v1541
        %1689 = vrot.lane.b32.xlu0 %v1686, 96
        %v1690 = vpop.permute.xlu0 %1689
        %v1692 = vmul.f32 %v1685, %v1690
        %1694 = vrot.lane.b32.xlu0 %v1692, 16
        %v1695 = vpop.permute.xlu0 %1694
        %v1697 = vadd.f32 %v1687, %v1695
        %v1698 = vtanh.pop %v1697
        %1700 = vrot.lane.b32.xlu0 %v1698, 32
        %v1701 = vpop.permute.xlu0 %1700
        %v1703 = vmul.f32 %v1685, %v1701
        %1705 = vrot.lane.b32.xlu0 %v1679, 80
        %v1706 = vpop.permute.xlu0 %1705
        %1708 = vst.msk [vmem:[#allocation4 + $0x7] sm:$0x1] %vm615, %v1706
        %1710 = vrot.lane.b32.xlu0 %v1703, 80
        %v1711 = vpop.permute.xlu0 %1710
        %1713 = vst.msk [vmem:[#allocation5] sm:$0x1] %vm615, %v1711
        %v1714 = vld [vmem:[#allocation4] sm:$0xff]
        %v1715 = vpack.c.bf16 %v1714, %v1714
        %v1716 = vld [vmem:[%s5] sm:$0xf]
        %v1717 = vld [vmem:[%s5 + $0x4] sm:$0xf]
        %v1718 = vld [vmem:[#allocation5] sm:$0xff]
        %v1719 = vpack.c.bf16 %v1718, %v1718
        %v1720 = vld [vmem:[%s5 + $0x8] sm:$0xf]
        %v1721 = vld [vmem:[%s5 + $0xc] sm:$0xf]
        %v1724 = vunpack.c.l.b16 %v1720
        %v1725 = vunpack.c.l.b16 %v1721
        %v1726 = vpack.c.b16 %v1725, %v1724
        %v1729 = vsel %vm470, %v1719, 0
        %1731 = vmatprep.subr.bf16.mxu0 0
        %1732 = vmatpush1.bf16.msra.mxu0 0
        %1733 = vmatprep.subr.bf16.mxu0 0
        %1734 = vmatpush1.bf16.msra.mxu0 0
        %1735 = vmatprep.subr.bf16.mxu0 0
        %1736 = vmatpush1.bf16.msra.mxu0 0
        %1737 = vmatprep.subr.bf16.mxu0 0
        %1738 = vmatpush1.bf16.msra.mxu0 0
        %1739 = vmatprep.subr.bf16.mxu0 0
        %1740 = vmatpush1.bf16.msra.mxu0 0
        %1741 = vmatprep.subr.bf16.mxu0 0
        %1742 = vmatpush1.bf16.msra.mxu0 0
        %1743 = vmatprep.subr.bf16.mxu0 0
        %1744 = vmatpush1.bf16.msra.mxu0 0
        %1745 = vmatprep.subr.bf16.mxu0 0
        %1746 = vmatpush1.bf16.msra.mxu0 %v1726
        %1747 = vmatprep.subr.bf16.mxu0 0
        %1748 = vmatpush2.bf16.msra.mxu0 0
        %1749 = vmatprep.subr.bf16.mxu0 0
        %1750 = vmatpush2.bf16.msra.mxu0 0
        %1751 = vmatprep.subr.bf16.mxu0 0
        %1752 = vmatpush2.bf16.msra.mxu0 0
        %1753 = vmatprep.subr.bf16.mxu0 0
        %1754 = vmatpush2.bf16.msra.mxu0 0
        %1755 = vmatprep.subr.bf16.mxu0 0
        %1756 = vmatpush2.bf16.msra.mxu0 0
        %1757 = vmatprep.subr.bf16.mxu0 0
        %1758 = vmatpush2.bf16.msra.mxu0 0
        %1759 = vmatprep.subr.bf16.mxu0 0
        %1760 = vmatpush2.bf16.msra.mxu0 0
        %1761 = vmatprep.subr.bf16.mxu0 0
        %1762 = vmatpush2.bf16.msra.mxu0 0
        %1763 = vmatprep.mubr.bf16.mxu0 0
        %1764 = vmatmul.mubr.bf16.gmra.mxu0 %v1729
        %v1765 = vpop.f32.mrf.mxu0
        %v1766 = vadd.f32 0.0, %v1765
        %v1767 = vpop.f32.mrf.mxu0
        %v1768 = vpop.f32.mrf.mxu0
        %v1769 = vpop.f32.mrf.mxu0
        %1770 = vdwg.mxu0
        %v1773 = vunpack.c.l.b16 %v1716
        %v1774 = vunpack.c.l.b16 %v1717
        %v1775 = vpack.c.b16 %v1774, %v1773
        %v1778 = vsel %vm470, %v1715, 0
        %1780 = vmatprep.subr.bf16.mxu0 0
        %1781 = vmatpush1.bf16.msra.mxu0 0
        %1782 = vmatprep.subr.bf16.mxu0 0
        %1783 = vmatpush1.bf16.msra.mxu0 0
        %1784 = vmatprep.subr.bf16.mxu0 0
        %1785 = vmatpush1.bf16.msra.mxu0 0
        %1786 = vmatprep.subr.bf16.mxu0 0
        %1787 = vmatpush1.bf16.msra.mxu0 0
        %1788 = vmatprep.subr.bf16.mxu0 0
        %1789 = vmatpush1.bf16.msra.mxu0 0
        %1790 = vmatprep.subr.bf16.mxu0 0
        %1791 = vmatpush1.bf16.msra.mxu0 0
        %1792 = vmatprep.subr.bf16.mxu0 0
        %1793 = vmatpush1.bf16.msra.mxu0 0
        %1794 = vmatprep.subr.bf16.mxu0 0
        %1795 = vmatpush1.bf16.msra.mxu0 %v1775
        %1796 = vmatprep.subr.bf16.mxu0 0
        %1797 = vmatpush2.bf16.msra.mxu0 0
        %1798 = vmatprep.subr.bf16.mxu0 0
        %1799 = vmatpush2.bf16.msra.mxu0 0
        %1800 = vmatprep.subr.bf16.mxu0 0
        %1801 = vmatpush2.bf16.msra.mxu0 0
        %1802 = vmatprep.subr.bf16.mxu0 0
        %1803 = vmatpush2.bf16.msra.mxu0 0
        %1804 = vmatprep.subr.bf16.mxu0 0
        %1805 = vmatpush2.bf16.msra.mxu0 0
        %1806 = vmatprep.subr.bf16.mxu0 0
        %1807 = vmatpush2.bf16.msra.mxu0 0
        %1808 = vmatprep.subr.bf16.mxu0 0
        %1809 = vmatpush2.bf16.msra.mxu0 0
        %1810 = vmatprep.subr.bf16.mxu0 0
        %1811 = vmatpush2.bf16.msra.mxu0 0
        %1812 = vmatprep.mubr.bf16.mxu0 0
        %1813 = vmatmul.mubr.bf16.gmra.mxu0 %v1778
        %v1814 = vpop.f32.mrf.mxu0
        %v1815 = vadd.f32 %v1766, %v1814
        %v1816 = vpop.f32.mrf.mxu0
        %v1817 = vpop.f32.mrf.mxu0
        %v1818 = vpop.f32.mrf.mxu0
        %1819 = vdwg.mxu0
        %v1820 = vld [vmem:[%s8] sm:$0x1]
        %v1822 = vlaneseq
        %v1823 = vshrl.u32 %v1822, 7
        %v1824 = vsub.s32 0, %v1823
        %v1825 = vrot.slane %v1820, %v1824
        %v1827 = vadd.f32 %v1815, %v1825
        %1828 = vst.msk [vmem:[#allocation2] sm:$0xff] %vm452, %v1827
        %1830 = vrot.lane.b32.xlu0 %v1827, 64
        %v1831 = vpop.permute.xlu0 %1830
        %1833 = vst.msk [vmem:[#allocation3] sm:$0xff] %vm452, %v1831
        %v1834 = vld [vmem:[%s6] sm:$0xf]
        %v1835 = vld [vmem:[%s6 + $0x4] sm:$0xf]
        %v1836 = vld [vmem:[%s7] sm:$0xf]
        %v1837 = vld [vmem:[%s7 + $0x4] sm:$0xf]
        %v1838 = vld [vmem:[#allocation2] sm:$0x1]
        %v1841 = vunpack.c.l.b16 %v1834
        %v1842 = vunpack.c.l.b16 %v1835
        %v1843 = vpack.c.b16 %v1842, %v1841
        %1845 = vmatprep.subr.bf16.mxu0 0
        %1846 = vmatpush1.bf16.msra.mxu0 0
        %1847 = vmatprep.subr.bf16.mxu0 0
        %1848 = vmatpush1.bf16.msra.mxu0 0
        %1849 = vmatprep.subr.bf16.mxu0 0
        %1850 = vmatpush1.bf16.msra.mxu0 0
        %1851 = vmatprep.subr.bf16.mxu0 0
        %1852 = vmatpush1.bf16.msra.mxu0 0
        %1853 = vmatprep.subr.bf16.mxu0 0
        %1854 = vmatpush1.bf16.msra.mxu0 0
        %1855 = vmatprep.subr.bf16.mxu0 0
        %1856 = vmatpush1.bf16.msra.mxu0 0
        %1857 = vmatprep.subr.bf16.mxu0 0
        %1858 = vmatpush1.bf16.msra.mxu0 0
        %1859 = vmatprep.subr.bf16.mxu0 0
        %1860 = vmatpush1.bf16.msra.mxu0 %v1843
        %1861 = vmatprep.subr.bf16.mxu0 0
        %1862 = vmatpush2.bf16.msra.mxu0 0
        %1863 = vmatprep.subr.bf16.mxu0 0
        %1864 = vmatpush2.bf16.msra.mxu0 0
        %1865 = vmatprep.subr.bf16.mxu0 0
        %1866 = vmatpush2.bf16.msra.mxu0 0
        %1867 = vmatprep.subr.bf16.mxu0 0
        %1868 = vmatpush2.bf16.msra.mxu0 0
        %1869 = vmatprep.subr.bf16.mxu0 0
        %1870 = vmatpush2.bf16.msra.mxu0 0
        %1871 = vmatprep.subr.bf16.mxu0 0
        %1872 = vmatpush2.bf16.msra.mxu0 0
        %1873 = vmatprep.subr.bf16.mxu0 0
        %1874 = vmatpush2.bf16.msra.mxu0 0
        %1875 = vmatprep.subr.bf16.mxu0 0
        %1876 = vmatpush2.bf16.msra.mxu0 0
        %1877 = vmatprep.mubr.bf16.mxu0 0
        %1878 = vmatmul.mubr.bf16.gmra.mxu0 %v472
        %v1879 = vpop.f32.mrf.mxu0
        %v1880 = vadd.f32 0.0, %v1879
        %v1881 = vpop.f32.mrf.mxu0
        %v1882 = vpop.f32.mrf.mxu0
        %v1883 = vpop.f32.mrf.mxu0
        %1884 = vdwg.mxu0
        %v1885 = vadd.f32 %v1838, %v1880
        %v1886 = vld [vmem:[#allocation3 + $0x7] sm:$0x1]
        %v1889 = vunpack.c.l.b16 %v1836
        %v1890 = vunpack.c.l.b16 %v1837
        %v1891 = vpack.c.b16 %v1890, %v1889
        %1893 = vmatprep.subr.bf16.mxu0 0
        %1894 = vmatpush1.bf16.msra.mxu0 0
        %1895 = vmatprep.subr.bf16.mxu0 0
        %1896 = vmatpush1.bf16.msra.mxu0 0
        %1897 = vmatprep.subr.bf16.mxu0 0
        %1898 = vmatpush1.bf16.msra.mxu0 0
        %1899 = vmatprep.subr.bf16.mxu0 0
        %1900 = vmatpush1.bf16.msra.mxu0 0
        %1901 = vmatprep.subr.bf16.mxu0 0
        %1902 = vmatpush1.bf16.msra.mxu0 0
        %1903 = vmatprep.subr.bf16.mxu0 0
        %1904 = vmatpush1.bf16.msra.mxu0 0
        %1905 = vmatprep.subr.bf16.mxu0 0
        %1906 = vmatpush1.bf16.msra.mxu0 0
        %1907 = vmatprep.subr.bf16.mxu0 0
        %1908 = vmatpush1.bf16.msra.mxu0 %v1891
        %1909 = vmatprep.subr.bf16.mxu0 0
        %1910 = vmatpush2.bf16.msra.mxu0 0
        %1911 = vmatprep.subr.bf16.mxu0 0
        %1912 = vmatpush2.bf16.msra.mxu0 0
        %1913 = vmatprep.subr.bf16.mxu0 0
        %1914 = vmatpush2.bf16.msra.mxu0 0
        %1915 = vmatprep.subr.bf16.mxu0 0
        %1916 = vmatpush2.bf16.msra.mxu0 0
        %1917 = vmatprep.subr.bf16.mxu0 0
        %1918 = vmatpush2.bf16.msra.mxu0 0
        %1919 = vmatprep.subr.bf16.mxu0 0
        %1920 = vmatpush2.bf16.msra.mxu0 0
        %1921 = vmatprep.subr.bf16.mxu0 0
        %1922 = vmatpush2.bf16.msra.mxu0 0
        %1923 = vmatprep.subr.bf16.mxu0 0
        %1924 = vmatpush2.bf16.msra.mxu0 0
        %1925 = vmatprep.mubr.bf16.mxu0 0
        %1926 = vmatmul.mubr.bf16.gmra.mxu0 %v472
        %v1927 = vpop.f32.mrf.mxu0
        %v1928 = vadd.f32 0.0, %v1927
        %v1929 = vpop.f32.mrf.mxu0
        %v1930 = vpop.f32.mrf.mxu0
        %v1931 = vpop.f32.mrf.mxu0
        %1932 = vdwg.mxu0
        %v1933 = vadd.f32 %v1886, %v1928
        %v1934 = vxor.u32 %v1885, 2147483648
        %v1935 = vmul.f32 %v1934, 1.442695
        %v1936 = vpow.pop %v1935
        %v1937 = vadd.f32 %v1936, 1.0
        %v1938 = vrcp.pop %v1937
        %v1939 = vmul.f32 1.0, %v1938
        %v1940 = vtanh.pop %v1885
        %v1941 = vmul.f32 %v1939, 0.0
        %1943 = vrot.lane.b32.xlu0 %v1940, 96
        %v1944 = vpop.permute.xlu0 %1943
        %v1946 = vmul.f32 %v1939, %v1944
        %1948 = vrot.lane.b32.xlu0 %v1946, 16
        %v1949 = vpop.permute.xlu0 %1948
        %v1951 = vadd.f32 %v1941, %v1949
        %v1952 = vtanh.pop %v1951
        %1954 = vrot.lane.b32.xlu0 %v1952, 32
        %v1955 = vpop.permute.xlu0 %1954
        %v1957 = vmul.f32 %v1939, %v1955
        %v1958 = vxor.u32 %v1933, 2147483648
        %v1959 = vmul.f32 %v1958, 1.442695
        %v1960 = vpow.pop %v1959
        %v1961 = vadd.f32 %v1960, 1.0
        %v1962 = vrcp.pop %v1961
        %v1963 = vmul.f32 1.0, %v1962
        %v1964 = vtanh.pop %v1933
        %v1965 = vmul.f32 %v1963, 0.0
        %1967 = vrot.lane.b32.xlu0 %v1964, 96
        %v1968 = vpop.permute.xlu0 %1967
        %v1970 = vmul.f32 %v1963, %v1968
        %1972 = vrot.lane.b32.xlu0 %v1970, 16
        %v1973 = vpop.permute.xlu0 %1972
        %v1975 = vadd.f32 %v1965, %v1973
        %v1976 = vtanh.pop %v1975
        %1978 = vrot.lane.b32.xlu0 %v1976, 32
        %v1979 = vpop.permute.xlu0 %1978
        %v1981 = vmul.f32 %v1963, %v1979
        %1983 = vrot.lane.b32.xlu0 %v1957, 80
        %v1984 = vpop.permute.xlu0 %1983
        %1986 = vst.msk [vmem:[#allocation4] sm:$0x1] %vm615, %v1984
        %1988 = vrot.lane.b32.xlu0 %v1981, 80
        %v1989 = vpop.permute.xlu0 %1988
        %1991 = vst.msk [vmem:[#allocation5 + $0x7] sm:$0x1] %vm615, %v1989
        %v1992 = vld [vmem:[#allocation2 + $0x1] sm:$0x1]
        %v1993 = vpack.c.bf16 %v1957, %v1957
        %1995 = vrot.lane.b32.xlu0 %v1993, 80
        %v1996 = vpop.permute.xlu0 %1995
        %v1998 = vsel %vm470, %v1996, 0
        %2000 = vmatprep.subr.bf16.mxu0 0
        %2001 = vmatpush1.bf16.msra.mxu0 0
        %2002 = vmatprep.subr.bf16.mxu0 0
        %2003 = vmatpush1.bf16.msra.mxu0 0
        %2004 = vmatprep.subr.bf16.mxu0 0
        %2005 = vmatpush1.bf16.msra.mxu0 0
        %2006 = vmatprep.subr.bf16.mxu0 0
        %2007 = vmatpush1.bf16.msra.mxu0 0
        %2008 = vmatprep.subr.bf16.mxu0 0
        %2009 = vmatpush1.bf16.msra.mxu0 0
        %2010 = vmatprep.subr.bf16.mxu0 0
        %2011 = vmatpush1.bf16.msra.mxu0 0
        %2012 = vmatprep.subr.bf16.mxu0 0
        %2013 = vmatpush1.bf16.msra.mxu0 0
        %2014 = vmatprep.subr.bf16.mxu0 0
        %2015 = vmatpush1.bf16.msra.mxu0 %v1843
        %2016 = vmatprep.subr.bf16.mxu0 0
        %2017 = vmatpush2.bf16.msra.mxu0 0
        %2018 = vmatprep.subr.bf16.mxu0 0
        %2019 = vmatpush2.bf16.msra.mxu0 0
        %2020 = vmatprep.subr.bf16.mxu0 0
        %2021 = vmatpush2.bf16.msra.mxu0 0
        %2022 = vmatprep.subr.bf16.mxu0 0
        %2023 = vmatpush2.bf16.msra.mxu0 0
        %2024 = vmatprep.subr.bf16.mxu0 0
        %2025 = vmatpush2.bf16.msra.mxu0 0
        %2026 = vmatprep.subr.bf16.mxu0 0
        %2027 = vmatpush2.bf16.msra.mxu0 0
        %2028 = vmatprep.subr.bf16.mxu0 0
        %2029 = vmatpush2.bf16.msra.mxu0 0
        %2030 = vmatprep.subr.bf16.mxu0 0
        %2031 = vmatpush2.bf16.msra.mxu0 0
        %2032 = vmatprep.mubr.bf16.mxu0 0
        %2033 = vmatmul.mubr.bf16.gmra.mxu0 %v1998
        %v2034 = vpop.f32.mrf.mxu0
        %v2035 = vadd.f32 0.0, %v2034
        %v2036 = vpop.f32.mrf.mxu0
        %v2037 = vpop.f32.mrf.mxu0
        %v2038 = vpop.f32.mrf.mxu0
        %2039 = vdwg.mxu0
        %v2040 = vadd.f32 %v1992, %v2035
        %v2041 = vld [vmem:[#allocation3 + $0x6] sm:$0x1]
        %v2042 = vpack.c.bf16 %v1981, %v1981
        %2044 = vrot.lane.b32.xlu0 %v2042, 80
        %v2045 = vpop.permute.xlu0 %2044
        %v2047 = vsel %vm470, %v2045, 0
        %2049 = vmatprep.subr.bf16.mxu0 0
        %2050 = vmatpush1.bf16.msra.mxu0 0
        %2051 = vmatprep.subr.bf16.mxu0 0
        %2052 = vmatpush1.bf16.msra.mxu0 0
        %2053 = vmatprep.subr.bf16.mxu0 0
        %2054 = vmatpush1.bf16.msra.mxu0 0
        %2055 = vmatprep.subr.bf16.mxu0 0
        %2056 = vmatpush1.bf16.msra.mxu0 0
        %2057 = vmatprep.subr.bf16.mxu0 0
        %2058 = vmatpush1.bf16.msra.mxu0 0
        %2059 = vmatprep.subr.bf16.mxu0 0
        %2060 = vmatpush1.bf16.msra.mxu0 0
        %2061 = vmatprep.subr.bf16.mxu0 0
        %2062 = vmatpush1.bf16.msra.mxu0 0
        %2063 = vmatprep.subr.bf16.mxu0 0
        %2064 = vmatpush1.bf16.msra.mxu0 %v1891
        %2065 = vmatprep.subr.bf16.mxu0 0
        %2066 = vmatpush2.bf16.msra.mxu0 0
        %2067 = vmatprep.subr.bf16.mxu0 0
        %2068 = vmatpush2.bf16.msra.mxu0 0
        %2069 = vmatprep.subr.bf16.mxu0 0
        %2070 = vmatpush2.bf16.msra.mxu0 0
        %2071 = vmatprep.subr.bf16.mxu0 0
        %2072 = vmatpush2.bf16.msra.mxu0 0
        %2073 = vmatprep.subr.bf16.mxu0 0
        %2074 = vmatpush2.bf16.msra.mxu0 0
        %2075 = vmatprep.subr.bf16.mxu0 0
        %2076 = vmatpush2.bf16.msra.mxu0 0
        %2077 = vmatprep.subr.bf16.mxu0 0
        %2078 = vmatpush2.bf16.msra.mxu0 0
        %2079 = vmatprep.subr.bf16.mxu0 0
        %2080 = vmatpush2.bf16.msra.mxu0 0
        %2081 = vmatprep.mubr.bf16.mxu0 0
        %2082 = vmatmul.mubr.bf16.gmra.mxu0 %v2047
        %v2083 = vpop.f32.mrf.mxu0
        %v2084 = vadd.f32 0.0, %v2083
        %v2085 = vpop.f32.mrf.mxu0
        %v2086 = vpop.f32.mrf.mxu0
        %v2087 = vpop.f32.mrf.mxu0
        %2088 = vdwg.mxu0
        %v2089 = vadd.f32 %v2041, %v2084
        %v2090 = vxor.u32 %v2040, 2147483648
        %v2091 = vmul.f32 %v2090, 1.442695
        %v2092 = vpow.pop %v2091
        %v2093 = vadd.f32 %v2092, 1.0
        %v2094 = vrcp.pop %v2093
        %v2095 = vmul.f32 1.0, %v2094
        %v2096 = vtanh.pop %v2040
        %v2097 = vmul.f32 %v2095, %v1951
        %2099 = vrot.lane.b32.xlu0 %v2096, 96
        %v2100 = vpop.permute.xlu0 %2099
        %v2102 = vmul.f32 %v2095, %v2100
        %2104 = vrot.lane.b32.xlu0 %v2102, 16
        %v2105 = vpop.permute.xlu0 %2104
        %v2107 = vadd.f32 %v2097, %v2105
        %v2108 = vtanh.pop %v2107
        %2110 = vrot.lane.b32.xlu0 %v2108, 32
        %v2111 = vpop.permute.xlu0 %2110
        %v2113 = vmul.f32 %v2095, %v2111
        %v2114 = vxor.u32 %v2089, 2147483648
        %v2115 = vmul.f32 %v2114, 1.442695
        %v2116 = vpow.pop %v2115
        %v2117 = vadd.f32 %v2116, 1.0
        %v2118 = vrcp.pop %v2117
        %v2119 = vmul.f32 1.0, %v2118
        %v2120 = vtanh.pop %v2089
        %v2121 = vmul.f32 %v2119, %v1975
        %2123 = vrot.lane.b32.xlu0 %v2120, 96
        %v2124 = vpop.permute.xlu0 %2123
        %v2126 = vmul.f32 %v2119, %v2124
        %2128 = vrot.lane.b32.xlu0 %v2126, 16
        %v2129 = vpop.permute.xlu0 %2128
        %v2131 = vadd.f32 %v2121, %v2129
        %v2132 = vtanh.pop %v2131
        %2134 = vrot.lane.b32.xlu0 %v2132, 32
        %v2135 = vpop.permute.xlu0 %2134
        %v2137 = vmul.f32 %v2119, %v2135
        %2139 = vrot.lane.b32.xlu0 %v2113, 80
        %v2140 = vpop.permute.xlu0 %2139
        %2142 = vst.msk [vmem:[#allocation4 + $0x1] sm:$0x1] %vm615, %v2140
        %2144 = vrot.lane.b32.xlu0 %v2137, 80
        %v2145 = vpop.permute.xlu0 %2144
        %2147 = vst.msk [vmem:[#allocation5 + $0x6] sm:$0x1] %vm615, %v2145
        %v2148 = vld [vmem:[#allocation2 + $0x2] sm:$0x1]
        %v2149 = vpack.c.bf16 %v2113, %v2113
        %2151 = vrot.lane.b32.xlu0 %v2149, 80
        %v2152 = vpop.permute.xlu0 %2151
        %v2154 = vsel %vm470, %v2152, 0
        %2156 = vmatprep.subr.bf16.mxu0 0
        %2157 = vmatpush1.bf16.msra.mxu0 0
        %2158 = vmatprep.subr.bf16.mxu0 0
        %2159 = vmatpush1.bf16.msra.mxu0 0
        %2160 = vmatprep.subr.bf16.mxu0 0
        %2161 = vmatpush1.bf16.msra.mxu0 0
        %2162 = vmatprep.subr.bf16.mxu0 0
        %2163 = vmatpush1.bf16.msra.mxu0 0
        %2164 = vmatprep.subr.bf16.mxu0 0
        %2165 = vmatpush1.bf16.msra.mxu0 0
        %2166 = vmatprep.subr.bf16.mxu0 0
        %2167 = vmatpush1.bf16.msra.mxu0 0
        %2168 = vmatprep.subr.bf16.mxu0 0
        %2169 = vmatpush1.bf16.msra.mxu0 0
        %2170 = vmatprep.subr.bf16.mxu0 0
        %2171 = vmatpush1.bf16.msra.mxu0 %v1843
        %2172 = vmatprep.subr.bf16.mxu0 0
        %2173 = vmatpush2.bf16.msra.mxu0 0
        %2174 = vmatprep.subr.bf16.mxu0 0
        %2175 = vmatpush2.bf16.msra.mxu0 0
        %2176 = vmatprep.subr.bf16.mxu0 0
        %2177 = vmatpush2.bf16.msra.mxu0 0
        %2178 = vmatprep.subr.bf16.mxu0 0
        %2179 = vmatpush2.bf16.msra.mxu0 0
        %2180 = vmatprep.subr.bf16.mxu0 0
        %2181 = vmatpush2.bf16.msra.mxu0 0
        %2182 = vmatprep.subr.bf16.mxu0 0
        %2183 = vmatpush2.bf16.msra.mxu0 0
        %2184 = vmatprep.subr.bf16.mxu0 0
        %2185 = vmatpush2.bf16.msra.mxu0 0
        %2186 = vmatprep.subr.bf16.mxu0 0
        %2187 = vmatpush2.bf16.msra.mxu0 0
        %2188 = vmatprep.mubr.bf16.mxu0 0
        %2189 = vmatmul.mubr.bf16.gmra.mxu0 %v2154
        %v2190 = vpop.f32.mrf.mxu0
        %v2191 = vadd.f32 0.0, %v2190
        %v2192 = vpop.f32.mrf.mxu0
        %v2193 = vpop.f32.mrf.mxu0
        %v2194 = vpop.f32.mrf.mxu0
        %2195 = vdwg.mxu0
        %v2196 = vadd.f32 %v2148, %v2191
        %v2197 = vld [vmem:[#allocation3 + $0x5] sm:$0x1]
        %v2198 = vpack.c.bf16 %v2137, %v2137
        %2200 = vrot.lane.b32.xlu0 %v2198, 80
        %v2201 = vpop.permute.xlu0 %2200
        %v2203 = vsel %vm470, %v2201, 0
        %2205 = vmatprep.subr.bf16.mxu0 0
        %2206 = vmatpush1.bf16.msra.mxu0 0
        %2207 = vmatprep.subr.bf16.mxu0 0
        %2208 = vmatpush1.bf16.msra.mxu0 0
        %2209 = vmatprep.subr.bf16.mxu0 0
        %2210 = vmatpush1.bf16.msra.mxu0 0
        %2211 = vmatprep.subr.bf16.mxu0 0
        %2212 = vmatpush1.bf16.msra.mxu0 0
        %2213 = vmatprep.subr.bf16.mxu0 0
        %2214 = vmatpush1.bf16.msra.mxu0 0
        %2215 = vmatprep.subr.bf16.mxu0 0
        %2216 = vmatpush1.bf16.msra.mxu0 0
        %2217 = vmatprep.subr.bf16.mxu0 0
        %2218 = vmatpush1.bf16.msra.mxu0 0
        %2219 = vmatprep.subr.bf16.mxu0 0
        %2220 = vmatpush1.bf16.msra.mxu0 %v1891
        %2221 = vmatprep.subr.bf16.mxu0 0
        %2222 = vmatpush2.bf16.msra.mxu0 0
        %2223 = vmatprep.subr.bf16.mxu0 0
        %2224 = vmatpush2.bf16.msra.mxu0 0
        %2225 = vmatprep.subr.bf16.mxu0 0
        %2226 = vmatpush2.bf16.msra.mxu0 0
        %2227 = vmatprep.subr.bf16.mxu0 0
        %2228 = vmatpush2.bf16.msra.mxu0 0
        %2229 = vmatprep.subr.bf16.mxu0 0
        %2230 = vmatpush2.bf16.msra.mxu0 0
        %2231 = vmatprep.subr.bf16.mxu0 0
        %2232 = vmatpush2.bf16.msra.mxu0 0
        %2233 = vmatprep.subr.bf16.mxu0 0
        %2234 = vmatpush2.bf16.msra.mxu0 0
        %2235 = vmatprep.subr.bf16.mxu0 0
        %2236 = vmatpush2.bf16.msra.mxu0 0
        %2237 = vmatprep.mubr.bf16.mxu0 0
        %2238 = vmatmul.mubr.bf16.gmra.mxu0 %v2203
        %v2239 = vpop.f32.mrf.mxu0
        %v2240 = vadd.f32 0.0, %v2239
        %v2241 = vpop.f32.mrf.mxu0
        %v2242 = vpop.f32.mrf.mxu0
        %v2243 = vpop.f32.mrf.mxu0
        %2244 = vdwg.mxu0
        %v2245 = vadd.f32 %v2197, %v2240
        %v2246 = vxor.u32 %v2196, 2147483648
        %v2247 = vmul.f32 %v2246, 1.442695
        %v2248 = vpow.pop %v2247
        %v2249 = vadd.f32 %v2248, 1.0
        %v2250 = vrcp.pop %v2249
        %v2251 = vmul.f32 1.0, %v2250
        %v2252 = vtanh.pop %v2196
        %v2253 = vmul.f32 %v2251, %v2107
        %2255 = vrot.lane.b32.xlu0 %v2252, 96
        %v2256 = vpop.permute.xlu0 %2255
        %v2258 = vmul.f32 %v2251, %v2256
        %2260 = vrot.lane.b32.xlu0 %v2258, 16
        %v2261 = vpop.permute.xlu0 %2260
        %v2263 = vadd.f32 %v2253, %v2261
        %v2264 = vtanh.pop %v2263
        %2266 = vrot.lane.b32.xlu0 %v2264, 32
        %v2267 = vpop.permute.xlu0 %2266
        %v2269 = vmul.f32 %v2251, %v2267
        %v2270 = vxor.u32 %v2245, 2147483648
        %v2271 = vmul.f32 %v2270, 1.442695
        %v2272 = vpow.pop %v2271
        %v2273 = vadd.f32 %v2272, 1.0
        %v2274 = vrcp.pop %v2273
        %v2275 = vmul.f32 1.0, %v2274
        %v2276 = vtanh.pop %v2245
        %v2277 = vmul.f32 %v2275, %v2131
        %2279 = vrot.lane.b32.xlu0 %v2276, 96
        %v2280 = vpop.permute.xlu0 %2279
        %v2282 = vmul.f32 %v2275, %v2280
        %2284 = vrot.lane.b32.xlu0 %v2282, 16
        %v2285 = vpop.permute.xlu0 %2284
        %v2287 = vadd.f32 %v2277, %v2285
        %v2288 = vtanh.pop %v2287
        %2290 = vrot.lane.b32.xlu0 %v2288, 32
        %v2291 = vpop.permute.xlu0 %2290
        %v2293 = vmul.f32 %v2275, %v2291
        %2295 = vrot.lane.b32.xlu0 %v2269, 80
        %v2296 = vpop.permute.xlu0 %2295
        %2298 = vst.msk [vmem:[#allocation4 + $0x2] sm:$0x1] %vm615, %v2296
        %2300 = vrot.lane.b32.xlu0 %v2293, 80
        %v2301 = vpop.permute.xlu0 %2300
        %2303 = vst.msk [vmem:[#allocation5 + $0x5] sm:$0x1] %vm615, %v2301
        %v2304 = vld [vmem:[#allocation2 + $0x3] sm:$0x1]
        %v2305 = vpack.c.bf16 %v2269, %v2269
        %2307 = vrot.lane.b32.xlu0 %v2305, 80
        %v2308 = vpop.permute.xlu0 %2307
        %v2310 = vsel %vm470, %v2308, 0
        %2312 = vmatprep.subr.bf16.mxu0 0
        %2313 = vmatpush1.bf16.msra.mxu0 0
        %2314 = vmatprep.subr.bf16.mxu0 0
        %2315 = vmatpush1.bf16.msra.mxu0 0
        %2316 = vmatprep.subr.bf16.mxu0 0
        %2317 = vmatpush1.bf16.msra.mxu0 0
        %2318 = vmatprep.subr.bf16.mxu0 0
        %2319 = vmatpush1.bf16.msra.mxu0 0
        %2320 = vmatprep.subr.bf16.mxu0 0
        %2321 = vmatpush1.bf16.msra.mxu0 0
        %2322 = vmatprep.subr.bf16.mxu0 0
        %2323 = vmatpush1.bf16.msra.mxu0 0
        %2324 = vmatprep.subr.bf16.mxu0 0
        %2325 = vmatpush1.bf16.msra.mxu0 0
        %2326 = vmatprep.subr.bf16.mxu0 0
        %2327 = vmatpush1.bf16.msra.mxu0 %v1843
        %2328 = vmatprep.subr.bf16.mxu0 0
        %2329 = vmatpush2.bf16.msra.mxu0 0
        %2330 = vmatprep.subr.bf16.mxu0 0
        %2331 = vmatpush2.bf16.msra.mxu0 0
        %2332 = vmatprep.subr.bf16.mxu0 0
        %2333 = vmatpush2.bf16.msra.mxu0 0
        %2334 = vmatprep.subr.bf16.mxu0 0
        %2335 = vmatpush2.bf16.msra.mxu0 0
        %2336 = vmatprep.subr.bf16.mxu0 0
        %2337 = vmatpush2.bf16.msra.mxu0 0
        %2338 = vmatprep.subr.bf16.mxu0 0
        %2339 = vmatpush2.bf16.msra.mxu0 0
        %2340 = vmatprep.subr.bf16.mxu0 0
        %2341 = vmatpush2.bf16.msra.mxu0 0
        %2342 = vmatprep.subr.bf16.mxu0 0
        %2343 = vmatpush2.bf16.msra.mxu0 0
        %2344 = vmatprep.mubr.bf16.mxu0 0
        %2345 = vmatmul.mubr.bf16.gmra.mxu0 %v2310
        %v2346 = vpop.f32.mrf.mxu0
        %v2347 = vadd.f32 0.0, %v2346
        %v2348 = vpop.f32.mrf.mxu0
        %v2349 = vpop.f32.mrf.mxu0
        %v2350 = vpop.f32.mrf.mxu0
        %2351 = vdwg.mxu0
        %v2352 = vadd.f32 %v2304, %v2347
        %v2353 = vld [vmem:[#allocation3 + $0x4] sm:$0x1]
        %v2354 = vpack.c.bf16 %v2293, %v2293
        %2356 = vrot.lane.b32.xlu0 %v2354, 80
        %v2357 = vpop.permute.xlu0 %2356
        %v2359 = vsel %vm470, %v2357, 0
        %2361 = vmatprep.subr.bf16.mxu0 0
        %2362 = vmatpush1.bf16.msra.mxu0 0
        %2363 = vmatprep.subr.bf16.mxu0 0
        %2364 = vmatpush1.bf16.msra.mxu0 0
        %2365 = vmatprep.subr.bf16.mxu0 0
        %2366 = vmatpush1.bf16.msra.mxu0 0
        %2367 = vmatprep.subr.bf16.mxu0 0
        %2368 = vmatpush1.bf16.msra.mxu0 0
        %2369 = vmatprep.subr.bf16.mxu0 0
        %2370 = vmatpush1.bf16.msra.mxu0 0
        %2371 = vmatprep.subr.bf16.mxu0 0
        %2372 = vmatpush1.bf16.msra.mxu0 0
        %2373 = vmatprep.subr.bf16.mxu0 0
        %2374 = vmatpush1.bf16.msra.mxu0 0
        %2375 = vmatprep.subr.bf16.mxu0 0
        %2376 = vmatpush1.bf16.msra.mxu0 %v1891
        %2377 = vmatprep.subr.bf16.mxu0 0
        %2378 = vmatpush2.bf16.msra.mxu0 0
        %2379 = vmatprep.subr.bf16.mxu0 0
        %2380 = vmatpush2.bf16.msra.mxu0 0
        %2381 = vmatprep.subr.bf16.mxu0 0
        %2382 = vmatpush2.bf16.msra.mxu0 0
        %2383 = vmatprep.subr.bf16.mxu0 0
        %2384 = vmatpush2.bf16.msra.mxu0 0
        %2385 = vmatprep.subr.bf16.mxu0 0
        %2386 = vmatpush2.bf16.msra.mxu0 0
        %2387 = vmatprep.subr.bf16.mxu0 0
        %2388 = vmatpush2.bf16.msra.mxu0 0
        %2389 = vmatprep.subr.bf16.mxu0 0
        %2390 = vmatpush2.bf16.msra.mxu0 0
        %2391 = vmatprep.subr.bf16.mxu0 0
        %2392 = vmatpush2.bf16.msra.mxu0 0
        %2393 = vmatprep.mubr.bf16.mxu0 0
        %2394 = vmatmul.mubr.bf16.gmra.mxu0 %v2359
        %v2395 = vpop.f32.mrf.mxu0
        %v2396 = vadd.f32 0.0, %v2395
        %v2397 = vpop.f32.mrf.mxu0
        %v2398 = vpop.f32.mrf.mxu0
        %v2399 = vpop.f32.mrf.mxu0
        %2400 = vdwg.mxu0
        %v2401 = vadd.f32 %v2353, %v2396
        %v2402 = vxor.u32 %v2352, 2147483648
        %v2403 = vmul.f32 %v2402, 1.442695
        %v2404 = vpow.pop %v2403
        %v2405 = vadd.f32 %v2404, 1.0
        %v2406 = vrcp.pop %v2405
        %v2407 = vmul.f32 1.0, %v2406
        %v2408 = vtanh.pop %v2352
        %v2409 = vmul.f32 %v2407, %v2263
        %2411 = vrot.lane.b32.xlu0 %v2408, 96
        %v2412 = vpop.permute.xlu0 %2411
        %v2414 = vmul.f32 %v2407, %v2412
        %2416 = vrot.lane.b32.xlu0 %v2414, 16
        %v2417 = vpop.permute.xlu0 %2416
        %v2419 = vadd.f32 %v2409, %v2417
        %v2420 = vtanh.pop %v2419
        %2422 = vrot.lane.b32.xlu0 %v2420, 32
        %v2423 = vpop.permute.xlu0 %2422
        %v2425 = vmul.f32 %v2407, %v2423
        %v2426 = vxor.u32 %v2401, 2147483648
        %v2427 = vmul.f32 %v2426, 1.442695
        %v2428 = vpow.pop %v2427
        %v2429 = vadd.f32 %v2428, 1.0
        %v2430 = vrcp.pop %v2429
        %v2431 = vmul.f32 1.0, %v2430
        %v2432 = vtanh.pop %v2401
        %v2433 = vmul.f32 %v2431, %v2287
        %2435 = vrot.lane.b32.xlu0 %v2432, 96
        %v2436 = vpop.permute.xlu0 %2435
        %v2438 = vmul.f32 %v2431, %v2436
        %2440 = vrot.lane.b32.xlu0 %v2438, 16
        %v2441 = vpop.permute.xlu0 %2440
        %v2443 = vadd.f32 %v2433, %v2441
        %v2444 = vtanh.pop %v2443
        %2446 = vrot.lane.b32.xlu0 %v2444, 32
        %v2447 = vpop.permute.xlu0 %2446
        %v2449 = vmul.f32 %v2431, %v2447
        %2451 = vrot.lane.b32.xlu0 %v2425, 80
        %v2452 = vpop.permute.xlu0 %2451
        %2454 = vst.msk [vmem:[#allocation4 + $0x3] sm:$0x1] %vm615, %v2452
        %2456 = vrot.lane.b32.xlu0 %v2449, 80
        %v2457 = vpop.permute.xlu0 %2456
        %2459 = vst.msk [vmem:[#allocation5 + $0x4] sm:$0x1] %vm615, %v2457
        %v2460 = vld [vmem:[#allocation2 + $0x4] sm:$0x1]
        %v2461 = vpack.c.bf16 %v2425, %v2425
        %2463 = vrot.lane.b32.xlu0 %v2461, 80
        %v2464 = vpop.permute.xlu0 %2463
        %v2466 = vsel %vm470, %v2464, 0
        %2468 = vmatprep.subr.bf16.mxu0 0
        %2469 = vmatpush1.bf16.msra.mxu0 0
        %2470 = vmatprep.subr.bf16.mxu0 0
        %2471 = vmatpush1.bf16.msra.mxu0 0
        %2472 = vmatprep.subr.bf16.mxu0 0
        %2473 = vmatpush1.bf16.msra.mxu0 0
        %2474 = vmatprep.subr.bf16.mxu0 0
        %2475 = vmatpush1.bf16.msra.mxu0 0
        %2476 = vmatprep.subr.bf16.mxu0 0
        %2477 = vmatpush1.bf16.msra.mxu0 0
        %2478 = vmatprep.subr.bf16.mxu0 0
        %2479 = vmatpush1.bf16.msra.mxu0 0
        %2480 = vmatprep.subr.bf16.mxu0 0
        %2481 = vmatpush1.bf16.msra.mxu0 0
        %2482 = vmatprep.subr.bf16.mxu0 0
        %2483 = vmatpush1.bf16.msra.mxu0 %v1843
        %2484 = vmatprep.subr.bf16.mxu0 0
        %2485 = vmatpush2.bf16.msra.mxu0 0
        %2486 = vmatprep.subr.bf16.mxu0 0
        %2487 = vmatpush2.bf16.msra.mxu0 0
        %2488 = vmatprep.subr.bf16.mxu0 0
        %2489 = vmatpush2.bf16.msra.mxu0 0
        %2490 = vmatprep.subr.bf16.mxu0 0
        %2491 = vmatpush2.bf16.msra.mxu0 0
        %2492 = vmatprep.subr.bf16.mxu0 0
        %2493 = vmatpush2.bf16.msra.mxu0 0
        %2494 = vmatprep.subr.bf16.mxu0 0
        %2495 = vmatpush2.bf16.msra.mxu0 0
        %2496 = vmatprep.subr.bf16.mxu0 0
        %2497 = vmatpush2.bf16.msra.mxu0 0
        %2498 = vmatprep.subr.bf16.mxu0 0
        %2499 = vmatpush2.bf16.msra.mxu0 0
        %2500 = vmatprep.mubr.bf16.mxu0 0
        %2501 = vmatmul.mubr.bf16.gmra.mxu0 %v2466
        %v2502 = vpop.f32.mrf.mxu0
        %v2503 = vadd.f32 0.0, %v2502
        %v2504 = vpop.f32.mrf.mxu0
        %v2505 = vpop.f32.mrf.mxu0
        %v2506 = vpop.f32.mrf.mxu0
        %2507 = vdwg.mxu0
        %v2508 = vadd.f32 %v2460, %v2503
        %v2509 = vld [vmem:[#allocation3 + $0x3] sm:$0x1]
        %v2510 = vpack.c.bf16 %v2449, %v2449
        %2512 = vrot.lane.b32.xlu0 %v2510, 80
        %v2513 = vpop.permute.xlu0 %2512
        %v2515 = vsel %vm470, %v2513, 0
        %2517 = vmatprep.subr.bf16.mxu0 0
        %2518 = vmatpush1.bf16.msra.mxu0 0
        %2519 = vmatprep.subr.bf16.mxu0 0
        %2520 = vmatpush1.bf16.msra.mxu0 0
        %2521 = vmatprep.subr.bf16.mxu0 0
        %2522 = vmatpush1.bf16.msra.mxu0 0
        %2523 = vmatprep.subr.bf16.mxu0 0
        %2524 = vmatpush1.bf16.msra.mxu0 0
        %2525 = vmatprep.subr.bf16.mxu0 0
        %2526 = vmatpush1.bf16.msra.mxu0 0
        %2527 = vmatprep.subr.bf16.mxu0 0
        %2528 = vmatpush1.bf16.msra.mxu0 0
        %2529 = vmatprep.subr.bf16.mxu0 0
        %2530 = vmatpush1.bf16.msra.mxu0 0
        %2531 = vmatprep.subr.bf16.mxu0 0
        %2532 = vmatpush1.bf16.msra.mxu0 %v1891
        %2533 = vmatprep.subr.bf16.mxu0 0
        %2534 = vmatpush2.bf16.msra.mxu0 0
        %2535 = vmatprep.subr.bf16.mxu0 0
        %2536 = vmatpush2.bf16.msra.mxu0 0
        %2537 = vmatprep.subr.bf16.mxu0 0
        %2538 = vmatpush2.bf16.msra.mxu0 0
        %2539 = vmatprep.subr.bf16.mxu0 0
        %2540 = vmatpush2.bf16.msra.mxu0 0
        %2541 = vmatprep.subr.bf16.mxu0 0
        %2542 = vmatpush2.bf16.msra.mxu0 0
        %2543 = vmatprep.subr.bf16.mxu0 0
        %2544 = vmatpush2.bf16.msra.mxu0 0
        %2545 = vmatprep.subr.bf16.mxu0 0
        %2546 = vmatpush2.bf16.msra.mxu0 0
        %2547 = vmatprep.subr.bf16.mxu0 0
        %2548 = vmatpush2.bf16.msra.mxu0 0
        %2549 = vmatprep.mubr.bf16.mxu0 0
        %2550 = vmatmul.mubr.bf16.gmra.mxu0 %v2515
        %v2551 = vpop.f32.mrf.mxu0
        %v2552 = vadd.f32 0.0, %v2551
        %v2553 = vpop.f32.mrf.mxu0
        %v2554 = vpop.f32.mrf.mxu0
        %v2555 = vpop.f32.mrf.mxu0
        %2556 = vdwg.mxu0
        %v2557 = vadd.f32 %v2509, %v2552
        %v2558 = vxor.u32 %v2508, 2147483648
        %v2559 = vmul.f32 %v2558, 1.442695
        %v2560 = vpow.pop %v2559
        %v2561 = vadd.f32 %v2560, 1.0
        %v2562 = vrcp.pop %v2561
        %v2563 = vmul.f32 1.0, %v2562
        %v2564 = vtanh.pop %v2508
        %v2565 = vmul.f32 %v2563, %v2419
        %2567 = vrot.lane.b32.xlu0 %v2564, 96
        %v2568 = vpop.permute.xlu0 %2567
        %v2570 = vmul.f32 %v2563, %v2568
        %2572 = vrot.lane.b32.xlu0 %v2570, 16
        %v2573 = vpop.permute.xlu0 %2572
        %v2575 = vadd.f32 %v2565, %v2573
        %v2576 = vtanh.pop %v2575
        %2578 = vrot.lane.b32.xlu0 %v2576, 32
        %v2579 = vpop.permute.xlu0 %2578
        %v2581 = vmul.f32 %v2563, %v2579
        %v2582 = vxor.u32 %v2557, 2147483648
        %v2583 = vmul.f32 %v2582, 1.442695
        %v2584 = vpow.pop %v2583
        %v2585 = vadd.f32 %v2584, 1.0
        %v2586 = vrcp.pop %v2585
        %v2587 = vmul.f32 1.0, %v2586
        %v2588 = vtanh.pop %v2557
        %v2589 = vmul.f32 %v2587, %v2443
        %2591 = vrot.lane.b32.xlu0 %v2588, 96
        %v2592 = vpop.permute.xlu0 %2591
        %v2594 = vmul.f32 %v2587, %v2592
        %2596 = vrot.lane.b32.xlu0 %v2594, 16
        %v2597 = vpop.permute.xlu0 %2596
        %v2599 = vadd.f32 %v2589, %v2597
        %v2600 = vtanh.pop %v2599
        %2602 = vrot.lane.b32.xlu0 %v2600, 32
        %v2603 = vpop.permute.xlu0 %2602
        %v2605 = vmul.f32 %v2587, %v2603
        %2607 = vrot.lane.b32.xlu0 %v2581, 80
        %v2608 = vpop.permute.xlu0 %2607
        %2610 = vst.msk [vmem:[#allocation4 + $0x4] sm:$0x1] %vm615, %v2608
        %2612 = vrot.lane.b32.xlu0 %v2605, 80
        %v2613 = vpop.permute.xlu0 %2612
        %2615 = vst.msk [vmem:[#allocation5 + $0x3] sm:$0x1] %vm615, %v2613
        %v2616 = vld [vmem:[#allocation2 + $0x5] sm:$0x1]
        %v2617 = vpack.c.bf16 %v2581, %v2581
        %2619 = vrot.lane.b32.xlu0 %v2617, 80
        %v2620 = vpop.permute.xlu0 %2619
        %v2622 = vsel %vm470, %v2620, 0
        %2624 = vmatprep.subr.bf16.mxu0 0
        %2625 = vmatpush1.bf16.msra.mxu0 0
        %2626 = vmatprep.subr.bf16.mxu0 0
        %2627 = vmatpush1.bf16.msra.mxu0 0
        %2628 = vmatprep.subr.bf16.mxu0 0
        %2629 = vmatpush1.bf16.msra.mxu0 0
        %2630 = vmatprep.subr.bf16.mxu0 0
        %2631 = vmatpush1.bf16.msra.mxu0 0
        %2632 = vmatprep.subr.bf16.mxu0 0
        %2633 = vmatpush1.bf16.msra.mxu0 0
        %2634 = vmatprep.subr.bf16.mxu0 0
        %2635 = vmatpush1.bf16.msra.mxu0 0
        %2636 = vmatprep.subr.bf16.mxu0 0
        %2637 = vmatpush1.bf16.msra.mxu0 0
        %2638 = vmatprep.subr.bf16.mxu0 0
        %2639 = vmatpush1.bf16.msra.mxu0 %v1843
        %2640 = vmatprep.subr.bf16.mxu0 0
        %2641 = vmatpush2.bf16.msra.mxu0 0
        %2642 = vmatprep.subr.bf16.mxu0 0
        %2643 = vmatpush2.bf16.msra.mxu0 0
        %2644 = vmatprep.subr.bf16.mxu0 0
        %2645 = vmatpush2.bf16.msra.mxu0 0
        %2646 = vmatprep.subr.bf16.mxu0 0
        %2647 = vmatpush2.bf16.msra.mxu0 0
        %2648 = vmatprep.subr.bf16.mxu0 0
        %2649 = vmatpush2.bf16.msra.mxu0 0
        %2650 = vmatprep.subr.bf16.mxu0 0
        %2651 = vmatpush2.bf16.msra.mxu0 0
        %2652 = vmatprep.subr.bf16.mxu0 0
        %2653 = vmatpush2.bf16.msra.mxu0 0
        %2654 = vmatprep.subr.bf16.mxu0 0
        %2655 = vmatpush2.bf16.msra.mxu0 0
        %2656 = vmatprep.mubr.bf16.mxu0 0
        %2657 = vmatmul.mubr.bf16.gmra.mxu0 %v2622
        %v2658 = vpop.f32.mrf.mxu0
        %v2659 = vadd.f32 0.0, %v2658
        %v2660 = vpop.f32.mrf.mxu0
        %v2661 = vpop.f32.mrf.mxu0
        %v2662 = vpop.f32.mrf.mxu0
        %2663 = vdwg.mxu0
        %v2664 = vadd.f32 %v2616, %v2659
        %v2665 = vld [vmem:[#allocation3 + $0x2] sm:$0x1]
        %v2666 = vpack.c.bf16 %v2605, %v2605
        %2668 = vrot.lane.b32.xlu0 %v2666, 80
        %v2669 = vpop.permute.xlu0 %2668
        %v2671 = vsel %vm470, %v2669, 0
        %2673 = vmatprep.subr.bf16.mxu0 0
        %2674 = vmatpush1.bf16.msra.mxu0 0
        %2675 = vmatprep.subr.bf16.mxu0 0
        %2676 = vmatpush1.bf16.msra.mxu0 0
        %2677 = vmatprep.subr.bf16.mxu0 0
        %2678 = vmatpush1.bf16.msra.mxu0 0
        %2679 = vmatprep.subr.bf16.mxu0 0
        %2680 = vmatpush1.bf16.msra.mxu0 0
        %2681 = vmatprep.subr.bf16.mxu0 0
        %2682 = vmatpush1.bf16.msra.mxu0 0
        %2683 = vmatprep.subr.bf16.mxu0 0
        %2684 = vmatpush1.bf16.msra.mxu0 0
        %2685 = vmatprep.subr.bf16.mxu0 0
        %2686 = vmatpush1.bf16.msra.mxu0 0
        %2687 = vmatprep.subr.bf16.mxu0 0
        %2688 = vmatpush1.bf16.msra.mxu0 %v1891
        %2689 = vmatprep.subr.bf16.mxu0 0
        %2690 = vmatpush2.bf16.msra.mxu0 0
        %2691 = vmatprep.subr.bf16.mxu0 0
        %2692 = vmatpush2.bf16.msra.mxu0 0
        %2693 = vmatprep.subr.bf16.mxu0 0
        %2694 = vmatpush2.bf16.msra.mxu0 0
        %2695 = vmatprep.subr.bf16.mxu0 0
        %2696 = vmatpush2.bf16.msra.mxu0 0
        %2697 = vmatprep.subr.bf16.mxu0 0
        %2698 = vmatpush2.bf16.msra.mxu0 0
        %2699 = vmatprep.subr.bf16.mxu0 0
        %2700 = vmatpush2.bf16.msra.mxu0 0
        %2701 = vmatprep.subr.bf16.mxu0 0
        %2702 = vmatpush2.bf16.msra.mxu0 0
        %2703 = vmatprep.subr.bf16.mxu0 0
        %2704 = vmatpush2.bf16.msra.mxu0 0
        %2705 = vmatprep.mubr.bf16.mxu0 0
        %2706 = vmatmul.mubr.bf16.gmra.mxu0 %v2671
        %v2707 = vpop.f32.mrf.mxu0
        %v2708 = vadd.f32 0.0, %v2707
        %v2709 = vpop.f32.mrf.mxu0
        %v2710 = vpop.f32.mrf.mxu0
        %v2711 = vpop.f32.mrf.mxu0
        %2712 = vdwg.mxu0
        %v2713 = vadd.f32 %v2665, %v2708
        %v2714 = vxor.u32 %v2664, 2147483648
        %v2715 = vmul.f32 %v2714, 1.442695
        %v2716 = vpow.pop %v2715
        %v2717 = vadd.f32 %v2716, 1.0
        %v2718 = vrcp.pop %v2717
        %v2719 = vmul.f32 1.0, %v2718
        %v2720 = vtanh.pop %v2664
        %v2721 = vmul.f32 %v2719, %v2575
        %2723 = vrot.lane.b32.xlu0 %v2720, 96
        %v2724 = vpop.permute.xlu0 %2723
        %v2726 = vmul.f32 %v2719, %v2724
        %2728 = vrot.lane.b32.xlu0 %v2726, 16
        %v2729 = vpop.permute.xlu0 %2728
        %v2731 = vadd.f32 %v2721, %v2729
        %v2732 = vtanh.pop %v2731
        %2734 = vrot.lane.b32.xlu0 %v2732, 32
        %v2735 = vpop.permute.xlu0 %2734
        %v2737 = vmul.f32 %v2719, %v2735
        %v2738 = vxor.u32 %v2713, 2147483648
        %v2739 = vmul.f32 %v2738, 1.442695
        %v2740 = vpow.pop %v2739
        %v2741 = vadd.f32 %v2740, 1.0
        %v2742 = vrcp.pop %v2741
        %v2743 = vmul.f32 1.0, %v2742
        %v2744 = vtanh.pop %v2713
        %v2745 = vmul.f32 %v2743, %v2599
        %2747 = vrot.lane.b32.xlu0 %v2744, 96
        %v2748 = vpop.permute.xlu0 %2747
        %v2750 = vmul.f32 %v2743, %v2748
        %2752 = vrot.lane.b32.xlu0 %v2750, 16
        %v2753 = vpop.permute.xlu0 %2752
        %v2755 = vadd.f32 %v2745, %v2753
        %v2756 = vtanh.pop %v2755
        %2758 = vrot.lane.b32.xlu0 %v2756, 32
        %v2759 = vpop.permute.xlu0 %2758
        %v2761 = vmul.f32 %v2743, %v2759
        %2763 = vrot.lane.b32.xlu0 %v2737, 80
        %v2764 = vpop.permute.xlu0 %2763
        %2766 = vst.msk [vmem:[#allocation4 + $0x5] sm:$0x1] %vm615, %v2764
        %2768 = vrot.lane.b32.xlu0 %v2761, 80
        %v2769 = vpop.permute.xlu0 %2768
        %2771 = vst.msk [vmem:[#allocation5 + $0x2] sm:$0x1] %vm615, %v2769
        %v2772 = vld [vmem:[#allocation2 + $0x6] sm:$0x1]
        %v2773 = vpack.c.bf16 %v2737, %v2737
        %2775 = vrot.lane.b32.xlu0 %v2773, 80
        %v2776 = vpop.permute.xlu0 %2775
        %v2778 = vsel %vm470, %v2776, 0
        %2780 = vmatprep.subr.bf16.mxu0 0
        %2781 = vmatpush1.bf16.msra.mxu0 0
        %2782 = vmatprep.subr.bf16.mxu0 0
        %2783 = vmatpush1.bf16.msra.mxu0 0
        %2784 = vmatprep.subr.bf16.mxu0 0
        %2785 = vmatpush1.bf16.msra.mxu0 0
        %2786 = vmatprep.subr.bf16.mxu0 0
        %2787 = vmatpush1.bf16.msra.mxu0 0
        %2788 = vmatprep.subr.bf16.mxu0 0
        %2789 = vmatpush1.bf16.msra.mxu0 0
        %2790 = vmatprep.subr.bf16.mxu0 0
        %2791 = vmatpush1.bf16.msra.mxu0 0
        %2792 = vmatprep.subr.bf16.mxu0 0
        %2793 = vmatpush1.bf16.msra.mxu0 0
        %2794 = vmatprep.subr.bf16.mxu0 0
        %2795 = vmatpush1.bf16.msra.mxu0 %v1843
        %2796 = vmatprep.subr.bf16.mxu0 0
        %2797 = vmatpush2.bf16.msra.mxu0 0
        %2798 = vmatprep.subr.bf16.mxu0 0
        %2799 = vmatpush2.bf16.msra.mxu0 0
        %2800 = vmatprep.subr.bf16.mxu0 0
        %2801 = vmatpush2.bf16.msra.mxu0 0
        %2802 = vmatprep.subr.bf16.mxu0 0
        %2803 = vmatpush2.bf16.msra.mxu0 0
        %2804 = vmatprep.subr.bf16.mxu0 0
        %2805 = vmatpush2.bf16.msra.mxu0 0
        %2806 = vmatprep.subr.bf16.mxu0 0
        %2807 = vmatpush2.bf16.msra.mxu0 0
        %2808 = vmatprep.subr.bf16.mxu0 0
        %2809 = vmatpush2.bf16.msra.mxu0 0
        %2810 = vmatprep.subr.bf16.mxu0 0
        %2811 = vmatpush2.bf16.msra.mxu0 0
        %2812 = vmatprep.mubr.bf16.mxu0 0
        %2813 = vmatmul.mubr.bf16.gmra.mxu0 %v2778
        %v2814 = vpop.f32.mrf.mxu0
        %v2815 = vadd.f32 0.0, %v2814
        %v2816 = vpop.f32.mrf.mxu0
        %v2817 = vpop.f32.mrf.mxu0
        %v2818 = vpop.f32.mrf.mxu0
        %2819 = vdwg.mxu0
        %v2820 = vadd.f32 %v2772, %v2815
        %v2821 = vld [vmem:[#allocation3 + $0x1] sm:$0x1]
        %v2822 = vpack.c.bf16 %v2761, %v2761
        %2824 = vrot.lane.b32.xlu0 %v2822, 80
        %v2825 = vpop.permute.xlu0 %2824
        %v2827 = vsel %vm470, %v2825, 0
        %2829 = vmatprep.subr.bf16.mxu0 0
        %2830 = vmatpush1.bf16.msra.mxu0 0
        %2831 = vmatprep.subr.bf16.mxu0 0
        %2832 = vmatpush1.bf16.msra.mxu0 0
        %2833 = vmatprep.subr.bf16.mxu0 0
        %2834 = vmatpush1.bf16.msra.mxu0 0
        %2835 = vmatprep.subr.bf16.mxu0 0
        %2836 = vmatpush1.bf16.msra.mxu0 0
        %2837 = vmatprep.subr.bf16.mxu0 0
        %2838 = vmatpush1.bf16.msra.mxu0 0
        %2839 = vmatprep.subr.bf16.mxu0 0
        %2840 = vmatpush1.bf16.msra.mxu0 0
        %2841 = vmatprep.subr.bf16.mxu0 0
        %2842 = vmatpush1.bf16.msra.mxu0 0
        %2843 = vmatprep.subr.bf16.mxu0 0
        %2844 = vmatpush1.bf16.msra.mxu0 %v1891
        %2845 = vmatprep.subr.bf16.mxu0 0
        %2846 = vmatpush2.bf16.msra.mxu0 0
        %2847 = vmatprep.subr.bf16.mxu0 0
        %2848 = vmatpush2.bf16.msra.mxu0 0
        %2849 = vmatprep.subr.bf16.mxu0 0
        %2850 = vmatpush2.bf16.msra.mxu0 0
        %2851 = vmatprep.subr.bf16.mxu0 0
        %2852 = vmatpush2.bf16.msra.mxu0 0
        %2853 = vmatprep.subr.bf16.mxu0 0
        %2854 = vmatpush2.bf16.msra.mxu0 0
        %2855 = vmatprep.subr.bf16.mxu0 0
        %2856 = vmatpush2.bf16.msra.mxu0 0
        %2857 = vmatprep.subr.bf16.mxu0 0
        %2858 = vmatpush2.bf16.msra.mxu0 0
        %2859 = vmatprep.subr.bf16.mxu0 0
        %2860 = vmatpush2.bf16.msra.mxu0 0
        %2861 = vmatprep.mubr.bf16.mxu0 0
        %2862 = vmatmul.mubr.bf16.gmra.mxu0 %v2827
        %v2863 = vpop.f32.mrf.mxu0
        %v2864 = vadd.f32 0.0, %v2863
        %v2865 = vpop.f32.mrf.mxu0
        %v2866 = vpop.f32.mrf.mxu0
        %v2867 = vpop.f32.mrf.mxu0
        %2868 = vdwg.mxu0
        %v2869 = vadd.f32 %v2821, %v2864
        %v2870 = vxor.u32 %v2820, 2147483648
        %v2871 = vmul.f32 %v2870, 1.442695
        %v2872 = vpow.pop %v2871
        %v2873 = vadd.f32 %v2872, 1.0
        %v2874 = vrcp.pop %v2873
        %v2875 = vmul.f32 1.0, %v2874
        %v2876 = vtanh.pop %v2820
        %v2877 = vmul.f32 %v2875, %v2731
        %2879 = vrot.lane.b32.xlu0 %v2876, 96
        %v2880 = vpop.permute.xlu0 %2879
        %v2882 = vmul.f32 %v2875, %v2880
        %2884 = vrot.lane.b32.xlu0 %v2882, 16
        %v2885 = vpop.permute.xlu0 %2884
        %v2887 = vadd.f32 %v2877, %v2885
        %v2888 = vtanh.pop %v2887
        %2890 = vrot.lane.b32.xlu0 %v2888, 32
        %v2891 = vpop.permute.xlu0 %2890
        %v2893 = vmul.f32 %v2875, %v2891
        %v2894 = vxor.u32 %v2869, 2147483648
        %v2895 = vmul.f32 %v2894, 1.442695
        %v2896 = vpow.pop %v2895
        %v2897 = vadd.f32 %v2896, 1.0
        %v2898 = vrcp.pop %v2897
        %v2899 = vmul.f32 1.0, %v2898
        %v2900 = vtanh.pop %v2869
        %v2901 = vmul.f32 %v2899, %v2755
        %2903 = vrot.lane.b32.xlu0 %v2900, 96
        %v2904 = vpop.permute.xlu0 %2903
        %v2906 = vmul.f32 %v2899, %v2904
        %2908 = vrot.lane.b32.xlu0 %v2906, 16
        %v2909 = vpop.permute.xlu0 %2908
        %v2911 = vadd.f32 %v2901, %v2909
        %v2912 = vtanh.pop %v2911
        %2914 = vrot.lane.b32.xlu0 %v2912, 32
        %v2915 = vpop.permute.xlu0 %2914
        %v2917 = vmul.f32 %v2899, %v2915
        %2919 = vrot.lane.b32.xlu0 %v2893, 80
        %v2920 = vpop.permute.xlu0 %2919
        %2922 = vst.msk [vmem:[#allocation4 + $0x6] sm:$0x1] %vm615, %v2920
        %2924 = vrot.lane.b32.xlu0 %v2917, 80
        %v2925 = vpop.permute.xlu0 %2924
        %2927 = vst.msk [vmem:[#allocation5 + $0x1] sm:$0x1] %vm615, %v2925
        %v2928 = vld [vmem:[#allocation2 + $0x7] sm:$0x1]
        %v2929 = vpack.c.bf16 %v2893, %v2893
        %2931 = vrot.lane.b32.xlu0 %v2929, 80
        %v2932 = vpop.permute.xlu0 %2931
        %v2934 = vsel %vm470, %v2932, 0
        %2936 = vmatprep.subr.bf16.mxu0 0
        %2937 = vmatpush1.bf16.msra.mxu0 0
        %2938 = vmatprep.subr.bf16.mxu0 0
        %2939 = vmatpush1.bf16.msra.mxu0 0
        %2940 = vmatprep.subr.bf16.mxu0 0
        %2941 = vmatpush1.bf16.msra.mxu0 0
        %2942 = vmatprep.subr.bf16.mxu0 0
        %2943 = vmatpush1.bf16.msra.mxu0 0
        %2944 = vmatprep.subr.bf16.mxu0 0
        %2945 = vmatpush1.bf16.msra.mxu0 0
        %2946 = vmatprep.subr.bf16.mxu0 0
        %2947 = vmatpush1.bf16.msra.mxu0 0
        %2948 = vmatprep.subr.bf16.mxu0 0
        %2949 = vmatpush1.bf16.msra.mxu0 0
        %2950 = vmatprep.subr.bf16.mxu0 0
        %2951 = vmatpush1.bf16.msra.mxu0 %v1843
        %2952 = vmatprep.subr.bf16.mxu0 0
        %2953 = vmatpush2.bf16.msra.mxu0 0
        %2954 = vmatprep.subr.bf16.mxu0 0
        %2955 = vmatpush2.bf16.msra.mxu0 0
        %2956 = vmatprep.subr.bf16.mxu0 0
        %2957 = vmatpush2.bf16.msra.mxu0 0
        %2958 = vmatprep.subr.bf16.mxu0 0
        %2959 = vmatpush2.bf16.msra.mxu0 0
        %2960 = vmatprep.subr.bf16.mxu0 0
        %2961 = vmatpush2.bf16.msra.mxu0 0
        %2962 = vmatprep.subr.bf16.mxu0 0
        %2963 = vmatpush2.bf16.msra.mxu0 0
        %2964 = vmatprep.subr.bf16.mxu0 0
        %2965 = vmatpush2.bf16.msra.mxu0 0
        %2966 = vmatprep.subr.bf16.mxu0 0
        %2967 = vmatpush2.bf16.msra.mxu0 0
        %2968 = vmatprep.mubr.bf16.mxu0 0
        %2969 = vmatmul.mubr.bf16.gmra.mxu0 %v2934
        %v2970 = vpop.f32.mrf.mxu0
        %v2971 = vadd.f32 0.0, %v2970
        %v2972 = vpop.f32.mrf.mxu0
        %v2973 = vpop.f32.mrf.mxu0
        %v2974 = vpop.f32.mrf.mxu0
        %2975 = vdwg.mxu0
        %v2976 = vadd.f32 %v2928, %v2971
        %v2977 = vld [vmem:[#allocation3] sm:$0x1]
        %v2978 = vpack.c.bf16 %v2917, %v2917
        %2980 = vrot.lane.b32.xlu0 %v2978, 80
        %v2981 = vpop.permute.xlu0 %2980
        %v2983 = vsel %vm470, %v2981, 0
        %2985 = vmatprep.subr.bf16.mxu0 0
        %2986 = vmatpush1.bf16.msra.mxu0 0
        %2987 = vmatprep.subr.bf16.mxu0 0
        %2988 = vmatpush1.bf16.msra.mxu0 0
        %2989 = vmatprep.subr.bf16.mxu0 0
        %2990 = vmatpush1.bf16.msra.mxu0 0
        %2991 = vmatprep.subr.bf16.mxu0 0
        %2992 = vmatpush1.bf16.msra.mxu0 0
        %2993 = vmatprep.subr.bf16.mxu0 0
        %2994 = vmatpush1.bf16.msra.mxu0 0
        %2995 = vmatprep.subr.bf16.mxu0 0
        %2996 = vmatpush1.bf16.msra.mxu0 0
        %2997 = vmatprep.subr.bf16.mxu0 0
        %2998 = vmatpush1.bf16.msra.mxu0 0
        %2999 = vmatprep.subr.bf16.mxu0 0
        %3000 = vmatpush1.bf16.msra.mxu0 %v1891
        %3001 = vmatprep.subr.bf16.mxu0 0
        %3002 = vmatpush2.bf16.msra.mxu0 0
        %3003 = vmatprep.subr.bf16.mxu0 0
        %3004 = vmatpush2.bf16.msra.mxu0 0
        %3005 = vmatprep.subr.bf16.mxu0 0
        %3006 = vmatpush2.bf16.msra.mxu0 0
        %3007 = vmatprep.subr.bf16.mxu0 0
        %3008 = vmatpush2.bf16.msra.mxu0 0
        %3009 = vmatprep.subr.bf16.mxu0 0
        %3010 = vmatpush2.bf16.msra.mxu0 0
        %3011 = vmatprep.subr.bf16.mxu0 0
        %3012 = vmatpush2.bf16.msra.mxu0 0
        %3013 = vmatprep.subr.bf16.mxu0 0
        %3014 = vmatpush2.bf16.msra.mxu0 0
        %3015 = vmatprep.subr.bf16.mxu0 0
        %3016 = vmatpush2.bf16.msra.mxu0 0
        %3017 = vmatprep.mubr.bf16.mxu0 0
        %3018 = vmatmul.mubr.bf16.gmra.mxu0 %v2983
        %v3019 = vpop.f32.mrf.mxu0
        %v3020 = vadd.f32 0.0, %v3019
        %v3021 = vpop.f32.mrf.mxu0
        %v3022 = vpop.f32.mrf.mxu0
        %v3023 = vpop.f32.mrf.mxu0
        %3024 = vdwg.mxu0
        %v3025 = vadd.f32 %v2977, %v3020
        %v3026 = vxor.u32 %v2976, 2147483648
        %v3027 = vmul.f32 %v3026, 1.442695
        %v3028 = vpow.pop %v3027
        %v3029 = vadd.f32 %v3028, 1.0
        %v3030 = vrcp.pop %v3029
        %v3031 = vmul.f32 1.0, %v3030
        %v3032 = vtanh.pop %v2976
        %v3033 = vmul.f32 %v3031, %v2887
        %3035 = vrot.lane.b32.xlu0 %v3032, 96
        %v3036 = vpop.permute.xlu0 %3035
        %v3038 = vmul.f32 %v3031, %v3036
        %3040 = vrot.lane.b32.xlu0 %v3038, 16
        %v3041 = vpop.permute.xlu0 %3040
        %v3043 = vadd.f32 %v3033, %v3041
        %v3044 = vtanh.pop %v3043
        %3046 = vrot.lane.b32.xlu0 %v3044, 32
        %v3047 = vpop.permute.xlu0 %3046
        %v3049 = vmul.f32 %v3031, %v3047
        %v3050 = vxor.u32 %v3025, 2147483648
        %v3051 = vmul.f32 %v3050, 1.442695
        %v3052 = vpow.pop %v3051
        %v3053 = vadd.f32 %v3052, 1.0
        %v3054 = vrcp.pop %v3053
        %v3055 = vmul.f32 1.0, %v3054
        %v3056 = vtanh.pop %v3025
        %v3057 = vmul.f32 %v3055, %v2911
        %3059 = vrot.lane.b32.xlu0 %v3056, 96
        %v3060 = vpop.permute.xlu0 %3059
        %v3062 = vmul.f32 %v3055, %v3060
        %3064 = vrot.lane.b32.xlu0 %v3062, 16
        %v3065 = vpop.permute.xlu0 %3064
        %v3067 = vadd.f32 %v3057, %v3065
        %v3068 = vtanh.pop %v3067
        %3070 = vrot.lane.b32.xlu0 %v3068, 32
        %v3071 = vpop.permute.xlu0 %3070
        %v3073 = vmul.f32 %v3055, %v3071
        %3075 = vrot.lane.b32.xlu0 %v3049, 80
        %v3076 = vpop.permute.xlu0 %3075
        %3078 = vst.msk [vmem:[#allocation4 + $0x7] sm:$0x1] %vm615, %v3076
        %3080 = vrot.lane.b32.xlu0 %v3073, 80
        %v3081 = vpop.permute.xlu0 %3080
        %3083 = vst.msk [vmem:[#allocation5] sm:$0x1] %vm615, %v3081
        %v3084 = vld [vmem:[#allocation4] sm:$0xff]
        %v3085 = vld [vmem:[#allocation5] sm:$0xff]
        %3087 = vrot.lane.b32.xlu0 %v3085, 16
        %v3088 = vpop.permute.xlu0 %3087
        %v3090 = vsel %vm470, %v3084, %v3088
        %v3091 = vsel %vm408, %v3090, 0.0
        %3092 = vadd.xlane.f32.xlu0 %v3091
        %v3093 = vpop.xlane.xlu0 %3092
        %v3094 = vrcp.pop 32.0
        %v3095 = vmul.f32 %v3093, %v3094
        %v3096 = vsub.f32 %v3090, %v3095
        %v3097 = vmul.f32 %v3096, %v3096
        %v3098 = vsel %vm408, %v3097, 0.0
        %3099 = vadd.xlane.f32.xlu0 %v3098
        %v3100 = vpop.xlane.xlu0 %3099
        %v3101 = vmul.f32 %v3100, %v3094
        %v3102 = vadd.f32 %v3101, 1e-05
        %v3103 = vrsqrt.pop %v3102
        %v3104 = vmul.f32 %v3096, %v3103
        %v3105 = vld [vmem:[%s9] sm:$0x1]
        %v3107 = vlaneseq
        %v3108 = vshrl.u32 %v3107, 7
        %v3109 = vsub.s32 0, %v3108
        %v3110 = vrot.slane %v3105, %v3109
        %v3112 = vmul.f32 %v3104, %v3110
        %v3113 = vld [vmem:[%s10] sm:$0x1]
        %v3115 = vlaneseq
        %v3116 = vshrl.u32 %v3115, 7
        %v3117 = vsub.s32 0, %v3116
        %v3118 = vrot.slane %v3113, %v3117
        %v3120 = vadd.f32 %v3112, %v3118
        %vm3121 = vcmask 253952
        %3122 = vst.msk [vmem:[%s377] sm:$0x1] %vm3121, %v3120
        %vm3123 = vcmask 254977
        %3124 = vst.msk [vmem:[%s377] sm:$0x2] %vm3123, %v3120
        %vm3125 = vcmask 256002
        %3126 = vst.msk [vmem:[%s377] sm:$0x4] %vm3125, %v3120
        %vm3127 = vcmask 257027
        %3128 = vst.msk [vmem:[%s377] sm:$0x8] %vm3127, %v3120
        %vm3129 = vcmask 258052
        %3130 = vst.msk [vmem:[%s377] sm:$0x10] %vm3129, %v3120
        %vm3131 = vcmask 259077
        %3132 = vst.msk [vmem:[%s377] sm:$0x20] %vm3131, %v3120
        %vm3133 = vcmask 260102
        %3134 = vst.msk [vmem:[%s377] sm:$0x40] %vm3133, %v3120
        %vm3135 = vcmask 261127
        %3136 = vst.msk [vmem:[%s377] sm:$0x80] %vm3135, %v3120
        %s3137 = sand.u32 %s269, 1
        %s3138 = scalar_lea.sflag [#allocation7], %s3137
        %s3139 = sand.u32 %s269, 1
        %s3140 = smul.addr %s3139, 8
        %s3141 = scalar_lea.vmem [#allocation6], %s3140
        // Predicated region
        $region65: #{entity_context_encoder_forward.3} parent=63 // pred_check
          %p3142 = pneg %p279
        $region66: #{entity_context_encoder_forward.3} parent=63 // pred_check_branch
          %3144 = sbr.rel (%p3142) target = $region68
        $region67: #{entity_context_encoder_forward.3} parent=63 // pred_region
          %s3146 = ssub.s32 128, 128
          %3147 = vsyncadd %s3138, %s3146
          %s3148 = smul.addr %s25, 128
          %s3149 = scalar_lea.hbm %s11, %s3148
          %s3151 = sshll.u32 %s3141, 4
          %s3152 = int_to_ptr.vmem [resolvable:$true] %s3151
          %3154 = dma.vmem_to_hbm [thread:$0]  %s3152, 128, %s3149, %s3138
        $region68: #{entity_context_encoder_forward.3} parent=63 // pred_fallthru
          _
      $region64: #{entity_context_encoder_forward.3} parent=5 // pred_fallthru
        _
      %p3155 = scmp.le.s32.totalorder 2, %s20
      // Predicated region
      $region69: #{entity_context_encoder_forward.3} parent=5 // pred_check
        %p3156 = pneg %p3155
      $region70: #{entity_context_encoder_forward.3} parent=5 // pred_check_branch
        %3158 = sbr.rel (%p3156) target = $region72
      $region71: #{entity_context_encoder_forward.3} parent=5 // pred_region
        %s3159 = ssub.s32 %s20, 2
        // Predicated region
        $region73: #{entity_context_encoder_forward.3} parent=71 // pred_check
          %p3160 = pneg %p285
        $region74: #{entity_context_encoder_forward.3} parent=71 // pred_check_branch
          %3162 = sbr.rel (%p3160) target = $region76
        $region75: #{entity_context_encoder_forward.3} parent=71 // pred_region
          %s3163 = sand.u32 %s270, 1
          %s3164 = scalar_lea.sflag [#allocation7], %s3163
          %s3165 = sand.u32 %s270, 1
          %s3166 = smul.addr %s3165, 8
          %s3167 = scalar_lea.vmem [#allocation6], %s3166
          %3168 = dma.done %s3164, 128
        $region76: #{entity_context_encoder_forward.3} parent=71 // pred_fallthru
          _
      $region72: #{entity_context_encoder_forward.3} parent=5 // pred_fallthru
        _
    $region6: #{entity_context_encoder_forward.3} parent=1 // loop_footer
      %s24 = sadd.s32 1, %s20
    $region7: #{entity_context_encoder_forward.3} parent=1 // loop_footer_branch
      %19 = sbr.rel target = $region3
    $region8: #{entity_context_encoder_forward.3} parent=1 // loop_exit
      _
    %3169 = vsyncpa [#allocation7], 1
    %s3170 = scalar_lea.sflag [#allocation7], 1
    %3171 = vsyncpa %s3170, 1

// kernel: entity_context_encoder_forward.2
$region0: #{entity_context_encoder_forward.2}
  #allocation0 [shape = 'u32[]', space=smem, size = 0x4, offset = 0x4, fixed_abs, tag = 'smem constant byte address 0x4 - core index']
  #allocation1 [shape = 'u32[144,128]{1,0:T(1,128)}', space=vmem, size = 0x12000, scoped, tag = 'internal scratch']
  %s0 = inlined_call_operand.vmem [shape: f32[8,32], index: 0, kind: input, shape index: {}]
  %s1 = inlined_call_operand.vmem [shape: bf16[32,64], index: 1, kind: input, shape index: {}]
  %s2 = inlined_call_operand.vmem [shape: f32[1,64], index: 2, kind: input, shape index: {}]
  %s3 = inlined_call_operand.vmem [shape: bf16[64,512], index: 3, kind: input, shape index: {}]
  %s4 = inlined_call_operand.vmem [shape: f32[1,512], index: 4, kind: input, shape index: {}]
  %s5 = inlined_call_operand.hbm [shape: bf16[512,1024], index: 5, kind: input, shape index: {}]
  %s6 = inlined_call_operand.vmem [shape: f32[1,1024], index: 6, kind: input, shape index: {}]
  %s7 = inlined_call_operand.vmem [shape: bf16[1024,128], index: 7, kind: input, shape index: {}]
  %s8 = inlined_call_operand.vmem [shape: f32[1,128], index: 8, kind: input, shape index: {}]
  %s9 = inlined_call_operand.hbm [shape: f32[8,128], index: 9, kind: output, shape index: {}]
  %s10 = sld [smem:[#allocation0]]
  $region50: #{entity_context_encoder_forward.2} parent=0
    _
  %s12 = ssub.s32 1, %s10
  %s13 = scalar_select 0, %s12, %s10
  $region1: #{entity_context_encoder_forward.2} parent=0
    #allocation2 [shape = 'u8[1048576]{0}', space=vmem, size = 0x100000, scoped, tag = 'input window, operand 5, single buffered']
    #allocation3 [shape = 's32[1]{0}', space=sflag, size = 0x4, scoped, tag = 'scoped memory for entity_context_encoder_forward.2']
    #allocation4 [shape = 's32[1]{0}', space=sflag, size = 0x4, scoped, tag = 'scoped memory for entity_context_encoder_forward.2']
    #allocation5 [shape = 'u8[4096]{0}', space=vmem, size = 0x1000, scoped, tag = 'output window, operand 0, single buffered']
    %14 = vsyncpa [#allocation3], 0
    %15 = vsyncpa [#allocation4], 0
    // Predicated region
    $region2: #{entity_context_encoder_forward.2} parent=1 // pred_check
      _
    $region3: #{entity_context_encoder_forward.2} parent=1 // pred_check_branch
      %17 = sbr.rel (0) target = $region5
    $region4: #{entity_context_encoder_forward.2} parent=1 // pred_region
      _
    $region5: #{entity_context_encoder_forward.2} parent=1 // pred_fallthru
      _
    // Predicated region
    $region6: #{entity_context_encoder_forward.2} parent=1 // pred_check
      _
    $region7: #{entity_context_encoder_forward.2} parent=1 // pred_check_branch
      %19 = sbr.rel (0) target = $region9
    $region8: #{entity_context_encoder_forward.2} parent=1 // pred_region
      _
    $region9: #{entity_context_encoder_forward.2} parent=1 // pred_fallthru
      _
    // Predicated region
    $region10: #{entity_context_encoder_forward.2} parent=1 // pred_check
      _
    $region11: #{entity_context_encoder_forward.2} parent=1 // pred_check_branch
      %21 = sbr.rel (0) target = $region13
    $region12: #{entity_context_encoder_forward.2} parent=1 // pred_region
      _
    $region13: #{entity_context_encoder_forward.2} parent=1 // pred_fallthru
      _
    // Predicated region
    $region14: #{entity_context_encoder_forward.2} parent=1 // pred_check
      _
    $region15: #{entity_context_encoder_forward.2} parent=1 // pred_check_branch
      %23 = sbr.rel (0) target = $region17
    $region16: #{entity_context_encoder_forward.2} parent=1 // pred_region
      _
    $region17: #{entity_context_encoder_forward.2} parent=1 // pred_fallthru
      _
    // Predicated region
    $region18: #{entity_context_encoder_forward.2} parent=1 // pred_check
      _
    $region19: #{entity_context_encoder_forward.2} parent=1 // pred_check_branch
      %25 = sbr.rel (0) target = $region21
    $region20: #{entity_context_encoder_forward.2} parent=1 // pred_region
      _
    $region21: #{entity_context_encoder_forward.2} parent=1 // pred_fallthru
      _
    // Predicated region
    $region22: #{entity_context_encoder_forward.2} parent=1 // pred_check
      _
    $region23: #{entity_context_encoder_forward.2} parent=1 // pred_check_branch
      %27 = sbr.rel (0) target = $region25
    $region24: #{entity_context_encoder_forward.2} parent=1 // pred_region
      %s29 = ssub.s32 32768, 32768
      %30 = vsyncadd [#allocation3], %s29
      %s31 = sshll.u32 [#allocation2], 4
      %s32 = int_to_ptr.vmem [resolvable:$true] %s31
      %37 = dma.hbm_to_vmem [thread:$0]  %s5, 32768, %s32, [#allocation3], 512, 512, 32
    $region25: #{entity_context_encoder_forward.2} parent=1 // pred_fallthru
      _
    // Predicated region
    $region26: #{entity_context_encoder_forward.2} parent=1 // pred_check
      _
    $region27: #{entity_context_encoder_forward.2} parent=1 // pred_check_branch
      %39 = sbr.rel (0) target = $region29
    $region28: #{entity_context_encoder_forward.2} parent=1 // pred_region
      _
    $region29: #{entity_context_encoder_forward.2} parent=1 // pred_fallthru
      _
    // Predicated region
    $region30: #{entity_context_encoder_forward.2} parent=1 // pred_check
      _
    $region31: #{entity_context_encoder_forward.2} parent=1 // pred_check_branch
      %41 = sbr.rel (0) target = $region33
    $region32: #{entity_context_encoder_forward.2} parent=1 // pred_region
      _
    $region33: #{entity_context_encoder_forward.2} parent=1 // pred_fallthru
      _
    // Predicated region
    $region34: #{entity_context_encoder_forward.2} parent=1 // pred_check
      _
    $region35: #{entity_context_encoder_forward.2} parent=1 // pred_check_branch
      %43 = sbr.rel (0) target = $region37
    $region36: #{entity_context_encoder_forward.2} parent=1 // pred_region
      _
    $region37: #{entity_context_encoder_forward.2} parent=1 // pred_fallthru
      _
    // Predicated region
    $region38: #{entity_context_encoder_forward.2} parent=1 // pred_check
      _
    $region39: #{entity_context_encoder_forward.2} parent=1 // pred_check_branch
      %45 = sbr.rel (0) target = $region41
    $region40: #{entity_context_encoder_forward.2} parent=1 // pred_region
      %46 = dma.done [#allocation3], 32768
    $region41: #{entity_context_encoder_forward.2} parent=1 // pred_fallthru
      _
    %v48 = vld [vmem:[%s0] sm:$0xff]
    %v49 = vpack.c.bf16 %v48, %v48
    %v50 = vld [vmem:[%s1] sm:$0xf]
    %v51 = vld [vmem:[%s1 + $0x4] sm:$0xf]
    %v52 = vld [vmem:[%s1 + $0x8] sm:$0xf]
    %v53 = vld [vmem:[%s1 + $0xc] sm:$0xf]
    %v54 = vld [vmem:[%s2] sm:$0x1]
    %v56 = vlaneseq
    %v57 = vshrl.u32 %v56, 7
    %v58 = vsub.s32 0, %v57
    %v59 = vrot.slane %v54, %v58
    %v65 = vunpack.c.l.b16 %v50
    %v66 = vunpack.c.l.b16 %v51
    %v67 = vunpack.c.l.b16 %v52
    %v68 = vunpack.c.l.b16 %v53
    %v69 = vpack.c.b16 %v66, %v65
    %v70 = vpack.c.b16 %v68, %v67
    %vm73 = vcmask 261120
    %v75 = vsel %vm73, %v49, 0
    %77 = vmatprep.subr.bf16.mxu0 0
    %78 = vmatpush1.bf16.msra.mxu0 0
    %79 = vmatprep.subr.bf16.mxu0 0
    %80 = vmatpush1.bf16.msra.mxu0 0
    %81 = vmatprep.subr.bf16.mxu0 0
    %82 = vmatpush1.bf16.msra.mxu0 0
    %83 = vmatprep.subr.bf16.mxu0 0
    %84 = vmatpush1.bf16.msra.mxu0 0
    %85 = vmatprep.subr.bf16.mxu0 0
    %86 = vmatpush1.bf16.msra.mxu0 0
    %87 = vmatprep.subr.bf16.mxu0 0
    %88 = vmatpush1.bf16.msra.mxu0 0
    %89 = vmatprep.subr.bf16.mxu0 0
    %90 = vmatpush1.bf16.msra.mxu0 %v70
    %91 = vmatprep.subr.bf16.mxu0 0
    %92 = vmatpush1.bf16.msra.mxu0 %v69
    %93 = vmatprep.subr.bf16.mxu0 0
    %94 = vmatpush2.bf16.msra.mxu0 0
    %95 = vmatprep.subr.bf16.mxu0 0
    %96 = vmatpush2.bf16.msra.mxu0 0
    %97 = vmatprep.subr.bf16.mxu0 0
    %98 = vmatpush2.bf16.msra.mxu0 0
    %99 = vmatprep.subr.bf16.mxu0 0
    %100 = vmatpush2.bf16.msra.mxu0 0
    %101 = vmatprep.subr.bf16.mxu0 0
    %102 = vmatpush2.bf16.msra.mxu0 0
    %103 = vmatprep.subr.bf16.mxu0 0
    %104 = vmatpush2.bf16.msra.mxu0 0
    %105 = vmatprep.subr.bf16.mxu0 0
    %106 = vmatpush2.bf16.msra.mxu0 0
    %107 = vmatprep.subr.bf16.mxu0 0
    %108 = vmatpush2.bf16.msra.mxu0 0
    %109 = vmatprep.mubr.bf16.mxu0 0
    %110 = vmatmul.mubr.bf16.gmra.mxu0 %v75
    %v111 = vpop.f32.mrf.mxu0
    %v112 = vadd.f32 %v59, %v111
    %v113 = vpop.f32.mrf.mxu0
    %v114 = vpop.f32.mrf.mxu0
    %v115 = vpop.f32.mrf.mxu0
    %116 = vdwg.mxu0
    %v117 = vpack.c.bf16 %v112, %v112
    %v118 = vld [vmem:[%s3] sm:$0xff]
    %v119 = vld [vmem:[%s3 + $0x8] sm:$0xff]
    %v120 = vld [vmem:[%s3 + $0x10] sm:$0xff]
    %v121 = vld [vmem:[%s3 + $0x18] sm:$0xff]
    %v122 = vld [vmem:[%s3 + $0x20] sm:$0xff]
    %v123 = vld [vmem:[%s3 + $0x28] sm:$0xff]
    %v124 = vld [vmem:[%s3 + $0x30] sm:$0xff]
    %v125 = vld [vmem:[%s3 + $0x38] sm:$0xff]
    %v126 = vld [vmem:[%s3 + $0x40] sm:$0xff]
    %v127 = vld [vmem:[%s3 + $0x48] sm:$0xff]
    %v128 = vld [vmem:[%s3 + $0x50] sm:$0xff]
    %v129 = vld [vmem:[%s3 + $0x58] sm:$0xff]
    %v130 = vld [vmem:[%s3 + $0x60] sm:$0xff]
    %v131 = vld [vmem:[%s3 + $0x68] sm:$0xff]
    %v132 = vld [vmem:[%s3 + $0x70] sm:$0xff]
    %v133 = vld [vmem:[%s3 + $0x78] sm:$0xff]
    %v134 = vld [vmem:[%s4] sm:$0xf]
    %v136 = vlaneseq
    %v137 = vshrl.u32 %v136, 7
    %v138 = vsub.s32 0, %v137
    %v139 = vrot.slane %v134, %v138
    %v140 = vlaneseq
    %v141 = vshrl.u32 %v140, 7
    %v142 = vsub.s32 1, %v141
    %v143 = vrot.slane %v134, %v142
    %v144 = vlaneseq
    %v145 = vshrl.u32 %v144, 7
    %v146 = vsub.s32 2, %v145
    %v147 = vrot.slane %v134, %v146
    %v148 = vlaneseq
    %v149 = vshrl.u32 %v148, 7
    %v150 = vsub.s32 3, %v149
    %v151 = vrot.slane %v134, %v150
    %v172 = vunpack.c.l.b16 %v118
    %v173 = vunpack.c.h.b16 %v118
    %v174 = vunpack.c.l.b16 %v119
    %v175 = vunpack.c.h.b16 %v119
    %v176 = vunpack.c.l.b16 %v120
    %v177 = vunpack.c.h.b16 %v120
    %v178 = vunpack.c.l.b16 %v121
    %v179 = vunpack.c.h.b16 %v121
    %v180 = vunpack.c.l.b16 %v122
    %v181 = vunpack.c.h.b16 %v122
    %v182 = vunpack.c.l.b16 %v123
    %v183 = vunpack.c.h.b16 %v123
    %v184 = vunpack.c.l.b16 %v124
    %v185 = vunpack.c.h.b16 %v124
    %v186 = vunpack.c.l.b16 %v125
    %v187 = vunpack.c.h.b16 %v125
    %v188 = vunpack.c.l.b16 %v126
    %v189 = vunpack.c.h.b16 %v126
    %v190 = vunpack.c.l.b16 %v127
    %v191 = vunpack.c.h.b16 %v127
    %v192 = vunpack.c.l.b16 %v128
    %v193 = vunpack.c.h.b16 %v128
    %v194 = vunpack.c.l.b16 %v129
    %v195 = vunpack.c.h.b16 %v129
    %v196 = vunpack.c.l.b16 %v130
    %v197 = vunpack.c.h.b16 %v130
    %v198 = vunpack.c.l.b16 %v131
    %v199 = vunpack.c.h.b16 %v131
    %v200 = vunpack.c.l.b16 %v132
    %v201 = vunpack.c.h.b16 %v132
    %v202 = vunpack.c.l.b16 %v133
    %v203 = vunpack.c.h.b16 %v133
    %v204 = vpack.c.b16 %v176, %v172
    %v205 = vpack.c.b16 %v177, %v173
    %v206 = vpack.c.b16 %v178, %v174
    %v207 = vpack.c.b16 %v179, %v175
    %v208 = vpack.c.b16 %v184, %v180
    %v209 = vpack.c.b16 %v185, %v181
    %v210 = vpack.c.b16 %v186, %v182
    %v211 = vpack.c.b16 %v187, %v183
    %v212 = vpack.c.b16 %v192, %v188
    %v213 = vpack.c.b16 %v193, %v189
    %v214 = vpack.c.b16 %v194, %v190
    %v215 = vpack.c.b16 %v195, %v191
    %v216 = vpack.c.b16 %v200, %v196
    %v217 = vpack.c.b16 %v201, %v197
    %v218 = vpack.c.b16 %v202, %v198
    %v219 = vpack.c.b16 %v203, %v199
    %vm236 = vcmask 523264
    %v238 = vsel %vm236, %v117, 0
    %240 = vmatprep.subr.bf16.mxu0 0
    %241 = vmatpush1.bf16.msra.mxu0 0
    %242 = vmatprep.subr.bf16.mxu0 0
    %243 = vmatpush1.bf16.msra.mxu0 0
    %244 = vmatprep.subr.bf16.mxu0 0
    %245 = vmatpush1.bf16.msra.mxu0 0
    %246 = vmatprep.subr.bf16.mxu0 0
    %247 = vmatpush1.bf16.msra.mxu0 0
    %248 = vmatprep.subr.bf16.mxu0 %v217
    %249 = vmatpush1.bf16.msra.mxu0 %v216
    %250 = vmatprep.subr.bf16.mxu0 %v213
    %251 = vmatpush1.bf16.msra.mxu0 %v212
    %252 = vmatprep.subr.bf16.mxu0 %v209
    %253 = vmatpush1.bf16.msra.mxu0 %v208
    %254 = vmatprep.subr.bf16.mxu0 %v205
    %255 = vmatpush1.bf16.msra.mxu0 %v204
    %256 = vmatprep.subr.bf16.mxu0 0
    %257 = vmatpush2.bf16.msra.mxu0 0
    %258 = vmatprep.subr.bf16.mxu0 0
    %259 = vmatpush2.bf16.msra.mxu0 0
    %260 = vmatprep.subr.bf16.mxu0 0
    %261 = vmatpush2.bf16.msra.mxu0 0
    %262 = vmatprep.subr.bf16.mxu0 0
    %263 = vmatpush2.bf16.msra.mxu0 0
    %264 = vmatprep.subr.bf16.mxu0 0
    %265 = vmatpush2.bf16.msra.mxu0 0
    %266 = vmatprep.subr.bf16.mxu0 0
    %267 = vmatpush2.bf16.msra.mxu0 0
    %268 = vmatprep.subr.bf16.mxu0 0
    %269 = vmatpush2.bf16.msra.mxu0 0
    %270 = vmatprep.subr.bf16.mxu0 0
    %271 = vmatpush2.bf16.msra.mxu0 0
    %272 = vmatprep.mubr.bf16.mxu0 0
    %273 = vmatmul.mubr.bf16.gmra.mxu0 %v238
    %v274 = vpop.f32.mrf.mxu0
    %v275 = vadd.f32 %v139, %v274
    %v276 = vpop.f32.mrf.mxu0
    %v277 = vadd.f32 %v143, %v276
    %v278 = vpop.f32.mrf.mxu0
    %v279 = vpop.f32.mrf.mxu0
    %280 = vdwg.mxu0
    %281 = vmatprep.subr.bf16.mxu0 0
    %282 = vmatpush1.bf16.msra.mxu0 0
    %283 = vmatprep.subr.bf16.mxu0 0
    %284 = vmatpush1.bf16.msra.mxu0 0
    %285 = vmatprep.subr.bf16.mxu0 0
    %286 = vmatpush1.bf16.msra.mxu0 0
    %287 = vmatprep.subr.bf16.mxu0 0
    %288 = vmatpush1.bf16.msra.mxu0 0
    %289 = vmatprep.subr.bf16.mxu0 %v219
    %290 = vmatpush1.bf16.msra.mxu0 %v218
    %291 = vmatprep.subr.bf16.mxu0 %v215
    %292 = vmatpush1.bf16.msra.mxu0 %v214
    %293 = vmatprep.subr.bf16.mxu0 %v211
    %294 = vmatpush1.bf16.msra.mxu0 %v210
    %295 = vmatprep.subr.bf16.mxu0 %v207
    %296 = vmatpush1.bf16.msra.mxu0 %v206
    %297 = vmatprep.subr.bf16.mxu0 0
    %298 = vmatpush2.bf16.msra.mxu0 0
    %299 = vmatprep.subr.bf16.mxu0 0
    %300 = vmatpush2.bf16.msra.mxu0 0
    %301 = vmatprep.subr.bf16.mxu0 0
    %302 = vmatpush2.bf16.msra.mxu0 0
    %303 = vmatprep.subr.bf16.mxu0 0
    %304 = vmatpush2.bf16.msra.mxu0 0
    %305 = vmatprep.subr.bf16.mxu0 0
    %306 = vmatpush2.bf16.msra.mxu0 0
    %307 = vmatprep.subr.bf16.mxu0 0
    %308 = vmatpush2.bf16.msra.mxu0 0
    %309 = vmatprep.subr.bf16.mxu0 0
    %310 = vmatpush2.bf16.msra.mxu0 0
    %311 = vmatprep.subr.bf16.mxu0 0
    %312 = vmatpush2.bf16.msra.mxu0 0
    %313 = vmatprep.mubr.bf16.mxu0 0
    %314 = vmatmul.mubr.bf16.gmra.mxu0 %v238
    %v315 = vpop.f32.mrf.mxu0
    %v316 = vadd.f32 %v147, %v315
    %v317 = vpop.f32.mrf.mxu0
    %v318 = vadd.f32 %v151, %v317
    %v319 = vpop.f32.mrf.mxu0
    %v320 = vpop.f32.mrf.mxu0
    %321 = vdwg.mxu0
    %v322 = vmax.f32 %v275, 0.0
    %v323 = vmax.f32 %v277, 0.0
    %v324 = vmax.f32 %v316, 0.0
    %v325 = vmax.f32 %v318, 0.0
    %v326 = vpack.c.bf16 %v322, %v322
    %v327 = vpack.c.bf16 %v323, %v323
    %v328 = vpack.c.bf16 %v324, %v324
    %v329 = vpack.c.bf16 %v325, %v325
    %v330 = vld [vmem:[#allocation2] sm:$0xff]
    %v331 = vld [vmem:[#allocation2 + $0x8] sm:$0xff]
    %v332 = vld [vmem:[#allocation2 + $0x10] sm:$0xff]
    %v333 = vld [vmem:[#allocation2 + $0x18] sm:$0xff]
    %v334 = vld [vmem:[#allocation2 + $0x20] sm:$0xff]
    %v335 = vld [vmem:[#allocation2 + $0x28] sm:$0xff]
    %v336 = vld [vmem:[#allocation2 + $0x30] sm:$0xff]
    %v337 = vld [vmem:[#allocation2 + $0x38] sm:$0xff]
    %v338 = vld [vmem:[#allocation2 + $0x40] sm:$0xff]
    %v339 = vld [vmem:[#allocation2 + $0x48] sm:$0xff]
    %v340 = vld [vmem:[#allocation2 + $0x50] sm:$0xff]
    %v341 = vld [vmem:[#allocation2 + $0x58] sm:$0xff]
    %v342 = vld [vmem:[#allocation2 + $0x60] sm:$0xff]
    %v343 = vld [vmem:[#allocation2 + $0x68] sm:$0xff]
    %v344 = vld [vmem:[#allocation2 + $0x70] sm:$0xff]
    %v345 = vld [vmem:[#allocation2 + $0x78] sm:$0xff]
    %v346 = vld [vmem:[#allocation2 + $0x80] sm:$0xff]
    %v347 = vld [vmem:[#allocation2 + $0x88] sm:$0xff]
    %v348 = vld [vmem:[#allocation2 + $0x90] sm:$0xff]
    %v349 = vld [vmem:[#allocation2 + $0x98] sm:$0xff]
    %v350 = vld [vmem:[#allocation2 + $0xa0] sm:$0xff]
    %v351 = vld [vmem:[#allocation2 + $0xa8] sm:$0xff]
    %v352 = vld [vmem:[#allocation2 + $0xb0] sm:$0xff]
    %v353 = vld [vmem:[#allocation2 + $0xb8] sm:$0xff]
    %v354 = vld [vmem:[#allocation2 + $0xc0] sm:$0xff]
    %v355 = vld [vmem:[#allocation2 + $0xc8] sm:$0xff]
    %v356 = vld [vmem:[#allocation2 + $0xd0] sm:$0xff]
    %v357 = vld [vmem:[#allocation2 + $0xd8] sm:$0xff]
    %v358 = vld [vmem:[#allocation2 + $0xe0] sm:$0xff]
    %v359 = vld [vmem:[#allocation2 + $0xe8] sm:$0xff]
    %v360 = vld [vmem:[#allocation2 + $0xf0] sm:$0xff]
    %v361 = vld [vmem:[#allocation2 + $0xf8] sm:$0xff]
    %v362 = vld [vmem:[#allocation2 + $0x100] sm:$0xff]
    %v363 = vld [vmem:[#allocation2 + $0x108] sm:$0xff]
    %v364 = vld [vmem:[#allocation2 + $0x110] sm:$0xff]
    %v365 = vld [vmem:[#allocation2 + $0x118] sm:$0xff]
    %v366 = vld [vmem:[#allocation2 + $0x120] sm:$0xff]
    %v367 = vld [vmem:[#allocation2 + $0x128] sm:$0xff]
    %v368 = vld [vmem:[#allocation2 + $0x130] sm:$0xff]
    %v369 = vld [vmem:[#allocation2 + $0x138] sm:$0xff]
    %v370 = vld [vmem:[#allocation2 + $0x140] sm:$0xff]
    %v371 = vld [vmem:[#allocation2 + $0x148] sm:$0xff]
    %v372 = vld [vmem:[#allocation2 + $0x150] sm:$0xff]
    %v373 = vld [vmem:[#allocation2 + $0x158] sm:$0xff]
    %v374 = vld [vmem:[#allocation2 + $0x160] sm:$0xff]
    %v375 = vld [vmem:[#allocation2 + $0x168] sm:$0xff]
    %v376 = vld [vmem:[#allocation2 + $0x170] sm:$0xff]
    %v377 = vld [vmem:[#allocation2 + $0x178] sm:$0xff]
    %v378 = vld [vmem:[#allocation2 + $0x180] sm:$0xff]
    %v379 = vld [vmem:[#allocation2 + $0x188] sm:$0xff]
    %v380 = vld [vmem:[#allocation2 + $0x190] sm:$0xff]
    %v381 = vld [vmem:[#allocation2 + $0x198] sm:$0xff]
    %v382 = vld [vmem:[#allocation2 + $0x1a0] sm:$0xff]
    %v383 = vld [vmem:[#allocation2 + $0x1a8] sm:$0xff]
    %v384 = vld [vmem:[#allocation2 + $0x1b0] sm:$0xff]
    %v385 = vld [vmem:[#allocation2 + $0x1b8] sm:$0xff]
    %v386 = vld [vmem:[#allocation2 + $0x1c0] sm:$0xff]
    %v387 = vld [vmem:[#allocation2 + $0x1c8] sm:$0xff]
    %v388 = vld [vmem:[#allocation2 + $0x1d0] sm:$0xff]
    %v389 = vld [vmem:[#allocation2 + $0x1d8] sm:$0xff]
    %v390 = vld [vmem:[#allocation2 + $0x1e0] sm:$0xff]
    %v391 = vld [vmem:[#allocation2 + $0x1e8] sm:$0xff]
    %v392 = vld [vmem:[#allocation2 + $0x1f0] sm:$0xff]
    %v393 = vld [vmem:[#allocation2 + $0x1f8] sm:$0xff]
    %v394 = vld [vmem:[#allocation2 + $0x200] sm:$0xff]
    %v395 = vld [vmem:[#allocation2 + $0x208] sm:$0xff]
    %v396 = vld [vmem:[#allocation2 + $0x210] sm:$0xff]
    %v397 = vld [vmem:[#allocation2 + $0x218] sm:$0xff]
    %v398 = vld [vmem:[#allocation2 + $0x220] sm:$0xff]
    %v399 = vld [vmem:[#allocation2 + $0x228] sm:$0xff]
    %v400 = vld [vmem:[#allocation2 + $0x230] sm:$0xff]
    %v401 = vld [vmem:[#allocation2 + $0x238] sm:$0xff]
    %v402 = vld [vmem:[#allocation2 + $0x240] sm:$0xff]
    %v403 = vld [vmem:[#allocation2 + $0x248] sm:$0xff]
    %v404 = vld [vmem:[#allocation2 + $0x250] sm:$0xff]
    %v405 = vld [vmem:[#allocation2 + $0x258] sm:$0xff]
    %v406 = vld [vmem:[#allocation2 + $0x260] sm:$0xff]
    %v407 = vld [vmem:[#allocation2 + $0x268] sm:$0xff]
    %v408 = vld [vmem:[#allocation2 + $0x270] sm:$0xff]
    %v409 = vld [vmem:[#allocation2 + $0x278] sm:$0xff]
    %v410 = vld [vmem:[#allocation2 + $0x280] sm:$0xff]
    %v411 = vld [vmem:[#allocation2 + $0x288] sm:$0xff]
    %v412 = vld [vmem:[#allocation2 + $0x290] sm:$0xff]
    %v413 = vld [vmem:[#allocation2 + $0x298] sm:$0xff]
    %v414 = vld [vmem:[#allocation2 + $0x2a0] sm:$0xff]
    %v415 = vld [vmem:[#allocation2 + $0x2a8] sm:$0xff]
    %v416 = vld [vmem:[#allocation2 + $0x2b0] sm:$0xff]
    %v417 = vld [vmem:[#allocation2 + $0x2b8] sm:$0xff]
    %v418 = vld [vmem:[#allocation2 + $0x2c0] sm:$0xff]
    %v419 = vld [vmem:[#allocation2 + $0x2c8] sm:$0xff]
    %v420 = vld [vmem:[#allocation2 + $0x2d0] sm:$0xff]
    %v421 = vld [vmem:[#allocation2 + $0x2d8] sm:$0xff]
    %v422 = vld [vmem:[#allocation2 + $0x2e0] sm:$0xff]
    %v423 = vld [vmem:[#allocation2 + $0x2e8] sm:$0xff]
    %v424 = vld [vmem:[#allocation2 + $0x2f0] sm:$0xff]
    %v425 = vld [vmem:[#allocation2 + $0x2f8] sm:$0xff]
    %v426 = vld [vmem:[#allocation2 + $0x300] sm:$0xff]
    %v427 = vld [vmem:[#allocation2 + $0x308] sm:$0xff]
    %v428 = vld [vmem:[#allocation2 + $0x310] sm:$0xff]
    %v429 = vld [vmem:[#allocation2 + $0x318] sm:$0xff]
    %v430 = vld [vmem:[#allocation2 + $0x320] sm:$0xff]
    %v431 = vld [vmem:[#allocation2 + $0x328] sm:$0xff]
    %v432 = vld [vmem:[#allocation2 + $0x330] sm:$0xff]
    %v433 = vld [vmem:[#allocation2 + $0x338] sm:$0xff]
    %v434 = vld [vmem:[#allocation2 + $0x340] sm:$0xff]
    %v435 = vld [vmem:[#allocation2 + $0x348] sm:$0xff]
    %v436 = vld [vmem:[#allocation2 + $0x350] sm:$0xff]
    %v437 = vld [vmem:[#allocation2 + $0x358] sm:$0xff]
    %v438 = vld [vmem:[#allocation2 + $0x360] sm:$0xff]
    %v439 = vld [vmem:[#allocation2 + $0x368] sm:$0xff]
    %v440 = vld [vmem:[#allocation2 + $0x370] sm:$0xff]
    %v441 = vld [vmem:[#allocation2 + $0x378] sm:$0xff]
    %v442 = vld [vmem:[#allocation2 + $0x380] sm:$0xff]
    %v443 = vld [vmem:[#allocation2 + $0x388] sm:$0xff]
    %v444 = vld [vmem:[#allocation2 + $0x390] sm:$0xff]
    %v445 = vld [vmem:[#allocation2 + $0x398] sm:$0xff]
    %v446 = vld [vmem:[#allocation2 + $0x3a0] sm:$0xff]
    %v447 = vld [vmem:[#allocation2 + $0x3a8] sm:$0xff]
    %v448 = vld [vmem:[#allocation2 + $0x3b0] sm:$0xff]
    %v449 = vld [vmem:[#allocation2 + $0x3b8] sm:$0xff]
    %v450 = vld [vmem:[#allocation2 + $0x3c0] sm:$0xff]
    %v451 = vld [vmem:[#allocation2 + $0x3c8] sm:$0xff]
    %v452 = vld [vmem:[#allocation2 + $0x3d0] sm:$0xff]
    %v453 = vld [vmem:[#allocation2 + $0x3d8] sm:$0xff]
    %v454 = vld [vmem:[#allocation2 + $0x3e0] sm:$0xff]
    %v455 = vld [vmem:[#allocation2 + $0x3e8] sm:$0xff]
    %v456 = vld [vmem:[#allocation2 + $0x3f0] sm:$0xff]
    %v457 = vld [vmem:[#allocation2 + $0x3f8] sm:$0xff]
    %v458 = vld [vmem:[#allocation2 + $0x400] sm:$0xff]
    %v459 = vld [vmem:[#allocation2 + $0x408] sm:$0xff]
    %v460 = vld [vmem:[#allocation2 + $0x410] sm:$0xff]
    %v461 = vld [vmem:[#allocation2 + $0x418] sm:$0xff]
    %v462 = vld [vmem:[#allocation2 + $0x420] sm:$0xff]
    %v463 = vld [vmem:[#allocation2 + $0x428] sm:$0xff]
    %v464 = vld [vmem:[#allocation2 + $0x430] sm:$0xff]
    %v465 = vld [vmem:[#allocation2 + $0x438] sm:$0xff]
    %v466 = vld [vmem:[#allocation2 + $0x440] sm:$0xff]
    %v467 = vld [vmem:[#allocation2 + $0x448] sm:$0xff]
    %v468 = vld [vmem:[#allocation2 + $0x450] sm:$0xff]
    %v469 = vld [vmem:[#allocation2 + $0x458] sm:$0xff]
    %v470 = vld [vmem:[#allocation2 + $0x460] sm:$0xff]
    %v471 = vld [vmem:[#allocation2 + $0x468] sm:$0xff]
    %v472 = vld [vmem:[#allocation2 + $0x470] sm:$0xff]
    %v473 = vld [vmem:[#allocation2 + $0x478] sm:$0xff]
    %v474 = vld [vmem:[#allocation2 + $0x480] sm:$0xff]
    %v475 = vld [vmem:[#allocation2 + $0x488] sm:$0xff]
    %v476 = vld [vmem:[#allocation2 + $0x490] sm:$0xff]
    %v477 = vld [vmem:[#allocation2 + $0x498] sm:$0xff]
    %v478 = vld [vmem:[#allocation2 + $0x4a0] sm:$0xff]
    %v479 = vld [vmem:[#allocation2 + $0x4a8] sm:$0xff]
    %v480 = vld [vmem:[#allocation2 + $0x4b0] sm:$0xff]
    %v481 = vld [vmem:[#allocation2 + $0x4b8] sm:$0xff]
    %v482 = vld [vmem:[#allocation2 + $0x4c0] sm:$0xff]
    %v483 = vld [vmem:[#allocation2 + $0x4c8] sm:$0xff]
    %v484 = vld [vmem:[#allocation2 + $0x4d0] sm:$0xff]
    %v485 = vld [vmem:[#allocation2 + $0x4d8] sm:$0xff]
    %v486 = vld [vmem:[#allocation2 + $0x4e0] sm:$0xff]
    %v487 = vld [vmem:[#allocation2 + $0x4e8] sm:$0xff]
    %v488 = vld [vmem:[#allocation2 + $0x4f0] sm:$0xff]
    %v489 = vld [vmem:[#allocation2 + $0x4f8] sm:$0xff]
    %v490 = vld [vmem:[#allocation2 + $0x500] sm:$0xff]
    %v491 = vld [vmem:[#allocation2 + $0x508] sm:$0xff]
    %v492 = vld [vmem:[#allocation2 + $0x510] sm:$0xff]
    %v493 = vld [vmem:[#allocation2 + $0x518] sm:$0xff]
    %v494 = vld [vmem:[#allocation2 + $0x520] sm:$0xff]
    %v495 = vld [vmem:[#allocation2 + $0x528] sm:$0xff]
    %v496 = vld [vmem:[#allocation2 + $0x530] sm:$0xff]
    %v497 = vld [vmem:[#allocation2 + $0x538] sm:$0xff]
    %v498 = vld [vmem:[#allocation2 + $0x540] sm:$0xff]
    %v499 = vld [vmem:[#allocation2 + $0x548] sm:$0xff]
    %v500 = vld [vmem:[#allocation2 + $0x550] sm:$0xff]
    %v501 = vld [vmem:[#allocation2 + $0x558] sm:$0xff]
    %v502 = vld [vmem:[#allocation2 + $0x560] sm:$0xff]
    %v503 = vld [vmem:[#allocation2 + $0x568] sm:$0xff]
    %v504 = vld [vmem:[#allocation2 + $0x570] sm:$0xff]
    %v505 = vld [vmem:[#allocation2 + $0x578] sm:$0xff]
    %v506 = vld [vmem:[#allocation2 + $0x580] sm:$0xff]
    %v507 = vld [vmem:[#allocation2 + $0x588] sm:$0xff]
    %v508 = vld [vmem:[#allocation2 + $0x590] sm:$0xff]
    %v509 = vld [vmem:[#allocation2 + $0x598] sm:$0xff]
    %v510 = vld [vmem:[#allocation2 + $0x5a0] sm:$0xff]
    %v511 = vld [vmem:[#allocation2 + $0x5a8] sm:$0xff]
    %v512 = vld [vmem:[#allocation2 + $0x5b0] sm:$0xff]
    %v513 = vld [vmem:[#allocation2 + $0x5b8] sm:$0xff]
    %v514 = vld [vmem:[#allocation2 + $0x5c0] sm:$0xff]
    %v515 = vld [vmem:[#allocation2 + $0x5c8] sm:$0xff]
    %v516 = vld [vmem:[#allocation2 + $0x5d0] sm:$0xff]
    %v517 = vld [vmem:[#allocation2 + $0x5d8] sm:$0xff]
    %v518 = vld [vmem:[#allocation2 + $0x5e0] sm:$0xff]
    %v519 = vld [vmem:[#allocation2 + $0x5e8] sm:$0xff]
    %v520 = vld [vmem:[#allocation2 + $0x5f0] sm:$0xff]
    %v521 = vld [vmem:[#allocation2 + $0x5f8] sm:$0xff]
    %v522 = vld [vmem:[#allocation2 + $0x600] sm:$0xff]
    %v523 = vld [vmem:[#allocation2 + $0x608] sm:$0xff]
    %v524 = vld [vmem:[#allocation2 + $0x610] sm:$0xff]
    %v525 = vld [vmem:[#allocation2 + $0x618] sm:$0xff]
    %v526 = vld [vmem:[#allocation2 + $0x620] sm:$0xff]
    %v527 = vld [vmem:[#allocation2 + $0x628] sm:$0xff]
    %v528 = vld [vmem:[#allocation2 + $0x630] sm:$0xff]
    %v529 = vld [vmem:[#allocation2 + $0x638] sm:$0xff]
    %v530 = vld [vmem:[#allocation2 + $0x640] sm:$0xff]
    %v531 = vld [vmem:[#allocation2 + $0x648] sm:$0xff]
    %v532 = vld [vmem:[#allocation2 + $0x650] sm:$0xff]
    %v533 = vld [vmem:[#allocation2 + $0x658] sm:$0xff]
    %v534 = vld [vmem:[#allocation2 + $0x660] sm:$0xff]
    %v535 = vld [vmem:[#allocation2 + $0x668] sm:$0xff]
    %v536 = vld [vmem:[#allocation2 + $0x670] sm:$0xff]
    %v537 = vld [vmem:[#allocation2 + $0x678] sm:$0xff]
    %v538 = vld [vmem:[#allocation2 + $0x680] sm:$0xff]
    %v539 = vld [vmem:[#allocation2 + $0x688] sm:$0xff]
    %v540 = vld [vmem:[#allocation2 + $0x690] sm:$0xff]
    %v541 = vld [vmem:[#allocation2 + $0x698] sm:$0xff]
    %v542 = vld [vmem:[#allocation2 + $0x6a0] sm:$0xff]
    %v543 = vld [vmem:[#allocation2 + $0x6a8] sm:$0xff]
    %v544 = vld [vmem:[#allocation2 + $0x6b0] sm:$0xff]
    %v545 = vld [vmem:[#allocation2 + $0x6b8] sm:$0xff]
    %v546 = vld [vmem:[#allocation2 + $0x6c0] sm:$0xff]
    %v547 = vld [vmem:[#allocation2 + $0x6c8] sm:$0xff]
    %v548 = vld [vmem:[#allocation2 + $0x6d0] sm:$0xff]
    %v549 = vld [vmem:[#allocation2 + $0x6d8] sm:$0xff]
    %v550 = vld [vmem:[#allocation2 + $0x6e0] sm:$0xff]
    %v551 = vld [vmem:[#allocation2 + $0x6e8] sm:$0xff]
    %v552 = vld [vmem:[#allocation2 + $0x6f0] sm:$0xff]
    %v553 = vld [vmem:[#allocation2 + $0x6f8] sm:$0xff]
    %v554 = vld [vmem:[#allocation2 + $0x700] sm:$0xff]
    %v555 = vld [vmem:[#allocation2 + $0x708] sm:$0xff]
    %v556 = vld [vmem:[#allocation2 + $0x710] sm:$0xff]
    %v557 = vld [vmem:[#allocation2 + $0x718] sm:$0xff]
    %v558 = vld [vmem:[#allocation2 + $0x720] sm:$0xff]
    %v559 = vld [vmem:[#allocation2 + $0x728] sm:$0xff]
    %v560 = vld [vmem:[#allocation2 + $0x730] sm:$0xff]
    %v561 = vld [vmem:[#allocation2 + $0x738] sm:$0xff]
    %v562 = vld [vmem:[#allocation2 + $0x740] sm:$0xff]
    %v563 = vld [vmem:[#allocation2 + $0x748] sm:$0xff]
    %v564 = vld [vmem:[#allocation2 + $0x750] sm:$0xff]
    %v565 = vld [vmem:[#allocation2 + $0x758] sm:$0xff]
    %v566 = vld [vmem:[#allocation2 + $0x760] sm:$0xff]
    %v567 = vld [vmem:[#allocation2 + $0x768] sm:$0xff]
    %v568 = vld [vmem:[#allocation2 + $0x770] sm:$0xff]
    %v569 = vld [vmem:[#allocation2 + $0x778] sm:$0xff]
    %v570 = vld [vmem:[#allocation2 + $0x780] sm:$0xff]
    %v571 = vld [vmem:[#allocation2 + $0x788] sm:$0xff]
    %v572 = vld [vmem:[#allocation2 + $0x790] sm:$0xff]
    %v573 = vld [vmem:[#allocation2 + $0x798] sm:$0xff]
    %v574 = vld [vmem:[#allocation2 + $0x7a0] sm:$0xff]
    %v575 = vld [vmem:[#allocation2 + $0x7a8] sm:$0xff]
    %v576 = vld [vmem:[#allocation2 + $0x7b0] sm:$0xff]
    %v577 = vld [vmem:[#allocation2 + $0x7b8] sm:$0xff]
    %v578 = vld [vmem:[#allocation2 + $0x7c0] sm:$0xff]
    %v579 = vld [vmem:[#allocation2 + $0x7c8] sm:$0xff]
    %v580 = vld [vmem:[#allocation2 + $0x7d0] sm:$0xff]
    %v581 = vld [vmem:[#allocation2 + $0x7d8] sm:$0xff]
    %v582 = vld [vmem:[#allocation2 + $0x7e0] sm:$0xff]
    %v583 = vld [vmem:[#allocation2 + $0x7e8] sm:$0xff]
    %v584 = vld [vmem:[#allocation2 + $0x7f0] sm:$0xff]
    %v585 = vld [vmem:[#allocation2 + $0x7f8] sm:$0xff]
    %v586 = vld [vmem:[%s6] sm:$0xff]
    %v588 = vlaneseq
    %v589 = vshrl.u32 %v588, 7
    %v590 = vsub.s32 0, %v589
    %v591 = vrot.slane %v586, %v590
    %v592 = vlaneseq
    %v593 = vshrl.u32 %v592, 7
    %v594 = vsub.s32 1, %v593
    %v595 = vrot.slane %v586, %v594
    %v596 = vlaneseq
    %v597 = vshrl.u32 %v596, 7
    %v598 = vsub.s32 2, %v597
    %v599 = vrot.slane %v586, %v598
    %v600 = vlaneseq
    %v601 = vshrl.u32 %v600, 7
    %v602 = vsub.s32 3, %v601
    %v603 = vrot.slane %v586, %v602
    %v604 = vlaneseq
    %v605 = vshrl.u32 %v604, 7
    %v606 = vsub.s32 4, %v605
    %v607 = vrot.slane %v586, %v606
    %v608 = vlaneseq
    %v609 = vshrl.u32 %v608, 7
    %v610 = vsub.s32 5, %v609
    %v611 = vrot.slane %v586, %v610
    %v612 = vlaneseq
    %v613 = vshrl.u32 %v612, 7
    %v614 = vsub.s32 6, %v613
    %v615 = vrot.slane %v586, %v614
    %v616 = vlaneseq
    %v617 = vshrl.u32 %v616, 7
    %v618 = vsub.s32 7, %v617
    %v619 = vrot.slane %v586, %v618
    %v884 = vunpack.c.l.b16 %v330
    %v885 = vunpack.c.h.b16 %v330
    %v886 = vunpack.c.l.b16 %v331
    %v887 = vunpack.c.h.b16 %v331
    %v888 = vunpack.c.l.b16 %v332
    %v889 = vunpack.c.h.b16 %v332
    %v890 = vunpack.c.l.b16 %v333
    %v891 = vunpack.c.h.b16 %v333
    %v892 = vunpack.c.l.b16 %v334
    %v893 = vunpack.c.h.b16 %v334
    %v894 = vunpack.c.l.b16 %v335
    %v895 = vunpack.c.h.b16 %v335
    %v896 = vunpack.c.l.b16 %v336
    %v897 = vunpack.c.h.b16 %v336
    %v898 = vunpack.c.l.b16 %v337
    %v899 = vunpack.c.h.b16 %v337
    %v900 = vunpack.c.l.b16 %v338
    %v901 = vunpack.c.h.b16 %v338
    %v902 = vunpack.c.l.b16 %v339
    %v903 = vunpack.c.h.b16 %v339
    %v904 = vunpack.c.l.b16 %v340
    %v905 = vunpack.c.h.b16 %v340
    %v906 = vunpack.c.l.b16 %v341
    %v907 = vunpack.c.h.b16 %v341
    %v908 = vunpack.c.l.b16 %v342
    %v909 = vunpack.c.h.b16 %v342
    %v910 = vunpack.c.l.b16 %v343
    %v911 = vunpack.c.h.b16 %v343
    %v912 = vunpack.c.l.b16 %v344
    %v913 = vunpack.c.h.b16 %v344
    %v914 = vunpack.c.l.b16 %v345
    %v915 = vunpack.c.h.b16 %v345
    %v916 = vunpack.c.l.b16 %v346
    %v917 = vunpack.c.h.b16 %v346
    %v918 = vunpack.c.l.b16 %v347
    %v919 = vunpack.c.h.b16 %v347
    %v920 = vunpack.c.l.b16 %v348
    %v921 = vunpack.c.h.b16 %v348
    %v922 = vunpack.c.l.b16 %v349
    %v923 = vunpack.c.h.b16 %v349
    %v924 = vunpack.c.l.b16 %v350
    %v925 = vunpack.c.h.b16 %v350
    %v926 = vunpack.c.l.b16 %v351
    %v927 = vunpack.c.h.b16 %v351
    %v928 = vunpack.c.l.b16 %v352
    %v929 = vunpack.c.h.b16 %v352
    %v930 = vunpack.c.l.b16 %v353
    %v931 = vunpack.c.h.b16 %v353
    %v932 = vunpack.c.l.b16 %v354
    %v933 = vunpack.c.h.b16 %v354
    %v934 = vunpack.c.l.b16 %v355
    %v935 = vunpack.c.h.b16 %v355
    %v936 = vunpack.c.l.b16 %v356
    %v937 = vunpack.c.h.b16 %v356
    %v938 = vunpack.c.l.b16 %v357
    %v939 = vunpack.c.h.b16 %v357
    %v940 = vunpack.c.l.b16 %v358
    %v941 = vunpack.c.h.b16 %v358
    %v942 = vunpack.c.l.b16 %v359
    %v943 = vunpack.c.h.b16 %v359
    %v944 = vunpack.c.l.b16 %v360
    %v945 = vunpack.c.h.b16 %v360
    %v946 = vunpack.c.l.b16 %v361
    %v947 = vunpack.c.h.b16 %v361
    %v948 = vunpack.c.l.b16 %v362
    %v949 = vunpack.c.h.b16 %v362
    %v950 = vunpack.c.l.b16 %v363
    %v951 = vunpack.c.h.b16 %v363
    %v952 = vunpack.c.l.b16 %v364
    %v953 = vunpack.c.h.b16 %v364
    %v954 = vunpack.c.l.b16 %v365
    %v955 = vunpack.c.h.b16 %v365
    %v956 = vunpack.c.l.b16 %v366
    %v957 = vunpack.c.h.b16 %v366
    %v958 = vunpack.c.l.b16 %v367
    %v959 = vunpack.c.h.b16 %v367
    %v960 = vunpack.c.l.b16 %v368
    %v961 = vunpack.c.h.b16 %v368
    %v962 = vunpack.c.l.b16 %v369
    %v963 = vunpack.c.h.b16 %v369
    %v964 = vunpack.c.l.b16 %v370
    %v965 = vunpack.c.h.b16 %v370
    %v966 = vunpack.c.l.b16 %v371
    %v967 = vunpack.c.h.b16 %v371
    %v968 = vunpack.c.l.b16 %v372
    %v969 = vunpack.c.h.b16 %v372
    %v970 = vunpack.c.l.b16 %v373
    %v971 = vunpack.c.h.b16 %v373
    %v972 = vunpack.c.l.b16 %v374
    %v973 = vunpack.c.h.b16 %v374
    %v974 = vunpack.c.l.b16 %v375
    %v975 = vunpack.c.h.b16 %v375
    %v976 = vunpack.c.l.b16 %v376
    %v977 = vunpack.c.h.b16 %v376
    %v978 = vunpack.c.l.b16 %v377
    %v979 = vunpack.c.h.b16 %v377
    %v980 = vunpack.c.l.b16 %v378
    %v981 = vunpack.c.h.b16 %v378
    %v982 = vunpack.c.l.b16 %v379
    %v983 = vunpack.c.h.b16 %v379
    %v984 = vunpack.c.l.b16 %v380
    %v985 = vunpack.c.h.b16 %v380
    %v986 = vunpack.c.l.b16 %v381
    %v987 = vunpack.c.h.b16 %v381
    %v988 = vunpack.c.l.b16 %v382
    %v989 = vunpack.c.h.b16 %v382
    %v990 = vunpack.c.l.b16 %v383
    %v991 = vunpack.c.h.b16 %v383
    %v992 = vunpack.c.l.b16 %v384
    %v993 = vunpack.c.h.b16 %v384
    %v994 = vunpack.c.l.b16 %v385
    %v995 = vunpack.c.h.b16 %v385
    %v996 = vunpack.c.l.b16 %v386
    %v997 = vunpack.c.h.b16 %v386
    %v998 = vunpack.c.l.b16 %v387
    %v999 = vunpack.c.h.b16 %v387
    %v1000 = vunpack.c.l.b16 %v388
    %v1001 = vunpack.c.h.b16 %v388
    %v1002 = vunpack.c.l.b16 %v389
    %v1003 = vunpack.c.h.b16 %v389
    %v1004 = vunpack.c.l.b16 %v390
    %v1005 = vunpack.c.h.b16 %v390
    %v1006 = vunpack.c.l.b16 %v391
    %v1007 = vunpack.c.h.b16 %v391
    %v1008 = vunpack.c.l.b16 %v392
    %v1009 = vunpack.c.h.b16 %v392
    %v1010 = vunpack.c.l.b16 %v393
    %v1011 = vunpack.c.h.b16 %v393
    %v1012 = vunpack.c.l.b16 %v394
    %v1013 = vunpack.c.h.b16 %v394
    %v1014 = vunpack.c.l.b16 %v395
    %v1015 = vunpack.c.h.b16 %v395
    %v1016 = vunpack.c.l.b16 %v396
    %v1017 = vunpack.c.h.b16 %v396
    %v1018 = vunpack.c.l.b16 %v397
    %v1019 = vunpack.c.h.b16 %v397
    %v1020 = vunpack.c.l.b16 %v398
    %v1021 = vunpack.c.h.b16 %v398
    %v1022 = vunpack.c.l.b16 %v399
    %v1023 = vunpack.c.h.b16 %v399
    %v1024 = vunpack.c.l.b16 %v400
    %v1025 = vunpack.c.h.b16 %v400
    %v1026 = vunpack.c.l.b16 %v401
    %v1027 = vunpack.c.h.b16 %v401
    %v1028 = vunpack.c.l.b16 %v402
    %v1029 = vunpack.c.h.b16 %v402
    %v1030 = vunpack.c.l.b16 %v403
    %v1031 = vunpack.c.h.b16 %v403
    %v1032 = vunpack.c.l.b16 %v404
    %v1033 = vunpack.c.h.b16 %v404
    %v1034 = vunpack.c.l.b16 %v405
    %v1035 = vunpack.c.h.b16 %v405
    %v1036 = vunpack.c.l.b16 %v406
    %v1037 = vunpack.c.h.b16 %v406
    %v1038 = vunpack.c.l.b16 %v407
    %v1039 = vunpack.c.h.b16 %v407
    %v1040 = vunpack.c.l.b16 %v408
    %v1041 = vunpack.c.h.b16 %v408
    %v1042 = vunpack.c.l.b16 %v409
    %v1043 = vunpack.c.h.b16 %v409
    %v1044 = vunpack.c.l.b16 %v410
    %v1045 = vunpack.c.h.b16 %v410
    %v1046 = vunpack.c.l.b16 %v411
    %v1047 = vunpack.c.h.b16 %v411
    %v1048 = vunpack.c.l.b16 %v412
    %v1049 = vunpack.c.h.b16 %v412
    %v1050 = vunpack.c.l.b16 %v413
    %v1051 = vunpack.c.h.b16 %v413
    %v1052 = vunpack.c.l.b16 %v414
    %v1053 = vunpack.c.h.b16 %v414
    %v1054 = vunpack.c.l.b16 %v415
    %v1055 = vunpack.c.h.b16 %v415
    %v1056 = vunpack.c.l.b16 %v416
    %v1057 = vunpack.c.h.b16 %v416
    %v1058 = vunpack.c.l.b16 %v417
    %v1059 = vunpack.c.h.b16 %v417
    %v1060 = vunpack.c.l.b16 %v418
    %v1061 = vunpack.c.h.b16 %v418
    %v1062 = vunpack.c.l.b16 %v419
    %v1063 = vunpack.c.h.b16 %v419
    %v1064 = vunpack.c.l.b16 %v420
    %v1065 = vunpack.c.h.b16 %v420
    %v1066 = vunpack.c.l.b16 %v421
    %v1067 = vunpack.c.h.b16 %v421
    %v1068 = vunpack.c.l.b16 %v422
    %v1069 = vunpack.c.h.b16 %v422
    %v1070 = vunpack.c.l.b16 %v423
    %v1071 = vunpack.c.h.b16 %v423
    %v1072 = vunpack.c.l.b16 %v424
    %v1073 = vunpack.c.h.b16 %v424
    %v1074 = vunpack.c.l.b16 %v425
    %v1075 = vunpack.c.h.b16 %v425
    %v1076 = vunpack.c.l.b16 %v426
    %v1077 = vunpack.c.h.b16 %v426
    %v1078 = vunpack.c.l.b16 %v427
    %v1079 = vunpack.c.h.b16 %v427
    %v1080 = vunpack.c.l.b16 %v428
    %v1081 = vunpack.c.h.b16 %v428
    %v1082 = vunpack.c.l.b16 %v429
    %v1083 = vunpack.c.h.b16 %v429
    %v1084 = vunpack.c.l.b16 %v430
    %v1085 = vunpack.c.h.b16 %v430
    %v1086 = vunpack.c.l.b16 %v431
    %v1087 = vunpack.c.h.b16 %v431
    %v1088 = vunpack.c.l.b16 %v432
    %v1089 = vunpack.c.h.b16 %v432
    %v1090 = vunpack.c.l.b16 %v433
    %v1091 = vunpack.c.h.b16 %v433
    %v1092 = vunpack.c.l.b16 %v434
    %v1093 = vunpack.c.h.b16 %v434
    %v1094 = vunpack.c.l.b16 %v435
    %v1095 = vunpack.c.h.b16 %v435
    %v1096 = vunpack.c.l.b16 %v436
    %v1097 = vunpack.c.h.b16 %v436
    %v1098 = vunpack.c.l.b16 %v437
    %v1099 = vunpack.c.h.b16 %v437
    %v1100 = vunpack.c.l.b16 %v438
    %v1101 = vunpack.c.h.b16 %v438
    %v1102 = vunpack.c.l.b16 %v439
    %v1103 = vunpack.c.h.b16 %v439
    %v1104 = vunpack.c.l.b16 %v440
    %v1105 = vunpack.c.h.b16 %v440
    %v1106 = vunpack.c.l.b16 %v441
    %v1107 = vunpack.c.h.b16 %v441
    %v1108 = vunpack.c.l.b16 %v442
    %v1109 = vunpack.c.h.b16 %v442
    %v1110 = vunpack.c.l.b16 %v443
    %v1111 = vunpack.c.h.b16 %v443
    %v1112 = vunpack.c.l.b16 %v444
    %v1113 = vunpack.c.h.b16 %v444
    %v1114 = vunpack.c.l.b16 %v445
    %v1115 = vunpack.c.h.b16 %v445
    %v1116 = vunpack.c.l.b16 %v446
    %v1117 = vunpack.c.h.b16 %v446
    %v1118 = vunpack.c.l.b16 %v447
    %v1119 = vunpack.c.h.b16 %v447
    %v1120 = vunpack.c.l.b16 %v448
    %v1121 = vunpack.c.h.b16 %v448
    %v1122 = vunpack.c.l.b16 %v449
    %v1123 = vunpack.c.h.b16 %v449
    %v1124 = vunpack.c.l.b16 %v450
    %v1125 = vunpack.c.h.b16 %v450
    %v1126 = vunpack.c.l.b16 %v451
    %v1127 = vunpack.c.h.b16 %v451
    %v1128 = vunpack.c.l.b16 %v452
    %v1129 = vunpack.c.h.b16 %v452
    %v1130 = vunpack.c.l.b16 %v453
    %v1131 = vunpack.c.h.b16 %v453
    %v1132 = vunpack.c.l.b16 %v454
    %v1133 = vunpack.c.h.b16 %v454
    %v1134 = vunpack.c.l.b16 %v455
    %v1135 = vunpack.c.h.b16 %v455
    %v1136 = vunpack.c.l.b16 %v456
    %v1137 = vunpack.c.h.b16 %v456
    %v1138 = vunpack.c.l.b16 %v457
    %v1139 = vunpack.c.h.b16 %v457
    %v1140 = vunpack.c.l.b16 %v458
    %v1141 = vunpack.c.h.b16 %v458
    %v1142 = vunpack.c.l.b16 %v459
    %v1143 = vunpack.c.h.b16 %v459
    %v1144 = vunpack.c.l.b16 %v460
    %v1145 = vunpack.c.h.b16 %v460
    %v1146 = vunpack.c.l.b16 %v461
    %v1147 = vunpack.c.h.b16 %v461
    %v1148 = vunpack.c.l.b16 %v462
    %v1149 = vunpack.c.h.b16 %v462
    %v1150 = vunpack.c.l.b16 %v463
    %v1151 = vunpack.c.h.b16 %v463
    %v1152 = vunpack.c.l.b16 %v464
    %v1153 = vunpack.c.h.b16 %v464
    %v1154 = vunpack.c.l.b16 %v465
    %v1155 = vunpack.c.h.b16 %v465
    %v1156 = vunpack.c.l.b16 %v466
    %v1157 = vunpack.c.h.b16 %v466
    %v1158 = vunpack.c.l.b16 %v467
    %v1159 = vunpack.c.h.b16 %v467
    %v1160 = vunpack.c.l.b16 %v468
    %v1161 = vunpack.c.h.b16 %v468
    %v1162 = vunpack.c.l.b16 %v469
    %v1163 = vunpack.c.h.b16 %v469
    %v1164 = vunpack.c.l.b16 %v470
    %v1165 = vunpack.c.h.b16 %v470
    %v1166 = vunpack.c.l.b16 %v471
    %v1167 = vunpack.c.h.b16 %v471
    %v1168 = vunpack.c.l.b16 %v472
    %v1169 = vunpack.c.h.b16 %v472
    %v1170 = vunpack.c.l.b16 %v473
    %v1171 = vunpack.c.h.b16 %v473
    %v1172 = vunpack.c.l.b16 %v474
    %v1173 = vunpack.c.h.b16 %v474
    %v1174 = vunpack.c.l.b16 %v475
    %v1175 = vunpack.c.h.b16 %v475
    %v1176 = vunpack.c.l.b16 %v476
    %v1177 = vunpack.c.h.b16 %v476
    %v1178 = vunpack.c.l.b16 %v477
    %v1179 = vunpack.c.h.b16 %v477
    %v1180 = vunpack.c.l.b16 %v478
    %v1181 = vunpack.c.h.b16 %v478
    %v1182 = vunpack.c.l.b16 %v479
    %v1183 = vunpack.c.h.b16 %v479
    %v1184 = vunpack.c.l.b16 %v480
    %v1185 = vunpack.c.h.b16 %v480
    %v1186 = vunpack.c.l.b16 %v481
    %v1187 = vunpack.c.h.b16 %v481
    %v1188 = vunpack.c.l.b16 %v482
    %v1189 = vunpack.c.h.b16 %v482
    %v1190 = vunpack.c.l.b16 %v483
    %v1191 = vunpack.c.h.b16 %v483
    %v1192 = vunpack.c.l.b16 %v484
    %v1193 = vunpack.c.h.b16 %v484
    %v1194 = vunpack.c.l.b16 %v485
    %v1195 = vunpack.c.h.b16 %v485
    %v1196 = vunpack.c.l.b16 %v486
    %v1197 = vunpack.c.h.b16 %v486
    %v1198 = vunpack.c.l.b16 %v487
    %v1199 = vunpack.c.h.b16 %v487
    %v1200 = vunpack.c.l.b16 %v488
    %v1201 = vunpack.c.h.b16 %v488
    %v1202 = vunpack.c.l.b16 %v489
    %v1203 = vunpack.c.h.b16 %v489
    %v1204 = vunpack.c.l.b16 %v490
    %v1205 = vunpack.c.h.b16 %v490
    %v1206 = vunpack.c.l.b16 %v491
    %v1207 = vunpack.c.h.b16 %v491
    %v1208 = vunpack.c.l.b16 %v492
    %v1209 = vunpack.c.h.b16 %v492
    %v1210 = vunpack.c.l.b16 %v493
    %v1211 = vunpack.c.h.b16 %v493
    %v1212 = vunpack.c.l.b16 %v494
    %v1213 = vunpack.c.h.b16 %v494
    %v1214 = vunpack.c.l.b16 %v495
    %v1215 = vunpack.c.h.b16 %v495
    %v1216 = vunpack.c.l.b16 %v496
    %v1217 = vunpack.c.h.b16 %v496
    %v1218 = vunpack.c.l.b16 %v497
    %v1219 = vunpack.c.h.b16 %v497
    %v1220 = vunpack.c.l.b16 %v498
    %v1221 = vunpack.c.h.b16 %v498
    %v1222 = vunpack.c.l.b16 %v499
    %v1223 = vunpack.c.h.b16 %v499
    %v1224 = vunpack.c.l.b16 %v500
    %v1225 = vunpack.c.h.b16 %v500
    %v1226 = vunpack.c.l.b16 %v501
    %v1227 = vunpack.c.h.b16 %v501
    %v1228 = vunpack.c.l.b16 %v502
    %v1229 = vunpack.c.h.b16 %v502
    %v1230 = vunpack.c.l.b16 %v503
    %v1231 = vunpack.c.h.b16 %v503
    %v1232 = vunpack.c.l.b16 %v504
    %v1233 = vunpack.c.h.b16 %v504
    %v1234 = vunpack.c.l.b16 %v505
    %v1235 = vunpack.c.h.b16 %v505
    %v1236 = vunpack.c.l.b16 %v506
    %v1237 = vunpack.c.h.b16 %v506
    %v1238 = vunpack.c.l.b16 %v507
    %v1239 = vunpack.c.h.b16 %v507
    %v1240 = vunpack.c.l.b16 %v508
    %v1241 = vunpack.c.h.b16 %v508
    %v1242 = vunpack.c.l.b16 %v509
    %v1243 = vunpack.c.h.b16 %v509
    %v1244 = vunpack.c.l.b16 %v510
    %v1245 = vunpack.c.h.b16 %v510
    %v1246 = vunpack.c.l.b16 %v511
    %v1247 = vunpack.c.h.b16 %v511
    %v1248 = vunpack.c.l.b16 %v512
    %v1249 = vunpack.c.h.b16 %v512
    %v1250 = vunpack.c.l.b16 %v513
    %v1251 = vunpack.c.h.b16 %v513
    %v1252 = vunpack.c.l.b16 %v514
    %v1253 = vunpack.c.h.b16 %v514
    %v1254 = vunpack.c.l.b16 %v515
    %v1255 = vunpack.c.h.b16 %v515
    %v1256 = vunpack.c.l.b16 %v516
    %v1257 = vunpack.c.h.b16 %v516
    %v1258 = vunpack.c.l.b16 %v517
    %v1259 = vunpack.c.h.b16 %v517
    %v1260 = vunpack.c.l.b16 %v518
    %v1261 = vunpack.c.h.b16 %v518
    %v1262 = vunpack.c.l.b16 %v519
    %v1263 = vunpack.c.h.b16 %v519
    %v1264 = vunpack.c.l.b16 %v520
    %v1265 = vunpack.c.h.b16 %v520
    %v1266 = vunpack.c.l.b16 %v521
    %v1267 = vunpack.c.h.b16 %v521
    %v1268 = vunpack.c.l.b16 %v522
    %v1269 = vunpack.c.h.b16 %v522
    %v1270 = vunpack.c.l.b16 %v523
    %v1271 = vunpack.c.h.b16 %v523
    %v1272 = vunpack.c.l.b16 %v524
    %v1273 = vunpack.c.h.b16 %v524
    %v1274 = vunpack.c.l.b16 %v525
    %v1275 = vunpack.c.h.b16 %v525
    %v1276 = vunpack.c.l.b16 %v526
    %v1277 = vunpack.c.h.b16 %v526
    %v1278 = vunpack.c.l.b16 %v527
    %v1279 = vunpack.c.h.b16 %v527
    %v1280 = vunpack.c.l.b16 %v528
    %v1281 = vunpack.c.h.b16 %v528
    %v1282 = vunpack.c.l.b16 %v529
    %v1283 = vunpack.c.h.b16 %v529
    %v1284 = vunpack.c.l.b16 %v530
    %v1285 = vunpack.c.h.b16 %v530
    %v1286 = vunpack.c.l.b16 %v531
    %v1287 = vunpack.c.h.b16 %v531
    %v1288 = vunpack.c.l.b16 %v532
    %v1289 = vunpack.c.h.b16 %v532
    %v1290 = vunpack.c.l.b16 %v533
    %v1291 = vunpack.c.h.b16 %v533
    %v1292 = vunpack.c.l.b16 %v534
    %v1293 = vunpack.c.h.b16 %v534
    %v1294 = vunpack.c.l.b16 %v535
    %v1295 = vunpack.c.h.b16 %v535
    %v1296 = vunpack.c.l.b16 %v536
    %v1297 = vunpack.c.h.b16 %v536
    %v1298 = vunpack.c.l.b16 %v537
    %v1299 = vunpack.c.h.b16 %v537
    %v1300 = vunpack.c.l.b16 %v538
    %v1301 = vunpack.c.h.b16 %v538
    %v1302 = vunpack.c.l.b16 %v539
    %v1303 = vunpack.c.h.b16 %v539
    %v1304 = vunpack.c.l.b16 %v540
    %v1305 = vunpack.c.h.b16 %v540
    %v1306 = vunpack.c.l.b16 %v541
    %v1307 = vunpack.c.h.b16 %v541
    %v1308 = vunpack.c.l.b16 %v542
    %v1309 = vunpack.c.h.b16 %v542
    %v1310 = vunpack.c.l.b16 %v543
    %v1311 = vunpack.c.h.b16 %v543
    %v1312 = vunpack.c.l.b16 %v544
    %v1313 = vunpack.c.h.b16 %v544
    %v1314 = vunpack.c.l.b16 %v545
    %v1315 = vunpack.c.h.b16 %v545
    %v1316 = vunpack.c.l.b16 %v546
    %v1317 = vunpack.c.h.b16 %v546
    %v1318 = vunpack.c.l.b16 %v547
    %v1319 = vunpack.c.h.b16 %v547
    %v1320 = vunpack.c.l.b16 %v548
    %v1321 = vunpack.c.h.b16 %v548
    %v1322 = vunpack.c.l.b16 %v549
    %v1323 = vunpack.c.h.b16 %v549
    %v1324 = vunpack.c.l.b16 %v550
    %v1325 = vunpack.c.h.b16 %v550
    %v1326 = vunpack.c.l.b16 %v551
    %v1327 = vunpack.c.h.b16 %v551
    %v1328 = vunpack.c.l.b16 %v552
    %v1329 = vunpack.c.h.b16 %v552
    %v1330 = vunpack.c.l.b16 %v553
    %v1331 = vunpack.c.h.b16 %v553
    %v1332 = vunpack.c.l.b16 %v554
    %v1333 = vunpack.c.h.b16 %v554
    %v1334 = vunpack.c.l.b16 %v555
    %v1335 = vunpack.c.h.b16 %v555
    %v1336 = vunpack.c.l.b16 %v556
    %v1337 = vunpack.c.h.b16 %v556
    %v1338 = vunpack.c.l.b16 %v557
    %v1339 = vunpack.c.h.b16 %v557
    %v1340 = vunpack.c.l.b16 %v558
    %v1341 = vunpack.c.h.b16 %v558
    %v1342 = vunpack.c.l.b16 %v559
    %v1343 = vunpack.c.h.b16 %v559
    %v1344 = vunpack.c.l.b16 %v560
    %v1345 = vunpack.c.h.b16 %v560
    %v1346 = vunpack.c.l.b16 %v561
    %v1347 = vunpack.c.h.b16 %v561
    %v1348 = vunpack.c.l.b16 %v562
    %v1349 = vunpack.c.h.b16 %v562
    %v1350 = vunpack.c.l.b16 %v563
    %v1351 = vunpack.c.h.b16 %v563
    %v1352 = vunpack.c.l.b16 %v564
    %v1353 = vunpack.c.h.b16 %v564
    %v1354 = vunpack.c.l.b16 %v565
    %v1355 = vunpack.c.h.b16 %v565
    %v1356 = vunpack.c.l.b16 %v566
    %v1357 = vunpack.c.h.b16 %v566
    %v1358 = vunpack.c.l.b16 %v567
    %v1359 = vunpack.c.h.b16 %v567
    %v1360 = vunpack.c.l.b16 %v568
    %v1361 = vunpack.c.h.b16 %v568
    %v1362 = vunpack.c.l.b16 %v569
    %v1363 = vunpack.c.h.b16 %v569
    %v1364 = vunpack.c.l.b16 %v570
    %v1365 = vunpack.c.h.b16 %v570
    %v1366 = vunpack.c.l.b16 %v571
    %v1367 = vunpack.c.h.b16 %v571
    %v1368 = vunpack.c.l.b16 %v572
    %v1369 = vunpack.c.h.b16 %v572
    %v1370 = vunpack.c.l.b16 %v573
    %v1371 = vunpack.c.h.b16 %v573
    %v1372 = vunpack.c.l.b16 %v574
    %v1373 = vunpack.c.h.b16 %v574
    %v1374 = vunpack.c.l.b16 %v575
    %v1375 = vunpack.c.h.b16 %v575
    %v1376 = vunpack.c.l.b16 %v576
    %v1377 = vunpack.c.h.b16 %v576
    %v1378 = vunpack.c.l.b16 %v577
    %v1379 = vunpack.c.h.b16 %v577
    %v1380 = vunpack.c.l.b16 %v578
    %v1381 = vunpack.c.h.b16 %v578
    %v1382 = vunpack.c.l.b16 %v579
    %v1383 = vunpack.c.h.b16 %v579
    %v1384 = vunpack.c.l.b16 %v580
    %v1385 = vunpack.c.h.b16 %v580
    %v1386 = vunpack.c.l.b16 %v581
    %v1387 = vunpack.c.h.b16 %v581
    %v1388 = vunpack.c.l.b16 %v582
    %v1389 = vunpack.c.h.b16 %v582
    %v1390 = vunpack.c.l.b16 %v583
    %v1391 = vunpack.c.h.b16 %v583
    %v1392 = vunpack.c.l.b16 %v584
    %v1393 = vunpack.c.h.b16 %v584
    %v1394 = vunpack.c.l.b16 %v585
    %v1395 = vunpack.c.h.b16 %v585
    %v1396 = vpack.c.b16 %v892, %v884
    %v1397 = vpack.c.b16 %v893, %v885
    %v1398 = vpack.c.b16 %v894, %v886
    %v1399 = vpack.c.b16 %v895, %v887
    %v1400 = vpack.c.b16 %v896, %v888
    %v1401 = vpack.c.b16 %v897, %v889
    %v1402 = vpack.c.b16 %v898, %v890
    %v1403 = vpack.c.b16 %v899, %v891
    %v1404 = vpack.c.b16 %v908, %v900
    %v1405 = vpack.c.b16 %v909, %v901
    %v1406 = vpack.c.b16 %v910, %v902
    %v1407 = vpack.c.b16 %v911, %v903
    %v1408 = vpack.c.b16 %v912, %v904
    %v1409 = vpack.c.b16 %v913, %v905
    %v1410 = vpack.c.b16 %v914, %v906
    %v1411 = vpack.c.b16 %v915, %v907
    %v1412 = vpack.c.b16 %v924, %v916
    %v1413 = vpack.c.b16 %v925, %v917
    %v1414 = vpack.c.b16 %v926, %v918
    %v1415 = vpack.c.b16 %v927, %v919
    %v1416 = vpack.c.b16 %v928, %v920
    %v1417 = vpack.c.b16 %v929, %v921
    %v1418 = vpack.c.b16 %v930, %v922
    %v1419 = vpack.c.b16 %v931, %v923
    %v1420 = vpack.c.b16 %v940, %v932
    %v1421 = vpack.c.b16 %v941, %v933
    %v1422 = vpack.c.b16 %v942, %v934
    %v1423 = vpack.c.b16 %v943, %v935
    %v1424 = vpack.c.b16 %v944, %v936
    %v1425 = vpack.c.b16 %v945, %v937
    %v1426 = vpack.c.b16 %v946, %v938
    %v1427 = vpack.c.b16 %v947, %v939
    %v1428 = vpack.c.b16 %v956, %v948
    %v1429 = vpack.c.b16 %v957, %v949
    %v1430 = vpack.c.b16 %v958, %v950
    %v1431 = vpack.c.b16 %v959, %v951
    %v1432 = vpack.c.b16 %v960, %v952
    %v1433 = vpack.c.b16 %v961, %v953
    %v1434 = vpack.c.b16 %v962, %v954
    %v1435 = vpack.c.b16 %v963, %v955
    %v1436 = vpack.c.b16 %v972, %v964
    %v1437 = vpack.c.b16 %v973, %v965
    %v1438 = vpack.c.b16 %v974, %v966
    %v1439 = vpack.c.b16 %v975, %v967
    %v1440 = vpack.c.b16 %v976, %v968
    %v1441 = vpack.c.b16 %v977, %v969
    %v1442 = vpack.c.b16 %v978, %v970
    %v1443 = vpack.c.b16 %v979, %v971
    %v1444 = vpack.c.b16 %v988, %v980
    %v1445 = vpack.c.b16 %v989, %v981
    %v1446 = vpack.c.b16 %v990, %v982
    %v1447 = vpack.c.b16 %v991, %v983
    %v1448 = vpack.c.b16 %v992, %v984
    %v1449 = vpack.c.b16 %v993, %v985
    %v1450 = vpack.c.b16 %v994, %v986
    %v1451 = vpack.c.b16 %v995, %v987
    %v1452 = vpack.c.b16 %v1004, %v996
    %v1453 = vpack.c.b16 %v1005, %v997
    %v1454 = vpack.c.b16 %v1006, %v998
    %v1455 = vpack.c.b16 %v1007, %v999
    %v1456 = vpack.c.b16 %v1008, %v1000
    %v1457 = vpack.c.b16 %v1009, %v1001
    %v1458 = vpack.c.b16 %v1010, %v1002
    %v1459 = vpack.c.b16 %v1011, %v1003
    %v1460 = vpack.c.b16 %v1020, %v1012
    %v1461 = vpack.c.b16 %v1021, %v1013
    %v1462 = vpack.c.b16 %v1022, %v1014
    %v1463 = vpack.c.b16 %v1023, %v1015
    %v1464 = vpack.c.b16 %v1024, %v1016
    %v1465 = vpack.c.b16 %v1025, %v1017
    %v1466 = vpack.c.b16 %v1026, %v1018
    %v1467 = vpack.c.b16 %v1027, %v1019
    %v1468 = vpack.c.b16 %v1036, %v1028
    %v1469 = vpack.c.b16 %v1037, %v1029
    %v1470 = vpack.c.b16 %v1038, %v1030
    %v1471 = vpack.c.b16 %v1039, %v1031
    %v1472 = vpack.c.b16 %v1040, %v1032
    %v1473 = vpack.c.b16 %v1041, %v1033
    %v1474 = vpack.c.b16 %v1042, %v1034
    %v1475 = vpack.c.b16 %v1043, %v1035
    %v1476 = vpack.c.b16 %v1052, %v1044
    %v1477 = vpack.c.b16 %v1053, %v1045
    %v1478 = vpack.c.b16 %v1054, %v1046
    %v1479 = vpack.c.b16 %v1055, %v1047
    %v1480 = vpack.c.b16 %v1056, %v1048
    %v1481 = vpack.c.b16 %v1057, %v1049
    %v1482 = vpack.c.b16 %v1058, %v1050
    %v1483 = vpack.c.b16 %v1059, %v1051
    %v1484 = vpack.c.b16 %v1068, %v1060
    %v1485 = vpack.c.b16 %v1069, %v1061
    %v1486 = vpack.c.b16 %v1070, %v1062
    %v1487 = vpack.c.b16 %v1071, %v1063
    %v1488 = vpack.c.b16 %v1072, %v1064
    %v1489 = vpack.c.b16 %v1073, %v1065
    %v1490 = vpack.c.b16 %v1074, %v1066
    %v1491 = vpack.c.b16 %v1075, %v1067
    %v1492 = vpack.c.b16 %v1084, %v1076
    %v1493 = vpack.c.b16 %v1085, %v1077
    %v1494 = vpack.c.b16 %v1086, %v1078
    %v1495 = vpack.c.b16 %v1087, %v1079
    %v1496 = vpack.c.b16 %v1088, %v1080
    %v1497 = vpack.c.b16 %v1089, %v1081
    %v1498 = vpack.c.b16 %v1090, %v1082
    %v1499 = vpack.c.b16 %v1091, %v1083
    %v1500 = vpack.c.b16 %v1100, %v1092
    %v1501 = vpack.c.b16 %v1101, %v1093
    %v1502 = vpack.c.b16 %v1102, %v1094
    %v1503 = vpack.c.b16 %v1103, %v1095
    %v1504 = vpack.c.b16 %v1104, %v1096
    %v1505 = vpack.c.b16 %v1105, %v1097
    %v1506 = vpack.c.b16 %v1106, %v1098
    %v1507 = vpack.c.b16 %v1107, %v1099
    %v1508 = vpack.c.b16 %v1116, %v1108
    %v1509 = vpack.c.b16 %v1117, %v1109
    %v1510 = vpack.c.b16 %v1118, %v1110
    %v1511 = vpack.c.b16 %v1119, %v1111
    %v1512 = vpack.c.b16 %v1120, %v1112
    %v1513 = vpack.c.b16 %v1121, %v1113
    %v1514 = vpack.c.b16 %v1122, %v1114
    %v1515 = vpack.c.b16 %v1123, %v1115
    %v1516 = vpack.c.b16 %v1132, %v1124
    %v1517 = vpack.c.b16 %v1133, %v1125
    %v1518 = vpack.c.b16 %v1134, %v1126
    %v1519 = vpack.c.b16 %v1135, %v1127
    %v1520 = vpack.c.b16 %v1136, %v1128
    %v1521 = vpack.c.b16 %v1137, %v1129
    %v1522 = vpack.c.b16 %v1138, %v1130
    %v1523 = vpack.c.b16 %v1139, %v1131
    %v1524 = vpack.c.b16 %v1148, %v1140
    %v1525 = vpack.c.b16 %v1149, %v1141
    %v1526 = vpack.c.b16 %v1150, %v1142
    %v1527 = vpack.c.b16 %v1151, %v1143
    %v1528 = vpack.c.b16 %v1152, %v1144
    %v1529 = vpack.c.b16 %v1153, %v1145
    %v1530 = vpack.c.b16 %v1154, %v1146
    %v1531 = vpack.c.b16 %v1155, %v1147
    %v1532 = vpack.c.b16 %v1164, %v1156
    %v1533 = vpack.c.b16 %v1165, %v1157
    %v1534 = vpack.c.b16 %v1166, %v1158
    %v1535 = vpack.c.b16 %v1167, %v1159
    %v1536 = vpack.c.b16 %v1168, %v1160
    %v1537 = vpack.c.b16 %v1169, %v1161
    %v1538 = vpack.c.b16 %v1170, %v1162
    %v1539 = vpack.c.b16 %v1171, %v1163
    %v1540 = vpack.c.b16 %v1180, %v1172
    %v1541 = vpack.c.b16 %v1181, %v1173
    %v1542 = vpack.c.b16 %v1182, %v1174
    %v1543 = vpack.c.b16 %v1183, %v1175
    %v1544 = vpack.c.b16 %v1184, %v1176
    %v1545 = vpack.c.b16 %v1185, %v1177
    %v1546 = vpack.c.b16 %v1186, %v1178
    %v1547 = vpack.c.b16 %v1187, %v1179
    %v1548 = vpack.c.b16 %v1196, %v1188
    %v1549 = vpack.c.b16 %v1197, %v1189
    %v1550 = vpack.c.b16 %v1198, %v1190
    %v1551 = vpack.c.b16 %v1199, %v1191
    %v1552 = vpack.c.b16 %v1200, %v1192
    %v1553 = vpack.c.b16 %v1201, %v1193
    %v1554 = vpack.c.b16 %v1202, %v1194
    %v1555 = vpack.c.b16 %v1203, %v1195
    %v1556 = vpack.c.b16 %v1212, %v1204
    %v1557 = vpack.c.b16 %v1213, %v1205
    %v1558 = vpack.c.b16 %v1214, %v1206
    %v1559 = vpack.c.b16 %v1215, %v1207
    %v1560 = vpack.c.b16 %v1216, %v1208
    %v1561 = vpack.c.b16 %v1217, %v1209
    %v1562 = vpack.c.b16 %v1218, %v1210
    %v1563 = vpack.c.b16 %v1219, %v1211
    %v1564 = vpack.c.b16 %v1228, %v1220
    %v1565 = vpack.c.b16 %v1229, %v1221
    %v1566 = vpack.c.b16 %v1230, %v1222
    %v1567 = vpack.c.b16 %v1231, %v1223
    %v1568 = vpack.c.b16 %v1232, %v1224
    %v1569 = vpack.c.b16 %v1233, %v1225
    %v1570 = vpack.c.b16 %v1234, %v1226
    %v1571 = vpack.c.b16 %v1235, %v1227
    %v1572 = vpack.c.b16 %v1244, %v1236
    %v1573 = vpack.c.b16 %v1245, %v1237
    %v1574 = vpack.c.b16 %v1246, %v1238
    %v1575 = vpack.c.b16 %v1247, %v1239
    %v1576 = vpack.c.b16 %v1248, %v1240
    %v1577 = vpack.c.b16 %v1249, %v1241
    %v1578 = vpack.c.b16 %v1250, %v1242
    %v1579 = vpack.c.b16 %v1251, %v1243
    %v1580 = vpack.c.b16 %v1260, %v1252
    %v1581 = vpack.c.b16 %v1261, %v1253
    %v1582 = vpack.c.b16 %v1262, %v1254
    %v1583 = vpack.c.b16 %v1263, %v1255
    %v1584 = vpack.c.b16 %v1264, %v1256
    %v1585 = vpack.c.b16 %v1265, %v1257
    %v1586 = vpack.c.b16 %v1266, %v1258
    %v1587 = vpack.c.b16 %v1267, %v1259
    %v1588 = vpack.c.b16 %v1276, %v1268
    %v1589 = vpack.c.b16 %v1277, %v1269
    %v1590 = vpack.c.b16 %v1278, %v1270
    %v1591 = vpack.c.b16 %v1279, %v1271
    %v1592 = vpack.c.b16 %v1280, %v1272
    %v1593 = vpack.c.b16 %v1281, %v1273
    %v1594 = vpack.c.b16 %v1282, %v1274
    %v1595 = vpack.c.b16 %v1283, %v1275
    %v1596 = vpack.c.b16 %v1292, %v1284
    %v1597 = vpack.c.b16 %v1293, %v1285
    %v1598 = vpack.c.b16 %v1294, %v1286
    %v1599 = vpack.c.b16 %v1295, %v1287
    %v1600 = vpack.c.b16 %v1296, %v1288
    %v1601 = vpack.c.b16 %v1297, %v1289
    %v1602 = vpack.c.b16 %v1298, %v1290
    %v1603 = vpack.c.b16 %v1299, %v1291
    %v1604 = vpack.c.b16 %v1308, %v1300
    %v1605 = vpack.c.b16 %v1309, %v1301
    %v1606 = vpack.c.b16 %v1310, %v1302
    %v1607 = vpack.c.b16 %v1311, %v1303
    %v1608 = vpack.c.b16 %v1312, %v1304
    %v1609 = vpack.c.b16 %v1313, %v1305
    %v1610 = vpack.c.b16 %v1314, %v1306
    %v1611 = vpack.c.b16 %v1315, %v1307
    %v1612 = vpack.c.b16 %v1324, %v1316
    %v1613 = vpack.c.b16 %v1325, %v1317
    %v1614 = vpack.c.b16 %v1326, %v1318
    %v1615 = vpack.c.b16 %v1327, %v1319
    %v1616 = vpack.c.b16 %v1328, %v1320
    %v1617 = vpack.c.b16 %v1329, %v1321
    %v1618 = vpack.c.b16 %v1330, %v1322
    %v1619 = vpack.c.b16 %v1331, %v1323
    %v1620 = vpack.c.b16 %v1340, %v1332
    %v1621 = vpack.c.b16 %v1341, %v1333
    %v1622 = vpack.c.b16 %v1342, %v1334
    %v1623 = vpack.c.b16 %v1343, %v1335
    %v1624 = vpack.c.b16 %v1344, %v1336
    %v1625 = vpack.c.b16 %v1345, %v1337
    %v1626 = vpack.c.b16 %v1346, %v1338
    %v1627 = vpack.c.b16 %v1347, %v1339
    %v1628 = vpack.c.b16 %v1356, %v1348
    %v1629 = vpack.c.b16 %v1357, %v1349
    %v1630 = vpack.c.b16 %v1358, %v1350
    %v1631 = vpack.c.b16 %v1359, %v1351
    %v1632 = vpack.c.b16 %v1360, %v1352
    %v1633 = vpack.c.b16 %v1361, %v1353
    %v1634 = vpack.c.b16 %v1362, %v1354
    %v1635 = vpack.c.b16 %v1363, %v1355
    %v1636 = vpack.c.b16 %v1372, %v1364
    %v1637 = vpack.c.b16 %v1373, %v1365
    %v1638 = vpack.c.b16 %v1374, %v1366
    %v1639 = vpack.c.b16 %v1375, %v1367
    %v1640 = vpack.c.b16 %v1376, %v1368
    %v1641 = vpack.c.b16 %v1377, %v1369
    %v1642 = vpack.c.b16 %v1378, %v1370
    %v1643 = vpack.c.b16 %v1379, %v1371
    %v1644 = vpack.c.b16 %v1388, %v1380
    %v1645 = vpack.c.b16 %v1389, %v1381
    %v1646 = vpack.c.b16 %v1390, %v1382
    %v1647 = vpack.c.b16 %v1391, %v1383
    %v1648 = vpack.c.b16 %v1392, %v1384
    %v1649 = vpack.c.b16 %v1393, %v1385
    %v1650 = vpack.c.b16 %v1394, %v1386
    %v1651 = vpack.c.b16 %v1395, %v1387
    %1908 = vmatprep.subr.bf16.mxu0 %v1453
    %1909 = vmatpush1.bf16.msra.mxu0 %v1452
    %1910 = vmatprep.subr.bf16.mxu0 %v1445
    %1911 = vmatpush1.bf16.msra.mxu0 %v1444
    %1912 = vmatprep.subr.bf16.mxu0 %v1437
    %1913 = vmatpush1.bf16.msra.mxu0 %v1436
    %1914 = vmatprep.subr.bf16.mxu0 %v1429
    %1915 = vmatpush1.bf16.msra.mxu0 %v1428
    %1916 = vmatprep.subr.bf16.mxu0 %v1421
    %1917 = vmatpush1.bf16.msra.mxu0 %v1420
    %1918 = vmatprep.subr.bf16.mxu0 %v1413
    %1919 = vmatpush1.bf16.msra.mxu0 %v1412
    %1920 = vmatprep.subr.bf16.mxu0 %v1405
    %1921 = vmatpush1.bf16.msra.mxu0 %v1404
    %1922 = vmatprep.subr.bf16.mxu0 %v1397
    %1923 = vmatpush1.bf16.msra.mxu0 %v1396
    %1924 = vmatprep.subr.bf16.mxu0 %v1517
    %1925 = vmatpush2.bf16.msra.mxu0 %v1516
    %1926 = vmatprep.subr.bf16.mxu0 %v1509
    %1927 = vmatpush2.bf16.msra.mxu0 %v1508
    %1928 = vmatprep.subr.bf16.mxu0 %v1501
    %1929 = vmatpush2.bf16.msra.mxu0 %v1500
    %1930 = vmatprep.subr.bf16.mxu0 %v1493
    %1931 = vmatpush2.bf16.msra.mxu0 %v1492
    %1932 = vmatprep.subr.bf16.mxu0 %v1485
    %1933 = vmatpush2.bf16.msra.mxu0 %v1484
    %1934 = vmatprep.subr.bf16.mxu0 %v1477
    %1935 = vmatpush2.bf16.msra.mxu0 %v1476
    %1936 = vmatprep.subr.bf16.mxu0 %v1469
    %1937 = vmatpush2.bf16.msra.mxu0 %v1468
    %1938 = vmatprep.subr.bf16.mxu0 %v1461
    %1939 = vmatpush2.bf16.msra.mxu0 %v1460
    %1940 = vmatprep.mubr.bf16.mxu0 %v327
    %1941 = vmatmul.mubr.bf16.gmra.mxu0 %v326
    %v1942 = vpop.f32.mrf.mxu0
    %v1943 = vadd.f32 %v591, %v1942
    %v1944 = vpop.f32.mrf.mxu0
    %v1945 = vadd.f32 %v595, %v1944
    %v1946 = vpop.f32.mrf.mxu0
    %v1947 = vpop.f32.mrf.mxu0
    %1948 = vdwg.mxu0
    %1949 = vmatprep.subr.bf16.mxu0 %v1581
    %1950 = vmatpush1.bf16.msra.mxu0 %v1580
    %1951 = vmatprep.subr.bf16.mxu0 %v1573
    %1952 = vmatpush1.bf16.msra.mxu0 %v1572
    %1953 = vmatprep.subr.bf16.mxu0 %v1565
    %1954 = vmatpush1.bf16.msra.mxu0 %v1564
    %1955 = vmatprep.subr.bf16.mxu0 %v1557
    %1956 = vmatpush1.bf16.msra.mxu0 %v1556
    %1957 = vmatprep.subr.bf16.mxu0 %v1549
    %1958 = vmatpush1.bf16.msra.mxu0 %v1548
    %1959 = vmatprep.subr.bf16.mxu0 %v1541
    %1960 = vmatpush1.bf16.msra.mxu0 %v1540
    %1961 = vmatprep.subr.bf16.mxu0 %v1533
    %1962 = vmatpush1.bf16.msra.mxu0 %v1532
    %1963 = vmatprep.subr.bf16.mxu0 %v1525
    %1964 = vmatpush1.bf16.msra.mxu0 %v1524
    %1965 = vmatprep.subr.bf16.mxu0 %v1645
    %1966 = vmatpush2.bf16.msra.mxu0 %v1644
    %1967 = vmatprep.subr.bf16.mxu0 %v1637
    %1968 = vmatpush2.bf16.msra.mxu0 %v1636
    %1969 = vmatprep.subr.bf16.mxu0 %v1629
    %1970 = vmatpush2.bf16.msra.mxu0 %v1628
    %1971 = vmatprep.subr.bf16.mxu0 %v1621
    %1972 = vmatpush2.bf16.msra.mxu0 %v1620
    %1973 = vmatprep.subr.bf16.mxu0 %v1613
    %1974 = vmatpush2.bf16.msra.mxu0 %v1612
    %1975 = vmatprep.subr.bf16.mxu0 %v1605
    %1976 = vmatpush2.bf16.msra.mxu0 %v1604
    %1977 = vmatprep.subr.bf16.mxu0 %v1597
    %1978 = vmatpush2.bf16.msra.mxu0 %v1596
    %1979 = vmatprep.subr.bf16.mxu0 %v1589
    %1980 = vmatpush2.bf16.msra.mxu0 %v1588
    %1981 = vmatprep.mubr.bf16.mxu0 %v329
    %1982 = vmatmul.mubr.bf16.gmra.mxu0 %v328
    %v1983 = vpop.f32.mrf.mxu0
    %v1984 = vadd.f32 %v1943, %v1983
    %v1985 = vpop.f32.mrf.mxu0
    %v1986 = vadd.f32 %v1945, %v1985
    %v1987 = vpop.f32.mrf.mxu0
    %v1988 = vpop.f32.mrf.mxu0
    %1989 = vdwg.mxu0
    %1990 = vmatprep.subr.bf16.mxu0 %v1455
    %1991 = vmatpush1.bf16.msra.mxu0 %v1454
    %1992 = vmatprep.subr.bf16.mxu0 %v1447
    %1993 = vmatpush1.bf16.msra.mxu0 %v1446
    %1994 = vmatprep.subr.bf16.mxu0 %v1439
    %1995 = vmatpush1.bf16.msra.mxu0 %v1438
    %1996 = vmatprep.subr.bf16.mxu0 %v1431
    %1997 = vmatpush1.bf16.msra.mxu0 %v1430
    %1998 = vmatprep.subr.bf16.mxu0 %v1423
    %1999 = vmatpush1.bf16.msra.mxu0 %v1422
    %2000 = vmatprep.subr.bf16.mxu0 %v1415
    %2001 = vmatpush1.bf16.msra.mxu0 %v1414
    %2002 = vmatprep.subr.bf16.mxu0 %v1407
    %2003 = vmatpush1.bf16.msra.mxu0 %v1406
    %2004 = vmatprep.subr.bf16.mxu0 %v1399
    %2005 = vmatpush1.bf16.msra.mxu0 %v1398
    %2006 = vmatprep.subr.bf16.mxu0 %v1519
    %2007 = vmatpush2.bf16.msra.mxu0 %v1518
    %2008 = vmatprep.subr.bf16.mxu0 %v1511
    %2009 = vmatpush2.bf16.msra.mxu0 %v1510
    %2010 = vmatprep.subr.bf16.mxu0 %v1503
    %2011 = vmatpush2.bf16.msra.mxu0 %v1502
    %2012 = vmatprep.subr.bf16.mxu0 %v1495
    %2013 = vmatpush2.bf16.msra.mxu0 %v1494
    %2014 = vmatprep.subr.bf16.mxu0 %v1487
    %2015 = vmatpush2.bf16.msra.mxu0 %v1486
    %2016 = vmatprep.subr.bf16.mxu0 %v1479
    %2017 = vmatpush2.bf16.msra.mxu0 %v1478
    %2018 = vmatprep.subr.bf16.mxu0 %v1471
    %2019 = vmatpush2.bf16.msra.mxu0 %v1470
    %2020 = vmatprep.subr.bf16.mxu0 %v1463
    %2021 = vmatpush2.bf16.msra.mxu0 %v1462
    %2022 = vmatprep.mubr.bf16.mxu0 %v327
    %2023 = vmatmul.mubr.bf16.gmra.mxu0 %v326
    %v2024 = vpop.f32.mrf.mxu0
    %v2025 = vadd.f32 %v599, %v2024
    %v2026 = vpop.f32.mrf.mxu0
    %v2027 = vadd.f32 %v603, %v2026
    %v2028 = vpop.f32.mrf.mxu0
    %v2029 = vpop.f32.mrf.mxu0
    %2030 = vdwg.mxu0
    %2031 = vmatprep.subr.bf16.mxu0 %v1583
    %2032 = vmatpush1.bf16.msra.mxu0 %v1582
    %2033 = vmatprep.subr.bf16.mxu0 %v1575
    %2034 = vmatpush1.bf16.msra.mxu0 %v1574
    %2035 = vmatprep.subr.bf16.mxu0 %v1567
    %2036 = vmatpush1.bf16.msra.mxu0 %v1566
    %2037 = vmatprep.subr.bf16.mxu0 %v1559
    %2038 = vmatpush1.bf16.msra.mxu0 %v1558
    %2039 = vmatprep.subr.bf16.mxu0 %v1551
    %2040 = vmatpush1.bf16.msra.mxu0 %v1550
    %2041 = vmatprep.subr.bf16.mxu0 %v1543
    %2042 = vmatpush1.bf16.msra.mxu0 %v1542
    %2043 = vmatprep.subr.bf16.mxu0 %v1535
    %2044 = vmatpush1.bf16.msra.mxu0 %v1534
    %2045 = vmatprep.subr.bf16.mxu0 %v1527
    %2046 = vmatpush1.bf16.msra.mxu0 %v1526
    %2047 = vmatprep.subr.bf16.mxu0 %v1647
    %2048 = vmatpush2.bf16.msra.mxu0 %v1646
    %2049 = vmatprep.subr.bf16.mxu0 %v1639
    %2050 = vmatpush2.bf16.msra.mxu0 %v1638
    %2051 = vmatprep.subr.bf16.mxu0 %v1631
    %2052 = vmatpush2.bf16.msra.mxu0 %v1630
    %2053 = vmatprep.subr.bf16.mxu0 %v1623
    %2054 = vmatpush2.bf16.msra.mxu0 %v1622
    %2055 = vmatprep.subr.bf16.mxu0 %v1615
    %2056 = vmatpush2.bf16.msra.mxu0 %v1614
    %2057 = vmatprep.subr.bf16.mxu0 %v1607
    %2058 = vmatpush2.bf16.msra.mxu0 %v1606
    %2059 = vmatprep.subr.bf16.mxu0 %v1599
    %2060 = vmatpush2.bf16.msra.mxu0 %v1598
    %2061 = vmatprep.subr.bf16.mxu0 %v1591
    %2062 = vmatpush2.bf16.msra.mxu0 %v1590
    %2063 = vmatprep.mubr.bf16.mxu0 %v329
    %2064 = vmatmul.mubr.bf16.gmra.mxu0 %v328
    %v2065 = vpop.f32.mrf.mxu0
    %v2066 = vadd.f32 %v2025, %v2065
    %v2067 = vpop.f32.mrf.mxu0
    %v2068 = vadd.f32 %v2027, %v2067
    %v2069 = vpop.f32.mrf.mxu0
    %v2070 = vpop.f32.mrf.mxu0
    %2071 = vdwg.mxu0
    %2072 = vmatprep.subr.bf16.mxu0 %v1457
    %2073 = vmatpush1.bf16.msra.mxu0 %v1456
    %2074 = vmatprep.subr.bf16.mxu0 %v1449
    %2075 = vmatpush1.bf16.msra.mxu0 %v1448
    %2076 = vmatprep.subr.bf16.mxu0 %v1441
    %2077 = vmatpush1.bf16.msra.mxu0 %v1440
    %2078 = vmatprep.subr.bf16.mxu0 %v1433
    %2079 = vmatpush1.bf16.msra.mxu0 %v1432
    %2080 = vmatprep.subr.bf16.mxu0 %v1425
    %2081 = vmatpush1.bf16.msra.mxu0 %v1424
    %2082 = vmatprep.subr.bf16.mxu0 %v1417
    %2083 = vmatpush1.bf16.msra.mxu0 %v1416
    %2084 = vmatprep.subr.bf16.mxu0 %v1409
    %2085 = vmatpush1.bf16.msra.mxu0 %v1408
    %2086 = vmatprep.subr.bf16.mxu0 %v1401
    %2087 = vmatpush1.bf16.msra.mxu0 %v1400
    %2088 = vmatprep.subr.bf16.mxu0 %v1521
    %2089 = vmatpush2.bf16.msra.mxu0 %v1520
    %2090 = vmatprep.subr.bf16.mxu0 %v1513
    %2091 = vmatpush2.bf16.msra.mxu0 %v1512
    %2092 = vmatprep.subr.bf16.mxu0 %v1505
    %2093 = vmatpush2.bf16.msra.mxu0 %v1504
    %2094 = vmatprep.subr.bf16.mxu0 %v1497
    %2095 = vmatpush2.bf16.msra.mxu0 %v1496
    %2096 = vmatprep.subr.bf16.mxu0 %v1489
    %2097 = vmatpush2.bf16.msra.mxu0 %v1488
    %2098 = vmatprep.subr.bf16.mxu0 %v1481
    %2099 = vmatpush2.bf16.msra.mxu0 %v1480
    %2100 = vmatprep.subr.bf16.mxu0 %v1473
    %2101 = vmatpush2.bf16.msra.mxu0 %v1472
    %2102 = vmatprep.subr.bf16.mxu0 %v1465
    %2103 = vmatpush2.bf16.msra.mxu0 %v1464
    %2104 = vmatprep.mubr.bf16.mxu0 %v327
    %2105 = vmatmul.mubr.bf16.gmra.mxu0 %v326
    %v2106 = vpop.f32.mrf.mxu0
    %v2107 = vadd.f32 %v607, %v2106
    %v2108 = vpop.f32.mrf.mxu0
    %v2109 = vadd.f32 %v611, %v2108
    %v2110 = vpop.f32.mrf.mxu0
    %v2111 = vpop.f32.mrf.mxu0
    %2112 = vdwg.mxu0
    %2113 = vmatprep.subr.bf16.mxu0 %v1585
    %2114 = vmatpush1.bf16.msra.mxu0 %v1584
    %2115 = vmatprep.subr.bf16.mxu0 %v1577
    %2116 = vmatpush1.bf16.msra.mxu0 %v1576
    %2117 = vmatprep.subr.bf16.mxu0 %v1569
    %2118 = vmatpush1.bf16.msra.mxu0 %v1568
    %2119 = vmatprep.subr.bf16.mxu0 %v1561
    %2120 = vmatpush1.bf16.msra.mxu0 %v1560
    %2121 = vmatprep.subr.bf16.mxu0 %v1553
    %2122 = vmatpush1.bf16.msra.mxu0 %v1552
    %2123 = vmatprep.subr.bf16.mxu0 %v1545
    %2124 = vmatpush1.bf16.msra.mxu0 %v1544
    %2125 = vmatprep.subr.bf16.mxu0 %v1537
    %2126 = vmatpush1.bf16.msra.mxu0 %v1536
    %2127 = vmatprep.subr.bf16.mxu0 %v1529
    %2128 = vmatpush1.bf16.msra.mxu0 %v1528
    %2129 = vmatprep.subr.bf16.mxu0 %v1649
    %2130 = vmatpush2.bf16.msra.mxu0 %v1648
    %2131 = vmatprep.subr.bf16.mxu0 %v1641
    %2132 = vmatpush2.bf16.msra.mxu0 %v1640
    %2133 = vmatprep.subr.bf16.mxu0 %v1633
    %2134 = vmatpush2.bf16.msra.mxu0 %v1632
    %2135 = vmatprep.subr.bf16.mxu0 %v1625
    %2136 = vmatpush2.bf16.msra.mxu0 %v1624
    %2137 = vmatprep.subr.bf16.mxu0 %v1617
    %2138 = vmatpush2.bf16.msra.mxu0 %v1616
    %2139 = vmatprep.subr.bf16.mxu0 %v1609
    %2140 = vmatpush2.bf16.msra.mxu0 %v1608
    %2141 = vmatprep.subr.bf16.mxu0 %v1601
    %2142 = vmatpush2.bf16.msra.mxu0 %v1600
    %2143 = vmatprep.subr.bf16.mxu0 %v1593
    %2144 = vmatpush2.bf16.msra.mxu0 %v1592
    %2145 = vmatprep.mubr.bf16.mxu0 %v329
    %2146 = vmatmul.mubr.bf16.gmra.mxu0 %v328
    %v2147 = vpop.f32.mrf.mxu0
    %v2148 = vadd.f32 %v2107, %v2147
    %v2149 = vpop.f32.mrf.mxu0
    %v2150 = vadd.f32 %v2109, %v2149
    %v2151 = vpop.f32.mrf.mxu0
    %v2152 = vpop.f32.mrf.mxu0
    %2153 = vdwg.mxu0
    %2154 = vmatprep.subr.bf16.mxu0 %v1459
    %2155 = vmatpush1.bf16.msra.mxu0 %v1458
    %2156 = vmatprep.subr.bf16.mxu0 %v1451
    %2157 = vmatpush1.bf16.msra.mxu0 %v1450
    %2158 = vmatprep.subr.bf16.mxu0 %v1443
    %2159 = vmatpush1.bf16.msra.mxu0 %v1442
    %2160 = vmatprep.subr.bf16.mxu0 %v1435
    %2161 = vmatpush1.bf16.msra.mxu0 %v1434
    %2162 = vmatprep.subr.bf16.mxu0 %v1427
    %2163 = vmatpush1.bf16.msra.mxu0 %v1426
    %2164 = vmatprep.subr.bf16.mxu0 %v1419
    %2165 = vmatpush1.bf16.msra.mxu0 %v1418
    %2166 = vmatprep.subr.bf16.mxu0 %v1411
    %2167 = vmatpush1.bf16.msra.mxu0 %v1410
    %2168 = vmatprep.subr.bf16.mxu0 %v1403
    %2169 = vmatpush1.bf16.msra.mxu0 %v1402
    %2170 = vmatprep.subr.bf16.mxu0 %v1523
    %2171 = vmatpush2.bf16.msra.mxu0 %v1522
    %2172 = vmatprep.subr.bf16.mxu0 %v1515
    %2173 = vmatpush2.bf16.msra.mxu0 %v1514
    %2174 = vmatprep.subr.bf16.mxu0 %v1507
    %2175 = vmatpush2.bf16.msra.mxu0 %v1506
    %2176 = vmatprep.subr.bf16.mxu0 %v1499
    %2177 = vmatpush2.bf16.msra.mxu0 %v1498
    %2178 = vmatprep.subr.bf16.mxu0 %v1491
    %2179 = vmatpush2.bf16.msra.mxu0 %v1490
    %2180 = vmatprep.subr.bf16.mxu0 %v1483
    %2181 = vmatpush2.bf16.msra.mxu0 %v1482
    %2182 = vmatprep.subr.bf16.mxu0 %v1475
    %2183 = vmatpush2.bf16.msra.mxu0 %v1474
    %2184 = vmatprep.subr.bf16.mxu0 %v1467
    %2185 = vmatpush2.bf16.msra.mxu0 %v1466
    %2186 = vmatprep.mubr.bf16.mxu0 %v327
    %2187 = vmatmul.mubr.bf16.gmra.mxu0 %v326
    %v2188 = vpop.f32.mrf.mxu0
    %v2189 = vadd.f32 %v615, %v2188
    %v2190 = vpop.f32.mrf.mxu0
    %v2191 = vadd.f32 %v619, %v2190
    %v2192 = vpop.f32.mrf.mxu0
    %v2193 = vpop.f32.mrf.mxu0
    %2194 = vdwg.mxu0
    %2195 = vmatprep.subr.bf16.mxu0 %v1587
    %2196 = vmatpush1.bf16.msra.mxu0 %v1586
    %2197 = vmatprep.subr.bf16.mxu0 %v1579
    %2198 = vmatpush1.bf16.msra.mxu0 %v1578
    %2199 = vmatprep.subr.bf16.mxu0 %v1571
    %2200 = vmatpush1.bf16.msra.mxu0 %v1570
    %2201 = vmatprep.subr.bf16.mxu0 %v1563
    %2202 = vmatpush1.bf16.msra.mxu0 %v1562
    %2203 = vmatprep.subr.bf16.mxu0 %v1555
    %2204 = vmatpush1.bf16.msra.mxu0 %v1554
    %2205 = vmatprep.subr.bf16.mxu0 %v1547
    %2206 = vmatpush1.bf16.msra.mxu0 %v1546
    %2207 = vmatprep.subr.bf16.mxu0 %v1539
    %2208 = vmatpush1.bf16.msra.mxu0 %v1538
    %2209 = vmatprep.subr.bf16.mxu0 %v1531
    %2210 = vmatpush1.bf16.msra.mxu0 %v1530
    %2211 = vmatprep.subr.bf16.mxu0 %v1651
    %2212 = vmatpush2.bf16.msra.mxu0 %v1650
    %2213 = vmatprep.subr.bf16.mxu0 %v1643
    %2214 = vmatpush2.bf16.msra.mxu0 %v1642
    %2215 = vmatprep.subr.bf16.mxu0 %v1635
    %2216 = vmatpush2.bf16.msra.mxu0 %v1634
    %2217 = vmatprep.subr.bf16.mxu0 %v1627
    %2218 = vmatpush2.bf16.msra.mxu0 %v1626
    %2219 = vmatprep.subr.bf16.mxu0 %v1619
    %2220 = vmatpush2.bf16.msra.mxu0 %v1618
    %2221 = vmatprep.subr.bf16.mxu0 %v1611
    %2222 = vmatpush2.bf16.msra.mxu0 %v1610
    %2223 = vmatprep.subr.bf16.mxu0 %v1603
    %2224 = vmatpush2.bf16.msra.mxu0 %v1602
    %2225 = vmatprep.subr.bf16.mxu0 %v1595
    %2226 = vmatpush2.bf16.msra.mxu0 %v1594
    %2227 = vmatprep.mubr.bf16.mxu0 %v329
    %2228 = vmatmul.mubr.bf16.gmra.mxu0 %v328
    %v2229 = vpop.f32.mrf.mxu0
    %v2230 = vadd.f32 %v2189, %v2229
    %v2231 = vpop.f32.mrf.mxu0
    %v2232 = vadd.f32 %v2191, %v2231
    %v2233 = vpop.f32.mrf.mxu0
    %v2234 = vpop.f32.mrf.mxu0
    %2235 = vdwg.mxu0
    %v2236 = vmax.f32 %v1984, 0.0
    %v2237 = vmax.f32 %v1986, 0.0
    %v2238 = vmax.f32 %v2066, 0.0
    %v2239 = vmax.f32 %v2068, 0.0
    %v2240 = vmax.f32 %v2148, 0.0
    %v2241 = vmax.f32 %v2150, 0.0
    %v2242 = vmax.f32 %v2230, 0.0
    %v2243 = vmax.f32 %v2232, 0.0
    %v2244 = vpack.c.bf16 %v2236, %v2236
    %v2245 = vpack.c.bf16 %v2237, %v2237
    %v2246 = vpack.c.bf16 %v2238, %v2238
    %v2247 = vpack.c.bf16 %v2239, %v2239
    %v2248 = vpack.c.bf16 %v2240, %v2240
    %v2249 = vpack.c.bf16 %v2241, %v2241
    %v2250 = vpack.c.bf16 %v2242, %v2242
    %v2251 = vpack.c.bf16 %v2243, %v2243
    %v2252 = vld [vmem:[%s7] sm:$0xf]
    %v2253 = vld [vmem:[%s7 + $0x4] sm:$0xf]
    %v2254 = vld [vmem:[%s7 + $0x8] sm:$0xf]
    %v2255 = vld [vmem:[%s7 + $0xc] sm:$0xf]
    %v2256 = vld [vmem:[%s7 + $0x10] sm:$0xf]
    %v2257 = vld [vmem:[%s7 + $0x14] sm:$0xf]
    %v2258 = vld [vmem:[%s7 + $0x18] sm:$0xf]
    %v2259 = vld [vmem:[%s7 + $0x1c] sm:$0xf]
    %v2260 = vld [vmem:[%s7 + $0x20] sm:$0xf]
    %v2261 = vld [vmem:[%s7 + $0x24] sm:$0xf]
    %v2262 = vld [vmem:[%s7 + $0x28] sm:$0xf]
    %v2263 = vld [vmem:[%s7 + $0x2c] sm:$0xf]
    %v2264 = vld [vmem:[%s7 + $0x30] sm:$0xf]
    %v2265 = vld [vmem:[%s7 + $0x34] sm:$0xf]
    %v2266 = vld [vmem:[%s7 + $0x38] sm:$0xf]
    %v2267 = vld [vmem:[%s7 + $0x3c] sm:$0xf]
    %v2268 = vld [vmem:[%s7 + $0x40] sm:$0xf]
    %v2269 = vld [vmem:[%s7 + $0x44] sm:$0xf]
    %v2270 = vld [vmem:[%s7 + $0x48] sm:$0xf]
    %v2271 = vld [vmem:[%s7 + $0x4c] sm:$0xf]
    %v2272 = vld [vmem:[%s7 + $0x50] sm:$0xf]
    %v2273 = vld [vmem:[%s7 + $0x54] sm:$0xf]
    %v2274 = vld [vmem:[%s7 + $0x58] sm:$0xf]
    %v2275 = vld [vmem:[%s7 + $0x5c] sm:$0xf]
    %v2276 = vld [vmem:[%s7 + $0x60] sm:$0xf]
    %v2277 = vld [vmem:[%s7 + $0x64] sm:$0xf]
    %v2278 = vld [vmem:[%s7 + $0x68] sm:$0xf]
    %v2279 = vld [vmem:[%s7 + $0x6c] sm:$0xf]
    %v2280 = vld [vmem:[%s7 + $0x70] sm:$0xf]
    %v2281 = vld [vmem:[%s7 + $0x74] sm:$0xf]
    %v2282 = vld [vmem:[%s7 + $0x78] sm:$0xf]
    %v2283 = vld [vmem:[%s7 + $0x7c] sm:$0xf]
    %v2284 = vld [vmem:[%s7 + $0x80] sm:$0xf]
    %v2285 = vld [vmem:[%s7 + $0x84] sm:$0xf]
    %v2286 = vld [vmem:[%s7 + $0x88] sm:$0xf]
    %v2287 = vld [vmem:[%s7 + $0x8c] sm:$0xf]
    %v2288 = vld [vmem:[%s7 + $0x90] sm:$0xf]
    %v2289 = vld [vmem:[%s7 + $0x94] sm:$0xf]
    %v2290 = vld [vmem:[%s7 + $0x98] sm:$0xf]
    %v2291 = vld [vmem:[%s7 + $0x9c] sm:$0xf]
    %v2292 = vld [vmem:[%s7 + $0xa0] sm:$0xf]
    %v2293 = vld [vmem:[%s7 + $0xa4] sm:$0xf]
    %v2294 = vld [vmem:[%s7 + $0xa8] sm:$0xf]
    %v2295 = vld [vmem:[%s7 + $0xac] sm:$0xf]
    %v2296 = vld [vmem:[%s7 + $0xb0] sm:$0xf]
    %v2297 = vld [vmem:[%s7 + $0xb4] sm:$0xf]
    %v2298 = vld [vmem:[%s7 + $0xb8] sm:$0xf]
    %v2299 = vld [vmem:[%s7 + $0xbc] sm:$0xf]
    %v2300 = vld [vmem:[%s7 + $0xc0] sm:$0xf]
    %v2301 = vld [vmem:[%s7 + $0xc4] sm:$0xf]
    %v2302 = vld [vmem:[%s7 + $0xc8] sm:$0xf]
    %v2303 = vld [vmem:[%s7 + $0xcc] sm:$0xf]
    %v2304 = vld [vmem:[%s7 + $0xd0] sm:$0xf]
    %v2305 = vld [vmem:[%s7 + $0xd4] sm:$0xf]
    %v2306 = vld [vmem:[%s7 + $0xd8] sm:$0xf]
    %v2307 = vld [vmem:[%s7 + $0xdc] sm:$0xf]
    %v2308 = vld [vmem:[%s7 + $0xe0] sm:$0xf]
    %v2309 = vld [vmem:[%s7 + $0xe4] sm:$0xf]
    %v2310 = vld [vmem:[%s7 + $0xe8] sm:$0xf]
    %v2311 = vld [vmem:[%s7 + $0xec] sm:$0xf]
    %v2312 = vld [vmem:[%s7 + $0xf0] sm:$0xf]
    %v2313 = vld [vmem:[%s7 + $0xf4] sm:$0xf]
    %v2314 = vld [vmem:[%s7 + $0xf8] sm:$0xf]
    %v2315 = vld [vmem:[%s7 + $0xfc] sm:$0xf]
    %v2316 = vld [vmem:[%s7 + $0x100] sm:$0xf]
    %v2317 = vld [vmem:[%s7 + $0x104] sm:$0xf]
    %v2318 = vld [vmem:[%s7 + $0x108] sm:$0xf]
    %v2319 = vld [vmem:[%s7 + $0x10c] sm:$0xf]
    %v2320 = vld [vmem:[%s7 + $0x110] sm:$0xf]
    %v2321 = vld [vmem:[%s7 + $0x114] sm:$0xf]
    %v2322 = vld [vmem:[%s7 + $0x118] sm:$0xf]
    %v2323 = vld [vmem:[%s7 + $0x11c] sm:$0xf]
    %v2324 = vld [vmem:[%s7 + $0x120] sm:$0xf]
    %v2325 = vld [vmem:[%s7 + $0x124] sm:$0xf]
    %v2326 = vld [vmem:[%s7 + $0x128] sm:$0xf]
    %v2327 = vld [vmem:[%s7 + $0x12c] sm:$0xf]
    %v2328 = vld [vmem:[%s7 + $0x130] sm:$0xf]
    %v2329 = vld [vmem:[%s7 + $0x134] sm:$0xf]
    %v2330 = vld [vmem:[%s7 + $0x138] sm:$0xf]
    %v2331 = vld [vmem:[%s7 + $0x13c] sm:$0xf]
    %v2332 = vld [vmem:[%s7 + $0x140] sm:$0xf]
    %v2333 = vld [vmem:[%s7 + $0x144] sm:$0xf]
    %v2334 = vld [vmem:[%s7 + $0x148] sm:$0xf]
    %v2335 = vld [vmem:[%s7 + $0x14c] sm:$0xf]
    %v2336 = vld [vmem:[%s7 + $0x150] sm:$0xf]
    %v2337 = vld [vmem:[%s7 + $0x154] sm:$0xf]
    %v2338 = vld [vmem:[%s7 + $0x158] sm:$0xf]
    %v2339 = vld [vmem:[%s7 + $0x15c] sm:$0xf]
    %v2340 = vld [vmem:[%s7 + $0x160] sm:$0xf]
    %v2341 = vld [vmem:[%s7 + $0x164] sm:$0xf]
    %v2342 = vld [vmem:[%s7 + $0x168] sm:$0xf]
    %v2343 = vld [vmem:[%s7 + $0x16c] sm:$0xf]
    %v2344 = vld [vmem:[%s7 + $0x170] sm:$0xf]
    %v2345 = vld [vmem:[%s7 + $0x174] sm:$0xf]
    %v2346 = vld [vmem:[%s7 + $0x178] sm:$0xf]
    %v2347 = vld [vmem:[%s7 + $0x17c] sm:$0xf]
    %v2348 = vld [vmem:[%s7 + $0x180] sm:$0xf]
    %v2349 = vld [vmem:[%s7 + $0x184] sm:$0xf]
    %v2350 = vld [vmem:[%s7 + $0x188] sm:$0xf]
    %v2351 = vld [vmem:[%s7 + $0x18c] sm:$0xf]
    %v2352 = vld [vmem:[%s7 + $0x190] sm:$0xf]
    %v2353 = vld [vmem:[%s7 + $0x194] sm:$0xf]
    %v2354 = vld [vmem:[%s7 + $0x198] sm:$0xf]
    %v2355 = vld [vmem:[%s7 + $0x19c] sm:$0xf]
    %v2356 = vld [vmem:[%s7 + $0x1a0] sm:$0xf]
    %v2357 = vld [vmem:[%s7 + $0x1a4] sm:$0xf]
    %v2358 = vld [vmem:[%s7 + $0x1a8] sm:$0xf]
    %v2359 = vld [vmem:[%s7 + $0x1ac] sm:$0xf]
    %v2360 = vld [vmem:[%s7 + $0x1b0] sm:$0xf]
    %v2361 = vld [vmem:[%s7 + $0x1b4] sm:$0xf]
    %v2362 = vld [vmem:[%s7 + $0x1b8] sm:$0xf]
    %v2363 = vld [vmem:[%s7 + $0x1bc] sm:$0xf]
    %v2364 = vld [vmem:[%s7 + $0x1c0] sm:$0xf]
    %v2365 = vld [vmem:[%s7 + $0x1c4] sm:$0xf]
    %v2366 = vld [vmem:[%s7 + $0x1c8] sm:$0xf]
    %v2367 = vld [vmem:[%s7 + $0x1cc] sm:$0xf]
    %v2368 = vld [vmem:[%s7 + $0x1d0] sm:$0xf]
    %v2369 = vld [vmem:[%s7 + $0x1d4] sm:$0xf]
    %v2370 = vld [vmem:[%s7 + $0x1d8] sm:$0xf]
    %v2371 = vld [vmem:[%s7 + $0x1dc] sm:$0xf]
    %v2372 = vld [vmem:[%s7 + $0x1e0] sm:$0xf]
    %v2373 = vld [vmem:[%s7 + $0x1e4] sm:$0xf]
    %v2374 = vld [vmem:[%s7 + $0x1e8] sm:$0xf]
    %v2375 = vld [vmem:[%s7 + $0x1ec] sm:$0xf]
    %v2376 = vld [vmem:[%s7 + $0x1f0] sm:$0xf]
    %v2377 = vld [vmem:[%s7 + $0x1f4] sm:$0xf]
    %v2378 = vld [vmem:[%s7 + $0x1f8] sm:$0xf]
    %v2379 = vld [vmem:[%s7 + $0x1fc] sm:$0xf]
    %v2380 = vld [vmem:[%s8] sm:$0x1]
    %v2382 = vlaneseq
    %v2383 = vshrl.u32 %v2382, 7
    %v2384 = vsub.s32 0, %v2383
    %v2385 = vrot.slane %v2380, %v2384
    %v2515 = vunpack.c.l.b16 %v2252
    %v2516 = vunpack.c.l.b16 %v2253
    %v2517 = vunpack.c.l.b16 %v2254
    %v2518 = vunpack.c.l.b16 %v2255
    %v2519 = vunpack.c.l.b16 %v2256
    %v2520 = vunpack.c.l.b16 %v2257
    %v2521 = vunpack.c.l.b16 %v2258
    %v2522 = vunpack.c.l.b16 %v2259
    %v2523 = vunpack.c.l.b16 %v2260
    %v2524 = vunpack.c.l.b16 %v2261
    %v2525 = vunpack.c.l.b16 %v2262
    %v2526 = vunpack.c.l.b16 %v2263
    %v2527 = vunpack.c.l.b16 %v2264
    %v2528 = vunpack.c.l.b16 %v2265
    %v2529 = vunpack.c.l.b16 %v2266
    %v2530 = vunpack.c.l.b16 %v2267
    %v2531 = vunpack.c.l.b16 %v2268
    %v2532 = vunpack.c.l.b16 %v2269
    %v2533 = vunpack.c.l.b16 %v2270
    %v2534 = vunpack.c.l.b16 %v2271
    %v2535 = vunpack.c.l.b16 %v2272
    %v2536 = vunpack.c.l.b16 %v2273
    %v2537 = vunpack.c.l.b16 %v2274
    %v2538 = vunpack.c.l.b16 %v2275
    %v2539 = vunpack.c.l.b16 %v2276
    %v2540 = vunpack.c.l.b16 %v2277
    %v2541 = vunpack.c.l.b16 %v2278
    %v2542 = vunpack.c.l.b16 %v2279
    %v2543 = vunpack.c.l.b16 %v2280
    %v2544 = vunpack.c.l.b16 %v2281
    %v2545 = vunpack.c.l.b16 %v2282
    %v2546 = vunpack.c.l.b16 %v2283
    %v2547 = vunpack.c.l.b16 %v2284
    %v2548 = vunpack.c.l.b16 %v2285
    %v2549 = vunpack.c.l.b16 %v2286
    %v2550 = vunpack.c.l.b16 %v2287
    %v2551 = vunpack.c.l.b16 %v2288
    %v2552 = vunpack.c.l.b16 %v2289
    %v2553 = vunpack.c.l.b16 %v2290
    %v2554 = vunpack.c.l.b16 %v2291
    %v2555 = vunpack.c.l.b16 %v2292
    %v2556 = vunpack.c.l.b16 %v2293
    %v2557 = vunpack.c.l.b16 %v2294
    %v2558 = vunpack.c.l.b16 %v2295
    %v2559 = vunpack.c.l.b16 %v2296
    %v2560 = vunpack.c.l.b16 %v2297
    %v2561 = vunpack.c.l.b16 %v2298
    %v2562 = vunpack.c.l.b16 %v2299
    %v2563 = vunpack.c.l.b16 %v2300
    %v2564 = vunpack.c.l.b16 %v2301
    %v2565 = vunpack.c.l.b16 %v2302
    %v2566 = vunpack.c.l.b16 %v2303
    %v2567 = vunpack.c.l.b16 %v2304
    %v2568 = vunpack.c.l.b16 %v2305
    %v2569 = vunpack.c.l.b16 %v2306
    %v2570 = vunpack.c.l.b16 %v2307
    %v2571 = vunpack.c.l.b16 %v2308
    %v2572 = vunpack.c.l.b16 %v2309
    %v2573 = vunpack.c.l.b16 %v2310
    %v2574 = vunpack.c.l.b16 %v2311
    %v2575 = vunpack.c.l.b16 %v2312
    %v2576 = vunpack.c.l.b16 %v2313
    %v2577 = vunpack.c.l.b16 %v2314
    %v2578 = vunpack.c.l.b16 %v2315
    %v2579 = vunpack.c.l.b16 %v2316
    %v2580 = vunpack.c.l.b16 %v2317
    %v2581 = vunpack.c.l.b16 %v2318
    %v2582 = vunpack.c.l.b16 %v2319
    %v2583 = vunpack.c.l.b16 %v2320
    %v2584 = vunpack.c.l.b16 %v2321
    %v2585 = vunpack.c.l.b16 %v2322
    %v2586 = vunpack.c.l.b16 %v2323
    %v2587 = vunpack.c.l.b16 %v2324
    %v2588 = vunpack.c.l.b16 %v2325
    %v2589 = vunpack.c.l.b16 %v2326
    %v2590 = vunpack.c.l.b16 %v2327
    %v2591 = vunpack.c.l.b16 %v2328
    %v2592 = vunpack.c.l.b16 %v2329
    %v2593 = vunpack.c.l.b16 %v2330
    %v2594 = vunpack.c.l.b16 %v2331
    %v2595 = vunpack.c.l.b16 %v2332
    %v2596 = vunpack.c.l.b16 %v2333
    %v2597 = vunpack.c.l.b16 %v2334
    %v2598 = vunpack.c.l.b16 %v2335
    %v2599 = vunpack.c.l.b16 %v2336
    %v2600 = vunpack.c.l.b16 %v2337
    %v2601 = vunpack.c.l.b16 %v2338
    %v2602 = vunpack.c.l.b16 %v2339
    %v2603 = vunpack.c.l.b16 %v2340
    %v2604 = vunpack.c.l.b16 %v2341
    %v2605 = vunpack.c.l.b16 %v2342
    %v2606 = vunpack.c.l.b16 %v2343
    %v2607 = vunpack.c.l.b16 %v2344
    %v2608 = vunpack.c.l.b16 %v2345
    %v2609 = vunpack.c.l.b16 %v2346
    %v2610 = vunpack.c.l.b16 %v2347
    %v2611 = vunpack.c.l.b16 %v2348
    %v2612 = vunpack.c.l.b16 %v2349
    %v2613 = vunpack.c.l.b16 %v2350
    %v2614 = vunpack.c.l.b16 %v2351
    %v2615 = vunpack.c.l.b16 %v2352
    %v2616 = vunpack.c.l.b16 %v2353
    %v2617 = vunpack.c.l.b16 %v2354
    %v2618 = vunpack.c.l.b16 %v2355
    %v2619 = vunpack.c.l.b16 %v2356
    %v2620 = vunpack.c.l.b16 %v2357
    %v2621 = vunpack.c.l.b16 %v2358
    %v2622 = vunpack.c.l.b16 %v2359
    %v2623 = vunpack.c.l.b16 %v2360
    %v2624 = vunpack.c.l.b16 %v2361
    %v2625 = vunpack.c.l.b16 %v2362
    %v2626 = vunpack.c.l.b16 %v2363
    %v2627 = vunpack.c.l.b16 %v2364
    %v2628 = vunpack.c.l.b16 %v2365
    %v2629 = vunpack.c.l.b16 %v2366
    %v2630 = vunpack.c.l.b16 %v2367
    %v2631 = vunpack.c.l.b16 %v2368
    %v2632 = vunpack.c.l.b16 %v2369
    %v2633 = vunpack.c.l.b16 %v2370
    %v2634 = vunpack.c.l.b16 %v2371
    %v2635 = vunpack.c.l.b16 %v2372
    %v2636 = vunpack.c.l.b16 %v2373
    %v2637 = vunpack.c.l.b16 %v2374
    %v2638 = vunpack.c.l.b16 %v2375
    %v2639 = vunpack.c.l.b16 %v2376
    %v2640 = vunpack.c.l.b16 %v2377
    %v2641 = vunpack.c.l.b16 %v2378
    %v2642 = vunpack.c.l.b16 %v2379
    %v2643 = vpack.c.b16 %v2516, %v2515
    %v2644 = vpack.c.b16 %v2518, %v2517
    %v2645 = vpack.c.b16 %v2520, %v2519
    %v2646 = vpack.c.b16 %v2522, %v2521
    %v2647 = vpack.c.b16 %v2524, %v2523
    %v2648 = vpack.c.b16 %v2526, %v2525
    %v2649 = vpack.c.b16 %v2528, %v2527
    %v2650 = vpack.c.b16 %v2530, %v2529
    %v2651 = vpack.c.b16 %v2532, %v2531
    %v2652 = vpack.c.b16 %v2534, %v2533
    %v2653 = vpack.c.b16 %v2536, %v2535
    %v2654 = vpack.c.b16 %v2538, %v2537
    %v2655 = vpack.c.b16 %v2540, %v2539
    %v2656 = vpack.c.b16 %v2542, %v2541
    %v2657 = vpack.c.b16 %v2544, %v2543
    %v2658 = vpack.c.b16 %v2546, %v2545
    %v2659 = vpack.c.b16 %v2548, %v2547
    %v2660 = vpack.c.b16 %v2550, %v2549
    %v2661 = vpack.c.b16 %v2552, %v2551
    %v2662 = vpack.c.b16 %v2554, %v2553
    %v2663 = vpack.c.b16 %v2556, %v2555
    %v2664 = vpack.c.b16 %v2558, %v2557
    %v2665 = vpack.c.b16 %v2560, %v2559
    %v2666 = vpack.c.b16 %v2562, %v2561
    %v2667 = vpack.c.b16 %v2564, %v2563
    %v2668 = vpack.c.b16 %v2566, %v2565
    %v2669 = vpack.c.b16 %v2568, %v2567
    %v2670 = vpack.c.b16 %v2570, %v2569
    %v2671 = vpack.c.b16 %v2572, %v2571
    %v2672 = vpack.c.b16 %v2574, %v2573
    %v2673 = vpack.c.b16 %v2576, %v2575
    %v2674 = vpack.c.b16 %v2578, %v2577
    %v2675 = vpack.c.b16 %v2580, %v2579
    %v2676 = vpack.c.b16 %v2582, %v2581
    %v2677 = vpack.c.b16 %v2584, %v2583
    %v2678 = vpack.c.b16 %v2586, %v2585
    %v2679 = vpack.c.b16 %v2588, %v2587
    %v2680 = vpack.c.b16 %v2590, %v2589
    %v2681 = vpack.c.b16 %v2592, %v2591
    %v2682 = vpack.c.b16 %v2594, %v2593
    %v2683 = vpack.c.b16 %v2596, %v2595
    %v2684 = vpack.c.b16 %v2598, %v2597
    %v2685 = vpack.c.b16 %v2600, %v2599
    %v2686 = vpack.c.b16 %v2602, %v2601
    %v2687 = vpack.c.b16 %v2604, %v2603
    %v2688 = vpack.c.b16 %v2606, %v2605
    %v2689 = vpack.c.b16 %v2608, %v2607
    %v2690 = vpack.c.b16 %v2610, %v2609
    %v2691 = vpack.c.b16 %v2612, %v2611
    %v2692 = vpack.c.b16 %v2614, %v2613
    %v2693 = vpack.c.b16 %v2616, %v2615
    %v2694 = vpack.c.b16 %v2618, %v2617
    %v2695 = vpack.c.b16 %v2620, %v2619
    %v2696 = vpack.c.b16 %v2622, %v2621
    %v2697 = vpack.c.b16 %v2624, %v2623
    %v2698 = vpack.c.b16 %v2626, %v2625
    %v2699 = vpack.c.b16 %v2628, %v2627
    %v2700 = vpack.c.b16 %v2630, %v2629
    %v2701 = vpack.c.b16 %v2632, %v2631
    %v2702 = vpack.c.b16 %v2634, %v2633
    %v2703 = vpack.c.b16 %v2636, %v2635
    %v2704 = vpack.c.b16 %v2638, %v2637
    %v2705 = vpack.c.b16 %v2640, %v2639
    %v2706 = vpack.c.b16 %v2642, %v2641
    %2771 = vmatprep.subr.bf16.mxu0 0
    %2772 = vmatpush1.bf16.msra.mxu0 %v2650
    %2773 = vmatprep.subr.bf16.mxu0 0
    %2774 = vmatpush1.bf16.msra.mxu0 %v2649
    %2775 = vmatprep.subr.bf16.mxu0 0
    %2776 = vmatpush1.bf16.msra.mxu0 %v2648
    %2777 = vmatprep.subr.bf16.mxu0 0
    %2778 = vmatpush1.bf16.msra.mxu0 %v2647
    %2779 = vmatprep.subr.bf16.mxu0 0
    %2780 = vmatpush1.bf16.msra.mxu0 %v2646
    %2781 = vmatprep.subr.bf16.mxu0 0
    %2782 = vmatpush1.bf16.msra.mxu0 %v2645
    %2783 = vmatprep.subr.bf16.mxu0 0
    %2784 = vmatpush1.bf16.msra.mxu0 %v2644
    %2785 = vmatprep.subr.bf16.mxu0 0
    %2786 = vmatpush1.bf16.msra.mxu0 %v2643
    %2787 = vmatprep.subr.bf16.mxu0 0
    %2788 = vmatpush2.bf16.msra.mxu0 %v2658
    %2789 = vmatprep.subr.bf16.mxu0 0
    %2790 = vmatpush2.bf16.msra.mxu0 %v2657
    %2791 = vmatprep.subr.bf16.mxu0 0
    %2792 = vmatpush2.bf16.msra.mxu0 %v2656
    %2793 = vmatprep.subr.bf16.mxu0 0
    %2794 = vmatpush2.bf16.msra.mxu0 %v2655
    %2795 = vmatprep.subr.bf16.mxu0 0
    %2796 = vmatpush2.bf16.msra.mxu0 %v2654
    %2797 = vmatprep.subr.bf16.mxu0 0
    %2798 = vmatpush2.bf16.msra.mxu0 %v2653
    %2799 = vmatprep.subr.bf16.mxu0 0
    %2800 = vmatpush2.bf16.msra.mxu0 %v2652
    %2801 = vmatprep.subr.bf16.mxu0 0
    %2802 = vmatpush2.bf16.msra.mxu0 %v2651
    %2803 = vmatprep.mubr.bf16.mxu0 %v2245
    %2804 = vmatmul.mubr.bf16.gmra.mxu0 %v2244
    %v2805 = vpop.f32.mrf.mxu0
    %v2806 = vadd.f32 %v2385, %v2805
    %v2807 = vpop.f32.mrf.mxu0
    %v2808 = vpop.f32.mrf.mxu0
    %v2809 = vpop.f32.mrf.mxu0
    %2810 = vdwg.mxu0
    %2811 = vmatprep.subr.bf16.mxu0 0
    %2812 = vmatpush1.bf16.msra.mxu0 %v2666
    %2813 = vmatprep.subr.bf16.mxu0 0
    %2814 = vmatpush1.bf16.msra.mxu0 %v2665
    %2815 = vmatprep.subr.bf16.mxu0 0
    %2816 = vmatpush1.bf16.msra.mxu0 %v2664
    %2817 = vmatprep.subr.bf16.mxu0 0
    %2818 = vmatpush1.bf16.msra.mxu0 %v2663
    %2819 = vmatprep.subr.bf16.mxu0 0
    %2820 = vmatpush1.bf16.msra.mxu0 %v2662
    %2821 = vmatprep.subr.bf16.mxu0 0
    %2822 = vmatpush1.bf16.msra.mxu0 %v2661
    %2823 = vmatprep.subr.bf16.mxu0 0
    %2824 = vmatpush1.bf16.msra.mxu0 %v2660
    %2825 = vmatprep.subr.bf16.mxu0 0
    %2826 = vmatpush1.bf16.msra.mxu0 %v2659
    %2827 = vmatprep.subr.bf16.mxu0 0
    %2828 = vmatpush2.bf16.msra.mxu0 %v2674
    %2829 = vmatprep.subr.bf16.mxu0 0
    %2830 = vmatpush2.bf16.msra.mxu0 %v2673
    %2831 = vmatprep.subr.bf16.mxu0 0
    %2832 = vmatpush2.bf16.msra.mxu0 %v2672
    %2833 = vmatprep.subr.bf16.mxu0 0
    %2834 = vmatpush2.bf16.msra.mxu0 %v2671
    %2835 = vmatprep.subr.bf16.mxu0 0
    %2836 = vmatpush2.bf16.msra.mxu0 %v2670
    %2837 = vmatprep.subr.bf16.mxu0 0
    %2838 = vmatpush2.bf16.msra.mxu0 %v2669
    %2839 = vmatprep.subr.bf16.mxu0 0
    %2840 = vmatpush2.bf16.msra.mxu0 %v2668
    %2841 = vmatprep.subr.bf16.mxu0 0
    %2842 = vmatpush2.bf16.msra.mxu0 %v2667
    %2843 = vmatprep.mubr.bf16.mxu0 %v2247
    %2844 = vmatmul.mubr.bf16.gmra.mxu0 %v2246
    %v2845 = vpop.f32.mrf.mxu0
    %v2846 = vadd.f32 %v2806, %v2845
    %v2847 = vpop.f32.mrf.mxu0
    %v2848 = vpop.f32.mrf.mxu0
    %v2849 = vpop.f32.mrf.mxu0
    %2850 = vdwg.mxu0
    %2851 = vmatprep.subr.bf16.mxu0 0
    %2852 = vmatpush1.bf16.msra.mxu0 %v2682
    %2853 = vmatprep.subr.bf16.mxu0 0
    %2854 = vmatpush1.bf16.msra.mxu0 %v2681
    %2855 = vmatprep.subr.bf16.mxu0 0
    %2856 = vmatpush1.bf16.msra.mxu0 %v2680
    %2857 = vmatprep.subr.bf16.mxu0 0
    %2858 = vmatpush1.bf16.msra.mxu0 %v2679
    %2859 = vmatprep.subr.bf16.mxu0 0
    %2860 = vmatpush1.bf16.msra.mxu0 %v2678
    %2861 = vmatprep.subr.bf16.mxu0 0
    %2862 = vmatpush1.bf16.msra.mxu0 %v2677
    %2863 = vmatprep.subr.bf16.mxu0 0
    %2864 = vmatpush1.bf16.msra.mxu0 %v2676
    %2865 = vmatprep.subr.bf16.mxu0 0
    %2866 = vmatpush1.bf16.msra.mxu0 %v2675
    %2867 = vmatprep.subr.bf16.mxu0 0
    %2868 = vmatpush2.bf16.msra.mxu0 %v2690
    %2869 = vmatprep.subr.bf16.mxu0 0
    %2870 = vmatpush2.bf16.msra.mxu0 %v2689
    %2871 = vmatprep.subr.bf16.mxu0 0
    %2872 = vmatpush2.bf16.msra.mxu0 %v2688
    %2873 = vmatprep.subr.bf16.mxu0 0
    %2874 = vmatpush2.bf16.msra.mxu0 %v2687
    %2875 = vmatprep.subr.bf16.mxu0 0
    %2876 = vmatpush2.bf16.msra.mxu0 %v2686
    %2877 = vmatprep.subr.bf16.mxu0 0
    %2878 = vmatpush2.bf16.msra.mxu0 %v2685
    %2879 = vmatprep.subr.bf16.mxu0 0
    %2880 = vmatpush2.bf16.msra.mxu0 %v2684
    %2881 = vmatprep.subr.bf16.mxu0 0
    %2882 = vmatpush2.bf16.msra.mxu0 %v2683
    %2883 = vmatprep.mubr.bf16.mxu0 %v2249
    %2884 = vmatmul.mubr.bf16.gmra.mxu0 %v2248
    %v2885 = vpop.f32.mrf.mxu0
    %v2886 = vadd.f32 %v2846, %v2885
    %v2887 = vpop.f32.mrf.mxu0
    %v2888 = vpop.f32.mrf.mxu0
    %v2889 = vpop.f32.mrf.mxu0
    %2890 = vdwg.mxu0
    %2891 = vmatprep.subr.bf16.mxu0 0
    %2892 = vmatpush1.bf16.msra.mxu0 %v2698
    %2893 = vmatprep.subr.bf16.mxu0 0
    %2894 = vmatpush1.bf16.msra.mxu0 %v2697
    %2895 = vmatprep.subr.bf16.mxu0 0
    %2896 = vmatpush1.bf16.msra.mxu0 %v2696
    %2897 = vmatprep.subr.bf16.mxu0 0
    %2898 = vmatpush1.bf16.msra.mxu0 %v2695
    %2899 = vmatprep.subr.bf16.mxu0 0
    %2900 = vmatpush1.bf16.msra.mxu0 %v2694
    %2901 = vmatprep.subr.bf16.mxu0 0
    %2902 = vmatpush1.bf16.msra.mxu0 %v2693
    %2903 = vmatprep.subr.bf16.mxu0 0
    %2904 = vmatpush1.bf16.msra.mxu0 %v2692
    %2905 = vmatprep.subr.bf16.mxu0 0
    %2906 = vmatpush1.bf16.msra.mxu0 %v2691
    %2907 = vmatprep.subr.bf16.mxu0 0
    %2908 = vmatpush2.bf16.msra.mxu0 %v2706
    %2909 = vmatprep.subr.bf16.mxu0 0
    %2910 = vmatpush2.bf16.msra.mxu0 %v2705
    %2911 = vmatprep.subr.bf16.mxu0 0
    %2912 = vmatpush2.bf16.msra.mxu0 %v2704
    %2913 = vmatprep.subr.bf16.mxu0 0
    %2914 = vmatpush2.bf16.msra.mxu0 %v2703
    %2915 = vmatprep.subr.bf16.mxu0 0
    %2916 = vmatpush2.bf16.msra.mxu0 %v2702
    %2917 = vmatprep.subr.bf16.mxu0 0
    %2918 = vmatpush2.bf16.msra.mxu0 %v2701
    %2919 = vmatprep.subr.bf16.mxu0 0
    %2920 = vmatpush2.bf16.msra.mxu0 %v2700
    %2921 = vmatprep.subr.bf16.mxu0 0
    %2922 = vmatpush2.bf16.msra.mxu0 %v2699
    %2923 = vmatprep.mubr.bf16.mxu0 %v2251
    %2924 = vmatmul.mubr.bf16.gmra.mxu0 %v2250
    %v2925 = vpop.f32.mrf.mxu0
    %v2926 = vadd.f32 %v2886, %v2925
    %v2927 = vpop.f32.mrf.mxu0
    %v2928 = vpop.f32.mrf.mxu0
    %v2929 = vpop.f32.mrf.mxu0
    %2930 = vdwg.mxu0
    %v2931 = vmax.f32 %v2926, 0.0
    %2932 = vst [vmem:[#allocation5] sm:$0xff] %v2931
    // Predicated region
    $region42: #{entity_context_encoder_forward.2} parent=1 // pred_check
      _
    $region43: #{entity_context_encoder_forward.2} parent=1 // pred_check_branch
      %2934 = sbr.rel (0) target = $region45
    $region44: #{entity_context_encoder_forward.2} parent=1 // pred_region
      %s2936 = ssub.s32 128, 128
      %2937 = vsyncadd [#allocation4], %s2936
      %s2939 = sshll.u32 [#allocation5], 4
      %s2940 = int_to_ptr.vmem [resolvable:$true] %s2939
      %2942 = dma.vmem_to_hbm [thread:$0]  %s2940, 128, %s9, [#allocation4]
    $region45: #{entity_context_encoder_forward.2} parent=1 // pred_fallthru
      _
    // Predicated region
    $region46: #{entity_context_encoder_forward.2} parent=1 // pred_check
      _
    $region47: #{entity_context_encoder_forward.2} parent=1 // pred_check_branch
      %2944 = sbr.rel (0) target = $region49
    $region48: #{entity_context_encoder_forward.2} parent=1 // pred_region
      %2945 = dma.done [#allocation4], 128
    $region49: #{entity_context_encoder_forward.2} parent=1 // pred_fallthru
      _
    %2946 = vsyncpa [#allocation3], 1
    %2947 = vsyncpa [#allocation4], 1

</llo_original>
